<compile_context>
chip_gen: v7x
topology: tpu7x:2x2x1
jax: 0.10.0
libtpu: 0.0.40
codegen_flags: <defaults>
</compile_context>

<pallas_src>
import functools

import jax
import jax.numpy as jnp
from jax import lax
from jax.experimental import pallas as pl
from jax.experimental.pallas import tpu as pltpu

EPS = 1e-5
C = 64  # decoder channel width (fixed by the module)

# ConvTranspose2d(64,64,4,stride=2,pad=1) tap table:
#   out[2m+py, 2n+px] = sum_taps  P[m+dy, n+dx] @ W[ky, kx],  P = input padded by 1.
_TAPS = {
    (0, 0): [(1, 1, 1, 1), (1, 0, 1, 3), (0, 1, 3, 1), (0, 0, 3, 3)],
    (0, 1): [(1, 2, 1, 0), (1, 1, 1, 2), (0, 2, 3, 0), (0, 1, 3, 2)],
    (1, 0): [(2, 1, 0, 1), (2, 0, 0, 3), (1, 1, 2, 1), (1, 0, 2, 3)],
    (1, 1): [(2, 2, 0, 0), (2, 1, 0, 2), (1, 2, 2, 0), (1, 1, 2, 2)],
}

# Distinct (source-phase parity, spatial offset) pairs needed by the 3x3 conv
# when expressed on the deconv phase maps (same list for rows and columns).
_SRC = ((0, 0), (1, -1), (1, 0), (0, 1))


# ----------------------------- in-kernel helpers -----------------------------
def _fold4(v):
    """(1, 4C) -> (1, C): sum the 4 phase copies of every channel."""
    return v[:, 0:C] + v[:, C:2 * C] + v[:, 2 * C:3 * C] + v[:, 3 * C:4 * C]


def _rep4_row(v):
    """(1, C) -> (1, 4C): repeat per-channel row for the 4 packed phases."""
    return jnp.concatenate([v, v, v, v], axis=1)


def _inorm_relu(y, gamma4, beta4, inv_n):
    """InstanceNorm(affine)+ReLU on a phase-packed (HW, 4C) f32 activation."""
    mu4 = _rep4_row(_fold4(jnp.sum(y, axis=0, keepdims=True)) * inv_n)
    yc = y - mu4
    var = _fold4(jnp.sum(yc * yc, axis=0, keepdims=True)) * inv_n
    inv_std4 = _rep4_row(lax.rsqrt(var + EPS))
    return jnp.maximum(yc * inv_std4 * gamma4 + beta4, 0.0)


# --------------------------------- the kernel --------------------------------
def _decoder_kernel(x_ref, wd_ref, bt_ref, g4_ref, b4_ref,
                    wc_ref, b2_ref, g5_ref, b5_ref, w1_ref, b1_ref,
                    out_ref, padx_ref, pady_ref, *, H, W, CO):
    HW = H * W
    C4 = 4 * C
    bf16 = jnp.bfloat16

    # Refresh only the 1-px zero halo of the padded scratches; the interiors
    # are fully rewritten below (safe under "parallel" batch scheduling).
    padx_ref[0:1, :, :] = jnp.zeros((1, W + 2, C), bf16)
    padx_ref[H + 1:H + 2, :, :] = jnp.zeros((1, W + 2, C), bf16)
    padx_ref[:, 0:1, :] = jnp.zeros((H + 2, 1, C), bf16)
    padx_ref[:, W + 1:W + 2, :] = jnp.zeros((H + 2, 1, C), bf16)
    pady_ref[0:1, :, :] = jnp.zeros((1, W + 2, C4), bf16)
    pady_ref[H + 1:H + 2, :, :] = jnp.zeros((1, W + 2, C4), bf16)
    pady_ref[:, 0:1, :] = jnp.zeros((H + 2, 1, C4), bf16)
    pady_ref[:, W + 1:W + 2, :] = jnp.zeros((H + 2, 1, C4), bf16)

    # ---- ConvTranspose2d(64,64,4,2,1): one K-stacked matmul -> all 4 phases ----
    padx_ref[1:H + 1, 1:W + 1, :] = x_ref[0]
    slab = jnp.concatenate(
        [padx_ref[dy:dy + H, dx:dx + W, :].reshape(HW, C)
         for dy in range(3) for dx in range(3)], axis=1)            # (HW, 9C) bf16
    y = jnp.dot(slab, wd_ref[...], preferred_element_type=jnp.float32)
    y = y + bt_ref[...]                                             # (HW, 4C) f32

    # ---- InstanceNorm4 + ReLU (stats pooled over the 4 phases) ----
    inv_n = 1.0 / (4.0 * HW)
    yn = _inorm_relu(y, g4_ref[...], b4_ref[...], inv_n)

    # ---- 3x3 "same" conv on the 2Hx2W map, in phase space ----
    pady_ref[1:H + 1, 1:W + 1, :] = yn.astype(bf16).reshape(H, W, C4)
    pieces = []
    for (pr, ry) in _SRC:
        for (pc, rx) in _SRC:
            p = 2 * pr + pc
            pieces.append(
                pady_ref[1 + ry:1 + ry + H, 1 + rx:1 + rx + W,
                         p * C:(p + 1) * C].reshape(HW, C))
    slab2 = jnp.concatenate(pieces, axis=1)                         # (HW, 16C) bf16
    z = jnp.dot(slab2, wc_ref[...], preferred_element_type=jnp.float32)
    z = z + b2_ref[...]                                             # (HW, 4C) f32

    # ---- InstanceNorm5 + ReLU ----
    zn = _inorm_relu(z, g5_ref[...], b5_ref[...], inv_n)

    # ---- 1x1 conv, channel-major (lane-dense (CO, HW) stores) ----
    for qy in range(2):
        for qx in range(2):
            q = 2 * qy + qx
            zq = zn[:, q * C:(q + 1) * C]                           # (HW, C) f32
            o = jnp.dot(w1_ref[...], zq.T,
                        preferred_element_type=jnp.float32) + b1_ref[...]
            out_ref[0, qy, qx] = o[:CO, :]                          # (CO, HW)


# ---------------------------- trace-time weight prep ----------------------------
def _build_deconv_weight(wt):
    """wt: (Cin=64, Cout=64, 4, 4) ConvTranspose2d weight -> (9C, 4C) bf16."""
    wt_k = jnp.transpose(wt, (2, 3, 0, 1))                 # (4,4,Cin,Cout)
    wd = jnp.zeros((9 * C, 4 * C), jnp.float32)
    for (py, px), taps in _TAPS.items():
        q = 2 * py + px
        for dy, dx, ky, kx in taps:
            k = 3 * dy + dx
            wd = wd.at[k * C:(k + 1) * C, q * C:(q + 1) * C].set(wt_k[ky, kx])
    return wd.astype(jnp.bfloat16)


def _build_conv_weight(w2):
    """w2: (Cout=64, Cin=64, 3, 3) Conv2d weight -> (16C, 4C) bf16 (phase space)."""
    w2_k = jnp.transpose(w2, (2, 3, 1, 0))                 # (3,3,Cin,Cout)
    wc = jnp.zeros((16 * C, 4 * C), jnp.float32)
    for qy in range(2):
        for qx in range(2):
            q = 2 * qy + qx
            for u in range(3):
                a = qy + u - 1
                i = _SRC.index((a % 2, a // 2))
                for v in range(3):
                    b = qx + v - 1
                    j = _SRC.index((b % 2, b // 2))
                    k = 4 * i + j
                    wc = wc.at[k * C:(k + 1) * C, q * C:(q + 1) * C].set(w2_k[u, v])
    return wc.astype(jnp.bfloat16)


# ----------------------------------- wrapper -----------------------------------
def decoder_forward(x_nchw, params):
    (wt, bt, g4, b4, w2, b2, g5, b5, w1, b1) = params
    N, Cin, H, W = x_nchw.shape
    assert Cin == C
    CO = w1.shape[0]
    COp = ((CO + 7) // 8) * 8          # sublane-pad the 1x1 weight rows
    HW = H * W

    x = jnp.transpose(x_nchw, (0, 2, 3, 1)).astype(jnp.bfloat16)   # NHWC, bf16

    wd = _build_deconv_weight(wt)                                   # (576, 256)
    wc = _build_conv_weight(w2)                                     # (1024, 256)
    rep4 = lambda v: jnp.tile(v.astype(jnp.float32), 4).reshape(1, 4 * C)
    w1m = jnp.zeros((COp, C), jnp.float32).at[:CO].set(
        w1[:, :, 0, 0].astype(jnp.float32))
    b1c = jnp.zeros((COp, 1), jnp.float32).at[:CO, 0].set(b1.astype(jnp.float32))

    ph = pl.pallas_call(
        functools.partial(_decoder_kernel, H=H, W=W, CO=CO),
        out_shape=jax.ShapeDtypeStruct((N, 2, 2, CO, HW), jnp.float32),
        grid_spec=pltpu.PrefetchScalarGridSpec(
            num_scalar_prefetch=0,
            grid=(N,),
            in_specs=[
                pl.BlockSpec((1, H, W, C), lambda n: (n, 0, 0, 0)),
                pl.BlockSpec((9 * C, 4 * C), lambda n: (0, 0)),
                pl.BlockSpec((1, 4 * C), lambda n: (0, 0)),
                pl.BlockSpec((1, 4 * C), lambda n: (0, 0)),
                pl.BlockSpec((1, 4 * C), lambda n: (0, 0)),
                pl.BlockSpec((16 * C, 4 * C), lambda n: (0, 0)),
                pl.BlockSpec((1, 4 * C), lambda n: (0, 0)),
                pl.BlockSpec((1, 4 * C), lambda n: (0, 0)),
                pl.BlockSpec((1, 4 * C), lambda n: (0, 0)),
                pl.BlockSpec((COp, C), lambda n: (0, 0)),
                pl.BlockSpec((COp, 1), lambda n: (0, 0)),
            ],
            out_specs=pl.BlockSpec((1, 2, 2, CO, HW),
                                   lambda n: (n, 0, 0, 0, 0)),
            scratch_shapes=[
                pltpu.VMEM((H + 2, W + 2, C), jnp.bfloat16),
                pltpu.VMEM((H + 2, W + 2, 4 * C), jnp.bfloat16),
            ],
        ),
        compiler_params=pltpu.CompilerParams(
            dimension_semantics=("parallel",)),
    )(x, wd, rep4(bt), rep4(g4), rep4(b4),
      wc, rep4(b2), rep4(g5), rep4(b5), w1m, b1c)

    # tiny CO-channel phase interleave: (N,qy,qx,CO,H,W) -> (N,CO,2H,2W)
    ph = ph.reshape(N, 2, 2, CO, H, W)
    return jnp.transpose(ph, (0, 3, 4, 1, 5, 2)).reshape(N, CO, 2 * H, 2 * W)


# ------------------------- deterministic parameter init -------------------------
def init_params(key, channal_out=3):
    ks = jax.random.split(key, 10)
    wt = 0.1 * jax.random.normal(ks[0], (64, 64, 4, 4), jnp.float32)   # ConvT (Cin,Cout,kH,kW)
    bt = 0.1 * jax.random.normal(ks[1], (64,), jnp.float32)
    g4 = 1.0 + 0.1 * jax.random.normal(ks[2], (64,), jnp.float32)
    b4 = 0.1 * jax.random.normal(ks[3], (64,), jnp.float32)
    w2 = 0.1 * jax.random.normal(ks[4], (64, 64, 3, 3), jnp.float32)   # Conv (Cout,Cin,kH,kW)
    b2 = 0.1 * jax.random.normal(ks[5], (64,), jnp.float32)
    g5 = 1.0 + 0.1 * jax.random.normal(ks[6], (64,), jnp.float32)
    b5 = 0.1 * jax.random.normal(ks[7], (64,), jnp.float32)
    w1 = 0.1 * jax.random.normal(ks[8], (channal_out, 64, 1, 1), jnp.float32)
    b1 = 0.1 * jax.random.normal(ks[9], (channal_out,), jnp.float32)
    return (wt, bt, g4, b4, w2, b2, g5, b5, w1, b1)


# ------------------------- pure-JAX reference (for checking) -------------------------
def _instance_norm(y, g, b):
    mu = jnp.mean(y, axis=(2, 3), keepdims=True)
    var = jnp.mean((y - mu) ** 2, axis=(2, 3), keepdims=True)
    return (y - mu) * lax.rsqrt(var + EPS) * g[None, :, None, None] + b[None, :, None, None]


def decoder_reference(x, params):
    (wt, bt, g4, b4, w2, b2, g5, b5, w1, b1) = params
    dn = ('NCHW', 'OIHW', 'NCHW')
    w_conv = jnp.transpose(jnp.flip(wt, axis=(2, 3)), (1, 0, 2, 3))
    y = lax.conv_general_dilated(x, w_conv, (1, 1), [(2, 2), (2, 2)],
                                 lhs_dilation=(2, 2), dimension_numbers=dn)
    y = y + bt[None, :, None, None]
    y = jax.nn.relu(_instance_norm(y, g4, b4))
    y = lax.conv_general_dilated(y, w2, (1, 1), [(1, 1), (1, 1)],
                                 dimension_numbers=dn) + b2[None, :, None, None]
    y = jax.nn.relu(_instance_norm(y, g5, b5))
    out = lax.conv_general_dilated(y, w1, (1, 1), [(0, 0), (0, 0)],
                                   dimension_numbers=dn) + b1[None, :, None, None]
    return out


if __name__ == "__main__":
    key = jax.random.PRNGKey(0)
    kx, kp = jax.random.split(key)

    N, Cin, H, W = 2, 64, 16, 16
    channal_out = 3
    x = jax.random.normal(kx, (N, Cin, H, W), jnp.float32)
    params = init_params(kp, channal_out)

    fwd = jax.jit(decoder_forward)
    out = jax.block_until_ready(fwd(x, params))
    assert out.shape == (N, channal_out, 2 * H, 2 * W), out.shape

    ref = jax.block_until_ready(decoder_reference(x, params))
    err = float(jnp.max(jnp.abs(out - ref)))
    scale = float(jnp.max(jnp.abs(ref))) + 1e-6
    # bf16 MXU operands with f32 accumulation: allow a few percent of max |ref|.
    if err > 0.05 * scale:
        raise AssertionError(f"kernel mismatch: max abs err {err} vs scale {scale}")

    print("KERNEL_OK")
</pallas_src>

<mosaic_0001>
module attributes {stable_mosaic.version = 11 : i64} {
  func.func @_decoder_kernel(%arg0: i32, %arg1: memref<1x16x16x64xbf16, #tpu.memory_space<vmem>>, %arg2: memref<576x256xbf16, #tpu.memory_space<vmem>>, %arg3: memref<1x256xf32, #tpu.memory_space<vmem>>, %arg4: memref<1x256xf32, #tpu.memory_space<vmem>>, %arg5: memref<1x256xf32, #tpu.memory_space<vmem>>, %arg6: memref<1024x256xbf16, #tpu.memory_space<vmem>>, %arg7: memref<1x256xf32, #tpu.memory_space<vmem>>, %arg8: memref<1x256xf32, #tpu.memory_space<vmem>>, %arg9: memref<1x256xf32, #tpu.memory_space<vmem>>, %arg10: memref<8x64xf32, #tpu.memory_space<vmem>>, %arg11: memref<8x1xf32, #tpu.memory_space<vmem>>, %arg12: memref<1x2x2x3x256xf32, #tpu.memory_space<vmem>>, %arg13: memref<18x18x64xbf16, #tpu.memory_space<vmem>>, %arg14: memref<18x18x256xbf16, #tpu.memory_space<vmem>>) attributes {dimension_semantics = [#tpu.dimension_semantics<parallel>], iteration_bounds = array<i64: 2>, scalar_prefetch = 0 : i64, scratch_operands = 2 : i64, tpu.core_type = #tpu.core_type<tc>, window_params = [{transform_indices = @transform_0, window_bounds = array<i64: 1, 16, 16, 64>}, {pipeline_mode = #tpu.pipeline_mode<synchronous>, transform_indices = @transform_1, window_bounds = array<i64: 576, 256>}, {pipeline_mode = #tpu.pipeline_mode<synchronous>, transform_indices = @transform_2, window_bounds = array<i64: 1, 256>}, {pipeline_mode = #tpu.pipeline_mode<synchronous>, transform_indices = @transform_3, window_bounds = array<i64: 1, 256>}, {pipeline_mode = #tpu.pipeline_mode<synchronous>, transform_indices = @transform_4, window_bounds = array<i64: 1, 256>}, {pipeline_mode = #tpu.pipeline_mode<synchronous>, transform_indices = @transform_5, window_bounds = array<i64: 1024, 256>}, {pipeline_mode = #tpu.pipeline_mode<synchronous>, transform_indices = @transform_6, window_bounds = array<i64: 1, 256>}, {pipeline_mode = #tpu.pipeline_mode<synchronous>, transform_indices = @transform_7, window_bounds = array<i64: 1, 256>}, {pipeline_mode = #tpu.pipeline_mode<synchronous>, transform_indices = @transform_8, window_bounds = array<i64: 1, 256>}, {pipeline_mode = #tpu.pipeline_mode<synchronous>, transform_indices = @transform_9, window_bounds = array<i64: 8, 64>}, {pipeline_mode = #tpu.pipeline_mode<synchronous>, transform_indices = @transform_10, window_bounds = array<i64: 8, 1>}, {transform_indices = @transform_11, window_bounds = array<i64: 1, 2, 2, 3, 256>}]} {
    %cst = arith.constant 0.000000e+00 : bf16
    %0 = vector.broadcast %cst : bf16 to vector<1x18x64xbf16>
    %c0 = arith.constant 0 : index
    %c0_0 = arith.constant 0 : index
    %c0_1 = arith.constant 0 : index
    %1 = vector.load %arg13[%c0, %c0_0, %c0_1] : memref<18x18x64xbf16, #tpu.memory_space<vmem>>, vector<1x18x64xbf16>
    tpu.vector_store %arg13[%c0, %c0_0, %c0_1], %0 {strides = array<i32>} : memref<18x18x64xbf16, #tpu.memory_space<vmem>>, vector<1x18x64xbf16>,
    %cst_2 = arith.constant 0.000000e+00 : bf16
    %2 = vector.broadcast %cst_2 : bf16 to vector<1x18x64xbf16>
    %c17 = arith.constant 17 : index
    %c0_3 = arith.constant 0 : index
    %c0_4 = arith.constant 0 : index
    %3 = vector.load %arg13[%c17, %c0_3, %c0_4] : memref<18x18x64xbf16, #tpu.memory_space<vmem>>, vector<1x18x64xbf16>
    tpu.vector_store %arg13[%c17, %c0_3, %c0_4], %2 {strides = array<i32>} : memref<18x18x64xbf16, #tpu.memory_space<vmem>>, vector<1x18x64xbf16>,
    %cst_5 = arith.constant 0.000000e+00 : bf16
    %4 = vector.broadcast %cst_5 : bf16 to vector<18x1x64xbf16>
    %c0_6 = arith.constant 0 : index
    %c0_7 = arith.constant 0 : index
    %c0_8 = arith.constant 0 : index
    %5 = vector.load %arg13[%c0_6, %c0_7, %c0_8] : memref<18x18x64xbf16, #tpu.memory_space<vmem>>, vector<18x1x64xbf16>
    tpu.vector_store %arg13[%c0_6, %c0_7, %c0_8], %4 {strides = array<i32>} : memref<18x18x64xbf16, #tpu.memory_space<vmem>>, vector<18x1x64xbf16>,
    %cst_9 = arith.constant 0.000000e+00 : bf16
    %6 = vector.broadcast %cst_9 : bf16 to vector<18x1x64xbf16>
    %c0_10 = arith.constant 0 : index
    %c17_11 = arith.constant 17 : index
    %c0_12 = arith.constant 0 : index
    %7 = vector.load %arg13[%c0_10, %c17_11, %c0_12] : memref<18x18x64xbf16, #tpu.memory_space<vmem>>, vector<18x1x64xbf16>
    tpu.vector_store %arg13[%c0_10, %c17_11, %c0_12], %6 {strides = array<i32>} : memref<18x18x64xbf16, #tpu.memory_space<vmem>>, vector<18x1x64xbf16>,
    %cst_13 = arith.constant 0.000000e+00 : bf16
    %8 = vector.broadcast %cst_13 : bf16 to vector<1x18x256xbf16>
    %c0_14 = arith.constant 0 : index
    %c0_15 = arith.constant 0 : index
    %c0_16 = arith.constant 0 : index
    %9 = vector.load %arg14[%c0_14, %c0_15, %c0_16] : memref<18x18x256xbf16, #tpu.memory_space<vmem>>, vector<1x18x256xbf16>
    tpu.vector_store %arg14[%c0_14, %c0_15, %c0_16], %8 {strides = array<i32>} : memref<18x18x256xbf16, #tpu.memory_space<vmem>>, vector<1x18x256xbf16>,
    %cst_17 = arith.constant 0.000000e+00 : bf16
    %10 = vector.broadcast %cst_17 : bf16 to vector<1x18x256xbf16>
    %c17_18 = arith.constant 17 : index
    %c0_19 = arith.constant 0 : index
    %c0_20 = arith.constant 0 : index
    %11 = vector.load %arg14[%c17_18, %c0_19, %c0_20] : memref<18x18x256xbf16, #tpu.memory_space<vmem>>, vector<1x18x256xbf16>
    tpu.vector_store %arg14[%c17_18, %c0_19, %c0_20], %10 {strides = array<i32>} : memref<18x18x256xbf16, #tpu.memory_space<vmem>>, vector<1x18x256xbf16>,
    %cst_21 = arith.constant 0.000000e+00 : bf16
    %12 = vector.broadcast %cst_21 : bf16 to vector<18x1x256xbf16>
    %c0_22 = arith.constant 0 : index
    %c0_23 = arith.constant 0 : index
    %c0_24 = arith.constant 0 : index
    %13 = vector.load %arg14[%c0_22, %c0_23, %c0_24] : memref<18x18x256xbf16, #tpu.memory_space<vmem>>, vector<18x1x256xbf16>
    tpu.vector_store %arg14[%c0_22, %c0_23, %c0_24], %12 {strides = array<i32>} : memref<18x18x256xbf16, #tpu.memory_space<vmem>>, vector<18x1x256xbf16>,
    %cst_25 = arith.constant 0.000000e+00 : bf16
    %14 = vector.broadcast %cst_25 : bf16 to vector<18x1x256xbf16>
    %c0_26 = arith.constant 0 : index
    %c17_27 = arith.constant 17 : index
    %c0_28 = arith.constant 0 : index
    %15 = vector.load %arg14[%c0_26, %c17_27, %c0_28] : memref<18x18x256xbf16, #tpu.memory_space<vmem>>, vector<18x1x256xbf16>
    tpu.vector_store %arg14[%c0_26, %c17_27, %c0_28], %14 {strides = array<i32>} : memref<18x18x256xbf16, #tpu.memory_space<vmem>>, vector<18x1x256xbf16>,
    %c0_29 = arith.constant 0 : index
    %c0_30 = arith.constant 0 : index
    %c0_31 = arith.constant 0 : index
    %c0_32 = arith.constant 0 : index
    %16 = vector.load %arg1[%c0_29, %c0_30, %c0_31, %c0_32] : memref<1x16x16x64xbf16, #tpu.memory_space<vmem>>, vector<1x16x16x64xbf16>
    %17 = vector.shape_cast %16 : vector<1x16x16x64xbf16> to vector<16x16x64xbf16>
    %c1 = arith.constant 1 : index
    %c1_33 = arith.constant 1 : index
    %c0_34 = arith.constant 0 : index
    %18 = vector.load %arg13[%c1, %c1_33, %c0_34] : memref<18x18x64xbf16, #tpu.memory_space<vmem>>, vector<16x16x64xbf16>
    tpu.vector_store %arg13[%c1, %c1_33, %c0_34], %17 {strides = array<i32>} : memref<18x18x64xbf16, #tpu.memory_space<vmem>>, vector<16x16x64xbf16>,
    %c0_35 = arith.constant 0 : index
    %c0_36 = arith.constant 0 : index
    %c0_37 = arith.constant 0 : index
    %19 = vector.load %arg13[%c0_35, %c0_36, %c0_37] : memref<18x18x64xbf16, #tpu.memory_space<vmem>>, vector<16x16x64xbf16>
    %20 = vector.shape_cast %19 : vector<16x16x64xbf16> to vector<256x64xbf16>
    %c0_38 = arith.constant 0 : index
    %c1_39 = arith.constant 1 : index
    %c0_40 = arith.constant 0 : index
    %21 = vector.load %arg13[%c0_38, %c1_39, %c0_40] : memref<18x18x64xbf16, #tpu.memory_space<vmem>>, vector<16x16x64xbf16>
    %22 = vector.shape_cast %21 : vector<16x16x64xbf16> to vector<256x64xbf16>
    %c0_41 = arith.constant 0 : index
    %c2 = arith.constant 2 : index
    %c0_42 = arith.constant 0 : index
    %23 = vector.load %arg13[%c0_41, %c2, %c0_42] : memref<18x18x64xbf16, #tpu.memory_space<vmem>>, vector<16x16x64xbf16>
    %24 = vector.shape_cast %23 : vector<16x16x64xbf16> to vector<256x64xbf16>
    %c1_43 = arith.constant 1 : index
    %c0_44 = arith.constant 0 : index
    %c0_45 = arith.constant 0 : index
    %25 = vector.load %arg13[%c1_43, %c0_44, %c0_45] : memref<18x18x64xbf16, #tpu.memory_space<vmem>>, vector<16x16x64xbf16>
    %26 = vector.shape_cast %25 : vector<16x16x64xbf16> to vector<256x64xbf16>
    %c1_46 = arith.constant 1 : index
    %c1_47 = arith.constant 1 : index
    %c0_48 = arith.constant 0 : index
    %27 = vector.load %arg13[%c1_46, %c1_47, %c0_48] : memref<18x18x64xbf16, #tpu.memory_space<vmem>>, vector<16x16x64xbf16>
    %28 = vector.shape_cast %27 : vector<16x16x64xbf16> to vector<256x64xbf16>
    %c1_49 = arith.constant 1 : index
    %c2_50 = arith.constant 2 : index
    %c0_51 = arith.constant 0 : index
    %29 = vector.load %arg13[%c1_49, %c2_50, %c0_51] : memref<18x18x64xbf16, #tpu.memory_space<vmem>>, vector<16x16x64xbf16>
    %30 = vector.shape_cast %29 : vector<16x16x64xbf16> to vector<256x64xbf16>
    %c2_52 = arith.constant 2 : index
    %c0_53 = arith.constant 0 : index
    %c0_54 = arith.constant 0 : index
    %31 = vector.load %arg13[%c2_52, %c0_53, %c0_54] : memref<18x18x64xbf16, #tpu.memory_space<vmem>>, vector<16x16x64xbf16>
    %32 = vector.shape_cast %31 : vector<16x16x64xbf16> to vector<256x64xbf16>
    %c2_55 = arith.constant 2 : index
    %c1_56 = arith.constant 1 : index
    %c0_57 = arith.constant 0 : index
    %33 = vector.load %arg13[%c2_55, %c1_56, %c0_57] : memref<18x18x64xbf16, #tpu.memory_space<vmem>>, vector<16x16x64xbf16>
    %34 = vector.shape_cast %33 : vector<16x16x64xbf16> to vector<256x64xbf16>
    %c2_58 = arith.constant 2 : index
    %c2_59 = arith.constant 2 : index
    %c0_60 = arith.constant 0 : index
    %35 = vector.load %arg13[%c2_58, %c2_59, %c0_60] : memref<18x18x64xbf16, #tpu.memory_space<vmem>>, vector<16x16x64xbf16>
    %36 = vector.shape_cast %35 : vector<16x16x64xbf16> to vector<256x64xbf16>
    %37 = tpu.concatenate %20, %22, %24, %26, %28, %30, %32, %34, %36 in 1 : vector<256x64xbf16>, vector<256x64xbf16>, vector<256x64xbf16>, vector<256x64xbf16>, vector<256x64xbf16>, vector<256x64xbf16>, vector<256x64xbf16>, vector<256x64xbf16>, vector<256x64xbf16> -> vector<256x576xbf16>
    %c0_61 = arith.constant 0 : index
    %c0_62 = arith.constant 0 : index
    %38 = vector.load %arg2[%c0_61, %c0_62] : memref<576x256xbf16, #tpu.memory_space<vmem>>, vector<576x256xbf16>
    %cst_63 = arith.constant dense<0.000000e+00> : vector<256x256xf32>
    %39 = tpu.matmul %37, %38, %cst_63 {dimension_numbers = #tpu.dot_dimension_numbers<[1], [0], [0], [1], [0, 0, 1, 1], [], []>} : vector<256x576xbf16>, vector<576x256xbf16>, vector<256x256xf32> -> vector<256x256xf32>
    %c0_64 = arith.constant 0 : index
    %c0_65 = arith.constant 0 : index
    %40 = vector.load %arg3[%c0_64, %c0_65] : memref<1x256xf32, #tpu.memory_space<vmem>>, vector<1x256xf32>
    %41 = vector.broadcast %40 : vector<1x256xf32> to vector<256x256xf32>
    %42 = arith.addf %39, %41 : vector<256x256xf32>
    %c0_66 = arith.constant 0 : index
    %c0_67 = arith.constant 0 : index
    %43 = vector.load %arg4[%c0_66, %c0_67] : memref<1x256xf32, #tpu.memory_space<vmem>>, vector<1x256xf32>
    %c0_68 = arith.constant 0 : index
    %c0_69 = arith.constant 0 : index
    %44 = vector.load %arg5[%c0_68, %c0_69] : memref<1x256xf32, #tpu.memory_space<vmem>>, vector<1x256xf32>
    %cst_70 = arith.constant dense<0.000000e+00> : vector<256xf32>
    %45 = vector.multi_reduction <add>, %42, %cst_70 [0] : vector<256x256xf32> to vector<256xf32>
    %46 = vector.shape_cast %45 : vector<256xf32> to vector<1x256xf32>
    %47 = vector.extract_strided_slice %46 {offsets = [0, 0], sizes = [1, 64], strides = [1, 1]} : vector<1x256xf32> to vector<1x64xf32>
    %48 = vector.extract_strided_slice %46 {offsets = [0, 64], sizes = [1, 64], strides = [1, 1]} : vector<1x256xf32> to vector<1x64xf32>
    %49 = arith.addf %47, %48 : vector<1x64xf32>
    %50 = vector.extract_strided_slice %46 {offsets = [0, 128], sizes = [1, 64], strides = [1, 1]} : vector<1x256xf32> to vector<1x64xf32>
    %51 = arith.addf %49, %50 : vector<1x64xf32>
    %52 = vector.extract_strided_slice %46 {offsets = [0, 192], sizes = [1, 64], strides = [1, 1]} : vector<1x256xf32> to vector<1x64xf32>
    %53 = arith.addf %51, %52 : vector<1x64xf32>
    %cst_71 = arith.constant 9.765625E-4 : f32
    %54 = vector.broadcast %cst_71 : f32 to vector<1x64xf32>
    %55 = arith.mulf %53, %54 : vector<1x64xf32>
    %56 = tpu.concatenate %55, %55, %55, %55 in 1 : vector<1x64xf32>, vector<1x64xf32>, vector<1x64xf32>, vector<1x64xf32> -> vector<1x256xf32>
    %57 = vector.broadcast %56 : vector<1x256xf32> to vector<256x256xf32>
    %58 = arith.subf %42, %57 : vector<256x256xf32>
    %59 = arith.mulf %58, %58 : vector<256x256xf32>
    %cst_72 = arith.constant dense<0.000000e+00> : vector<256xf32>
    %60 = vector.multi_reduction <add>, %59, %cst_72 [0] : vector<256x256xf32> to vector<256xf32>
    %61 = vector.shape_cast %60 : vector<256xf32> to vector<1x256xf32>
    %62 = vector.extract_strided_slice %61 {offsets = [0, 0], sizes = [1, 64], strides = [1, 1]} : vector<1x256xf32> to vector<1x64xf32>
    %63 = vector.extract_strided_slice %61 {offsets = [0, 64], sizes = [1, 64], strides = [1, 1]} : vector<1x256xf32> to vector<1x64xf32>
    %64 = arith.addf %62, %63 : vector<1x64xf32>
    %65 = vector.extract_strided_slice %61 {offsets = [0, 128], sizes = [1, 64], strides = [1, 1]} : vector<1x256xf32> to vector<1x64xf32>
    %66 = arith.addf %64, %65 : vector<1x64xf32>
    %67 = vector.extract_strided_slice %61 {offsets = [0, 192], sizes = [1, 64], strides = [1, 1]} : vector<1x256xf32> to vector<1x64xf32>
    %68 = arith.addf %66, %67 : vector<1x64xf32>
    %cst_73 = arith.constant 9.765625E-4 : f32
    %69 = vector.broadcast %cst_73 : f32 to vector<1x64xf32>
    %70 = arith.mulf %68, %69 : vector<1x64xf32>
    %cst_74 = arith.constant 9.99999974E-6 : f32
    %71 = vector.broadcast %cst_74 : f32 to vector<1x64xf32>
    %72 = arith.addf %70, %71 : vector<1x64xf32>
    %73 = math.rsqrt %72 : vector<1x64xf32>
    %74 = tpu.concatenate %73, %73, %73, %73 in 1 : vector<1x64xf32>, vector<1x64xf32>, vector<1x64xf32>, vector<1x64xf32> -> vector<1x256xf32>
    %75 = vector.broadcast %74 : vector<1x256xf32> to vector<256x256xf32>
    %76 = arith.mulf %58, %75 : vector<256x256xf32>
    %77 = vector.broadcast %43 : vector<1x256xf32> to vector<256x256xf32>
    %78 = arith.mulf %76, %77 : vector<256x256xf32>
    %79 = vector.broadcast %44 : vector<1x256xf32> to vector<256x256xf32>
    %80 = arith.addf %78, %79 : vector<256x256xf32>
    %cst_75 = arith.constant 0.000000e+00 : f32
    %81 = vector.broadcast %cst_75 : f32 to vector<256x256xf32>
    %82 = arith.maximumf %80, %81 : vector<256x256xf32>
    %83 = arith.truncf %82 : vector<256x256xf32> to vector<256x256xbf16>
    %84 = vector.shape_cast %83 : vector<256x256xbf16> to vector<16x16x256xbf16>
    %c1_76 = arith.constant 1 : index
    %c1_77 = arith.constant 1 : index
    %c0_78 = arith.constant 0 : index
    %85 = vector.load %arg14[%c1_76, %c1_77, %c0_78] : memref<18x18x256xbf16, #tpu.memory_space<vmem>>, vector<16x16x256xbf16>
    tpu.vector_store %arg14[%c1_76, %c1_77, %c0_78], %84 {strides = array<i32>} : memref<18x18x256xbf16, #tpu.memory_space<vmem>>, vector<16x16x256xbf16>,
    %c1_79 = arith.constant 1 : index
    %c1_80 = arith.constant 1 : index
    %c0_81 = arith.constant 0 : index
    %86 = vector.load %arg14[%c1_79, %c1_80, %c0_81] : memref<18x18x256xbf16, #tpu.memory_space<vmem>>, vector<16x16x64xbf16>
    %87 = vector.shape_cast %86 : vector<16x16x64xbf16> to vector<256x64xbf16>
    %c1_82 = arith.constant 1 : index
    %c0_83 = arith.constant 0 : index
    %c64 = arith.constant 64 : index
    %88 = vector.load %arg14[%c1_82, %c0_83, %c64] : memref<18x18x256xbf16, #tpu.memory_space<vmem>>, vector<16x16x64xbf16>
    %89 = vector.shape_cast %88 : vector<16x16x64xbf16> to vector<256x64xbf16>
    %c1_84 = arith.constant 1 : index
    %c1_85 = arith.constant 1 : index
    %c64_86 = arith.constant 64 : index
    %90 = vector.load %arg14[%c1_84, %c1_85, %c64_86] : memref<18x18x256xbf16, #tpu.memory_space<vmem>>, vector<16x16x64xbf16>
    %91 = vector.shape_cast %90 : vector<16x16x64xbf16> to vector<256x64xbf16>
    %c1_87 = arith.constant 1 : index
    %c2_88 = arith.constant 2 : index
    %c0_89 = arith.constant 0 : index
    %92 = vector.load %arg14[%c1_87, %c2_88, %c0_89] : memref<18x18x256xbf16, #tpu.memory_space<vmem>>, vector<16x16x64xbf16>
    %93 = vector.shape_cast %92 : vector<16x16x64xbf16> to vector<256x64xbf16>
    %c0_90 = arith.constant 0 : index
    %c1_91 = arith.constant 1 : index
    %c128 = arith.constant 128 : index
    %94 = vector.load %arg14[%c0_90, %c1_91, %c128] : memref<18x18x256xbf16, #tpu.memory_space<vmem>>, vector<16x16x64xbf16>
    %95 = vector.shape_cast %94 : vector<16x16x64xbf16> to vector<256x64xbf16>
    %c0_92 = arith.constant 0 : index
    %c0_93 = arith.constant 0 : index
    %c192 = arith.constant 192 : index
    %96 = vector.load %arg14[%c0_92, %c0_93, %c192] : memref<18x18x256xbf16, #tpu.memory_space<vmem>>, vector<16x16x64xbf16>
    %97 = vector.shape_cast %96 : vector<16x16x64xbf16> to vector<256x64xbf16>
    %c0_94 = arith.constant 0 : index
    %c1_95 = arith.constant 1 : index
    %c192_96 = arith.constant 192 : index
    %98 = vector.load %arg14[%c0_94, %c1_95, %c192_96] : memref<18x18x256xbf16, #tpu.memory_space<vmem>>, vector<16x16x64xbf16>
    %99 = vector.shape_cast %98 : vector<16x16x64xbf16> to vector<256x64xbf16>
    %c0_97 = arith.constant 0 : index
    %c2_98 = arith.constant 2 : index
    %c128_99 = arith.constant 128 : index
    %100 = vector.load %arg14[%c0_97, %c2_98, %c128_99] : memref<18x18x256xbf16, #tpu.memory_space<vmem>>, vector<16x16x64xbf16>
    %101 = vector.shape_cast %100 : vector<16x16x64xbf16> to vector<256x64xbf16>
    %c1_100 = arith.constant 1 : index
    %c1_101 = arith.constant 1 : index
    %c128_102 = arith.constant 128 : index
    %102 = vector.load %arg14[%c1_100, %c1_101, %c128_102] : memref<18x18x256xbf16, #tpu.memory_space<vmem>>, vector<16x16x64xbf16>
    %103 = vector.shape_cast %102 : vector<16x16x64xbf16> to vector<256x64xbf16>
    %c1_103 = arith.constant 1 : index
    %c0_104 = arith.constant 0 : index
    %c192_105 = arith.constant 192 : index
    %104 = vector.load %arg14[%c1_103, %c0_104, %c192_105] : memref<18x18x256xbf16, #tpu.memory_space<vmem>>, vector<16x16x64xbf16>
    %105 = vector.shape_cast %104 : vector<16x16x64xbf16> to vector<256x64xbf16>
    %c1_106 = arith.constant 1 : index
    %c1_107 = arith.constant 1 : index
    %c192_108 = arith.constant 192 : index
    %106 = vector.load %arg14[%c1_106, %c1_107, %c192_108] : memref<18x18x256xbf16, #tpu.memory_space<vmem>>, vector<16x16x64xbf16>
    %107 = vector.shape_cast %106 : vector<16x16x64xbf16> to vector<256x64xbf16>
    %c1_109 = arith.constant 1 : index
    %c2_110 = arith.constant 2 : index
    %c128_111 = arith.constant 128 : index
    %108 = vector.load %arg14[%c1_109, %c2_110, %c128_111] : memref<18x18x256xbf16, #tpu.memory_space<vmem>>, vector<16x16x64xbf16>
    %109 = vector.shape_cast %108 : vector<16x16x64xbf16> to vector<256x64xbf16>
    %c2_112 = arith.constant 2 : index
    %c1_113 = arith.constant 1 : index
    %c0_114 = arith.constant 0 : index
    %110 = vector.load %arg14[%c2_112, %c1_113, %c0_114] : memref<18x18x256xbf16, #tpu.memory_space<vmem>>, vector<16x16x64xbf16>
    %111 = vector.shape_cast %110 : vector<16x16x64xbf16> to vector<256x64xbf16>
    %c2_115 = arith.constant 2 : index
    %c0_116 = arith.constant 0 : index
    %c64_117 = arith.constant 64 : index
    %112 = vector.load %arg14[%c2_115, %c0_116, %c64_117] : memref<18x18x256xbf16, #tpu.memory_space<vmem>>, vector<16x16x64xbf16>
    %113 = vector.shape_cast %112 : vector<16x16x64xbf16> to vector<256x64xbf16>
    %c2_118 = arith.constant 2 : index
    %c1_119 = arith.constant 1 : index
    %c64_120 = arith.constant 64 : index
    %114 = vector.load %arg14[%c2_118, %c1_119, %c64_120] : memref<18x18x256xbf16, #tpu.memory_space<vmem>>, vector<16x16x64xbf16>
    %115 = vector.shape_cast %114 : vector<16x16x64xbf16> to vector<256x64xbf16>
    %c2_121 = arith.constant 2 : index
    %c2_122 = arith.constant 2 : index
    %c0_123 = arith.constant 0 : index
    %116 = vector.load %arg14[%c2_121, %c2_122, %c0_123] : memref<18x18x256xbf16, #tpu.memory_space<vmem>>, vector<16x16x64xbf16>
    %117 = vector.shape_cast %116 : vector<16x16x64xbf16> to vector<256x64xbf16>
    %118 = tpu.concatenate %87, %89, %91, %93, %95, %97, %99, %101, %103, %105, %107, %109, %111, %113, %115, %117 in 1 : vector<256x64xbf16>, vector<256x64xbf16>, vector<256x64xbf16>, vector<256x64xbf16>, vector<256x64xbf16>, vector<256x64xbf16>, vector<256x64xbf16>, vector<256x64xbf16>, vector<256x64xbf16>, vector<256x64xbf16>, vector<256x64xbf16>, vector<256x64xbf16>, vector<256x64xbf16>, vector<256x64xbf16>, vector<256x64xbf16>, vector<256x64xbf16> -> vector<256x1024xbf16>
    %c0_124 = arith.constant 0 : index
    %c0_125 = arith.constant 0 : index
    %119 = vector.load %arg6[%c0_124, %c0_125] : memref<1024x256xbf16, #tpu.memory_space<vmem>>, vector<1024x256xbf16>
    %cst_126 = arith.constant dense<0.000000e+00> : vector<256x256xf32>
    %120 = tpu.matmul %118, %119, %cst_126 {dimension_numbers = #tpu.dot_dimension_numbers<[1], [0], [0], [1], [0, 0, 1, 1], [], []>} : vector<256x1024xbf16>, vector<1024x256xbf16>, vector<256x256xf32> -> vector<256x256xf32>
    %c0_127 = arith.constant 0 : index
    %c0_128 = arith.constant 0 : index
    %121 = vector.load %arg7[%c0_127, %c0_128] : memref<1x256xf32, #tpu.memory_space<vmem>>, vector<1x256xf32>
    %122 = vector.broadcast %121 : vector<1x256xf32> to vector<256x256xf32>
    %123 = arith.addf %120, %122 : vector<256x256xf32>
    %c0_129 = arith.constant 0 : index
    %c0_130 = arith.constant 0 : index
    %124 = vector.load %arg8[%c0_129, %c0_130] : memref<1x256xf32, #tpu.memory_space<vmem>>, vector<1x256xf32>
    %c0_131 = arith.constant 0 : index
    %c0_132 = arith.constant 0 : index
    %125 = vector.load %arg9[%c0_131, %c0_132] : memref<1x256xf32, #tpu.memory_space<vmem>>, vector<1x256xf32>
    %cst_133 = arith.constant dense<0.000000e+00> : vector<256xf32>
    %126 = vector.multi_reduction <add>, %123, %cst_133 [0] : vector<256x256xf32> to vector<256xf32>
    %127 = vector.shape_cast %126 : vector<256xf32> to vector<1x256xf32>
    %128 = vector.extract_strided_slice %127 {offsets = [0, 0], sizes = [1, 64], strides = [1, 1]} : vector<1x256xf32> to vector<1x64xf32>
    %129 = vector.extract_strided_slice %127 {offsets = [0, 64], sizes = [1, 64], strides = [1, 1]} : vector<1x256xf32> to vector<1x64xf32>
    %130 = arith.addf %128, %129 : vector<1x64xf32>
    %131 = vector.extract_strided_slice %127 {offsets = [0, 128], sizes = [1, 64], strides = [1, 1]} : vector<1x256xf32> to vector<1x64xf32>
    %132 = arith.addf %130, %131 : vector<1x64xf32>
    %133 = vector.extract_strided_slice %127 {offsets = [0, 192], sizes = [1, 64], strides = [1, 1]} : vector<1x256xf32> to vector<1x64xf32>
    %134 = arith.addf %132, %133 : vector<1x64xf32>
    %cst_134 = arith.constant 9.765625E-4 : f32
    %135 = vector.broadcast %cst_134 : f32 to vector<1x64xf32>
    %136 = arith.mulf %134, %135 : vector<1x64xf32>
    %137 = tpu.concatenate %136, %136, %136, %136 in 1 : vector<1x64xf32>, vector<1x64xf32>, vector<1x64xf32>, vector<1x64xf32> -> vector<1x256xf32>
    %138 = vector.broadcast %137 : vector<1x256xf32> to vector<256x256xf32>
    %139 = arith.subf %123, %138 : vector<256x256xf32>
    %140 = arith.mulf %139, %139 : vector<256x256xf32>
    %cst_135 = arith.constant dense<0.000000e+00> : vector<256xf32>
    %141 = vector.multi_reduction <add>, %140, %cst_135 [0] : vector<256x256xf32> to vector<256xf32>
    %142 = vector.shape_cast %141 : vector<256xf32> to vector<1x256xf32>
    %143 = vector.extract_strided_slice %142 {offsets = [0, 0], sizes = [1, 64], strides = [1, 1]} : vector<1x256xf32> to vector<1x64xf32>
    %144 = vector.extract_strided_slice %142 {offsets = [0, 64], sizes = [1, 64], strides = [1, 1]} : vector<1x256xf32> to vector<1x64xf32>
    %145 = arith.addf %143, %144 : vector<1x64xf32>
    %146 = vector.extract_strided_slice %142 {offsets = [0, 128], sizes = [1, 64], strides = [1, 1]} : vector<1x256xf32> to vector<1x64xf32>
    %147 = arith.addf %145, %146 : vector<1x64xf32>
    %148 = vector.extract_strided_slice %142 {offsets = [0, 192], sizes = [1, 64], strides = [1, 1]} : vector<1x256xf32> to vector<1x64xf32>
    %149 = arith.addf %147, %148 : vector<1x64xf32>
    %cst_136 = arith.constant 9.765625E-4 : f32
    %150 = vector.broadcast %cst_136 : f32 to vector<1x64xf32>
    %151 = arith.mulf %149, %150 : vector<1x64xf32>
    %cst_137 = arith.constant 9.99999974E-6 : f32
    %152 = vector.broadcast %cst_137 : f32 to vector<1x64xf32>
    %153 = arith.addf %151, %152 : vector<1x64xf32>
    %154 = math.rsqrt %153 : vector<1x64xf32>
    %155 = tpu.concatenate %154, %154, %154, %154 in 1 : vector<1x64xf32>, vector<1x64xf32>, vector<1x64xf32>, vector<1x64xf32> -> vector<1x256xf32>
    %156 = vector.broadcast %155 : vector<1x256xf32> to vector<256x256xf32>
    %157 = arith.mulf %139, %156 : vector<256x256xf32>
    %158 = vector.broadcast %124 : vector<1x256xf32> to vector<256x256xf32>
    %159 = arith.mulf %157, %158 : vector<256x256xf32>
    %160 = vector.broadcast %125 : vector<1x256xf32> to vector<256x256xf32>
    %161 = arith.addf %159, %160 : vector<256x256xf32>
    %cst_138 = arith.constant 0.000000e+00 : f32
    %162 = vector.broadcast %cst_138 : f32 to vector<256x256xf32>
    %163 = arith.maximumf %161, %162 : vector<256x256xf32>
    %164 = vector.extract_strided_slice %163 {offsets = [0, 0], sizes = [256, 64], strides = [1, 1]} : vector<256x256xf32> to vector<256x64xf32>
    %c0_139 = arith.constant 0 : index
    %c0_140 = arith.constant 0 : index
    %165 = vector.load %arg10[%c0_139, %c0_140] : memref<8x64xf32, #tpu.memory_space<vmem>>, vector<8x64xf32>
    %166 = tpu.transpose %164, [1, 0] : vector<256x64xf32> -> vector<64x256xf32>
    %cst_141 = arith.constant dense<0.000000e+00> : vector<8x256xf32>
    %167 = tpu.matmul %165, %166, %cst_141 {dimension_numbers = #tpu.dot_dimension_numbers<[1], [0], [0], [1], [0, 0, 1, 1], [], []>} : vector<8x64xf32>, vector<64x256xf32>, vector<8x256xf32> -> vector<8x256xf32>
    %c0_142 = arith.constant 0 : index
    %c0_143 = arith.constant 0 : index
    %168 = vector.load %arg11[%c0_142, %c0_143] : memref<8x1xf32, #tpu.memory_space<vmem>>, vector<8x1xf32>
    %169 = vector.broadcast %168 : vector<8x1xf32> to vector<8x256xf32>
    %170 = arith.addf %167, %169 : vector<8x256xf32>
    %171 = vector.extract_strided_slice %170 {offsets = [0, 0], sizes = [3, 256], strides = [1, 1]} : vector<8x256xf32> to vector<3x256xf32>
    %c0_144 = arith.constant 0 : index
    %c0_145 = arith.constant 0 : index
    %c0_146 = arith.constant 0 : index
    %c0_147 = arith.constant 0 : index
    %c0_148 = arith.constant 0 : index
    %172 = vector.load %arg12[%c0_144, %c0_145, %c0_146, %c0_147, %c0_148] : memref<1x2x2x3x256xf32, #tpu.memory_space<vmem>>, vector<1x1x1x3x256xf32>
    %173 = vector.shape_cast %172 : vector<1x1x1x3x256xf32> to vector<3x256xf32>
    %174 = vector.shape_cast %171 : vector<3x256xf32> to vector<1x1x1x3x256xf32>
    tpu.vector_store %arg12[%c0_144, %c0_145, %c0_146, %c0_147, %c0_148], %174 {strides = array<i32>} : memref<1x2x2x3x256xf32, #tpu.memory_space<vmem>>, vector<1x1x1x3x256xf32>,
    %175 = vector.extract_strided_slice %163 {offsets = [0, 64], sizes = [256, 64], strides = [1, 1]} : vector<256x256xf32> to vector<256x64xf32>
    %c0_149 = arith.constant 0 : index
    %c0_150 = arith.constant 0 : index
    %176 = vector.load %arg10[%c0_149, %c0_150] : memref<8x64xf32, #tpu.memory_space<vmem>>, vector<8x64xf32>
    %177 = tpu.transpose %175, [1, 0] : vector<256x64xf32> -> vector<64x256xf32>
    %cst_151 = arith.constant dense<0.000000e+00> : vector<8x256xf32>
    %178 = tpu.matmul %176, %177, %cst_151 {dimension_numbers = #tpu.dot_dimension_numbers<[1], [0], [0], [1], [0, 0, 1, 1], [], []>} : vector<8x64xf32>, vector<64x256xf32>, vector<8x256xf32> -> vector<8x256xf32>
    %c0_152 = arith.constant 0 : index
    %c0_153 = arith.constant 0 : index
    %179 = vector.load %arg11[%c0_152, %c0_153] : memref<8x1xf32, #tpu.memory_space<vmem>>, vector<8x1xf32>
    %180 = vector.broadcast %179 : vector<8x1xf32> to vector<8x256xf32>
    %181 = arith.addf %178, %180 : vector<8x256xf32>
    %182 = vector.extract_strided_slice %181 {offsets = [0, 0], sizes = [3, 256], strides = [1, 1]} : vector<8x256xf32> to vector<3x256xf32>
    %c0_154 = arith.constant 0 : index
    %c0_155 = arith.constant 0 : index
    %c1_156 = arith.constant 1 : index
    %c0_157 = arith.constant 0 : index
    %c0_158 = arith.constant 0 : index
    %183 = vector.load %arg12[%c0_154, %c0_155, %c1_156, %c0_157, %c0_158] : memref<1x2x2x3x256xf32, #tpu.memory_space<vmem>>, vector<1x1x1x3x256xf32>
    %184 = vector.shape_cast %183 : vector<1x1x1x3x256xf32> to vector<3x256xf32>
    %185 = vector.shape_cast %182 : vector<3x256xf32> to vector<1x1x1x3x256xf32>
    tpu.vector_store %arg12[%c0_154, %c0_155, %c1_156, %c0_157, %c0_158], %185 {strides = array<i32>} : memref<1x2x2x3x256xf32, #tpu.memory_space<vmem>>, vector<1x1x1x3x256xf32>,
    %186 = vector.extract_strided_slice %163 {offsets = [0, 128], sizes = [256, 64], strides = [1, 1]} : vector<256x256xf32> to vector<256x64xf32>
    %c0_159 = arith.constant 0 : index
    %c0_160 = arith.constant 0 : index
    %187 = vector.load %arg10[%c0_159, %c0_160] : memref<8x64xf32, #tpu.memory_space<vmem>>, vector<8x64xf32>
    %188 = tpu.transpose %186, [1, 0] : vector<256x64xf32> -> vector<64x256xf32>
    %cst_161 = arith.constant dense<0.000000e+00> : vector<8x256xf32>
    %189 = tpu.matmul %187, %188, %cst_161 {dimension_numbers = #tpu.dot_dimension_numbers<[1], [0], [0], [1], [0, 0, 1, 1], [], []>} : vector<8x64xf32>, vector<64x256xf32>, vector<8x256xf32> -> vector<8x256xf32>
    %c0_162 = arith.constant 0 : index
    %c0_163 = arith.constant 0 : index
    %190 = vector.load %arg11[%c0_162, %c0_163] : memref<8x1xf32, #tpu.memory_space<vmem>>, vector<8x1xf32>
    %191 = vector.broadcast %190 : vector<8x1xf32> to vector<8x256xf32>
    %192 = arith.addf %189, %191 : vector<8x256xf32>
    %193 = vector.extract_strided_slice %192 {offsets = [0, 0], sizes = [3, 256], strides = [1, 1]} : vector<8x256xf32> to vector<3x256xf32>
    %c0_164 = arith.constant 0 : index
    %c1_165 = arith.constant 1 : index
    %c0_166 = arith.constant 0 : index
    %c0_167 = arith.constant 0 : index
    %c0_168 = arith.constant 0 : index
    %194 = vector.load %arg12[%c0_164, %c1_165, %c0_166, %c0_167, %c0_168] : memref<1x2x2x3x256xf32, #tpu.memory_space<vmem>>, vector<1x1x1x3x256xf32>
    %195 = vector.shape_cast %194 : vector<1x1x1x3x256xf32> to vector<3x256xf32>
    %196 = vector.shape_cast %193 : vector<3x256xf32> to vector<1x1x1x3x256xf32>
    tpu.vector_store %arg12[%c0_164, %c1_165, %c0_166, %c0_167, %c0_168], %196 {strides = array<i32>} : memref<1x2x2x3x256xf32, #tpu.memory_space<vmem>>, vector<1x1x1x3x256xf32>,
    %197 = vector.extract_strided_slice %163 {offsets = [0, 192], sizes = [256, 64], strides = [1, 1]} : vector<256x256xf32> to vector<256x64xf32>
    %c0_169 = arith.constant 0 : index
    %c0_170 = arith.constant 0 : index
    %198 = vector.load %arg10[%c0_169, %c0_170] : memref<8x64xf32, #tpu.memory_space<vmem>>, vector<8x64xf32>
    %199 = tpu.transpose %197, [1, 0] : vector<256x64xf32> -> vector<64x256xf32>
    %cst_171 = arith.constant dense<0.000000e+00> : vector<8x256xf32>
    %200 = tpu.matmul %198, %199, %cst_171 {dimension_numbers = #tpu.dot_dimension_numbers<[1], [0], [0], [1], [0, 0, 1, 1], [], []>} : vector<8x64xf32>, vector<64x256xf32>, vector<8x256xf32> -> vector<8x256xf32>
    %c0_172 = arith.constant 0 : index
    %c0_173 = arith.constant 0 : index
    %201 = vector.load %arg11[%c0_172, %c0_173] : memref<8x1xf32, #tpu.memory_space<vmem>>, vector<8x1xf32>
    %202 = vector.broadcast %201 : vector<8x1xf32> to vector<8x256xf32>
    %203 = arith.addf %200, %202 : vector<8x256xf32>
    %204 = vector.extract_strided_slice %203 {offsets = [0, 0], sizes = [3, 256], strides = [1, 1]} : vector<8x256xf32> to vector<3x256xf32>
    %c0_174 = arith.constant 0 : index
    %c1_175 = arith.constant 1 : index
    %c1_176 = arith.constant 1 : index
    %c0_177 = arith.constant 0 : index
    %c0_178 = arith.constant 0 : index
    %205 = vector.load %arg12[%c0_174, %c1_175, %c1_176, %c0_177, %c0_178] : memref<1x2x2x3x256xf32, #tpu.memory_space<vmem>>, vector<1x1x1x3x256xf32>
    %206 = vector.shape_cast %205 : vector<1x1x1x3x256xf32> to vector<3x256xf32>
    %207 = vector.shape_cast %204 : vector<3x256xf32> to vector<1x1x1x3x256xf32>
    tpu.vector_store %arg12[%c0_174, %c1_175, %c1_176, %c0_177, %c0_178], %207 {strides = array<i32>} : memref<1x2x2x3x256xf32, #tpu.memory_space<vmem>>, vector<1x1x1x3x256xf32>,
    return
  }
  func.func @transform_0(%arg0: i32) -> (i32, i32, i32, i32) {
    %c0_i32 = arith.constant 0 : i32
    %c0_i32_0 = arith.constant 0 : i32
    %c0_i32_1 = arith.constant 0 : i32
    %c0_i32_2 = arith.constant 0 : i32
    return %arg0, %c0_i32, %c0_i32_0, %c0_i32_1 : i32, i32, i32, i32
  }
  func.func @transform_1(%arg0: i32) -> (i32, i32) {
    %c0_i32 = arith.constant 0 : i32
    %c0_i32_0 = arith.constant 0 : i32
    %c0_i32_1 = arith.constant 0 : i32
    return %c0_i32, %c0_i32_0 : i32, i32
  }
  func.func @transform_2(%arg0: i32) -> (i32, i32) {
    %c0_i32 = arith.constant 0 : i32
    %c0_i32_0 = arith.constant 0 : i32
    %c0_i32_1 = arith.constant 0 : i32
    return %c0_i32, %c0_i32_0 : i32, i32
  }
  func.func @transform_3(%arg0: i32) -> (i32, i32) {
    %c0_i32 = arith.constant 0 : i32
    %c0_i32_0 = arith.constant 0 : i32
    %c0_i32_1 = arith.constant 0 : i32
    return %c0_i32, %c0_i32_0 : i32, i32
  }
  func.func @transform_4(%arg0: i32) -> (i32, i32) {
    %c0_i32 = arith.constant 0 : i32
    %c0_i32_0 = arith.constant 0 : i32
    %c0_i32_1 = arith.constant 0 : i32
    return %c0_i32, %c0_i32_0 : i32, i32
  }
  func.func @transform_5(%arg0: i32) -> (i32, i32) {
    %c0_i32 = arith.constant 0 : i32
    %c0_i32_0 = arith.constant 0 : i32
    %c0_i32_1 = arith.constant 0 : i32
    return %c0_i32, %c0_i32_0 : i32, i32
  }
  func.func @transform_6(%arg0: i32) -> (i32, i32) {
    %c0_i32 = arith.constant 0 : i32
    %c0_i32_0 = arith.constant 0 : i32
    %c0_i32_1 = arith.constant 0 : i32
    return %c0_i32, %c0_i32_0 : i32, i32
  }
  func.func @transform_7(%arg0: i32) -> (i32, i32) {
    %c0_i32 = arith.constant 0 : i32
    %c0_i32_0 = arith.constant 0 : i32
    %c0_i32_1 = arith.constant 0 : i32
    return %c0_i32, %c0_i32_0 : i32, i32
  }
  func.func @transform_8(%arg0: i32) -> (i32, i32) {
    %c0_i32 = arith.constant 0 : i32
    %c0_i32_0 = arith.constant 0 : i32
    %c0_i32_1 = arith.constant 0 : i32
    return %c0_i32, %c0_i32_0 : i32, i32
  }
  func.func @transform_9(%arg0: i32) -> (i32, i32) {
    %c0_i32 = arith.constant 0 : i32
    %c0_i32_0 = arith.constant 0 : i32
    %c0_i32_1 = arith.constant 0 : i32
    return %c0_i32, %c0_i32_0 : i32, i32
  }
  func.func @transform_10(%arg0: i32) -> (i32, i32) {
    %c0_i32 = arith.constant 0 : i32
    %c0_i32_0 = arith.constant 0 : i32
    %c0_i32_1 = arith.constant 0 : i32
    return %c0_i32, %c0_i32_0 : i32, i32
  }
  func.func @transform_11(%arg0: i32) -> (i32, i32, i32, i32, i32) {
    %c0_i32 = arith.constant 0 : i32
    %c0_i32_0 = arith.constant 0 : i32
    %c0_i32_1 = arith.constant 0 : i32
    %c0_i32_2 = arith.constant 0 : i32
    %c0_i32_3 = arith.constant 0 : i32
    return %arg0, %c0_i32, %c0_i32_0, %c0_i32_1, %c0_i32_2 : i32, i32, i32, i32, i32
  }
}

</mosaic_0001>

<llo_original>
// kernel: tile.33
$region0: #{tile.33}
  #allocation0 [shape = 's32[1]{0}', space=sflag, size = 0x4, scoped, tag = 'scoped memory for tile.33']
  %s0 = inlined_call_operand.vmem [shape: f32[64], index: 0, kind: input, shape index: {}]
  %s1 = inlined_call_operand.vmem [shape: f32[4,64], index: 1, kind: output, shape index: {}]
  // Predicated region
  $region2: #{tile.33} parent=0 // pred_check
    _
  $region3: #{tile.33} parent=0 // pred_check_branch
    %3 = sbr.rel (0) target = $region5
  $region4: #{tile.33} parent=0 // pred_region
    _
  $region5: #{tile.33} parent=0 // pred_fallthru
    _
  %v4 = vld [vmem:[%s0] ss:$0 sm:$0xff]
  %5 = vst [vmem:[%s1] sm:$0xf] %v4

// kernel: tile.34
$region0: #{tile.34}
  %s0 = inlined_call_operand.vmem [shape: f32[4,64], index: 0, kind: input, shape index: {}]
  %s1 = inlined_call_operand.vmem [shape: f32[1,256], index: 1, kind: output, shape index: {}]
  $region1: #{tile.34} parent=0
    #allocation0 [shape = 'u8[8192]{0}', space=vmem, size = 0x2000, scoped, tag = 'scoped mem for output reshape']
    #allocation1 [shape = 'u8[4096]{0}', space=vmem, size = 0x1000, scoped, tag = 'scoped mem for input reshape']
    %s3 = sshllo.u32 0, 4
    %v4 = vld [vmem:[%s0] sm:%s3]
    %5 = vst [vmem:[#allocation1] sm:%s3] %v4
    %s6 = smov 3
    %v7 = vld [vmem:[#allocation1] ss:$2 sm:%s6]
    %vm8 = vcmask 523264
    %9 = vst.msk [vmem:[#allocation0] ss:$8 sm:$0x3] %vm8, %v7
    %s10 = scalar_lea.vmem [#allocation1], 1
    %s11 = smov 3
    %v12 = vld [vmem:[%s10] ss:$2 sm:%s11]
    %13 = vrot.lane.b32.xlu0 %v12, 64
    %v14 = vpop.permute.xlu0 %13
    %vm15 = vcmask 1048064
    %16 = vst.msk [vmem:[#allocation0] ss:$8 sm:$0x3] %vm15, %v14
    %s18 = sshllo.u32 0, 1
    %v20 = vld [vmem:[#allocation0] sm:%s18]
    %s21 = sshllo.u32 0, 1
    %22 = vst [vmem:[%s1] sm:%s21] %v20
    %s23 = scalar_lea.vmem [#allocation0], 8
    %v24 = vld [vmem:[%s23] sm:%s18]
    %s25 = sshllo.u32 0, 1
    %s26 = scalar_lea.vmem %s1, 1
    %27 = vst [vmem:[%s26] sm:%s25] %v24

// kernel: decoder_forward.1
$region0: #{decoder_forward.1}
  #allocation0 [shape = 'u32[]', space=smem, size = 0x4, offset = 0x4, fixed_abs, tag = 'smem constant byte address 0x4 - core index']
  #allocation1 [shape = 'u32[144,128]{1,0:T(1,128)}', space=vmem, size = 0x12000, scoped, tag = 'internal scratch']
  #allocation2 [shape = 'bf16[18,18,64]{2,1,0:T(8,128)(2,1)}', space=vmem, size = 0x1b000, scoped, tag = 'scratch operand']
  #allocation3 [shape = 'bf16[18,18,256]{2,1,0:T(8,128)(2,1)}', space=vmem, size = 0x36000, scoped, tag = 'scratch operand']
  %s0 = inlined_call_operand.vmem [shape: bf16[2,16,16,64], index: 0, kind: input, shape index: {}]
  %s1 = inlined_call_operand.vmem [shape: bf16[576,256], index: 1, kind: input, shape index: {}]
  %s2 = inlined_call_operand.vmem [shape: f32[1,256], index: 2, kind: input, shape index: {}]
  %s3 = inlined_call_operand.vmem [shape: f32[1,256], index: 3, kind: input, shape index: {}]
  %s4 = inlined_call_operand.vmem [shape: f32[1,256], index: 4, kind: input, shape index: {}]
  %s5 = inlined_call_operand.vmem [shape: bf16[1024,256], index: 5, kind: input, shape index: {}]
  %s6 = inlined_call_operand.vmem [shape: f32[1,256], index: 6, kind: input, shape index: {}]
  %s7 = inlined_call_operand.vmem [shape: f32[1,256], index: 7, kind: input, shape index: {}]
  %s8 = inlined_call_operand.vmem [shape: f32[1,256], index: 8, kind: input, shape index: {}]
  %s9 = inlined_call_operand.vmem [shape: f32[8,64], index: 9, kind: input, shape index: {}]
  %s10 = inlined_call_operand.vmem [shape: f32[8,1], index: 10, kind: input, shape index: {}]
  %s11 = inlined_call_operand.vmem [shape: f32[2,2,2,3,256], index: 11, kind: output, shape index: {}]
  %s12 = sld [smem:[#allocation0]]
  $region77: #{decoder_forward.1} parent=0
    _
  %s14 = ssub.s32 1, %s12
  %s15 = scalar_select 0, %s14, %s12
  loop: start=0, step=1, limit=4
  $region2: #{decoder_forward.1} parent=0 // loop_pre_header
    _
  $region3: #{decoder_forward.1} parent=0 // loop_header
    %s17 = sphi 0, %s21
    %p18 = scmp.ge.s32.totalorder %s17, 4
    %s27 = sphi 0, %s29
    %s30 = sphi 0, %s27
    %s31 = sphi 0, %s30
    %s47 = sphi 0, %s31
    %s51 = sphi 0, %s51
    %s53 = sphi 0, %s51
    %s54 = sphi 0, %s53
    %s68 = sphi 0, %s54
    %s72 = sphi 0, %s72
    %s74 = sphi 0, %s72
    %s75 = sphi 0, %s74
    %s89 = sphi 0, %s75
    %s93 = sphi 0, %s93
    %s95 = sphi 0, %s93
    %s96 = sphi 0, %s95
    %s110 = sphi 0, %s96
    %s114 = sphi 0, %s114
    %s116 = sphi 0, %s114
    %s117 = sphi 0, %s116
    %s131 = sphi 0, %s117
    %s135 = sphi 0, %s135
    %s137 = sphi 0, %s135
    %s138 = sphi 0, %s137
    %s152 = sphi 0, %s138
    %s156 = sphi 0, %s156
    %s158 = sphi 0, %s156
    %s159 = sphi 0, %s158
    %s173 = sphi 0, %s159
    %s177 = sphi 0, %s177
    %s179 = sphi 0, %s177
    %s180 = sphi 0, %s179
    %s194 = sphi 0, %s180
    %s198 = sphi 0, %s198
    %s200 = sphi 0, %s198
    %s201 = sphi 0, %s200
    %s215 = sphi 0, %s201
    %s219 = sphi 0, %s219
    %s221 = sphi 0, %s219
    %s222 = sphi 0, %s221
    %s236 = sphi 0, %s222
    %s240 = sphi 0, %s240
    %s242 = sphi 0, %s240
    %s243 = sphi 0, %s242
    %s257 = sphi 0, %s243
    %s263 = sphi 0, %s265
    %s266 = sphi 0, %s263
    %s267 = sphi 0, %s266
    %s283 = sphi 0, %s267
  $region4: #{decoder_forward.1} parent=0 // loop_header_branch
    %20 = sbr.rel (%p18) target = $region8
  $region5: #{decoder_forward.1} parent=0 // loop_body
    %s22 = ssub.s32 %s17, 1
    %s23 = ssub.s32 %s17, 2
    %s24 = sadd.s32 %s17, 1
    %s25 = ssub.s32 %s17, %s24
    %p26 = scmp.eq.s32.totalorder %s25, 0
    %s28 = sadd.s32 %s27, 1
    %s29 = scalar_select %p26, %s27, %s28
    %p32 = pneg %p26
    %p33 = scmp.eq.s32.totalorder %s17, 1
    %p34 = por %p32, %p33
    %p35 = scmp.ne.s32.totalorder %s27, %s30
    %p36 = scmp.eq.s32.totalorder %s17, 0
    %p37 = por %p35, %p36
    %p38 = scmp.ne.s32.totalorder %s27, %s30
    %p39 = scmp.eq.s32.totalorder %s22, 1
    %p40 = por %p38, %p39
    %p41 = scmp.ne.s32.totalorder %s30, %s31
    %p42 = scmp.eq.s32.totalorder %s22, 0
    %p43 = por %p41, %p42
    %p44 = scmp.ne.s32.totalorder %s30, %s31
    %p45 = scmp.eq.s32.totalorder %s23, 1
    %p46 = por %p44, %p45
    %p48 = scmp.ne.s32.totalorder %s31, %s47
    %p49 = scmp.eq.s32.totalorder %s23, 0
    %p50 = por %p48, %p49
    %s52 = sadd.s32 %s51, 1
    %p55 = scmp.eq.s32.totalorder %s17, 1
    %p56 = scmp.ne.s32.totalorder %s51, %s53
    %p57 = scmp.eq.s32.totalorder %s17, 0
    %p58 = por %p56, %p57
    %p59 = scmp.ne.s32.totalorder %s51, %s53
    %p60 = scmp.eq.s32.totalorder %s22, 1
    %p61 = por %p59, %p60
    %p62 = scmp.ne.s32.totalorder %s53, %s54
    %p63 = scmp.eq.s32.totalorder %s22, 0
    %p64 = por %p62, %p63
    %p65 = scmp.ne.s32.totalorder %s53, %s54
    %p66 = scmp.eq.s32.totalorder %s23, 1
    %p67 = por %p65, %p66
    %p69 = scmp.ne.s32.totalorder %s54, %s68
    %p70 = scmp.eq.s32.totalorder %s23, 0
    %p71 = por %p69, %p70
    %s73 = sadd.s32 %s72, 1
    %p76 = scmp.eq.s32.totalorder %s17, 1
    %p77 = scmp.ne.s32.totalorder %s72, %s74
    %p78 = scmp.eq.s32.totalorder %s17, 0
    %p79 = por %p77, %p78
    %p80 = scmp.ne.s32.totalorder %s72, %s74
    %p81 = scmp.eq.s32.totalorder %s22, 1
    %p82 = por %p80, %p81
    %p83 = scmp.ne.s32.totalorder %s74, %s75
    %p84 = scmp.eq.s32.totalorder %s22, 0
    %p85 = por %p83, %p84
    %p86 = scmp.ne.s32.totalorder %s74, %s75
    %p87 = scmp.eq.s32.totalorder %s23, 1
    %p88 = por %p86, %p87
    %p90 = scmp.ne.s32.totalorder %s75, %s89
    %p91 = scmp.eq.s32.totalorder %s23, 0
    %p92 = por %p90, %p91
    %s94 = sadd.s32 %s93, 1
    %p97 = scmp.eq.s32.totalorder %s17, 1
    %p98 = scmp.ne.s32.totalorder %s93, %s95
    %p99 = scmp.eq.s32.totalorder %s17, 0
    %p100 = por %p98, %p99
    %p101 = scmp.ne.s32.totalorder %s93, %s95
    %p102 = scmp.eq.s32.totalorder %s22, 1
    %p103 = por %p101, %p102
    %p104 = scmp.ne.s32.totalorder %s95, %s96
    %p105 = scmp.eq.s32.totalorder %s22, 0
    %p106 = por %p104, %p105
    %p107 = scmp.ne.s32.totalorder %s95, %s96
    %p108 = scmp.eq.s32.totalorder %s23, 1
    %p109 = por %p107, %p108
    %p111 = scmp.ne.s32.totalorder %s96, %s110
    %p112 = scmp.eq.s32.totalorder %s23, 0
    %p113 = por %p111, %p112
    %s115 = sadd.s32 %s114, 1
    %p118 = scmp.eq.s32.totalorder %s17, 1
    %p119 = scmp.ne.s32.totalorder %s114, %s116
    %p120 = scmp.eq.s32.totalorder %s17, 0
    %p121 = por %p119, %p120
    %p122 = scmp.ne.s32.totalorder %s114, %s116
    %p123 = scmp.eq.s32.totalorder %s22, 1
    %p124 = por %p122, %p123
    %p125 = scmp.ne.s32.totalorder %s116, %s117
    %p126 = scmp.eq.s32.totalorder %s22, 0
    %p127 = por %p125, %p126
    %p128 = scmp.ne.s32.totalorder %s116, %s117
    %p129 = scmp.eq.s32.totalorder %s23, 1
    %p130 = por %p128, %p129
    %p132 = scmp.ne.s32.totalorder %s117, %s131
    %p133 = scmp.eq.s32.totalorder %s23, 0
    %p134 = por %p132, %p133
    %s136 = sadd.s32 %s135, 1
    %p139 = scmp.eq.s32.totalorder %s17, 1
    %p140 = scmp.ne.s32.totalorder %s135, %s137
    %p141 = scmp.eq.s32.totalorder %s17, 0
    %p142 = por %p140, %p141
    %p143 = scmp.ne.s32.totalorder %s135, %s137
    %p144 = scmp.eq.s32.totalorder %s22, 1
    %p145 = por %p143, %p144
    %p146 = scmp.ne.s32.totalorder %s137, %s138
    %p147 = scmp.eq.s32.totalorder %s22, 0
    %p148 = por %p146, %p147
    %p149 = scmp.ne.s32.totalorder %s137, %s138
    %p150 = scmp.eq.s32.totalorder %s23, 1
    %p151 = por %p149, %p150
    %p153 = scmp.ne.s32.totalorder %s138, %s152
    %p154 = scmp.eq.s32.totalorder %s23, 0
    %p155 = por %p153, %p154
    %s157 = sadd.s32 %s156, 1
    %p160 = scmp.eq.s32.totalorder %s17, 1
    %p161 = scmp.ne.s32.totalorder %s156, %s158
    %p162 = scmp.eq.s32.totalorder %s17, 0
    %p163 = por %p161, %p162
    %p164 = scmp.ne.s32.totalorder %s156, %s158
    %p165 = scmp.eq.s32.totalorder %s22, 1
    %p166 = por %p164, %p165
    %p167 = scmp.ne.s32.totalorder %s158, %s159
    %p168 = scmp.eq.s32.totalorder %s22, 0
    %p169 = por %p167, %p168
    %p170 = scmp.ne.s32.totalorder %s158, %s159
    %p171 = scmp.eq.s32.totalorder %s23, 1
    %p172 = por %p170, %p171
    %p174 = scmp.ne.s32.totalorder %s159, %s173
    %p175 = scmp.eq.s32.totalorder %s23, 0
    %p176 = por %p174, %p175
    %s178 = sadd.s32 %s177, 1
    %p181 = scmp.eq.s32.totalorder %s17, 1
    %p182 = scmp.ne.s32.totalorder %s177, %s179
    %p183 = scmp.eq.s32.totalorder %s17, 0
    %p184 = por %p182, %p183
    %p185 = scmp.ne.s32.totalorder %s177, %s179
    %p186 = scmp.eq.s32.totalorder %s22, 1
    %p187 = por %p185, %p186
    %p188 = scmp.ne.s32.totalorder %s179, %s180
    %p189 = scmp.eq.s32.totalorder %s22, 0
    %p190 = por %p188, %p189
    %p191 = scmp.ne.s32.totalorder %s179, %s180
    %p192 = scmp.eq.s32.totalorder %s23, 1
    %p193 = por %p191, %p192
    %p195 = scmp.ne.s32.totalorder %s180, %s194
    %p196 = scmp.eq.s32.totalorder %s23, 0
    %p197 = por %p195, %p196
    %s199 = sadd.s32 %s198, 1
    %p202 = scmp.eq.s32.totalorder %s17, 1
    %p203 = scmp.ne.s32.totalorder %s198, %s200
    %p204 = scmp.eq.s32.totalorder %s17, 0
    %p205 = por %p203, %p204
    %p206 = scmp.ne.s32.totalorder %s198, %s200
    %p207 = scmp.eq.s32.totalorder %s22, 1
    %p208 = por %p206, %p207
    %p209 = scmp.ne.s32.totalorder %s200, %s201
    %p210 = scmp.eq.s32.totalorder %s22, 0
    %p211 = por %p209, %p210
    %p212 = scmp.ne.s32.totalorder %s200, %s201
    %p213 = scmp.eq.s32.totalorder %s23, 1
    %p214 = por %p212, %p213
    %p216 = scmp.ne.s32.totalorder %s201, %s215
    %p217 = scmp.eq.s32.totalorder %s23, 0
    %p218 = por %p216, %p217
    %s220 = sadd.s32 %s219, 1
    %p223 = scmp.eq.s32.totalorder %s17, 1
    %p224 = scmp.ne.s32.totalorder %s219, %s221
    %p225 = scmp.eq.s32.totalorder %s17, 0
    %p226 = por %p224, %p225
    %p227 = scmp.ne.s32.totalorder %s219, %s221
    %p228 = scmp.eq.s32.totalorder %s22, 1
    %p229 = por %p227, %p228
    %p230 = scmp.ne.s32.totalorder %s221, %s222
    %p231 = scmp.eq.s32.totalorder %s22, 0
    %p232 = por %p230, %p231
    %p233 = scmp.ne.s32.totalorder %s221, %s222
    %p234 = scmp.eq.s32.totalorder %s23, 1
    %p235 = por %p233, %p234
    %p237 = scmp.ne.s32.totalorder %s222, %s236
    %p238 = scmp.eq.s32.totalorder %s23, 0
    %p239 = por %p237, %p238
    %s241 = sadd.s32 %s240, 1
    %p244 = scmp.eq.s32.totalorder %s17, 1
    %p245 = scmp.ne.s32.totalorder %s240, %s242
    %p246 = scmp.eq.s32.totalorder %s17, 0
    %p247 = por %p245, %p246
    %p248 = scmp.ne.s32.totalorder %s240, %s242
    %p249 = scmp.eq.s32.totalorder %s22, 1
    %p250 = por %p248, %p249
    %p251 = scmp.ne.s32.totalorder %s242, %s243
    %p252 = scmp.eq.s32.totalorder %s22, 0
    %p253 = por %p251, %p252
    %p254 = scmp.ne.s32.totalorder %s242, %s243
    %p255 = scmp.eq.s32.totalorder %s23, 1
    %p256 = por %p254, %p255
    %p258 = scmp.ne.s32.totalorder %s243, %s257
    %p259 = scmp.eq.s32.totalorder %s23, 0
    %p260 = por %p258, %p259
    %s261 = ssub.s32 %s17, %s24
    %p262 = scmp.eq.s32.totalorder %s261, 0
    %s264 = sadd.s32 %s263, 1
    %s265 = scalar_select %p262, %s263, %s264
    %p268 = pneg %p262
    %p269 = scmp.eq.s32.totalorder %s17, 1
    %p270 = por %p268, %p269
    %p271 = scmp.ne.s32.totalorder %s263, %s266
    %p272 = scmp.eq.s32.totalorder %s17, 0
    %p273 = por %p271, %p272
    %p274 = scmp.ne.s32.totalorder %s263, %s266
    %p275 = scmp.eq.s32.totalorder %s22, 1
    %p276 = por %p274, %p275
    %p277 = scmp.ne.s32.totalorder %s266, %s267
    %p278 = scmp.eq.s32.totalorder %s22, 0
    %p279 = por %p277, %p278
    %p280 = scmp.ne.s32.totalorder %s266, %s267
    %p281 = scmp.eq.s32.totalorder %s23, 1
    %p282 = por %p280, %p281
    %p284 = scmp.ne.s32.totalorder %s267, %s283
    %p285 = scmp.eq.s32.totalorder %s23, 0
    %p286 = por %p284, %p285
    %p287 = scmp.le.s32.totalorder 1, %s17
    %p288 = scmp.lt.s32.totalorder %s17, 3
    %p289 = pnand %p287, %p288
    %p290 = pneg %p289
    // Predicated region
    $region9: #{decoder_forward.1} parent=5 // pred_check
      _
    $region10: #{decoder_forward.1} parent=5 // pred_check_branch
      %292 = sbr.rel (%p289) target = $region12
    $region11: #{decoder_forward.1} parent=5 // pred_region
      %s293 = ssub.s32 %s17, 1
      // Predicated region
      $region13: #{decoder_forward.1} parent=11 // pred_check
        %p294 = pneg %p64
      $region14: #{decoder_forward.1} parent=11 // pred_check_branch
        %296 = sbr.rel (%p294) target = $region16
      $region15: #{decoder_forward.1} parent=11 // pred_region
        _
      $region16: #{decoder_forward.1} parent=11 // pred_fallthru
        _
      // Predicated region
      $region17: #{decoder_forward.1} parent=11 // pred_check
        %p297 = pneg %p85
      $region18: #{decoder_forward.1} parent=11 // pred_check_branch
        %299 = sbr.rel (%p297) target = $region20
      $region19: #{decoder_forward.1} parent=11 // pred_region
        _
      $region20: #{decoder_forward.1} parent=11 // pred_fallthru
        _
      // Predicated region
      $region21: #{decoder_forward.1} parent=11 // pred_check
        %p300 = pneg %p106
      $region22: #{decoder_forward.1} parent=11 // pred_check_branch
        %302 = sbr.rel (%p300) target = $region24
      $region23: #{decoder_forward.1} parent=11 // pred_region
        _
      $region24: #{decoder_forward.1} parent=11 // pred_fallthru
        _
      // Predicated region
      $region25: #{decoder_forward.1} parent=11 // pred_check
        %p303 = pneg %p127
      $region26: #{decoder_forward.1} parent=11 // pred_check_branch
        %305 = sbr.rel (%p303) target = $region28
      $region27: #{decoder_forward.1} parent=11 // pred_region
        _
      $region28: #{decoder_forward.1} parent=11 // pred_fallthru
        _
      // Predicated region
      $region29: #{decoder_forward.1} parent=11 // pred_check
        %p306 = pneg %p148
      $region30: #{decoder_forward.1} parent=11 // pred_check_branch
        %308 = sbr.rel (%p306) target = $region32
      $region31: #{decoder_forward.1} parent=11 // pred_region
        _
      $region32: #{decoder_forward.1} parent=11 // pred_fallthru
        _
      // Predicated region
      $region33: #{decoder_forward.1} parent=11 // pred_check
        %p309 = pneg %p169
      $region34: #{decoder_forward.1} parent=11 // pred_check_branch
        %311 = sbr.rel (%p309) target = $region36
      $region35: #{decoder_forward.1} parent=11 // pred_region
        _
      $region36: #{decoder_forward.1} parent=11 // pred_fallthru
        _
      // Predicated region
      $region37: #{decoder_forward.1} parent=11 // pred_check
        %p312 = pneg %p190
      $region38: #{decoder_forward.1} parent=11 // pred_check_branch
        %314 = sbr.rel (%p312) target = $region40
      $region39: #{decoder_forward.1} parent=11 // pred_region
        _
      $region40: #{decoder_forward.1} parent=11 // pred_fallthru
        _
      // Predicated region
      $region41: #{decoder_forward.1} parent=11 // pred_check
        %p315 = pneg %p211
      $region42: #{decoder_forward.1} parent=11 // pred_check_branch
        %317 = sbr.rel (%p315) target = $region44
      $region43: #{decoder_forward.1} parent=11 // pred_region
        _
      $region44: #{decoder_forward.1} parent=11 // pred_fallthru
        _
      // Predicated region
      $region45: #{decoder_forward.1} parent=11 // pred_check
        %p318 = pneg %p232
      $region46: #{decoder_forward.1} parent=11 // pred_check_branch
        %320 = sbr.rel (%p318) target = $region48
      $region47: #{decoder_forward.1} parent=11 // pred_region
        _
      $region48: #{decoder_forward.1} parent=11 // pred_fallthru
        _
      // Predicated region
      $region49: #{decoder_forward.1} parent=11 // pred_check
        %p321 = pneg %p253
      $region50: #{decoder_forward.1} parent=11 // pred_check_branch
        %323 = sbr.rel (%p321) target = $region52
      $region51: #{decoder_forward.1} parent=11 // pred_region
        _
      $region52: #{decoder_forward.1} parent=11 // pred_fallthru
        _
    $region12: #{decoder_forward.1} parent=5 // pred_fallthru
      _
    %p324 = scmp.lt.s32.totalorder %s17, 2
    // Predicated region
    $region53: #{decoder_forward.1} parent=5 // pred_check
      %p325 = pneg %p324
    $region54: #{decoder_forward.1} parent=5 // pred_check_branch
      %327 = sbr.rel (%p325) target = $region56
    $region55: #{decoder_forward.1} parent=5 // pred_region
      // Predicated region
      $region57: #{decoder_forward.1} parent=55 // pred_check
        %p328 = pneg %p37
      $region58: #{decoder_forward.1} parent=55 // pred_check_branch
        %330 = sbr.rel (%p328) target = $region60
      $region59: #{decoder_forward.1} parent=55 // pred_region
        %p331 = scmp.lt.s32.totalorder %s17, 1
        %s332 = scalar_select %p331, %s17, 1
        %s333 = smul.addr %s332, 32
        %s334 = smul.addr %s333, 4
        %s335 = scalar_lea.vmem %s0, %s334
      $region60: #{decoder_forward.1} parent=55 // pred_fallthru
        _
    $region56: #{decoder_forward.1} parent=5 // pred_fallthru
      _
    %p336 = scmp.le.s32.totalorder 1, %s17
    %p337 = scmp.lt.s32.totalorder %s17, 3
    %p338 = pnand %p336, %p337
    %p339 = pneg %p338
    // Predicated region
    $region61: #{decoder_forward.1} parent=5 // pred_check
      _
    $region62: #{decoder_forward.1} parent=5 // pred_check_branch
      %341 = sbr.rel (%p338) target = $region64
    $region63: #{decoder_forward.1} parent=5 // pred_region
      %s342 = ssub.s32 %s17, 1
      %p343 = scmp.lt.s32.totalorder %s22, 1
      %s344 = scalar_select %p343, %s22, 1
      %s345 = smul.addr %s344, 32
      %s346 = smul.addr %s345, 4
      %s347 = scalar_lea.vmem %s0, %s346
      %p348 = pneg %p43
      %p349 = pneg %p40
      %p350 = pneg %p64
      %p351 = pneg %p61
      %p352 = pneg %p85
      %p353 = pneg %p82
      %p354 = pneg %p106
      %p355 = pneg %p103
      %p356 = pneg %p127
      %p357 = pneg %p124
      %p358 = pneg %p148
      %p359 = pneg %p145
      %p360 = pneg %p169
      %p361 = pneg %p166
      %p362 = pneg %p190
      %p363 = pneg %p187
      %p364 = pneg %p211
      %p365 = pneg %p208
      %p366 = pneg %p232
      %p367 = pneg %p229
      %p368 = pneg %p253
      %p369 = pneg %p250
      %p370 = pneg %p279
      %p371 = pneg %p276
      %p372 = scmp.lt.s32.totalorder %s22, 1
      %s373 = scalar_select %p372, %s22, 1
      %s374 = smul.addr %s373, 8
      %s375 = smul.addr %s374, 4
      %s376 = scalar_lea.vmem %s11, %s375
      %p377 = scmp.lt.s32.totalorder %s22, 1
      %s378 = scalar_select %p377, %s22, 1
      %s379 = smul.addr %s378, 32
      %s380 = smul.addr %s379, 4
      %s381 = scalar_lea.vmem %s0, %s380
      %p382 = scmp.lt.s32.totalorder %s22, 1
      %s383 = scalar_select %p382, %s22, 1
      %s384 = smul.addr %s383, 8
      %s385 = smul.addr %s384, 4
      %s386 = scalar_lea.vmem %s11, %s385
      %vm388 = vcmask 519168
      %389 = vst.msk [vmem:[#allocation2] sm:$0xf] %vm388, 0
      %390 = vst.msk [vmem:[#allocation2 + $0x4] sm:$0xf] %vm388, 0
      %vm391 = vcmask 516096
      %392 = vst.msk [vmem:[#allocation2 + $0x8] sm:$0x1] %vm391, 0
      %s393 = scalar_lea.vmem [#allocation2], 204
      %394 = vst.msk [vmem:[%s393] sm:$0xf] %vm388, 0
      %395 = vst.msk [vmem:[%s393 + $0x4] sm:$0xf] %vm388, 0
      %396 = vst.msk [vmem:[%s393 + $0x8] sm:$0x1] %vm391, 0
      %vm397 = vcmask 516096
      %vm398 = vsmask.f32 256
      %vm399 = vmand %vm397, %vm398
      %v400 = vld [vmem:[#allocation2] sm:$0x1]
      %v401 = vsel %vm399, 0, %v400
      %402 = vst [vmem:[#allocation2] sm:$0x1] %v401
      %v403 = vld [vmem:[#allocation2 + $0xc] sm:$0x1]
      %v404 = vsel %vm399, 0, %v403
      %405 = vst [vmem:[#allocation2 + $0xc] sm:$0x1] %v404
      %v406 = vld [vmem:[#allocation2 + $0x18] sm:$0x1]
      %v407 = vsel %vm399, 0, %v406
      %408 = vst [vmem:[#allocation2 + $0x18] sm:$0x1] %v407
      %v409 = vld [vmem:[#allocation2 + $0x24] sm:$0x1]
      %v410 = vsel %vm399, 0, %v409
      %411 = vst [vmem:[#allocation2 + $0x24] sm:$0x1] %v410
      %v412 = vld [vmem:[#allocation2 + $0x30] sm:$0x1]
      %v413 = vsel %vm399, 0, %v412
      %414 = vst [vmem:[#allocation2 + $0x30] sm:$0x1] %v413
      %v415 = vld [vmem:[#allocation2 + $0x3c] sm:$0x1]
      %v416 = vsel %vm399, 0, %v415
      %417 = vst [vmem:[#allocation2 + $0x3c] sm:$0x1] %v416
      %v418 = vld [vmem:[#allocation2 + $0x48] sm:$0x1]
      %v419 = vsel %vm399, 0, %v418
      %420 = vst [vmem:[#allocation2 + $0x48] sm:$0x1] %v419
      %v421 = vld [vmem:[#allocation2 + $0x54] sm:$0x1]
      %v422 = vsel %vm399, 0, %v421
      %423 = vst [vmem:[#allocation2 + $0x54] sm:$0x1] %v422
      %v424 = vld [vmem:[#allocation2 + $0x60] sm:$0x1]
      %v425 = vsel %vm399, 0, %v424
      %426 = vst [vmem:[#allocation2 + $0x60] sm:$0x1] %v425
      %v427 = vld [vmem:[#allocation2 + $0x6c] sm:$0x1]
      %v428 = vsel %vm399, 0, %v427
      %429 = vst [vmem:[#allocation2 + $0x6c] sm:$0x1] %v428
      %v430 = vld [vmem:[#allocation2 + $0x78] sm:$0x1]
      %v431 = vsel %vm399, 0, %v430
      %432 = vst [vmem:[#allocation2 + $0x78] sm:$0x1] %v431
      %v433 = vld [vmem:[#allocation2 + $0x84] sm:$0x1]
      %v434 = vsel %vm399, 0, %v433
      %435 = vst [vmem:[#allocation2 + $0x84] sm:$0x1] %v434
      %v436 = vld [vmem:[#allocation2 + $0x90] sm:$0x1]
      %v437 = vsel %vm399, 0, %v436
      %438 = vst [vmem:[#allocation2 + $0x90] sm:$0x1] %v437
      %v439 = vld [vmem:[#allocation2 + $0x9c] sm:$0x1]
      %v440 = vsel %vm399, 0, %v439
      %441 = vst [vmem:[#allocation2 + $0x9c] sm:$0x1] %v440
      %v442 = vld [vmem:[#allocation2 + $0xa8] sm:$0x1]
      %v443 = vsel %vm399, 0, %v442
      %444 = vst [vmem:[#allocation2 + $0xa8] sm:$0x1] %v443
      %v445 = vld [vmem:[#allocation2 + $0xb4] sm:$0x1]
      %v446 = vsel %vm399, 0, %v445
      %447 = vst [vmem:[#allocation2 + $0xb4] sm:$0x1] %v446
      %v448 = vld [vmem:[#allocation2 + $0xc0] sm:$0x1]
      %v449 = vsel %vm399, 0, %v448
      %450 = vst [vmem:[#allocation2 + $0xc0] sm:$0x1] %v449
      %v451 = vld [vmem:[#allocation2 + $0xcc] sm:$0x1]
      %v452 = vsel %vm399, 0, %v451
      %453 = vst [vmem:[#allocation2 + $0xcc] sm:$0x1] %v452
      %vm454 = vsmask.f32 7938
      %vm455 = vmand %vm397, %vm454
      %v456 = vld [vmem:[#allocation2 + $0x8] sm:$0x1]
      %v457 = vsel %vm455, 0, %v456
      %458 = vst [vmem:[#allocation2 + $0x8] sm:$0x1] %v457
      %v459 = vld [vmem:[#allocation2 + $0x14] sm:$0x1]
      %v460 = vsel %vm455, 0, %v459
      %461 = vst [vmem:[#allocation2 + $0x14] sm:$0x1] %v460
      %v462 = vld [vmem:[#allocation2 + $0x20] sm:$0x1]
      %v463 = vsel %vm455, 0, %v462
      %464 = vst [vmem:[#allocation2 + $0x20] sm:$0x1] %v463
      %v465 = vld [vmem:[#allocation2 + $0x2c] sm:$0x1]
      %v466 = vsel %vm455, 0, %v465
      %467 = vst [vmem:[#allocation2 + $0x2c] sm:$0x1] %v466
      %v468 = vld [vmem:[#allocation2 + $0x38] sm:$0x1]
      %v469 = vsel %vm455, 0, %v468
      %470 = vst [vmem:[#allocation2 + $0x38] sm:$0x1] %v469
      %v471 = vld [vmem:[#allocation2 + $0x44] sm:$0x1]
      %v472 = vsel %vm455, 0, %v471
      %473 = vst [vmem:[#allocation2 + $0x44] sm:$0x1] %v472
      %v474 = vld [vmem:[#allocation2 + $0x50] sm:$0x1]
      %v475 = vsel %vm455, 0, %v474
      %476 = vst [vmem:[#allocation2 + $0x50] sm:$0x1] %v475
      %v477 = vld [vmem:[#allocation2 + $0x5c] sm:$0x1]
      %v478 = vsel %vm455, 0, %v477
      %479 = vst [vmem:[#allocation2 + $0x5c] sm:$0x1] %v478
      %v480 = vld [vmem:[#allocation2 + $0x68] sm:$0x1]
      %v481 = vsel %vm455, 0, %v480
      %482 = vst [vmem:[#allocation2 + $0x68] sm:$0x1] %v481
      %v483 = vld [vmem:[#allocation2 + $0x74] sm:$0x1]
      %v484 = vsel %vm455, 0, %v483
      %485 = vst [vmem:[#allocation2 + $0x74] sm:$0x1] %v484
      %v486 = vld [vmem:[#allocation2 + $0x80] sm:$0x1]
      %v487 = vsel %vm455, 0, %v486
      %488 = vst [vmem:[#allocation2 + $0x80] sm:$0x1] %v487
      %v489 = vld [vmem:[#allocation2 + $0x8c] sm:$0x1]
      %v490 = vsel %vm455, 0, %v489
      %491 = vst [vmem:[#allocation2 + $0x8c] sm:$0x1] %v490
      %v492 = vld [vmem:[#allocation2 + $0x98] sm:$0x1]
      %v493 = vsel %vm455, 0, %v492
      %494 = vst [vmem:[#allocation2 + $0x98] sm:$0x1] %v493
      %v495 = vld [vmem:[#allocation2 + $0xa4] sm:$0x1]
      %v496 = vsel %vm455, 0, %v495
      %497 = vst [vmem:[#allocation2 + $0xa4] sm:$0x1] %v496
      %v498 = vld [vmem:[#allocation2 + $0xb0] sm:$0x1]
      %v499 = vsel %vm455, 0, %v498
      %500 = vst [vmem:[#allocation2 + $0xb0] sm:$0x1] %v499
      %v501 = vld [vmem:[#allocation2 + $0xbc] sm:$0x1]
      %v502 = vsel %vm455, 0, %v501
      %503 = vst [vmem:[#allocation2 + $0xbc] sm:$0x1] %v502
      %v504 = vld [vmem:[#allocation2 + $0xc8] sm:$0x1]
      %v505 = vsel %vm455, 0, %v504
      %506 = vst [vmem:[#allocation2 + $0xc8] sm:$0x1] %v505
      %v507 = vld [vmem:[#allocation2 + $0xd4] sm:$0x1]
      %v508 = vsel %vm455, 0, %v507
      %509 = vst [vmem:[#allocation2 + $0xd4] sm:$0x1] %v508
      %510 = vst [vmem:[#allocation3] sm:$0xff] 0
      %511 = vst [vmem:[#allocation3 + $0x8] sm:$0xff] 0
      %512 = vst [vmem:[#allocation3 + $0x10] sm:$0x11] 0
      %s513 = scalar_lea.vmem [#allocation3], 408
      %514 = vst [vmem:[%s513] sm:$0xff] 0
      %515 = vst [vmem:[%s513 + $0x8] sm:$0xff] 0
      %516 = vst [vmem:[%s513 + $0x10] sm:$0x11] 0
      %vm517 = vcmask 1040384
      %vm518 = vmand %vm517, %vm398
      %vm519 = vcmask 1044484
      %vm520 = vsmask.f32 4352
      %vm521 = vmand %vm519, %vm520
      %vm522 = vmor %vm521, %vm518
      %v523 = vld [vmem:[#allocation3] sm:$0x11]
      %v524 = vsel %vm522, 0, %v523
      %525 = vst [vmem:[#allocation3] sm:$0x11] %v524
      %v526 = vld [vmem:[#allocation3 + $0x18] sm:$0x11]
      %v527 = vsel %vm522, 0, %v526
      %528 = vst [vmem:[#allocation3 + $0x18] sm:$0x11] %v527
      %v529 = vld [vmem:[#allocation3 + $0x30] sm:$0x11]
      %v530 = vsel %vm522, 0, %v529
      %531 = vst [vmem:[#allocation3 + $0x30] sm:$0x11] %v530
      %v532 = vld [vmem:[#allocation3 + $0x48] sm:$0x11]
      %v533 = vsel %vm522, 0, %v532
      %534 = vst [vmem:[#allocation3 + $0x48] sm:$0x11] %v533
      %v535 = vld [vmem:[#allocation3 + $0x60] sm:$0x11]
      %v536 = vsel %vm522, 0, %v535
      %537 = vst [vmem:[#allocation3 + $0x60] sm:$0x11] %v536
      %v538 = vld [vmem:[#allocation3 + $0x78] sm:$0x11]
      %v539 = vsel %vm522, 0, %v538
      %540 = vst [vmem:[#allocation3 + $0x78] sm:$0x11] %v539
      %v541 = vld [vmem:[#allocation3 + $0x90] sm:$0x11]
      %v542 = vsel %vm522, 0, %v541
      %543 = vst [vmem:[#allocation3 + $0x90] sm:$0x11] %v542
      %v544 = vld [vmem:[#allocation3 + $0xa8] sm:$0x11]
      %v545 = vsel %vm522, 0, %v544
      %546 = vst [vmem:[#allocation3 + $0xa8] sm:$0x11] %v545
      %v547 = vld [vmem:[#allocation3 + $0xc0] sm:$0x11]
      %v548 = vsel %vm522, 0, %v547
      %549 = vst [vmem:[#allocation3 + $0xc0] sm:$0x11] %v548
      %v550 = vld [vmem:[#allocation3 + $0xd8] sm:$0x11]
      %v551 = vsel %vm522, 0, %v550
      %552 = vst [vmem:[#allocation3 + $0xd8] sm:$0x11] %v551
      %v553 = vld [vmem:[#allocation3 + $0xf0] sm:$0x11]
      %v554 = vsel %vm522, 0, %v553
      %555 = vst [vmem:[#allocation3 + $0xf0] sm:$0x11] %v554
      %v556 = vld [vmem:[#allocation3 + $0x108] sm:$0x11]
      %v557 = vsel %vm522, 0, %v556
      %558 = vst [vmem:[#allocation3 + $0x108] sm:$0x11] %v557
      %v559 = vld [vmem:[#allocation3 + $0x120] sm:$0x11]
      %v560 = vsel %vm522, 0, %v559
      %561 = vst [vmem:[#allocation3 + $0x120] sm:$0x11] %v560
      %v562 = vld [vmem:[#allocation3 + $0x138] sm:$0x11]
      %v563 = vsel %vm522, 0, %v562
      %564 = vst [vmem:[#allocation3 + $0x138] sm:$0x11] %v563
      %v565 = vld [vmem:[#allocation3 + $0x150] sm:$0x11]
      %v566 = vsel %vm522, 0, %v565
      %567 = vst [vmem:[#allocation3 + $0x150] sm:$0x11] %v566
      %v568 = vld [vmem:[#allocation3 + $0x168] sm:$0x11]
      %v569 = vsel %vm522, 0, %v568
      %570 = vst [vmem:[#allocation3 + $0x168] sm:$0x11] %v569
      %v571 = vld [vmem:[#allocation3 + $0x180] sm:$0x11]
      %v572 = vsel %vm522, 0, %v571
      %573 = vst [vmem:[#allocation3 + $0x180] sm:$0x11] %v572
      %v574 = vld [vmem:[#allocation3 + $0x198] sm:$0x11]
      %v575 = vsel %vm522, 0, %v574
      %576 = vst [vmem:[#allocation3 + $0x198] sm:$0x11] %v575
      %vm577 = vmand %vm517, %vm454
      %vm578 = vsmask.f32 7954
      %vm579 = vmand %vm519, %vm578
      %vm580 = vmor %vm579, %vm577
      %v581 = vld [vmem:[#allocation3 + $0x10] sm:$0x11]
      %v582 = vsel %vm580, 0, %v581
      %583 = vst [vmem:[#allocation3 + $0x10] sm:$0x11] %v582
      %v584 = vld [vmem:[#allocation3 + $0x28] sm:$0x11]
      %v585 = vsel %vm580, 0, %v584
      %586 = vst [vmem:[#allocation3 + $0x28] sm:$0x11] %v585
      %v587 = vld [vmem:[#allocation3 + $0x40] sm:$0x11]
      %v588 = vsel %vm580, 0, %v587
      %589 = vst [vmem:[#allocation3 + $0x40] sm:$0x11] %v588
      %v590 = vld [vmem:[#allocation3 + $0x58] sm:$0x11]
      %v591 = vsel %vm580, 0, %v590
      %592 = vst [vmem:[#allocation3 + $0x58] sm:$0x11] %v591
      %v593 = vld [vmem:[#allocation3 + $0x70] sm:$0x11]
      %v594 = vsel %vm580, 0, %v593
      %595 = vst [vmem:[#allocation3 + $0x70] sm:$0x11] %v594
      %v596 = vld [vmem:[#allocation3 + $0x88] sm:$0x11]
      %v597 = vsel %vm580, 0, %v596
      %598 = vst [vmem:[#allocation3 + $0x88] sm:$0x11] %v597
      %v599 = vld [vmem:[#allocation3 + $0xa0] sm:$0x11]
      %v600 = vsel %vm580, 0, %v599
      %601 = vst [vmem:[#allocation3 + $0xa0] sm:$0x11] %v600
      %v602 = vld [vmem:[#allocation3 + $0xb8] sm:$0x11]
      %v603 = vsel %vm580, 0, %v602
      %604 = vst [vmem:[#allocation3 + $0xb8] sm:$0x11] %v603
      %v605 = vld [vmem:[#allocation3 + $0xd0] sm:$0x11]
      %v606 = vsel %vm580, 0, %v605
      %607 = vst [vmem:[#allocation3 + $0xd0] sm:$0x11] %v606
      %v608 = vld [vmem:[#allocation3 + $0xe8] sm:$0x11]
      %v609 = vsel %vm580, 0, %v608
      %610 = vst [vmem:[#allocation3 + $0xe8] sm:$0x11] %v609
      %v611 = vld [vmem:[#allocation3 + $0x100] sm:$0x11]
      %v612 = vsel %vm580, 0, %v611
      %613 = vst [vmem:[#allocation3 + $0x100] sm:$0x11] %v612
      %v614 = vld [vmem:[#allocation3 + $0x118] sm:$0x11]
      %v615 = vsel %vm580, 0, %v614
      %616 = vst [vmem:[#allocation3 + $0x118] sm:$0x11] %v615
      %v617 = vld [vmem:[#allocation3 + $0x130] sm:$0x11]
      %v618 = vsel %vm580, 0, %v617
      %619 = vst [vmem:[#allocation3 + $0x130] sm:$0x11] %v618
      %v620 = vld [vmem:[#allocation3 + $0x148] sm:$0x11]
      %v621 = vsel %vm580, 0, %v620
      %622 = vst [vmem:[#allocation3 + $0x148] sm:$0x11] %v621
      %v623 = vld [vmem:[#allocation3 + $0x160] sm:$0x11]
      %v624 = vsel %vm580, 0, %v623
      %625 = vst [vmem:[#allocation3 + $0x160] sm:$0x11] %v624
      %v626 = vld [vmem:[#allocation3 + $0x178] sm:$0x11]
      %v627 = vsel %vm580, 0, %v626
      %628 = vst [vmem:[#allocation3 + $0x178] sm:$0x11] %v627
      %v629 = vld [vmem:[#allocation3 + $0x190] sm:$0x11]
      %v630 = vsel %vm580, 0, %v629
      %631 = vst [vmem:[#allocation3 + $0x190] sm:$0x11] %v630
      %v632 = vld [vmem:[#allocation3 + $0x1a8] sm:$0x11]
      %v633 = vsel %vm580, 0, %v632
      %634 = vst [vmem:[#allocation3 + $0x1a8] sm:$0x11] %v633
      %v635 = vld [vmem:[%s381] sm:$0xf]
      %v636 = vld [vmem:[%s381 + $0x4] sm:$0xf]
      %v637 = vld [vmem:[%s381 + $0x8] sm:$0xf]
      %v638 = vld [vmem:[%s381 + $0xc] sm:$0xf]
      %v639 = vld [vmem:[%s381 + $0x10] sm:$0xf]
      %v640 = vld [vmem:[%s381 + $0x14] sm:$0xf]
      %v641 = vld [vmem:[%s381 + $0x18] sm:$0xf]
      %v642 = vld [vmem:[%s381 + $0x1c] sm:$0xf]
      %v643 = vld [vmem:[%s381 + $0x20] sm:$0xf]
      %v644 = vld [vmem:[%s381 + $0x24] sm:$0xf]
      %v645 = vld [vmem:[%s381 + $0x28] sm:$0xf]
      %v646 = vld [vmem:[%s381 + $0x2c] sm:$0xf]
      %v647 = vld [vmem:[%s381 + $0x30] sm:$0xf]
      %v648 = vld [vmem:[%s381 + $0x34] sm:$0xf]
      %v649 = vld [vmem:[%s381 + $0x38] sm:$0xf]
      %v650 = vld [vmem:[%s381 + $0x3c] sm:$0xf]
      %v651 = vld [vmem:[%s381 + $0x40] sm:$0xf]
      %v652 = vld [vmem:[%s381 + $0x44] sm:$0xf]
      %v653 = vld [vmem:[%s381 + $0x48] sm:$0xf]
      %v654 = vld [vmem:[%s381 + $0x4c] sm:$0xf]
      %v655 = vld [vmem:[%s381 + $0x50] sm:$0xf]
      %v656 = vld [vmem:[%s381 + $0x54] sm:$0xf]
      %v657 = vld [vmem:[%s381 + $0x58] sm:$0xf]
      %v658 = vld [vmem:[%s381 + $0x5c] sm:$0xf]
      %v659 = vld [vmem:[%s381 + $0x60] sm:$0xf]
      %v660 = vld [vmem:[%s381 + $0x64] sm:$0xf]
      %v661 = vld [vmem:[%s381 + $0x68] sm:$0xf]
      %v662 = vld [vmem:[%s381 + $0x6c] sm:$0xf]
      %v663 = vld [vmem:[%s381 + $0x70] sm:$0xf]
      %v664 = vld [vmem:[%s381 + $0x74] sm:$0xf]
      %v665 = vld [vmem:[%s381 + $0x78] sm:$0xf]
      %v666 = vld [vmem:[%s381 + $0x7c] sm:$0xf]
      %vm667 = vsmask.f32 4368
      %vm668 = vmor %vm398, %vm667
      %v670 = vshrl.u32 %v635, 16
      %v672 = vrot.slane %v670, 7
      %v673 = vshll.u32 %v635, 16
      %v675 = vor.u32 %v672, %v673
      %v676 = vrot.slane %v672, 4
      %v678 = vshrl.u32 %v636, 16
      %v680 = vrot.slane %v678, 7
      %v681 = vshll.u32 %v636, 16
      %v683 = vor.u32 %v680, %v681
      %v684 = vsel %vm668, %v676, %v683
      %v685 = vrot.slane %v680, 4
      %v687 = vshrl.u32 %v637, 16
      %v689 = vrot.slane %v687, 7
      %v690 = vshll.u32 %v637, 16
      %v692 = vor.u32 %v689, %v690
      %v693 = vrot.slane %v689, 4
      %v695 = vshrl.u32 %v638, 16
      %v697 = vrot.slane %v695, 7
      %v698 = vshll.u32 %v638, 16
      %v700 = vor.u32 %v697, %v698
      %v701 = vsel %vm668, %v693, %v700
      %v702 = vrot.slane %v697, 4
      %v704 = vshrl.u32 %v639, 16
      %v706 = vrot.slane %v704, 7
      %v707 = vshll.u32 %v639, 16
      %v709 = vor.u32 %v706, %v707
      %v710 = vrot.slane %v706, 4
      %v712 = vshrl.u32 %v640, 16
      %v714 = vrot.slane %v712, 7
      %v715 = vshll.u32 %v640, 16
      %v717 = vor.u32 %v714, %v715
      %v718 = vsel %vm668, %v710, %v717
      %v719 = vrot.slane %v714, 4
      %v721 = vshrl.u32 %v641, 16
      %v723 = vrot.slane %v721, 7
      %v724 = vshll.u32 %v641, 16
      %v726 = vor.u32 %v723, %v724
      %v727 = vrot.slane %v723, 4
      %v729 = vshrl.u32 %v642, 16
      %v731 = vrot.slane %v729, 7
      %v732 = vshll.u32 %v642, 16
      %v734 = vor.u32 %v731, %v732
      %v735 = vsel %vm668, %v727, %v734
      %v736 = vrot.slane %v731, 4
      %v738 = vshrl.u32 %v643, 16
      %v740 = vrot.slane %v738, 7
      %v741 = vshll.u32 %v643, 16
      %v743 = vor.u32 %v740, %v741
      %v744 = vrot.slane %v740, 4
      %v746 = vshrl.u32 %v644, 16
      %v748 = vrot.slane %v746, 7
      %v749 = vshll.u32 %v644, 16
      %v751 = vor.u32 %v748, %v749
      %v752 = vsel %vm668, %v744, %v751
      %v753 = vrot.slane %v748, 4
      %v755 = vshrl.u32 %v645, 16
      %v757 = vrot.slane %v755, 7
      %v758 = vshll.u32 %v645, 16
      %v760 = vor.u32 %v757, %v758
      %v761 = vrot.slane %v757, 4
      %v763 = vshrl.u32 %v646, 16
      %v765 = vrot.slane %v763, 7
      %v766 = vshll.u32 %v646, 16
      %v768 = vor.u32 %v765, %v766
      %v769 = vsel %vm668, %v761, %v768
      %v770 = vrot.slane %v765, 4
      %v772 = vshrl.u32 %v647, 16
      %v774 = vrot.slane %v772, 7
      %v775 = vshll.u32 %v647, 16
      %v777 = vor.u32 %v774, %v775
      %v778 = vrot.slane %v774, 4
      %v780 = vshrl.u32 %v648, 16
      %v782 = vrot.slane %v780, 7
      %v783 = vshll.u32 %v648, 16
      %v785 = vor.u32 %v782, %v783
      %v786 = vsel %vm668, %v778, %v785
      %v787 = vrot.slane %v782, 4
      %v789 = vshrl.u32 %v649, 16
      %v791 = vrot.slane %v789, 7
      %v792 = vshll.u32 %v649, 16
      %v794 = vor.u32 %v791, %v792
      %v795 = vrot.slane %v791, 4
      %v797 = vshrl.u32 %v650, 16
      %v799 = vrot.slane %v797, 7
      %v800 = vshll.u32 %v650, 16
      %v802 = vor.u32 %v799, %v800
      %v803 = vsel %vm668, %v795, %v802
      %v804 = vrot.slane %v799, 4
      %v806 = vshrl.u32 %v651, 16
      %v808 = vrot.slane %v806, 7
      %v809 = vshll.u32 %v651, 16
      %v811 = vor.u32 %v808, %v809
      %v812 = vrot.slane %v808, 4
      %v814 = vshrl.u32 %v652, 16
      %v816 = vrot.slane %v814, 7
      %v817 = vshll.u32 %v652, 16
      %v819 = vor.u32 %v816, %v817
      %v820 = vsel %vm668, %v812, %v819
      %v821 = vrot.slane %v816, 4
      %v823 = vshrl.u32 %v653, 16
      %v825 = vrot.slane %v823, 7
      %v826 = vshll.u32 %v653, 16
      %v828 = vor.u32 %v825, %v826
      %v829 = vrot.slane %v825, 4
      %v831 = vshrl.u32 %v654, 16
      %v833 = vrot.slane %v831, 7
      %v834 = vshll.u32 %v654, 16
      %v836 = vor.u32 %v833, %v834
      %v837 = vsel %vm668, %v829, %v836
      %v838 = vrot.slane %v833, 4
      %v840 = vshrl.u32 %v655, 16
      %v842 = vrot.slane %v840, 7
      %v843 = vshll.u32 %v655, 16
      %v845 = vor.u32 %v842, %v843
      %v846 = vrot.slane %v842, 4
      %v848 = vshrl.u32 %v656, 16
      %v850 = vrot.slane %v848, 7
      %v851 = vshll.u32 %v656, 16
      %v853 = vor.u32 %v850, %v851
      %v854 = vsel %vm668, %v846, %v853
      %v855 = vrot.slane %v850, 4
      %v857 = vshrl.u32 %v657, 16
      %v859 = vrot.slane %v857, 7
      %v860 = vshll.u32 %v657, 16
      %v862 = vor.u32 %v859, %v860
      %v863 = vrot.slane %v859, 4
      %v865 = vshrl.u32 %v658, 16
      %v867 = vrot.slane %v865, 7
      %v868 = vshll.u32 %v658, 16
      %v870 = vor.u32 %v867, %v868
      %v871 = vsel %vm668, %v863, %v870
      %v872 = vrot.slane %v867, 4
      %v874 = vshrl.u32 %v659, 16
      %v876 = vrot.slane %v874, 7
      %v877 = vshll.u32 %v659, 16
      %v879 = vor.u32 %v876, %v877
      %v880 = vrot.slane %v876, 4
      %v882 = vshrl.u32 %v660, 16
      %v884 = vrot.slane %v882, 7
      %v885 = vshll.u32 %v660, 16
      %v887 = vor.u32 %v884, %v885
      %v888 = vsel %vm668, %v880, %v887
      %v889 = vrot.slane %v884, 4
      %v891 = vshrl.u32 %v661, 16
      %v893 = vrot.slane %v891, 7
      %v894 = vshll.u32 %v661, 16
      %v896 = vor.u32 %v893, %v894
      %v897 = vrot.slane %v893, 4
      %v899 = vshrl.u32 %v662, 16
      %v901 = vrot.slane %v899, 7
      %v902 = vshll.u32 %v662, 16
      %v904 = vor.u32 %v901, %v902
      %v905 = vsel %vm668, %v897, %v904
      %v906 = vrot.slane %v901, 4
      %v908 = vshrl.u32 %v663, 16
      %v910 = vrot.slane %v908, 7
      %v911 = vshll.u32 %v663, 16
      %v913 = vor.u32 %v910, %v911
      %v914 = vrot.slane %v910, 4
      %v916 = vshrl.u32 %v664, 16
      %v918 = vrot.slane %v916, 7
      %v919 = vshll.u32 %v664, 16
      %v921 = vor.u32 %v918, %v919
      %v922 = vsel %vm668, %v914, %v921
      %v923 = vrot.slane %v918, 4
      %v925 = vshrl.u32 %v665, 16
      %v927 = vrot.slane %v925, 7
      %v928 = vshll.u32 %v665, 16
      %v930 = vor.u32 %v927, %v928
      %v931 = vrot.slane %v927, 4
      %v933 = vshrl.u32 %v666, 16
      %v935 = vrot.slane %v933, 7
      %v936 = vshll.u32 %v666, 16
      %v938 = vor.u32 %v935, %v936
      %v939 = vsel %vm668, %v931, %v938
      %v940 = vrot.slane %v935, 4
      %s989 = scalar_lea.vmem [#allocation2], 12
      %vm990 = vcmask 519168
      %vm991 = vmand %vm990, %vm454
      %v992 = vld [vmem:[%s989] sm:$0xf]
      %v993 = vsel %vm991, %v675, %v992
      %994 = vst [vmem:[%s989] sm:$0xf] %v993
      %995 = vst.msk [vmem:[%s989 + $0x4] sm:$0xf] %vm388, %v684
      %v996 = vld [vmem:[%s989 + $0x8] sm:$0x1]
      %v997 = vsel %vm399, %v685, %v996
      %998 = vst [vmem:[%s989 + $0x8] sm:$0x1] %v997
      %v999 = vld [vmem:[%s989 + $0xc] sm:$0xf]
      %v1000 = vsel %vm991, %v692, %v999
      %1001 = vst [vmem:[%s989 + $0xc] sm:$0xf] %v1000
      %1002 = vst.msk [vmem:[%s989 + $0x10] sm:$0xf] %vm388, %v701
      %v1003 = vld [vmem:[%s989 + $0x14] sm:$0x1]
      %v1004 = vsel %vm399, %v702, %v1003
      %1005 = vst [vmem:[%s989 + $0x14] sm:$0x1] %v1004
      %v1006 = vld [vmem:[%s989 + $0x18] sm:$0xf]
      %v1007 = vsel %vm991, %v709, %v1006
      %1008 = vst [vmem:[%s989 + $0x18] sm:$0xf] %v1007
      %1009 = vst.msk [vmem:[%s989 + $0x1c] sm:$0xf] %vm388, %v718
      %v1010 = vld [vmem:[%s989 + $0x20] sm:$0x1]
      %v1011 = vsel %vm399, %v719, %v1010
      %1012 = vst [vmem:[%s989 + $0x20] sm:$0x1] %v1011
      %v1013 = vld [vmem:[%s989 + $0x24] sm:$0xf]
      %v1014 = vsel %vm991, %v726, %v1013
      %1015 = vst [vmem:[%s989 + $0x24] sm:$0xf] %v1014
      %1016 = vst.msk [vmem:[%s989 + $0x28] sm:$0xf] %vm388, %v735
      %v1017 = vld [vmem:[%s989 + $0x2c] sm:$0x1]
      %v1018 = vsel %vm399, %v736, %v1017
      %1019 = vst [vmem:[%s989 + $0x2c] sm:$0x1] %v1018
      %v1020 = vld [vmem:[%s989 + $0x30] sm:$0xf]
      %v1021 = vsel %vm991, %v743, %v1020
      %1022 = vst [vmem:[%s989 + $0x30] sm:$0xf] %v1021
      %1023 = vst.msk [vmem:[%s989 + $0x34] sm:$0xf] %vm388, %v752
      %v1024 = vld [vmem:[%s989 + $0x38] sm:$0x1]
      %v1025 = vsel %vm399, %v753, %v1024
      %1026 = vst [vmem:[%s989 + $0x38] sm:$0x1] %v1025
      %v1027 = vld [vmem:[%s989 + $0x3c] sm:$0xf]
      %v1028 = vsel %vm991, %v760, %v1027
      %1029 = vst [vmem:[%s989 + $0x3c] sm:$0xf] %v1028
      %1030 = vst.msk [vmem:[%s989 + $0x40] sm:$0xf] %vm388, %v769
      %v1031 = vld [vmem:[%s989 + $0x44] sm:$0x1]
      %v1032 = vsel %vm399, %v770, %v1031
      %1033 = vst [vmem:[%s989 + $0x44] sm:$0x1] %v1032
      %v1034 = vld [vmem:[%s989 + $0x48] sm:$0xf]
      %v1035 = vsel %vm991, %v777, %v1034
      %1036 = vst [vmem:[%s989 + $0x48] sm:$0xf] %v1035
      %1037 = vst.msk [vmem:[%s989 + $0x4c] sm:$0xf] %vm388, %v786
      %v1038 = vld [vmem:[%s989 + $0x50] sm:$0x1]
      %v1039 = vsel %vm399, %v787, %v1038
      %1040 = vst [vmem:[%s989 + $0x50] sm:$0x1] %v1039
      %v1041 = vld [vmem:[%s989 + $0x54] sm:$0xf]
      %v1042 = vsel %vm991, %v794, %v1041
      %1043 = vst [vmem:[%s989 + $0x54] sm:$0xf] %v1042
      %1044 = vst.msk [vmem:[%s989 + $0x58] sm:$0xf] %vm388, %v803
      %v1045 = vld [vmem:[%s989 + $0x5c] sm:$0x1]
      %v1046 = vsel %vm399, %v804, %v1045
      %1047 = vst [vmem:[%s989 + $0x5c] sm:$0x1] %v1046
      %v1048 = vld [vmem:[%s989 + $0x60] sm:$0xf]
      %v1049 = vsel %vm991, %v811, %v1048
      %1050 = vst [vmem:[%s989 + $0x60] sm:$0xf] %v1049
      %1051 = vst.msk [vmem:[%s989 + $0x64] sm:$0xf] %vm388, %v820
      %v1052 = vld [vmem:[%s989 + $0x68] sm:$0x1]
      %v1053 = vsel %vm399, %v821, %v1052
      %1054 = vst [vmem:[%s989 + $0x68] sm:$0x1] %v1053
      %v1055 = vld [vmem:[%s989 + $0x6c] sm:$0xf]
      %v1056 = vsel %vm991, %v828, %v1055
      %1057 = vst [vmem:[%s989 + $0x6c] sm:$0xf] %v1056
      %1058 = vst.msk [vmem:[%s989 + $0x70] sm:$0xf] %vm388, %v837
      %v1059 = vld [vmem:[%s989 + $0x74] sm:$0x1]
      %v1060 = vsel %vm399, %v838, %v1059
      %1061 = vst [vmem:[%s989 + $0x74] sm:$0x1] %v1060
      %v1062 = vld [vmem:[%s989 + $0x78] sm:$0xf]
      %v1063 = vsel %vm991, %v845, %v1062
      %1064 = vst [vmem:[%s989 + $0x78] sm:$0xf] %v1063
      %1065 = vst.msk [vmem:[%s989 + $0x7c] sm:$0xf] %vm388, %v854
      %v1066 = vld [vmem:[%s989 + $0x80] sm:$0x1]
      %v1067 = vsel %vm399, %v855, %v1066
      %1068 = vst [vmem:[%s989 + $0x80] sm:$0x1] %v1067
      %v1069 = vld [vmem:[%s989 + $0x84] sm:$0xf]
      %v1070 = vsel %vm991, %v862, %v1069
      %1071 = vst [vmem:[%s989 + $0x84] sm:$0xf] %v1070
      %1072 = vst.msk [vmem:[%s989 + $0x88] sm:$0xf] %vm388, %v871
      %v1073 = vld [vmem:[%s989 + $0x8c] sm:$0x1]
      %v1074 = vsel %vm399, %v872, %v1073
      %1075 = vst [vmem:[%s989 + $0x8c] sm:$0x1] %v1074
      %v1076 = vld [vmem:[%s989 + $0x90] sm:$0xf]
      %v1077 = vsel %vm991, %v879, %v1076
      %1078 = vst [vmem:[%s989 + $0x90] sm:$0xf] %v1077
      %1079 = vst.msk [vmem:[%s989 + $0x94] sm:$0xf] %vm388, %v888
      %v1080 = vld [vmem:[%s989 + $0x98] sm:$0x1]
      %v1081 = vsel %vm399, %v889, %v1080
      %1082 = vst [vmem:[%s989 + $0x98] sm:$0x1] %v1081
      %v1083 = vld [vmem:[%s989 + $0x9c] sm:$0xf]
      %v1084 = vsel %vm991, %v896, %v1083
      %1085 = vst [vmem:[%s989 + $0x9c] sm:$0xf] %v1084
      %1086 = vst.msk [vmem:[%s989 + $0xa0] sm:$0xf] %vm388, %v905
      %v1087 = vld [vmem:[%s989 + $0xa4] sm:$0x1]
      %v1088 = vsel %vm399, %v906, %v1087
      %1089 = vst [vmem:[%s989 + $0xa4] sm:$0x1] %v1088
      %v1090 = vld [vmem:[%s989 + $0xa8] sm:$0xf]
      %v1091 = vsel %vm991, %v913, %v1090
      %1092 = vst [vmem:[%s989 + $0xa8] sm:$0xf] %v1091
      %1093 = vst.msk [vmem:[%s989 + $0xac] sm:$0xf] %vm388, %v922
      %v1094 = vld [vmem:[%s989 + $0xb0] sm:$0x1]
      %v1095 = vsel %vm399, %v923, %v1094
      %1096 = vst [vmem:[%s989 + $0xb0] sm:$0x1] %v1095
      %v1097 = vld [vmem:[%s989 + $0xb4] sm:$0xf]
      %v1098 = vsel %vm991, %v930, %v1097
      %1099 = vst [vmem:[%s989 + $0xb4] sm:$0xf] %v1098
      %1100 = vst.msk [vmem:[%s989 + $0xb8] sm:$0xf] %vm388, %v939
      %v1101 = vld [vmem:[%s989 + $0xbc] sm:$0x1]
      %v1102 = vsel %vm399, %v940, %v1101
      %1103 = vst [vmem:[%s989 + $0xbc] sm:$0x1] %v1102
      %v1104 = vld [vmem:[#allocation2] sm:$0xf]
      %v1105 = vld [vmem:[#allocation2 + $0x4] sm:$0xf]
      %v1106 = vld [vmem:[#allocation2 + $0xc] sm:$0xf]
      %v1107 = vld [vmem:[#allocation2 + $0x10] sm:$0xf]
      %v1108 = vld [vmem:[#allocation2 + $0x18] sm:$0xf]
      %v1109 = vld [vmem:[#allocation2 + $0x1c] sm:$0xf]
      %v1110 = vld [vmem:[#allocation2 + $0x24] sm:$0xf]
      %v1111 = vld [vmem:[#allocation2 + $0x28] sm:$0xf]
      %v1112 = vld [vmem:[#allocation2 + $0x30] sm:$0xf]
      %v1113 = vld [vmem:[#allocation2 + $0x34] sm:$0xf]
      %v1114 = vld [vmem:[#allocation2 + $0x3c] sm:$0xf]
      %v1115 = vld [vmem:[#allocation2 + $0x40] sm:$0xf]
      %v1116 = vld [vmem:[#allocation2 + $0x48] sm:$0xf]
      %v1117 = vld [vmem:[#allocation2 + $0x4c] sm:$0xf]
      %v1118 = vld [vmem:[#allocation2 + $0x54] sm:$0xf]
      %v1119 = vld [vmem:[#allocation2 + $0x58] sm:$0xf]
      %v1120 = vld [vmem:[#allocation2 + $0x60] sm:$0xf]
      %v1121 = vld [vmem:[#allocation2 + $0x64] sm:$0xf]
      %v1122 = vld [vmem:[#allocation2 + $0x6c] sm:$0xf]
      %v1123 = vld [vmem:[#allocation2 + $0x70] sm:$0xf]
      %v1124 = vld [vmem:[#allocation2 + $0x78] sm:$0xf]
      %v1125 = vld [vmem:[#allocation2 + $0x7c] sm:$0xf]
      %v1126 = vld [vmem:[#allocation2 + $0x84] sm:$0xf]
      %v1127 = vld [vmem:[#allocation2 + $0x88] sm:$0xf]
      %v1128 = vld [vmem:[#allocation2 + $0x90] sm:$0xf]
      %v1129 = vld [vmem:[#allocation2 + $0x94] sm:$0xf]
      %v1130 = vld [vmem:[#allocation2 + $0x9c] sm:$0xf]
      %v1131 = vld [vmem:[#allocation2 + $0xa0] sm:$0xf]
      %v1132 = vld [vmem:[#allocation2 + $0xa8] sm:$0xf]
      %v1133 = vld [vmem:[#allocation2 + $0xac] sm:$0xf]
      %v1134 = vld [vmem:[#allocation2 + $0xb4] sm:$0xf]
      %v1135 = vld [vmem:[#allocation2 + $0xb8] sm:$0xf]
      %v1136 = vld [vmem:[#allocation2 + $0x8] sm:$0x1]
      %v1137 = vld [vmem:[#allocation2 + $0x14] sm:$0x1]
      %v1138 = vld [vmem:[#allocation2 + $0x20] sm:$0x1]
      %v1139 = vld [vmem:[#allocation2 + $0x2c] sm:$0x1]
      %v1140 = vld [vmem:[#allocation2 + $0x38] sm:$0x1]
      %v1141 = vld [vmem:[#allocation2 + $0x44] sm:$0x1]
      %v1142 = vld [vmem:[#allocation2 + $0x50] sm:$0x1]
      %v1143 = vld [vmem:[#allocation2 + $0x5c] sm:$0x1]
      %v1144 = vld [vmem:[#allocation2 + $0x68] sm:$0x1]
      %v1145 = vld [vmem:[#allocation2 + $0x74] sm:$0x1]
      %v1146 = vld [vmem:[#allocation2 + $0x80] sm:$0x1]
      %v1147 = vld [vmem:[#allocation2 + $0x8c] sm:$0x1]
      %v1148 = vld [vmem:[#allocation2 + $0x98] sm:$0x1]
      %v1149 = vld [vmem:[#allocation2 + $0xa4] sm:$0x1]
      %v1150 = vld [vmem:[#allocation2 + $0xb0] sm:$0x1]
      %v1151 = vld [vmem:[#allocation2 + $0xbc] sm:$0x1]
      %vm1152 = vsmask.f32 3328
      %vm1153 = vsmask.f32 7440
      %vm1154 = vmor %vm1152, %vm1153
      %v1156 = vshrl.u32 %v1104, 16
      %v1158 = vrot.slane %v1156, 4
      %v1159 = vshll.u32 %v1104, 16
      %v1161 = vrot.slane %v1159, 5
      %v1162 = vor.u32 %v1158, %v1161
      %v1163 = vrot.slane %v1162, 4
      %v1165 = vshll.u32 %v1105, 16
      %v1167 = vrot.slane %v1165, 5
      %v1168 = vsel %vm1154, %v1163, %v1167
      %v1169 = vshrl.u32 %v1105, 16
      %v1171 = vrot.slane %v1169, 4
      %v1172 = vor.u32 %v1171, %v1167
      %v1173 = vrot.slane %v1172, 4
      %v1175 = vshll.u32 %v1136, 16
      %v1177 = vrot.slane %v1175, 5
      %v1178 = vsel %vm1154, %v1173, %v1177
      %v1180 = vshrl.u32 %v1106, 16
      %v1182 = vrot.slane %v1180, 4
      %v1183 = vshll.u32 %v1106, 16
      %v1185 = vrot.slane %v1183, 5
      %v1186 = vor.u32 %v1182, %v1185
      %v1187 = vrot.slane %v1186, 4
      %v1189 = vshll.u32 %v1107, 16
      %v1191 = vrot.slane %v1189, 5
      %v1192 = vsel %vm1154, %v1187, %v1191
      %v1193 = vshrl.u32 %v1107, 16
      %v1195 = vrot.slane %v1193, 4
      %v1196 = vor.u32 %v1195, %v1191
      %v1197 = vrot.slane %v1196, 4
      %v1199 = vshll.u32 %v1137, 16
      %v1201 = vrot.slane %v1199, 5
      %v1202 = vsel %vm1154, %v1197, %v1201
      %v1204 = vshrl.u32 %v1108, 16
      %v1206 = vrot.slane %v1204, 4
      %v1207 = vshll.u32 %v1108, 16
      %v1209 = vrot.slane %v1207, 5
      %v1210 = vor.u32 %v1206, %v1209
      %v1211 = vrot.slane %v1210, 4
      %v1213 = vshll.u32 %v1109, 16
      %v1215 = vrot.slane %v1213, 5
      %v1216 = vsel %vm1154, %v1211, %v1215
      %v1217 = vshrl.u32 %v1109, 16
      %v1219 = vrot.slane %v1217, 4
      %v1220 = vor.u32 %v1219, %v1215
      %v1221 = vrot.slane %v1220, 4
      %v1223 = vshll.u32 %v1138, 16
      %v1225 = vrot.slane %v1223, 5
      %v1226 = vsel %vm1154, %v1221, %v1225
      %v1228 = vshrl.u32 %v1110, 16
      %v1230 = vrot.slane %v1228, 4
      %v1231 = vshll.u32 %v1110, 16
      %v1233 = vrot.slane %v1231, 5
      %v1234 = vor.u32 %v1230, %v1233
      %v1235 = vrot.slane %v1234, 4
      %v1237 = vshll.u32 %v1111, 16
      %v1239 = vrot.slane %v1237, 5
      %v1240 = vsel %vm1154, %v1235, %v1239
      %v1241 = vshrl.u32 %v1111, 16
      %v1243 = vrot.slane %v1241, 4
      %v1244 = vor.u32 %v1243, %v1239
      %v1245 = vrot.slane %v1244, 4
      %v1247 = vshll.u32 %v1139, 16
      %v1249 = vrot.slane %v1247, 5
      %v1250 = vsel %vm1154, %v1245, %v1249
      %v1252 = vshrl.u32 %v1112, 16
      %v1254 = vrot.slane %v1252, 4
      %v1255 = vshll.u32 %v1112, 16
      %v1257 = vrot.slane %v1255, 5
      %v1258 = vor.u32 %v1254, %v1257
      %v1259 = vrot.slane %v1258, 4
      %v1261 = vshll.u32 %v1113, 16
      %v1263 = vrot.slane %v1261, 5
      %v1264 = vsel %vm1154, %v1259, %v1263
      %v1265 = vshrl.u32 %v1113, 16
      %v1267 = vrot.slane %v1265, 4
      %v1268 = vor.u32 %v1267, %v1263
      %v1269 = vrot.slane %v1268, 4
      %v1271 = vshll.u32 %v1140, 16
      %v1273 = vrot.slane %v1271, 5
      %v1274 = vsel %vm1154, %v1269, %v1273
      %v1276 = vshrl.u32 %v1114, 16
      %v1278 = vrot.slane %v1276, 4
      %v1279 = vshll.u32 %v1114, 16
      %v1281 = vrot.slane %v1279, 5
      %v1282 = vor.u32 %v1278, %v1281
      %v1283 = vrot.slane %v1282, 4
      %v1285 = vshll.u32 %v1115, 16
      %v1287 = vrot.slane %v1285, 5
      %v1288 = vsel %vm1154, %v1283, %v1287
      %v1289 = vshrl.u32 %v1115, 16
      %v1291 = vrot.slane %v1289, 4
      %v1292 = vor.u32 %v1291, %v1287
      %v1293 = vrot.slane %v1292, 4
      %v1295 = vshll.u32 %v1141, 16
      %v1297 = vrot.slane %v1295, 5
      %v1298 = vsel %vm1154, %v1293, %v1297
      %v1300 = vshrl.u32 %v1116, 16
      %v1302 = vrot.slane %v1300, 4
      %v1303 = vshll.u32 %v1116, 16
      %v1305 = vrot.slane %v1303, 5
      %v1306 = vor.u32 %v1302, %v1305
      %v1307 = vrot.slane %v1306, 4
      %v1309 = vshll.u32 %v1117, 16
      %v1311 = vrot.slane %v1309, 5
      %v1312 = vsel %vm1154, %v1307, %v1311
      %v1313 = vshrl.u32 %v1117, 16
      %v1315 = vrot.slane %v1313, 4
      %v1316 = vor.u32 %v1315, %v1311
      %v1317 = vrot.slane %v1316, 4
      %v1319 = vshll.u32 %v1142, 16
      %v1321 = vrot.slane %v1319, 5
      %v1322 = vsel %vm1154, %v1317, %v1321
      %v1324 = vshrl.u32 %v1118, 16
      %v1326 = vrot.slane %v1324, 4
      %v1327 = vshll.u32 %v1118, 16
      %v1329 = vrot.slane %v1327, 5
      %v1330 = vor.u32 %v1326, %v1329
      %v1331 = vrot.slane %v1330, 4
      %v1333 = vshll.u32 %v1119, 16
      %v1335 = vrot.slane %v1333, 5
      %v1336 = vsel %vm1154, %v1331, %v1335
      %v1337 = vshrl.u32 %v1119, 16
      %v1339 = vrot.slane %v1337, 4
      %v1340 = vor.u32 %v1339, %v1335
      %v1341 = vrot.slane %v1340, 4
      %v1343 = vshll.u32 %v1143, 16
      %v1345 = vrot.slane %v1343, 5
      %v1346 = vsel %vm1154, %v1341, %v1345
      %v1348 = vshrl.u32 %v1120, 16
      %v1350 = vrot.slane %v1348, 4
      %v1351 = vshll.u32 %v1120, 16
      %v1353 = vrot.slane %v1351, 5
      %v1354 = vor.u32 %v1350, %v1353
      %v1355 = vrot.slane %v1354, 4
      %v1357 = vshll.u32 %v1121, 16
      %v1359 = vrot.slane %v1357, 5
      %v1360 = vsel %vm1154, %v1355, %v1359
      %v1361 = vshrl.u32 %v1121, 16
      %v1363 = vrot.slane %v1361, 4
      %v1364 = vor.u32 %v1363, %v1359
      %v1365 = vrot.slane %v1364, 4
      %v1367 = vshll.u32 %v1144, 16
      %v1369 = vrot.slane %v1367, 5
      %v1370 = vsel %vm1154, %v1365, %v1369
      %v1372 = vshrl.u32 %v1122, 16
      %v1374 = vrot.slane %v1372, 4
      %v1375 = vshll.u32 %v1122, 16
      %v1377 = vrot.slane %v1375, 5
      %v1378 = vor.u32 %v1374, %v1377
      %v1379 = vrot.slane %v1378, 4
      %v1381 = vshll.u32 %v1123, 16
      %v1383 = vrot.slane %v1381, 5
      %v1384 = vsel %vm1154, %v1379, %v1383
      %v1385 = vshrl.u32 %v1123, 16
      %v1387 = vrot.slane %v1385, 4
      %v1388 = vor.u32 %v1387, %v1383
      %v1389 = vrot.slane %v1388, 4
      %v1391 = vshll.u32 %v1145, 16
      %v1393 = vrot.slane %v1391, 5
      %v1394 = vsel %vm1154, %v1389, %v1393
      %v1396 = vshrl.u32 %v1124, 16
      %v1398 = vrot.slane %v1396, 4
      %v1399 = vshll.u32 %v1124, 16
      %v1401 = vrot.slane %v1399, 5
      %v1402 = vor.u32 %v1398, %v1401
      %v1403 = vrot.slane %v1402, 4
      %v1405 = vshll.u32 %v1125, 16
      %v1407 = vrot.slane %v1405, 5
      %v1408 = vsel %vm1154, %v1403, %v1407
      %v1409 = vshrl.u32 %v1125, 16
      %v1411 = vrot.slane %v1409, 4
      %v1412 = vor.u32 %v1411, %v1407
      %v1413 = vrot.slane %v1412, 4
      %v1415 = vshll.u32 %v1146, 16
      %v1417 = vrot.slane %v1415, 5
      %v1418 = vsel %vm1154, %v1413, %v1417
      %v1420 = vshrl.u32 %v1126, 16
      %v1422 = vrot.slane %v1420, 4
      %v1423 = vshll.u32 %v1126, 16
      %v1425 = vrot.slane %v1423, 5
      %v1426 = vor.u32 %v1422, %v1425
      %v1427 = vrot.slane %v1426, 4
      %v1429 = vshll.u32 %v1127, 16
      %v1431 = vrot.slane %v1429, 5
      %v1432 = vsel %vm1154, %v1427, %v1431
      %v1433 = vshrl.u32 %v1127, 16
      %v1435 = vrot.slane %v1433, 4
      %v1436 = vor.u32 %v1435, %v1431
      %v1437 = vrot.slane %v1436, 4
      %v1439 = vshll.u32 %v1147, 16
      %v1441 = vrot.slane %v1439, 5
      %v1442 = vsel %vm1154, %v1437, %v1441
      %v1444 = vshrl.u32 %v1128, 16
      %v1446 = vrot.slane %v1444, 4
      %v1447 = vshll.u32 %v1128, 16
      %v1449 = vrot.slane %v1447, 5
      %v1450 = vor.u32 %v1446, %v1449
      %v1451 = vrot.slane %v1450, 4
      %v1453 = vshll.u32 %v1129, 16
      %v1455 = vrot.slane %v1453, 5
      %v1456 = vsel %vm1154, %v1451, %v1455
      %v1457 = vshrl.u32 %v1129, 16
      %v1459 = vrot.slane %v1457, 4
      %v1460 = vor.u32 %v1459, %v1455
      %v1461 = vrot.slane %v1460, 4
      %v1463 = vshll.u32 %v1148, 16
      %v1465 = vrot.slane %v1463, 5
      %v1466 = vsel %vm1154, %v1461, %v1465
      %v1468 = vshrl.u32 %v1130, 16
      %v1470 = vrot.slane %v1468, 4
      %v1471 = vshll.u32 %v1130, 16
      %v1473 = vrot.slane %v1471, 5
      %v1474 = vor.u32 %v1470, %v1473
      %v1475 = vrot.slane %v1474, 4
      %v1477 = vshll.u32 %v1131, 16
      %v1479 = vrot.slane %v1477, 5
      %v1480 = vsel %vm1154, %v1475, %v1479
      %v1481 = vshrl.u32 %v1131, 16
      %v1483 = vrot.slane %v1481, 4
      %v1484 = vor.u32 %v1483, %v1479
      %v1485 = vrot.slane %v1484, 4
      %v1487 = vshll.u32 %v1149, 16
      %v1489 = vrot.slane %v1487, 5
      %v1490 = vsel %vm1154, %v1485, %v1489
      %v1492 = vshrl.u32 %v1132, 16
      %v1494 = vrot.slane %v1492, 4
      %v1495 = vshll.u32 %v1132, 16
      %v1497 = vrot.slane %v1495, 5
      %v1498 = vor.u32 %v1494, %v1497
      %v1499 = vrot.slane %v1498, 4
      %v1501 = vshll.u32 %v1133, 16
      %v1503 = vrot.slane %v1501, 5
      %v1504 = vsel %vm1154, %v1499, %v1503
      %v1505 = vshrl.u32 %v1133, 16
      %v1507 = vrot.slane %v1505, 4
      %v1508 = vor.u32 %v1507, %v1503
      %v1509 = vrot.slane %v1508, 4
      %v1511 = vshll.u32 %v1150, 16
      %v1513 = vrot.slane %v1511, 5
      %v1514 = vsel %vm1154, %v1509, %v1513
      %v1516 = vshrl.u32 %v1134, 16
      %v1518 = vrot.slane %v1516, 4
      %v1519 = vshll.u32 %v1134, 16
      %v1521 = vrot.slane %v1519, 5
      %v1522 = vor.u32 %v1518, %v1521
      %v1523 = vrot.slane %v1522, 4
      %v1525 = vshll.u32 %v1135, 16
      %v1527 = vrot.slane %v1525, 5
      %v1528 = vsel %vm1154, %v1523, %v1527
      %v1529 = vshrl.u32 %v1135, 16
      %v1531 = vrot.slane %v1529, 4
      %v1532 = vor.u32 %v1531, %v1527
      %v1533 = vrot.slane %v1532, 4
      %v1535 = vshll.u32 %v1151, 16
      %v1537 = vrot.slane %v1535, 5
      %v1538 = vsel %vm1154, %v1533, %v1537
      %v1539 = vld [vmem:[#allocation2] sm:$0xe]
      %v1540 = vld [vmem:[#allocation2 + $0xc] sm:$0xe]
      %v1541 = vld [vmem:[#allocation2 + $0x18] sm:$0xe]
      %v1542 = vld [vmem:[#allocation2 + $0x24] sm:$0xe]
      %v1543 = vld [vmem:[#allocation2 + $0x30] sm:$0xe]
      %v1544 = vld [vmem:[#allocation2 + $0x3c] sm:$0xe]
      %v1545 = vld [vmem:[#allocation2 + $0x48] sm:$0xe]
      %v1546 = vld [vmem:[#allocation2 + $0x54] sm:$0xe]
      %v1547 = vld [vmem:[#allocation2 + $0x60] sm:$0xe]
      %v1548 = vld [vmem:[#allocation2 + $0x6c] sm:$0xe]
      %v1549 = vld [vmem:[#allocation2 + $0x78] sm:$0xe]
      %v1550 = vld [vmem:[#allocation2 + $0x84] sm:$0xe]
      %v1551 = vld [vmem:[#allocation2 + $0x90] sm:$0xe]
      %v1552 = vld [vmem:[#allocation2 + $0x9c] sm:$0xe]
      %v1553 = vld [vmem:[#allocation2 + $0xa8] sm:$0xe]
      %v1554 = vld [vmem:[#allocation2 + $0xb4] sm:$0xe]
      %vm1603 = vcmask 1042432
      %vm1604 = vcmask 1046532
      %vm1605 = vmor %vm1603, %vm1604
      %v1606 = vrot.slane %v1539, 5
      %v1607 = vrot.slane %v1606, 4
      %v1608 = vrot.slane %v1105, 5
      %v1609 = vsel %vm1605, %v1607, %v1608
      %v1610 = vrot.slane %v1608, 4
      %v1611 = vrot.slane %v1136, 5
      %v1612 = vsel %vm1605, %v1610, %v1611
      %v1613 = vrot.slane %v1540, 5
      %v1614 = vrot.slane %v1613, 4
      %v1615 = vrot.slane %v1107, 5
      %v1616 = vsel %vm1605, %v1614, %v1615
      %v1617 = vrot.slane %v1615, 4
      %v1618 = vrot.slane %v1137, 5
      %v1619 = vsel %vm1605, %v1617, %v1618
      %v1620 = vrot.slane %v1541, 5
      %v1621 = vrot.slane %v1620, 4
      %v1622 = vrot.slane %v1109, 5
      %v1623 = vsel %vm1605, %v1621, %v1622
      %v1624 = vrot.slane %v1622, 4
      %v1625 = vrot.slane %v1138, 5
      %v1626 = vsel %vm1605, %v1624, %v1625
      %v1627 = vrot.slane %v1542, 5
      %v1628 = vrot.slane %v1627, 4
      %v1629 = vrot.slane %v1111, 5
      %v1630 = vsel %vm1605, %v1628, %v1629
      %v1631 = vrot.slane %v1629, 4
      %v1632 = vrot.slane %v1139, 5
      %v1633 = vsel %vm1605, %v1631, %v1632
      %v1634 = vrot.slane %v1543, 5
      %v1635 = vrot.slane %v1634, 4
      %v1636 = vrot.slane %v1113, 5
      %v1637 = vsel %vm1605, %v1635, %v1636
      %v1638 = vrot.slane %v1636, 4
      %v1639 = vrot.slane %v1140, 5
      %v1640 = vsel %vm1605, %v1638, %v1639
      %v1641 = vrot.slane %v1544, 5
      %v1642 = vrot.slane %v1641, 4
      %v1643 = vrot.slane %v1115, 5
      %v1644 = vsel %vm1605, %v1642, %v1643
      %v1645 = vrot.slane %v1643, 4
      %v1646 = vrot.slane %v1141, 5
      %v1647 = vsel %vm1605, %v1645, %v1646
      %v1648 = vrot.slane %v1545, 5
      %v1649 = vrot.slane %v1648, 4
      %v1650 = vrot.slane %v1117, 5
      %v1651 = vsel %vm1605, %v1649, %v1650
      %v1652 = vrot.slane %v1650, 4
      %v1653 = vrot.slane %v1142, 5
      %v1654 = vsel %vm1605, %v1652, %v1653
      %v1655 = vrot.slane %v1546, 5
      %v1656 = vrot.slane %v1655, 4
      %v1657 = vrot.slane %v1119, 5
      %v1658 = vsel %vm1605, %v1656, %v1657
      %v1659 = vrot.slane %v1657, 4
      %v1660 = vrot.slane %v1143, 5
      %v1661 = vsel %vm1605, %v1659, %v1660
      %v1662 = vrot.slane %v1547, 5
      %v1663 = vrot.slane %v1662, 4
      %v1664 = vrot.slane %v1121, 5
      %v1665 = vsel %vm1605, %v1663, %v1664
      %v1666 = vrot.slane %v1664, 4
      %v1667 = vrot.slane %v1144, 5
      %v1668 = vsel %vm1605, %v1666, %v1667
      %v1669 = vrot.slane %v1548, 5
      %v1670 = vrot.slane %v1669, 4
      %v1671 = vrot.slane %v1123, 5
      %v1672 = vsel %vm1605, %v1670, %v1671
      %v1673 = vrot.slane %v1671, 4
      %v1674 = vrot.slane %v1145, 5
      %v1675 = vsel %vm1605, %v1673, %v1674
      %v1676 = vrot.slane %v1549, 5
      %v1677 = vrot.slane %v1676, 4
      %v1678 = vrot.slane %v1125, 5
      %v1679 = vsel %vm1605, %v1677, %v1678
      %v1680 = vrot.slane %v1678, 4
      %v1681 = vrot.slane %v1146, 5
      %v1682 = vsel %vm1605, %v1680, %v1681
      %v1683 = vrot.slane %v1550, 5
      %v1684 = vrot.slane %v1683, 4
      %v1685 = vrot.slane %v1127, 5
      %v1686 = vsel %vm1605, %v1684, %v1685
      %v1687 = vrot.slane %v1685, 4
      %v1688 = vrot.slane %v1147, 5
      %v1689 = vsel %vm1605, %v1687, %v1688
      %v1690 = vrot.slane %v1551, 5
      %v1691 = vrot.slane %v1690, 4
      %v1692 = vrot.slane %v1129, 5
      %v1693 = vsel %vm1605, %v1691, %v1692
      %v1694 = vrot.slane %v1692, 4
      %v1695 = vrot.slane %v1148, 5
      %v1696 = vsel %vm1605, %v1694, %v1695
      %v1697 = vrot.slane %v1552, 5
      %v1698 = vrot.slane %v1697, 4
      %v1699 = vrot.slane %v1131, 5
      %v1700 = vsel %vm1605, %v1698, %v1699
      %v1701 = vrot.slane %v1699, 4
      %v1702 = vrot.slane %v1149, 5
      %v1703 = vsel %vm1605, %v1701, %v1702
      %v1704 = vrot.slane %v1553, 5
      %v1705 = vrot.slane %v1704, 4
      %v1706 = vrot.slane %v1133, 5
      %v1707 = vsel %vm1605, %v1705, %v1706
      %v1708 = vrot.slane %v1706, 4
      %v1709 = vrot.slane %v1150, 5
      %v1710 = vsel %vm1605, %v1708, %v1709
      %v1711 = vrot.slane %v1554, 5
      %v1712 = vrot.slane %v1711, 4
      %v1713 = vrot.slane %v1135, 5
      %v1714 = vsel %vm1605, %v1712, %v1713
      %v1715 = vrot.slane %v1713, 4
      %v1716 = vrot.slane %v1151, 5
      %v1717 = vsel %vm1605, %v1715, %v1716
      %v1718 = vld [vmem:[%s989] sm:$0xf]
      %v1719 = vld [vmem:[%s989 + $0x4] sm:$0xf]
      %v1720 = vld [vmem:[%s989 + $0xc] sm:$0xf]
      %v1721 = vld [vmem:[%s989 + $0x10] sm:$0xf]
      %v1722 = vld [vmem:[%s989 + $0x18] sm:$0xf]
      %v1723 = vld [vmem:[%s989 + $0x1c] sm:$0xf]
      %v1724 = vld [vmem:[%s989 + $0x24] sm:$0xf]
      %v1725 = vld [vmem:[%s989 + $0x28] sm:$0xf]
      %v1726 = vld [vmem:[%s989 + $0x30] sm:$0xf]
      %v1727 = vld [vmem:[%s989 + $0x34] sm:$0xf]
      %v1728 = vld [vmem:[%s989 + $0x3c] sm:$0xf]
      %v1729 = vld [vmem:[%s989 + $0x40] sm:$0xf]
      %v1730 = vld [vmem:[%s989 + $0x48] sm:$0xf]
      %v1731 = vld [vmem:[%s989 + $0x4c] sm:$0xf]
      %v1732 = vld [vmem:[%s989 + $0x54] sm:$0xf]
      %v1733 = vld [vmem:[%s989 + $0x58] sm:$0xf]
      %v1734 = vld [vmem:[%s989 + $0x60] sm:$0xf]
      %v1735 = vld [vmem:[%s989 + $0x64] sm:$0xf]
      %v1736 = vld [vmem:[%s989 + $0x6c] sm:$0xf]
      %v1737 = vld [vmem:[%s989 + $0x70] sm:$0xf]
      %v1738 = vld [vmem:[%s989 + $0x78] sm:$0xf]
      %v1739 = vld [vmem:[%s989 + $0x7c] sm:$0xf]
      %v1740 = vld [vmem:[%s989 + $0x84] sm:$0xf]
      %v1741 = vld [vmem:[%s989 + $0x88] sm:$0xf]
      %v1742 = vld [vmem:[%s989 + $0x90] sm:$0xf]
      %v1743 = vld [vmem:[%s989 + $0x94] sm:$0xf]
      %v1744 = vld [vmem:[%s989 + $0x9c] sm:$0xf]
      %v1745 = vld [vmem:[%s989 + $0xa0] sm:$0xf]
      %v1746 = vld [vmem:[%s989 + $0xa8] sm:$0xf]
      %v1747 = vld [vmem:[%s989 + $0xac] sm:$0xf]
      %v1748 = vld [vmem:[%s989 + $0xb4] sm:$0xf]
      %v1749 = vld [vmem:[%s989 + $0xb8] sm:$0xf]
      %v1750 = vld [vmem:[%s989 + $0x8] sm:$0x1]
      %v1751 = vld [vmem:[%s989 + $0x14] sm:$0x1]
      %v1752 = vld [vmem:[%s989 + $0x20] sm:$0x1]
      %v1753 = vld [vmem:[%s989 + $0x2c] sm:$0x1]
      %v1754 = vld [vmem:[%s989 + $0x38] sm:$0x1]
      %v1755 = vld [vmem:[%s989 + $0x44] sm:$0x1]
      %v1756 = vld [vmem:[%s989 + $0x50] sm:$0x1]
      %v1757 = vld [vmem:[%s989 + $0x5c] sm:$0x1]
      %v1758 = vld [vmem:[%s989 + $0x68] sm:$0x1]
      %v1759 = vld [vmem:[%s989 + $0x74] sm:$0x1]
      %v1760 = vld [vmem:[%s989 + $0x80] sm:$0x1]
      %v1761 = vld [vmem:[%s989 + $0x8c] sm:$0x1]
      %v1762 = vld [vmem:[%s989 + $0x98] sm:$0x1]
      %v1763 = vld [vmem:[%s989 + $0xa4] sm:$0x1]
      %v1764 = vld [vmem:[%s989 + $0xb0] sm:$0x1]
      %v1765 = vld [vmem:[%s989 + $0xbc] sm:$0x1]
      %v1767 = vshrl.u32 %v1718, 16
      %v1769 = vrot.slane %v1767, 4
      %v1770 = vshll.u32 %v1718, 16
      %v1772 = vrot.slane %v1770, 5
      %v1773 = vor.u32 %v1769, %v1772
      %v1774 = vrot.slane %v1773, 4
      %v1776 = vshll.u32 %v1719, 16
      %v1778 = vrot.slane %v1776, 5
      %v1779 = vsel %vm1154, %v1774, %v1778
      %v1780 = vshrl.u32 %v1719, 16
      %v1782 = vrot.slane %v1780, 4
      %v1783 = vor.u32 %v1782, %v1778
      %v1784 = vrot.slane %v1783, 4
      %v1786 = vshll.u32 %v1750, 16
      %v1788 = vrot.slane %v1786, 5
      %v1789 = vsel %vm1154, %v1784, %v1788
      %v1791 = vshrl.u32 %v1720, 16
      %v1793 = vrot.slane %v1791, 4
      %v1794 = vshll.u32 %v1720, 16
      %v1796 = vrot.slane %v1794, 5
      %v1797 = vor.u32 %v1793, %v1796
      %v1798 = vrot.slane %v1797, 4
      %v1800 = vshll.u32 %v1721, 16
      %v1802 = vrot.slane %v1800, 5
      %v1803 = vsel %vm1154, %v1798, %v1802
      %v1804 = vshrl.u32 %v1721, 16
      %v1806 = vrot.slane %v1804, 4
      %v1807 = vor.u32 %v1806, %v1802
      %v1808 = vrot.slane %v1807, 4
      %v1810 = vshll.u32 %v1751, 16
      %v1812 = vrot.slane %v1810, 5
      %v1813 = vsel %vm1154, %v1808, %v1812
      %v1815 = vshrl.u32 %v1722, 16
      %v1817 = vrot.slane %v1815, 4
      %v1818 = vshll.u32 %v1722, 16
      %v1820 = vrot.slane %v1818, 5
      %v1821 = vor.u32 %v1817, %v1820
      %v1822 = vrot.slane %v1821, 4
      %v1824 = vshll.u32 %v1723, 16
      %v1826 = vrot.slane %v1824, 5
      %v1827 = vsel %vm1154, %v1822, %v1826
      %v1828 = vshrl.u32 %v1723, 16
      %v1830 = vrot.slane %v1828, 4
      %v1831 = vor.u32 %v1830, %v1826
      %v1832 = vrot.slane %v1831, 4
      %v1834 = vshll.u32 %v1752, 16
      %v1836 = vrot.slane %v1834, 5
      %v1837 = vsel %vm1154, %v1832, %v1836
      %v1839 = vshrl.u32 %v1724, 16
      %v1841 = vrot.slane %v1839, 4
      %v1842 = vshll.u32 %v1724, 16
      %v1844 = vrot.slane %v1842, 5
      %v1845 = vor.u32 %v1841, %v1844
      %v1846 = vrot.slane %v1845, 4
      %v1848 = vshll.u32 %v1725, 16
      %v1850 = vrot.slane %v1848, 5
      %v1851 = vsel %vm1154, %v1846, %v1850
      %v1852 = vshrl.u32 %v1725, 16
      %v1854 = vrot.slane %v1852, 4
      %v1855 = vor.u32 %v1854, %v1850
      %v1856 = vrot.slane %v1855, 4
      %v1858 = vshll.u32 %v1753, 16
      %v1860 = vrot.slane %v1858, 5
      %v1861 = vsel %vm1154, %v1856, %v1860
      %v1863 = vshrl.u32 %v1726, 16
      %v1865 = vrot.slane %v1863, 4
      %v1866 = vshll.u32 %v1726, 16
      %v1868 = vrot.slane %v1866, 5
      %v1869 = vor.u32 %v1865, %v1868
      %v1870 = vrot.slane %v1869, 4
      %v1872 = vshll.u32 %v1727, 16
      %v1874 = vrot.slane %v1872, 5
      %v1875 = vsel %vm1154, %v1870, %v1874
      %v1876 = vshrl.u32 %v1727, 16
      %v1878 = vrot.slane %v1876, 4
      %v1879 = vor.u32 %v1878, %v1874
      %v1880 = vrot.slane %v1879, 4
      %v1882 = vshll.u32 %v1754, 16
      %v1884 = vrot.slane %v1882, 5
      %v1885 = vsel %vm1154, %v1880, %v1884
      %v1887 = vshrl.u32 %v1728, 16
      %v1889 = vrot.slane %v1887, 4
      %v1890 = vshll.u32 %v1728, 16
      %v1892 = vrot.slane %v1890, 5
      %v1893 = vor.u32 %v1889, %v1892
      %v1894 = vrot.slane %v1893, 4
      %v1896 = vshll.u32 %v1729, 16
      %v1898 = vrot.slane %v1896, 5
      %v1899 = vsel %vm1154, %v1894, %v1898
      %v1900 = vshrl.u32 %v1729, 16
      %v1902 = vrot.slane %v1900, 4
      %v1903 = vor.u32 %v1902, %v1898
      %v1904 = vrot.slane %v1903, 4
      %v1906 = vshll.u32 %v1755, 16
      %v1908 = vrot.slane %v1906, 5
      %v1909 = vsel %vm1154, %v1904, %v1908
      %v1911 = vshrl.u32 %v1730, 16
      %v1913 = vrot.slane %v1911, 4
      %v1914 = vshll.u32 %v1730, 16
      %v1916 = vrot.slane %v1914, 5
      %v1917 = vor.u32 %v1913, %v1916
      %v1918 = vrot.slane %v1917, 4
      %v1920 = vshll.u32 %v1731, 16
      %v1922 = vrot.slane %v1920, 5
      %v1923 = vsel %vm1154, %v1918, %v1922
      %v1924 = vshrl.u32 %v1731, 16
      %v1926 = vrot.slane %v1924, 4
      %v1927 = vor.u32 %v1926, %v1922
      %v1928 = vrot.slane %v1927, 4
      %v1930 = vshll.u32 %v1756, 16
      %v1932 = vrot.slane %v1930, 5
      %v1933 = vsel %vm1154, %v1928, %v1932
      %v1935 = vshrl.u32 %v1732, 16
      %v1937 = vrot.slane %v1935, 4
      %v1938 = vshll.u32 %v1732, 16
      %v1940 = vrot.slane %v1938, 5
      %v1941 = vor.u32 %v1937, %v1940
      %v1942 = vrot.slane %v1941, 4
      %v1944 = vshll.u32 %v1733, 16
      %v1946 = vrot.slane %v1944, 5
      %v1947 = vsel %vm1154, %v1942, %v1946
      %v1948 = vshrl.u32 %v1733, 16
      %v1950 = vrot.slane %v1948, 4
      %v1951 = vor.u32 %v1950, %v1946
      %v1952 = vrot.slane %v1951, 4
      %v1954 = vshll.u32 %v1757, 16
      %v1956 = vrot.slane %v1954, 5
      %v1957 = vsel %vm1154, %v1952, %v1956
      %v1959 = vshrl.u32 %v1734, 16
      %v1961 = vrot.slane %v1959, 4
      %v1962 = vshll.u32 %v1734, 16
      %v1964 = vrot.slane %v1962, 5
      %v1965 = vor.u32 %v1961, %v1964
      %v1966 = vrot.slane %v1965, 4
      %v1968 = vshll.u32 %v1735, 16
      %v1970 = vrot.slane %v1968, 5
      %v1971 = vsel %vm1154, %v1966, %v1970
      %v1972 = vshrl.u32 %v1735, 16
      %v1974 = vrot.slane %v1972, 4
      %v1975 = vor.u32 %v1974, %v1970
      %v1976 = vrot.slane %v1975, 4
      %v1978 = vshll.u32 %v1758, 16
      %v1980 = vrot.slane %v1978, 5
      %v1981 = vsel %vm1154, %v1976, %v1980
      %v1983 = vshrl.u32 %v1736, 16
      %v1985 = vrot.slane %v1983, 4
      %v1986 = vshll.u32 %v1736, 16
      %v1988 = vrot.slane %v1986, 5
      %v1989 = vor.u32 %v1985, %v1988
      %v1990 = vrot.slane %v1989, 4
      %v1992 = vshll.u32 %v1737, 16
      %v1994 = vrot.slane %v1992, 5
      %v1995 = vsel %vm1154, %v1990, %v1994
      %v1996 = vshrl.u32 %v1737, 16
      %v1998 = vrot.slane %v1996, 4
      %v1999 = vor.u32 %v1998, %v1994
      %v2000 = vrot.slane %v1999, 4
      %v2002 = vshll.u32 %v1759, 16
      %v2004 = vrot.slane %v2002, 5
      %v2005 = vsel %vm1154, %v2000, %v2004
      %v2007 = vshrl.u32 %v1738, 16
      %v2009 = vrot.slane %v2007, 4
      %v2010 = vshll.u32 %v1738, 16
      %v2012 = vrot.slane %v2010, 5
      %v2013 = vor.u32 %v2009, %v2012
      %v2014 = vrot.slane %v2013, 4
      %v2016 = vshll.u32 %v1739, 16
      %v2018 = vrot.slane %v2016, 5
      %v2019 = vsel %vm1154, %v2014, %v2018
      %v2020 = vshrl.u32 %v1739, 16
      %v2022 = vrot.slane %v2020, 4
      %v2023 = vor.u32 %v2022, %v2018
      %v2024 = vrot.slane %v2023, 4
      %v2026 = vshll.u32 %v1760, 16
      %v2028 = vrot.slane %v2026, 5
      %v2029 = vsel %vm1154, %v2024, %v2028
      %v2031 = vshrl.u32 %v1740, 16
      %v2033 = vrot.slane %v2031, 4
      %v2034 = vshll.u32 %v1740, 16
      %v2036 = vrot.slane %v2034, 5
      %v2037 = vor.u32 %v2033, %v2036
      %v2038 = vrot.slane %v2037, 4
      %v2040 = vshll.u32 %v1741, 16
      %v2042 = vrot.slane %v2040, 5
      %v2043 = vsel %vm1154, %v2038, %v2042
      %v2044 = vshrl.u32 %v1741, 16
      %v2046 = vrot.slane %v2044, 4
      %v2047 = vor.u32 %v2046, %v2042
      %v2048 = vrot.slane %v2047, 4
      %v2050 = vshll.u32 %v1761, 16
      %v2052 = vrot.slane %v2050, 5
      %v2053 = vsel %vm1154, %v2048, %v2052
      %v2055 = vshrl.u32 %v1742, 16
      %v2057 = vrot.slane %v2055, 4
      %v2058 = vshll.u32 %v1742, 16
      %v2060 = vrot.slane %v2058, 5
      %v2061 = vor.u32 %v2057, %v2060
      %v2062 = vrot.slane %v2061, 4
      %v2064 = vshll.u32 %v1743, 16
      %v2066 = vrot.slane %v2064, 5
      %v2067 = vsel %vm1154, %v2062, %v2066
      %v2068 = vshrl.u32 %v1743, 16
      %v2070 = vrot.slane %v2068, 4
      %v2071 = vor.u32 %v2070, %v2066
      %v2072 = vrot.slane %v2071, 4
      %v2074 = vshll.u32 %v1762, 16
      %v2076 = vrot.slane %v2074, 5
      %v2077 = vsel %vm1154, %v2072, %v2076
      %v2079 = vshrl.u32 %v1744, 16
      %v2081 = vrot.slane %v2079, 4
      %v2082 = vshll.u32 %v1744, 16
      %v2084 = vrot.slane %v2082, 5
      %v2085 = vor.u32 %v2081, %v2084
      %v2086 = vrot.slane %v2085, 4
      %v2088 = vshll.u32 %v1745, 16
      %v2090 = vrot.slane %v2088, 5
      %v2091 = vsel %vm1154, %v2086, %v2090
      %v2092 = vshrl.u32 %v1745, 16
      %v2094 = vrot.slane %v2092, 4
      %v2095 = vor.u32 %v2094, %v2090
      %v2096 = vrot.slane %v2095, 4
      %v2098 = vshll.u32 %v1763, 16
      %v2100 = vrot.slane %v2098, 5
      %v2101 = vsel %vm1154, %v2096, %v2100
      %v2103 = vshrl.u32 %v1746, 16
      %v2105 = vrot.slane %v2103, 4
      %v2106 = vshll.u32 %v1746, 16
      %v2108 = vrot.slane %v2106, 5
      %v2109 = vor.u32 %v2105, %v2108
      %v2110 = vrot.slane %v2109, 4
      %v2112 = vshll.u32 %v1747, 16
      %v2114 = vrot.slane %v2112, 5
      %v2115 = vsel %vm1154, %v2110, %v2114
      %v2116 = vshrl.u32 %v1747, 16
      %v2118 = vrot.slane %v2116, 4
      %v2119 = vor.u32 %v2118, %v2114
      %v2120 = vrot.slane %v2119, 4
      %v2122 = vshll.u32 %v1764, 16
      %v2124 = vrot.slane %v2122, 5
      %v2125 = vsel %vm1154, %v2120, %v2124
      %v2127 = vshrl.u32 %v1748, 16
      %v2129 = vrot.slane %v2127, 4
      %v2130 = vshll.u32 %v1748, 16
      %v2132 = vrot.slane %v2130, 5
      %v2133 = vor.u32 %v2129, %v2132
      %v2134 = vrot.slane %v2133, 4
      %v2136 = vshll.u32 %v1749, 16
      %v2138 = vrot.slane %v2136, 5
      %v2139 = vsel %vm1154, %v2134, %v2138
      %v2140 = vshrl.u32 %v1749, 16
      %v2142 = vrot.slane %v2140, 4
      %v2143 = vor.u32 %v2142, %v2138
      %v2144 = vrot.slane %v2143, 4
      %v2146 = vshll.u32 %v1765, 16
      %v2148 = vrot.slane %v2146, 5
      %v2149 = vsel %vm1154, %v2144, %v2148
      %v2150 = vld [vmem:[%s989] sm:$0xe]
      %v2151 = vld [vmem:[%s989 + $0xc] sm:$0xe]
      %v2152 = vld [vmem:[%s989 + $0x18] sm:$0xe]
      %v2153 = vld [vmem:[%s989 + $0x24] sm:$0xe]
      %v2154 = vld [vmem:[%s989 + $0x30] sm:$0xe]
      %v2155 = vld [vmem:[%s989 + $0x3c] sm:$0xe]
      %v2156 = vld [vmem:[%s989 + $0x48] sm:$0xe]
      %v2157 = vld [vmem:[%s989 + $0x54] sm:$0xe]
      %v2158 = vld [vmem:[%s989 + $0x60] sm:$0xe]
      %v2159 = vld [vmem:[%s989 + $0x6c] sm:$0xe]
      %v2160 = vld [vmem:[%s989 + $0x78] sm:$0xe]
      %v2161 = vld [vmem:[%s989 + $0x84] sm:$0xe]
      %v2162 = vld [vmem:[%s989 + $0x90] sm:$0xe]
      %v2163 = vld [vmem:[%s989 + $0x9c] sm:$0xe]
      %v2164 = vld [vmem:[%s989 + $0xa8] sm:$0xe]
      %v2165 = vld [vmem:[%s989 + $0xb4] sm:$0xe]
      %v2214 = vrot.slane %v2150, 5
      %v2215 = vrot.slane %v2214, 4
      %v2216 = vrot.slane %v1719, 5
      %v2217 = vsel %vm1605, %v2215, %v2216
      %v2218 = vrot.slane %v2216, 4
      %v2219 = vrot.slane %v1750, 5
      %v2220 = vsel %vm1605, %v2218, %v2219
      %v2221 = vrot.slane %v2151, 5
      %v2222 = vrot.slane %v2221, 4
      %v2223 = vrot.slane %v1721, 5
      %v2224 = vsel %vm1605, %v2222, %v2223
      %v2225 = vrot.slane %v2223, 4
      %v2226 = vrot.slane %v1751, 5
      %v2227 = vsel %vm1605, %v2225, %v2226
      %v2228 = vrot.slane %v2152, 5
      %v2229 = vrot.slane %v2228, 4
      %v2230 = vrot.slane %v1723, 5
      %v2231 = vsel %vm1605, %v2229, %v2230
      %v2232 = vrot.slane %v2230, 4
      %v2233 = vrot.slane %v1752, 5
      %v2234 = vsel %vm1605, %v2232, %v2233
      %v2235 = vrot.slane %v2153, 5
      %v2236 = vrot.slane %v2235, 4
      %v2237 = vrot.slane %v1725, 5
      %v2238 = vsel %vm1605, %v2236, %v2237
      %v2239 = vrot.slane %v2237, 4
      %v2240 = vrot.slane %v1753, 5
      %v2241 = vsel %vm1605, %v2239, %v2240
      %v2242 = vrot.slane %v2154, 5
      %v2243 = vrot.slane %v2242, 4
      %v2244 = vrot.slane %v1727, 5
      %v2245 = vsel %vm1605, %v2243, %v2244
      %v2246 = vrot.slane %v2244, 4
      %v2247 = vrot.slane %v1754, 5
      %v2248 = vsel %vm1605, %v2246, %v2247
      %v2249 = vrot.slane %v2155, 5
      %v2250 = vrot.slane %v2249, 4
      %v2251 = vrot.slane %v1729, 5
      %v2252 = vsel %vm1605, %v2250, %v2251
      %v2253 = vrot.slane %v2251, 4
      %v2254 = vrot.slane %v1755, 5
      %v2255 = vsel %vm1605, %v2253, %v2254
      %v2256 = vrot.slane %v2156, 5
      %v2257 = vrot.slane %v2256, 4
      %v2258 = vrot.slane %v1731, 5
      %v2259 = vsel %vm1605, %v2257, %v2258
      %v2260 = vrot.slane %v2258, 4
      %v2261 = vrot.slane %v1756, 5
      %v2262 = vsel %vm1605, %v2260, %v2261
      %v2263 = vrot.slane %v2157, 5
      %v2264 = vrot.slane %v2263, 4
      %v2265 = vrot.slane %v1733, 5
      %v2266 = vsel %vm1605, %v2264, %v2265
      %v2267 = vrot.slane %v2265, 4
      %v2268 = vrot.slane %v1757, 5
      %v2269 = vsel %vm1605, %v2267, %v2268
      %v2270 = vrot.slane %v2158, 5
      %v2271 = vrot.slane %v2270, 4
      %v2272 = vrot.slane %v1735, 5
      %v2273 = vsel %vm1605, %v2271, %v2272
      %v2274 = vrot.slane %v2272, 4
      %v2275 = vrot.slane %v1758, 5
      %v2276 = vsel %vm1605, %v2274, %v2275
      %v2277 = vrot.slane %v2159, 5
      %v2278 = vrot.slane %v2277, 4
      %v2279 = vrot.slane %v1737, 5
      %v2280 = vsel %vm1605, %v2278, %v2279
      %v2281 = vrot.slane %v2279, 4
      %v2282 = vrot.slane %v1759, 5
      %v2283 = vsel %vm1605, %v2281, %v2282
      %v2284 = vrot.slane %v2160, 5
      %v2285 = vrot.slane %v2284, 4
      %v2286 = vrot.slane %v1739, 5
      %v2287 = vsel %vm1605, %v2285, %v2286
      %v2288 = vrot.slane %v2286, 4
      %v2289 = vrot.slane %v1760, 5
      %v2290 = vsel %vm1605, %v2288, %v2289
      %v2291 = vrot.slane %v2161, 5
      %v2292 = vrot.slane %v2291, 4
      %v2293 = vrot.slane %v1741, 5
      %v2294 = vsel %vm1605, %v2292, %v2293
      %v2295 = vrot.slane %v2293, 4
      %v2296 = vrot.slane %v1761, 5
      %v2297 = vsel %vm1605, %v2295, %v2296
      %v2298 = vrot.slane %v2162, 5
      %v2299 = vrot.slane %v2298, 4
      %v2300 = vrot.slane %v1743, 5
      %v2301 = vsel %vm1605, %v2299, %v2300
      %v2302 = vrot.slane %v2300, 4
      %v2303 = vrot.slane %v1762, 5
      %v2304 = vsel %vm1605, %v2302, %v2303
      %v2305 = vrot.slane %v2163, 5
      %v2306 = vrot.slane %v2305, 4
      %v2307 = vrot.slane %v1745, 5
      %v2308 = vsel %vm1605, %v2306, %v2307
      %v2309 = vrot.slane %v2307, 4
      %v2310 = vrot.slane %v1763, 5
      %v2311 = vsel %vm1605, %v2309, %v2310
      %v2312 = vrot.slane %v2164, 5
      %v2313 = vrot.slane %v2312, 4
      %v2314 = vrot.slane %v1747, 5
      %v2315 = vsel %vm1605, %v2313, %v2314
      %v2316 = vrot.slane %v2314, 4
      %v2317 = vrot.slane %v1764, 5
      %v2318 = vsel %vm1605, %v2316, %v2317
      %v2319 = vrot.slane %v2165, 5
      %v2320 = vrot.slane %v2319, 4
      %v2321 = vrot.slane %v1749, 5
      %v2322 = vsel %vm1605, %v2320, %v2321
      %v2323 = vrot.slane %v2321, 4
      %v2324 = vrot.slane %v1765, 5
      %v2325 = vsel %vm1605, %v2323, %v2324
      %s2326 = scalar_lea.vmem [#allocation2], 24
      %v2327 = vld [vmem:[%s2326] sm:$0xf]
      %v2328 = vld [vmem:[%s2326 + $0x4] sm:$0xf]
      %v2329 = vld [vmem:[%s2326 + $0xc] sm:$0xf]
      %v2330 = vld [vmem:[%s2326 + $0x10] sm:$0xf]
      %v2331 = vld [vmem:[%s2326 + $0x18] sm:$0xf]
      %v2332 = vld [vmem:[%s2326 + $0x1c] sm:$0xf]
      %v2333 = vld [vmem:[%s2326 + $0x24] sm:$0xf]
      %v2334 = vld [vmem:[%s2326 + $0x28] sm:$0xf]
      %v2335 = vld [vmem:[%s2326 + $0x30] sm:$0xf]
      %v2336 = vld [vmem:[%s2326 + $0x34] sm:$0xf]
      %v2337 = vld [vmem:[%s2326 + $0x3c] sm:$0xf]
      %v2338 = vld [vmem:[%s2326 + $0x40] sm:$0xf]
      %v2339 = vld [vmem:[%s2326 + $0x48] sm:$0xf]
      %v2340 = vld [vmem:[%s2326 + $0x4c] sm:$0xf]
      %v2341 = vld [vmem:[%s2326 + $0x54] sm:$0xf]
      %v2342 = vld [vmem:[%s2326 + $0x58] sm:$0xf]
      %v2343 = vld [vmem:[%s2326 + $0x60] sm:$0xf]
      %v2344 = vld [vmem:[%s2326 + $0x64] sm:$0xf]
      %v2345 = vld [vmem:[%s2326 + $0x6c] sm:$0xf]
      %v2346 = vld [vmem:[%s2326 + $0x70] sm:$0xf]
      %v2347 = vld [vmem:[%s2326 + $0x78] sm:$0xf]
      %v2348 = vld [vmem:[%s2326 + $0x7c] sm:$0xf]
      %v2349 = vld [vmem:[%s2326 + $0x84] sm:$0xf]
      %v2350 = vld [vmem:[%s2326 + $0x88] sm:$0xf]
      %v2351 = vld [vmem:[%s2326 + $0x90] sm:$0xf]
      %v2352 = vld [vmem:[%s2326 + $0x94] sm:$0xf]
      %v2353 = vld [vmem:[%s2326 + $0x9c] sm:$0xf]
      %v2354 = vld [vmem:[%s2326 + $0xa0] sm:$0xf]
      %v2355 = vld [vmem:[%s2326 + $0xa8] sm:$0xf]
      %v2356 = vld [vmem:[%s2326 + $0xac] sm:$0xf]
      %v2357 = vld [vmem:[%s2326 + $0xb4] sm:$0xf]
      %v2358 = vld [vmem:[%s2326 + $0xb8] sm:$0xf]
      %v2359 = vld [vmem:[%s2326 + $0x8] sm:$0x1]
      %v2360 = vld [vmem:[%s2326 + $0x14] sm:$0x1]
      %v2361 = vld [vmem:[%s2326 + $0x20] sm:$0x1]
      %v2362 = vld [vmem:[%s2326 + $0x2c] sm:$0x1]
      %v2363 = vld [vmem:[%s2326 + $0x38] sm:$0x1]
      %v2364 = vld [vmem:[%s2326 + $0x44] sm:$0x1]
      %v2365 = vld [vmem:[%s2326 + $0x50] sm:$0x1]
      %v2366 = vld [vmem:[%s2326 + $0x5c] sm:$0x1]
      %v2367 = vld [vmem:[%s2326 + $0x68] sm:$0x1]
      %v2368 = vld [vmem:[%s2326 + $0x74] sm:$0x1]
      %v2369 = vld [vmem:[%s2326 + $0x80] sm:$0x1]
      %v2370 = vld [vmem:[%s2326 + $0x8c] sm:$0x1]
      %v2371 = vld [vmem:[%s2326 + $0x98] sm:$0x1]
      %v2372 = vld [vmem:[%s2326 + $0xa4] sm:$0x1]
      %v2373 = vld [vmem:[%s2326 + $0xb0] sm:$0x1]
      %v2374 = vld [vmem:[%s2326 + $0xbc] sm:$0x1]
      %v2376 = vshrl.u32 %v2327, 16
      %v2378 = vrot.slane %v2376, 4
      %v2379 = vshll.u32 %v2327, 16
      %v2381 = vrot.slane %v2379, 5
      %v2382 = vor.u32 %v2378, %v2381
      %v2383 = vrot.slane %v2382, 4
      %v2385 = vshll.u32 %v2328, 16
      %v2387 = vrot.slane %v2385, 5
      %v2388 = vsel %vm1154, %v2383, %v2387
      %v2389 = vshrl.u32 %v2328, 16
      %v2391 = vrot.slane %v2389, 4
      %v2392 = vor.u32 %v2391, %v2387
      %v2393 = vrot.slane %v2392, 4
      %v2395 = vshll.u32 %v2359, 16
      %v2397 = vrot.slane %v2395, 5
      %v2398 = vsel %vm1154, %v2393, %v2397
      %v2400 = vshrl.u32 %v2329, 16
      %v2402 = vrot.slane %v2400, 4
      %v2403 = vshll.u32 %v2329, 16
      %v2405 = vrot.slane %v2403, 5
      %v2406 = vor.u32 %v2402, %v2405
      %v2407 = vrot.slane %v2406, 4
      %v2409 = vshll.u32 %v2330, 16
      %v2411 = vrot.slane %v2409, 5
      %v2412 = vsel %vm1154, %v2407, %v2411
      %v2413 = vshrl.u32 %v2330, 16
      %v2415 = vrot.slane %v2413, 4
      %v2416 = vor.u32 %v2415, %v2411
      %v2417 = vrot.slane %v2416, 4
      %v2419 = vshll.u32 %v2360, 16
      %v2421 = vrot.slane %v2419, 5
      %v2422 = vsel %vm1154, %v2417, %v2421
      %v2424 = vshrl.u32 %v2331, 16
      %v2426 = vrot.slane %v2424, 4
      %v2427 = vshll.u32 %v2331, 16
      %v2429 = vrot.slane %v2427, 5
      %v2430 = vor.u32 %v2426, %v2429
      %v2431 = vrot.slane %v2430, 4
      %v2433 = vshll.u32 %v2332, 16
      %v2435 = vrot.slane %v2433, 5
      %v2436 = vsel %vm1154, %v2431, %v2435
      %v2437 = vshrl.u32 %v2332, 16
      %v2439 = vrot.slane %v2437, 4
      %v2440 = vor.u32 %v2439, %v2435
      %v2441 = vrot.slane %v2440, 4
      %v2443 = vshll.u32 %v2361, 16
      %v2445 = vrot.slane %v2443, 5
      %v2446 = vsel %vm1154, %v2441, %v2445
      %v2448 = vshrl.u32 %v2333, 16
      %v2450 = vrot.slane %v2448, 4
      %v2451 = vshll.u32 %v2333, 16
      %v2453 = vrot.slane %v2451, 5
      %v2454 = vor.u32 %v2450, %v2453
      %v2455 = vrot.slane %v2454, 4
      %v2457 = vshll.u32 %v2334, 16
      %v2459 = vrot.slane %v2457, 5
      %v2460 = vsel %vm1154, %v2455, %v2459
      %v2461 = vshrl.u32 %v2334, 16
      %v2463 = vrot.slane %v2461, 4
      %v2464 = vor.u32 %v2463, %v2459
      %v2465 = vrot.slane %v2464, 4
      %v2467 = vshll.u32 %v2362, 16
      %v2469 = vrot.slane %v2467, 5
      %v2470 = vsel %vm1154, %v2465, %v2469
      %v2472 = vshrl.u32 %v2335, 16
      %v2474 = vrot.slane %v2472, 4
      %v2475 = vshll.u32 %v2335, 16
      %v2477 = vrot.slane %v2475, 5
      %v2478 = vor.u32 %v2474, %v2477
      %v2479 = vrot.slane %v2478, 4
      %v2481 = vshll.u32 %v2336, 16
      %v2483 = vrot.slane %v2481, 5
      %v2484 = vsel %vm1154, %v2479, %v2483
      %v2485 = vshrl.u32 %v2336, 16
      %v2487 = vrot.slane %v2485, 4
      %v2488 = vor.u32 %v2487, %v2483
      %v2489 = vrot.slane %v2488, 4
      %v2491 = vshll.u32 %v2363, 16
      %v2493 = vrot.slane %v2491, 5
      %v2494 = vsel %vm1154, %v2489, %v2493
      %v2496 = vshrl.u32 %v2337, 16
      %v2498 = vrot.slane %v2496, 4
      %v2499 = vshll.u32 %v2337, 16
      %v2501 = vrot.slane %v2499, 5
      %v2502 = vor.u32 %v2498, %v2501
      %v2503 = vrot.slane %v2502, 4
      %v2505 = vshll.u32 %v2338, 16
      %v2507 = vrot.slane %v2505, 5
      %v2508 = vsel %vm1154, %v2503, %v2507
      %v2509 = vshrl.u32 %v2338, 16
      %v2511 = vrot.slane %v2509, 4
      %v2512 = vor.u32 %v2511, %v2507
      %v2513 = vrot.slane %v2512, 4
      %v2515 = vshll.u32 %v2364, 16
      %v2517 = vrot.slane %v2515, 5
      %v2518 = vsel %vm1154, %v2513, %v2517
      %v2520 = vshrl.u32 %v2339, 16
      %v2522 = vrot.slane %v2520, 4
      %v2523 = vshll.u32 %v2339, 16
      %v2525 = vrot.slane %v2523, 5
      %v2526 = vor.u32 %v2522, %v2525
      %v2527 = vrot.slane %v2526, 4
      %v2529 = vshll.u32 %v2340, 16
      %v2531 = vrot.slane %v2529, 5
      %v2532 = vsel %vm1154, %v2527, %v2531
      %v2533 = vshrl.u32 %v2340, 16
      %v2535 = vrot.slane %v2533, 4
      %v2536 = vor.u32 %v2535, %v2531
      %v2537 = vrot.slane %v2536, 4
      %v2539 = vshll.u32 %v2365, 16
      %v2541 = vrot.slane %v2539, 5
      %v2542 = vsel %vm1154, %v2537, %v2541
      %v2544 = vshrl.u32 %v2341, 16
      %v2546 = vrot.slane %v2544, 4
      %v2547 = vshll.u32 %v2341, 16
      %v2549 = vrot.slane %v2547, 5
      %v2550 = vor.u32 %v2546, %v2549
      %v2551 = vrot.slane %v2550, 4
      %v2553 = vshll.u32 %v2342, 16
      %v2555 = vrot.slane %v2553, 5
      %v2556 = vsel %vm1154, %v2551, %v2555
      %v2557 = vshrl.u32 %v2342, 16
      %v2559 = vrot.slane %v2557, 4
      %v2560 = vor.u32 %v2559, %v2555
      %v2561 = vrot.slane %v2560, 4
      %v2563 = vshll.u32 %v2366, 16
      %v2565 = vrot.slane %v2563, 5
      %v2566 = vsel %vm1154, %v2561, %v2565
      %v2568 = vshrl.u32 %v2343, 16
      %v2570 = vrot.slane %v2568, 4
      %v2571 = vshll.u32 %v2343, 16
      %v2573 = vrot.slane %v2571, 5
      %v2574 = vor.u32 %v2570, %v2573
      %v2575 = vrot.slane %v2574, 4
      %v2577 = vshll.u32 %v2344, 16
      %v2579 = vrot.slane %v2577, 5
      %v2580 = vsel %vm1154, %v2575, %v2579
      %v2581 = vshrl.u32 %v2344, 16
      %v2583 = vrot.slane %v2581, 4
      %v2584 = vor.u32 %v2583, %v2579
      %v2585 = vrot.slane %v2584, 4
      %v2587 = vshll.u32 %v2367, 16
      %v2589 = vrot.slane %v2587, 5
      %v2590 = vsel %vm1154, %v2585, %v2589
      %v2592 = vshrl.u32 %v2345, 16
      %v2594 = vrot.slane %v2592, 4
      %v2595 = vshll.u32 %v2345, 16
      %v2597 = vrot.slane %v2595, 5
      %v2598 = vor.u32 %v2594, %v2597
      %v2599 = vrot.slane %v2598, 4
      %v2601 = vshll.u32 %v2346, 16
      %v2603 = vrot.slane %v2601, 5
      %v2604 = vsel %vm1154, %v2599, %v2603
      %v2605 = vshrl.u32 %v2346, 16
      %v2607 = vrot.slane %v2605, 4
      %v2608 = vor.u32 %v2607, %v2603
      %v2609 = vrot.slane %v2608, 4
      %v2611 = vshll.u32 %v2368, 16
      %v2613 = vrot.slane %v2611, 5
      %v2614 = vsel %vm1154, %v2609, %v2613
      %v2616 = vshrl.u32 %v2347, 16
      %v2618 = vrot.slane %v2616, 4
      %v2619 = vshll.u32 %v2347, 16
      %v2621 = vrot.slane %v2619, 5
      %v2622 = vor.u32 %v2618, %v2621
      %v2623 = vrot.slane %v2622, 4
      %v2625 = vshll.u32 %v2348, 16
      %v2627 = vrot.slane %v2625, 5
      %v2628 = vsel %vm1154, %v2623, %v2627
      %v2629 = vshrl.u32 %v2348, 16
      %v2631 = vrot.slane %v2629, 4
      %v2632 = vor.u32 %v2631, %v2627
      %v2633 = vrot.slane %v2632, 4
      %v2635 = vshll.u32 %v2369, 16
      %v2637 = vrot.slane %v2635, 5
      %v2638 = vsel %vm1154, %v2633, %v2637
      %v2640 = vshrl.u32 %v2349, 16
      %v2642 = vrot.slane %v2640, 4
      %v2643 = vshll.u32 %v2349, 16
      %v2645 = vrot.slane %v2643, 5
      %v2646 = vor.u32 %v2642, %v2645
      %v2647 = vrot.slane %v2646, 4
      %v2649 = vshll.u32 %v2350, 16
      %v2651 = vrot.slane %v2649, 5
      %v2652 = vsel %vm1154, %v2647, %v2651
      %v2653 = vshrl.u32 %v2350, 16
      %v2655 = vrot.slane %v2653, 4
      %v2656 = vor.u32 %v2655, %v2651
      %v2657 = vrot.slane %v2656, 4
      %v2659 = vshll.u32 %v2370, 16
      %v2661 = vrot.slane %v2659, 5
      %v2662 = vsel %vm1154, %v2657, %v2661
      %v2664 = vshrl.u32 %v2351, 16
      %v2666 = vrot.slane %v2664, 4
      %v2667 = vshll.u32 %v2351, 16
      %v2669 = vrot.slane %v2667, 5
      %v2670 = vor.u32 %v2666, %v2669
      %v2671 = vrot.slane %v2670, 4
      %v2673 = vshll.u32 %v2352, 16
      %v2675 = vrot.slane %v2673, 5
      %v2676 = vsel %vm1154, %v2671, %v2675
      %v2677 = vshrl.u32 %v2352, 16
      %v2679 = vrot.slane %v2677, 4
      %v2680 = vor.u32 %v2679, %v2675
      %v2681 = vrot.slane %v2680, 4
      %v2683 = vshll.u32 %v2371, 16
      %v2685 = vrot.slane %v2683, 5
      %v2686 = vsel %vm1154, %v2681, %v2685
      %v2688 = vshrl.u32 %v2353, 16
      %v2690 = vrot.slane %v2688, 4
      %v2691 = vshll.u32 %v2353, 16
      %v2693 = vrot.slane %v2691, 5
      %v2694 = vor.u32 %v2690, %v2693
      %v2695 = vrot.slane %v2694, 4
      %v2697 = vshll.u32 %v2354, 16
      %v2699 = vrot.slane %v2697, 5
      %v2700 = vsel %vm1154, %v2695, %v2699
      %v2701 = vshrl.u32 %v2354, 16
      %v2703 = vrot.slane %v2701, 4
      %v2704 = vor.u32 %v2703, %v2699
      %v2705 = vrot.slane %v2704, 4
      %v2707 = vshll.u32 %v2372, 16
      %v2709 = vrot.slane %v2707, 5
      %v2710 = vsel %vm1154, %v2705, %v2709
      %v2712 = vshrl.u32 %v2355, 16
      %v2714 = vrot.slane %v2712, 4
      %v2715 = vshll.u32 %v2355, 16
      %v2717 = vrot.slane %v2715, 5
      %v2718 = vor.u32 %v2714, %v2717
      %v2719 = vrot.slane %v2718, 4
      %v2721 = vshll.u32 %v2356, 16
      %v2723 = vrot.slane %v2721, 5
      %v2724 = vsel %vm1154, %v2719, %v2723
      %v2725 = vshrl.u32 %v2356, 16
      %v2727 = vrot.slane %v2725, 4
      %v2728 = vor.u32 %v2727, %v2723
      %v2729 = vrot.slane %v2728, 4
      %v2731 = vshll.u32 %v2373, 16
      %v2733 = vrot.slane %v2731, 5
      %v2734 = vsel %vm1154, %v2729, %v2733
      %v2736 = vshrl.u32 %v2357, 16
      %v2738 = vrot.slane %v2736, 4
      %v2739 = vshll.u32 %v2357, 16
      %v2741 = vrot.slane %v2739, 5
      %v2742 = vor.u32 %v2738, %v2741
      %v2743 = vrot.slane %v2742, 4
      %v2745 = vshll.u32 %v2358, 16
      %v2747 = vrot.slane %v2745, 5
      %v2748 = vsel %vm1154, %v2743, %v2747
      %v2749 = vshrl.u32 %v2358, 16
      %v2751 = vrot.slane %v2749, 4
      %v2752 = vor.u32 %v2751, %v2747
      %v2753 = vrot.slane %v2752, 4
      %v2755 = vshll.u32 %v2374, 16
      %v2757 = vrot.slane %v2755, 5
      %v2758 = vsel %vm1154, %v2753, %v2757
      %v2759 = vld [vmem:[%s2326] sm:$0xe]
      %v2760 = vld [vmem:[%s2326 + $0xc] sm:$0xe]
      %v2761 = vld [vmem:[%s2326 + $0x18] sm:$0xe]
      %v2762 = vld [vmem:[%s2326 + $0x24] sm:$0xe]
      %v2763 = vld [vmem:[%s2326 + $0x30] sm:$0xe]
      %v2764 = vld [vmem:[%s2326 + $0x3c] sm:$0xe]
      %v2765 = vld [vmem:[%s2326 + $0x48] sm:$0xe]
      %v2766 = vld [vmem:[%s2326 + $0x54] sm:$0xe]
      %v2767 = vld [vmem:[%s2326 + $0x60] sm:$0xe]
      %v2768 = vld [vmem:[%s2326 + $0x6c] sm:$0xe]
      %v2769 = vld [vmem:[%s2326 + $0x78] sm:$0xe]
      %v2770 = vld [vmem:[%s2326 + $0x84] sm:$0xe]
      %v2771 = vld [vmem:[%s2326 + $0x90] sm:$0xe]
      %v2772 = vld [vmem:[%s2326 + $0x9c] sm:$0xe]
      %v2773 = vld [vmem:[%s2326 + $0xa8] sm:$0xe]
      %v2774 = vld [vmem:[%s2326 + $0xb4] sm:$0xe]
      %v2823 = vrot.slane %v2759, 5
      %v2824 = vrot.slane %v2823, 4
      %v2825 = vrot.slane %v2328, 5
      %v2826 = vsel %vm1605, %v2824, %v2825
      %v2827 = vrot.slane %v2825, 4
      %v2828 = vrot.slane %v2359, 5
      %v2829 = vsel %vm1605, %v2827, %v2828
      %v2830 = vrot.slane %v2760, 5
      %v2831 = vrot.slane %v2830, 4
      %v2832 = vrot.slane %v2330, 5
      %v2833 = vsel %vm1605, %v2831, %v2832
      %v2834 = vrot.slane %v2832, 4
      %v2835 = vrot.slane %v2360, 5
      %v2836 = vsel %vm1605, %v2834, %v2835
      %v2837 = vrot.slane %v2761, 5
      %v2838 = vrot.slane %v2837, 4
      %v2839 = vrot.slane %v2332, 5
      %v2840 = vsel %vm1605, %v2838, %v2839
      %v2841 = vrot.slane %v2839, 4
      %v2842 = vrot.slane %v2361, 5
      %v2843 = vsel %vm1605, %v2841, %v2842
      %v2844 = vrot.slane %v2762, 5
      %v2845 = vrot.slane %v2844, 4
      %v2846 = vrot.slane %v2334, 5
      %v2847 = vsel %vm1605, %v2845, %v2846
      %v2848 = vrot.slane %v2846, 4
      %v2849 = vrot.slane %v2362, 5
      %v2850 = vsel %vm1605, %v2848, %v2849
      %v2851 = vrot.slane %v2763, 5
      %v2852 = vrot.slane %v2851, 4
      %v2853 = vrot.slane %v2336, 5
      %v2854 = vsel %vm1605, %v2852, %v2853
      %v2855 = vrot.slane %v2853, 4
      %v2856 = vrot.slane %v2363, 5
      %v2857 = vsel %vm1605, %v2855, %v2856
      %v2858 = vrot.slane %v2764, 5
      %v2859 = vrot.slane %v2858, 4
      %v2860 = vrot.slane %v2338, 5
      %v2861 = vsel %vm1605, %v2859, %v2860
      %v2862 = vrot.slane %v2860, 4
      %v2863 = vrot.slane %v2364, 5
      %v2864 = vsel %vm1605, %v2862, %v2863
      %v2865 = vrot.slane %v2765, 5
      %v2866 = vrot.slane %v2865, 4
      %v2867 = vrot.slane %v2340, 5
      %v2868 = vsel %vm1605, %v2866, %v2867
      %v2869 = vrot.slane %v2867, 4
      %v2870 = vrot.slane %v2365, 5
      %v2871 = vsel %vm1605, %v2869, %v2870
      %v2872 = vrot.slane %v2766, 5
      %v2873 = vrot.slane %v2872, 4
      %v2874 = vrot.slane %v2342, 5
      %v2875 = vsel %vm1605, %v2873, %v2874
      %v2876 = vrot.slane %v2874, 4
      %v2877 = vrot.slane %v2366, 5
      %v2878 = vsel %vm1605, %v2876, %v2877
      %v2879 = vrot.slane %v2767, 5
      %v2880 = vrot.slane %v2879, 4
      %v2881 = vrot.slane %v2344, 5
      %v2882 = vsel %vm1605, %v2880, %v2881
      %v2883 = vrot.slane %v2881, 4
      %v2884 = vrot.slane %v2367, 5
      %v2885 = vsel %vm1605, %v2883, %v2884
      %v2886 = vrot.slane %v2768, 5
      %v2887 = vrot.slane %v2886, 4
      %v2888 = vrot.slane %v2346, 5
      %v2889 = vsel %vm1605, %v2887, %v2888
      %v2890 = vrot.slane %v2888, 4
      %v2891 = vrot.slane %v2368, 5
      %v2892 = vsel %vm1605, %v2890, %v2891
      %v2893 = vrot.slane %v2769, 5
      %v2894 = vrot.slane %v2893, 4
      %v2895 = vrot.slane %v2348, 5
      %v2896 = vsel %vm1605, %v2894, %v2895
      %v2897 = vrot.slane %v2895, 4
      %v2898 = vrot.slane %v2369, 5
      %v2899 = vsel %vm1605, %v2897, %v2898
      %v2900 = vrot.slane %v2770, 5
      %v2901 = vrot.slane %v2900, 4
      %v2902 = vrot.slane %v2350, 5
      %v2903 = vsel %vm1605, %v2901, %v2902
      %v2904 = vrot.slane %v2902, 4
      %v2905 = vrot.slane %v2370, 5
      %v2906 = vsel %vm1605, %v2904, %v2905
      %v2907 = vrot.slane %v2771, 5
      %v2908 = vrot.slane %v2907, 4
      %v2909 = vrot.slane %v2352, 5
      %v2910 = vsel %vm1605, %v2908, %v2909
      %v2911 = vrot.slane %v2909, 4
      %v2912 = vrot.slane %v2371, 5
      %v2913 = vsel %vm1605, %v2911, %v2912
      %v2914 = vrot.slane %v2772, 5
      %v2915 = vrot.slane %v2914, 4
      %v2916 = vrot.slane %v2354, 5
      %v2917 = vsel %vm1605, %v2915, %v2916
      %v2918 = vrot.slane %v2916, 4
      %v2919 = vrot.slane %v2372, 5
      %v2920 = vsel %vm1605, %v2918, %v2919
      %v2921 = vrot.slane %v2773, 5
      %v2922 = vrot.slane %v2921, 4
      %v2923 = vrot.slane %v2356, 5
      %v2924 = vsel %vm1605, %v2922, %v2923
      %v2925 = vrot.slane %v2923, 4
      %v2926 = vrot.slane %v2373, 5
      %v2927 = vsel %vm1605, %v2925, %v2926
      %v2928 = vrot.slane %v2774, 5
      %v2929 = vrot.slane %v2928, 4
      %v2930 = vrot.slane %v2358, 5
      %v2931 = vsel %vm1605, %v2929, %v2930
      %v2932 = vrot.slane %v2930, 4
      %v2933 = vrot.slane %v2374, 5
      %v2934 = vsel %vm1605, %v2932, %v2933
      %v2951 = vunpack.c.l.b16 %v1104
      %v2952 = vunpack.c.l.b16 %v1105
      %v2953 = vunpack.c.l.b16 %v1106
      %v2954 = vunpack.c.l.b16 %v1107
      %v2955 = vunpack.c.l.b16 %v1108
      %v2956 = vunpack.c.l.b16 %v1109
      %v2957 = vunpack.c.l.b16 %v1110
      %v2958 = vunpack.c.l.b16 %v1111
      %v2959 = vunpack.c.l.b16 %v1112
      %v2960 = vunpack.c.l.b16 %v1113
      %v2961 = vunpack.c.l.b16 %v1114
      %v2962 = vunpack.c.l.b16 %v1115
      %v2963 = vunpack.c.l.b16 %v1116
      %v2964 = vunpack.c.l.b16 %v1117
      %v2965 = vunpack.c.l.b16 %v1118
      %v2966 = vunpack.c.l.b16 %v1119
      %v2967 = vunpack.c.l.b16 %v1120
      %v2968 = vunpack.c.l.b16 %v1121
      %v2969 = vunpack.c.l.b16 %v1122
      %v2970 = vunpack.c.l.b16 %v1123
      %v2971 = vunpack.c.l.b16 %v1124
      %v2972 = vunpack.c.l.b16 %v1125
      %v2973 = vunpack.c.l.b16 %v1126
      %v2974 = vunpack.c.l.b16 %v1127
      %v2975 = vunpack.c.l.b16 %v1128
      %v2976 = vunpack.c.l.b16 %v1129
      %v2977 = vunpack.c.l.b16 %v1130
      %v2978 = vunpack.c.l.b16 %v1131
      %v2979 = vunpack.c.l.b16 %v1132
      %v2980 = vunpack.c.l.b16 %v1133
      %v2981 = vunpack.c.l.b16 %v1134
      %v2982 = vunpack.c.l.b16 %v1135
      %v2983 = vpack.c.b16 %v2952, %v2951
      %v2984 = vpack.c.b16 %v2954, %v2953
      %v2985 = vpack.c.b16 %v2956, %v2955
      %v2986 = vpack.c.b16 %v2958, %v2957
      %v2987 = vpack.c.b16 %v2960, %v2959
      %v2988 = vpack.c.b16 %v2962, %v2961
      %v2989 = vpack.c.b16 %v2964, %v2963
      %v2990 = vpack.c.b16 %v2966, %v2965
      %v2991 = vpack.c.b16 %v2968, %v2967
      %v2992 = vpack.c.b16 %v2970, %v2969
      %v2993 = vpack.c.b16 %v2972, %v2971
      %v2994 = vpack.c.b16 %v2974, %v2973
      %v2995 = vpack.c.b16 %v2976, %v2975
      %v2996 = vpack.c.b16 %v2978, %v2977
      %v2997 = vpack.c.b16 %v2980, %v2979
      %v2998 = vpack.c.b16 %v2982, %v2981
      %v2999 = vunpack.c.l.b16 %v1168
      %v3000 = vunpack.c.l.b16 %v1178
      %v3001 = vunpack.c.l.b16 %v1192
      %v3002 = vunpack.c.l.b16 %v1202
      %v3003 = vunpack.c.l.b16 %v1216
      %v3004 = vunpack.c.l.b16 %v1226
      %v3005 = vunpack.c.l.b16 %v1240
      %v3006 = vunpack.c.l.b16 %v1250
      %v3007 = vunpack.c.l.b16 %v1264
      %v3008 = vunpack.c.l.b16 %v1274
      %v3009 = vunpack.c.l.b16 %v1288
      %v3010 = vunpack.c.l.b16 %v1298
      %v3011 = vunpack.c.l.b16 %v1312
      %v3012 = vunpack.c.l.b16 %v1322
      %v3013 = vunpack.c.l.b16 %v1336
      %v3014 = vunpack.c.l.b16 %v1346
      %v3015 = vunpack.c.l.b16 %v1360
      %v3016 = vunpack.c.l.b16 %v1370
      %v3017 = vunpack.c.l.b16 %v1384
      %v3018 = vunpack.c.l.b16 %v1394
      %v3019 = vunpack.c.l.b16 %v1408
      %v3020 = vunpack.c.l.b16 %v1418
      %v3021 = vunpack.c.l.b16 %v1432
      %v3022 = vunpack.c.l.b16 %v1442
      %v3023 = vunpack.c.l.b16 %v1456
      %v3024 = vunpack.c.l.b16 %v1466
      %v3025 = vunpack.c.l.b16 %v1480
      %v3026 = vunpack.c.l.b16 %v1490
      %v3027 = vunpack.c.l.b16 %v1504
      %v3028 = vunpack.c.l.b16 %v1514
      %v3029 = vunpack.c.l.b16 %v1528
      %v3030 = vunpack.c.l.b16 %v1538
      %v3031 = vpack.c.b16 %v3000, %v2999
      %v3032 = vpack.c.b16 %v3002, %v3001
      %v3033 = vpack.c.b16 %v3004, %v3003
      %v3034 = vpack.c.b16 %v3006, %v3005
      %v3035 = vpack.c.b16 %v3008, %v3007
      %v3036 = vpack.c.b16 %v3010, %v3009
      %v3037 = vpack.c.b16 %v3012, %v3011
      %v3038 = vpack.c.b16 %v3014, %v3013
      %v3039 = vpack.c.b16 %v3016, %v3015
      %v3040 = vpack.c.b16 %v3018, %v3017
      %v3041 = vpack.c.b16 %v3020, %v3019
      %v3042 = vpack.c.b16 %v3022, %v3021
      %v3043 = vpack.c.b16 %v3024, %v3023
      %v3044 = vpack.c.b16 %v3026, %v3025
      %v3045 = vpack.c.b16 %v3028, %v3027
      %v3046 = vpack.c.b16 %v3030, %v3029
      %3047 = vrot.lane.b32.xlu0 %v3031, 64
      %v3048 = vpop.permute.xlu0 %3047
      %3049 = vrot.lane.b32.xlu0 %v3032, 64
      %v3050 = vpop.permute.xlu0 %3049
      %3051 = vrot.lane.b32.xlu0 %v3033, 64
      %v3052 = vpop.permute.xlu0 %3051
      %3053 = vrot.lane.b32.xlu0 %v3034, 64
      %v3054 = vpop.permute.xlu0 %3053
      %3055 = vrot.lane.b32.xlu0 %v3035, 64
      %v3056 = vpop.permute.xlu0 %3055
      %3057 = vrot.lane.b32.xlu0 %v3036, 64
      %v3058 = vpop.permute.xlu0 %3057
      %3059 = vrot.lane.b32.xlu0 %v3037, 64
      %v3060 = vpop.permute.xlu0 %3059
      %3061 = vrot.lane.b32.xlu0 %v3038, 64
      %v3062 = vpop.permute.xlu0 %3061
      %3063 = vrot.lane.b32.xlu0 %v3039, 64
      %v3064 = vpop.permute.xlu0 %3063
      %3065 = vrot.lane.b32.xlu0 %v3040, 64
      %v3066 = vpop.permute.xlu0 %3065
      %3067 = vrot.lane.b32.xlu0 %v3041, 64
      %v3068 = vpop.permute.xlu0 %3067
      %3069 = vrot.lane.b32.xlu0 %v3042, 64
      %v3070 = vpop.permute.xlu0 %3069
      %3071 = vrot.lane.b32.xlu0 %v3043, 64
      %v3072 = vpop.permute.xlu0 %3071
      %3073 = vrot.lane.b32.xlu0 %v3044, 64
      %v3074 = vpop.permute.xlu0 %3073
      %3075 = vrot.lane.b32.xlu0 %v3045, 64
      %v3076 = vpop.permute.xlu0 %3075
      %3077 = vrot.lane.b32.xlu0 %v3046, 64
      %v3078 = vpop.permute.xlu0 %3077
      %v3079 = vunpack.c.l.b16 %v1609
      %v3080 = vunpack.c.l.b16 %v1612
      %v3081 = vunpack.c.l.b16 %v1616
      %v3082 = vunpack.c.l.b16 %v1619
      %v3083 = vunpack.c.l.b16 %v1623
      %v3084 = vunpack.c.l.b16 %v1626
      %v3085 = vunpack.c.l.b16 %v1630
      %v3086 = vunpack.c.l.b16 %v1633
      %v3087 = vunpack.c.l.b16 %v1637
      %v3088 = vunpack.c.l.b16 %v1640
      %v3089 = vunpack.c.l.b16 %v1644
      %v3090 = vunpack.c.l.b16 %v1647
      %v3091 = vunpack.c.l.b16 %v1651
      %v3092 = vunpack.c.l.b16 %v1654
      %v3093 = vunpack.c.l.b16 %v1658
      %v3094 = vunpack.c.l.b16 %v1661
      %v3095 = vunpack.c.l.b16 %v1665
      %v3096 = vunpack.c.l.b16 %v1668
      %v3097 = vunpack.c.l.b16 %v1672
      %v3098 = vunpack.c.l.b16 %v1675
      %v3099 = vunpack.c.l.b16 %v1679
      %v3100 = vunpack.c.l.b16 %v1682
      %v3101 = vunpack.c.l.b16 %v1686
      %v3102 = vunpack.c.l.b16 %v1689
      %v3103 = vunpack.c.l.b16 %v1693
      %v3104 = vunpack.c.l.b16 %v1696
      %v3105 = vunpack.c.l.b16 %v1700
      %v3106 = vunpack.c.l.b16 %v1703
      %v3107 = vunpack.c.l.b16 %v1707
      %v3108 = vunpack.c.l.b16 %v1710
      %v3109 = vunpack.c.l.b16 %v1714
      %v3110 = vunpack.c.l.b16 %v1717
      %v3111 = vpack.c.b16 %v3080, %v3079
      %v3112 = vpack.c.b16 %v3082, %v3081
      %v3113 = vpack.c.b16 %v3084, %v3083
      %v3114 = vpack.c.b16 %v3086, %v3085
      %v3115 = vpack.c.b16 %v3088, %v3087
      %v3116 = vpack.c.b16 %v3090, %v3089
      %v3117 = vpack.c.b16 %v3092, %v3091
      %v3118 = vpack.c.b16 %v3094, %v3093
      %v3119 = vpack.c.b16 %v3096, %v3095
      %v3120 = vpack.c.b16 %v3098, %v3097
      %v3121 = vpack.c.b16 %v3100, %v3099
      %v3122 = vpack.c.b16 %v3102, %v3101
      %v3123 = vpack.c.b16 %v3104, %v3103
      %v3124 = vpack.c.b16 %v3106, %v3105
      %v3125 = vpack.c.b16 %v3108, %v3107
      %v3126 = vpack.c.b16 %v3110, %v3109
      %v3143 = vunpack.c.l.b16 %v1718
      %v3144 = vunpack.c.l.b16 %v1719
      %v3145 = vunpack.c.l.b16 %v1720
      %v3146 = vunpack.c.l.b16 %v1721
      %v3147 = vunpack.c.l.b16 %v1722
      %v3148 = vunpack.c.l.b16 %v1723
      %v3149 = vunpack.c.l.b16 %v1724
      %v3150 = vunpack.c.l.b16 %v1725
      %v3151 = vunpack.c.l.b16 %v1726
      %v3152 = vunpack.c.l.b16 %v1727
      %v3153 = vunpack.c.l.b16 %v1728
      %v3154 = vunpack.c.l.b16 %v1729
      %v3155 = vunpack.c.l.b16 %v1730
      %v3156 = vunpack.c.l.b16 %v1731
      %v3157 = vunpack.c.l.b16 %v1732
      %v3158 = vunpack.c.l.b16 %v1733
      %v3159 = vunpack.c.l.b16 %v1734
      %v3160 = vunpack.c.l.b16 %v1735
      %v3161 = vunpack.c.l.b16 %v1736
      %v3162 = vunpack.c.l.b16 %v1737
      %v3163 = vunpack.c.l.b16 %v1738
      %v3164 = vunpack.c.l.b16 %v1739
      %v3165 = vunpack.c.l.b16 %v1740
      %v3166 = vunpack.c.l.b16 %v1741
      %v3167 = vunpack.c.l.b16 %v1742
      %v3168 = vunpack.c.l.b16 %v1743
      %v3169 = vunpack.c.l.b16 %v1744
      %v3170 = vunpack.c.l.b16 %v1745
      %v3171 = vunpack.c.l.b16 %v1746
      %v3172 = vunpack.c.l.b16 %v1747
      %v3173 = vunpack.c.l.b16 %v1748
      %v3174 = vunpack.c.l.b16 %v1749
      %v3175 = vpack.c.b16 %v3144, %v3143
      %v3176 = vpack.c.b16 %v3146, %v3145
      %v3177 = vpack.c.b16 %v3148, %v3147
      %v3178 = vpack.c.b16 %v3150, %v3149
      %v3179 = vpack.c.b16 %v3152, %v3151
      %v3180 = vpack.c.b16 %v3154, %v3153
      %v3181 = vpack.c.b16 %v3156, %v3155
      %v3182 = vpack.c.b16 %v3158, %v3157
      %v3183 = vpack.c.b16 %v3160, %v3159
      %v3184 = vpack.c.b16 %v3162, %v3161
      %v3185 = vpack.c.b16 %v3164, %v3163
      %v3186 = vpack.c.b16 %v3166, %v3165
      %v3187 = vpack.c.b16 %v3168, %v3167
      %v3188 = vpack.c.b16 %v3170, %v3169
      %v3189 = vpack.c.b16 %v3172, %v3171
      %v3190 = vpack.c.b16 %v3174, %v3173
      %3191 = vrot.lane.b32.xlu0 %v3175, 64
      %v3192 = vpop.permute.xlu0 %3191
      %3193 = vrot.lane.b32.xlu0 %v3176, 64
      %v3194 = vpop.permute.xlu0 %3193
      %3195 = vrot.lane.b32.xlu0 %v3177, 64
      %v3196 = vpop.permute.xlu0 %3195
      %3197 = vrot.lane.b32.xlu0 %v3178, 64
      %v3198 = vpop.permute.xlu0 %3197
      %3199 = vrot.lane.b32.xlu0 %v3179, 64
      %v3200 = vpop.permute.xlu0 %3199
      %3201 = vrot.lane.b32.xlu0 %v3180, 64
      %v3202 = vpop.permute.xlu0 %3201
      %3203 = vrot.lane.b32.xlu0 %v3181, 64
      %v3204 = vpop.permute.xlu0 %3203
      %3205 = vrot.lane.b32.xlu0 %v3182, 64
      %v3206 = vpop.permute.xlu0 %3205
      %3207 = vrot.lane.b32.xlu0 %v3183, 64
      %v3208 = vpop.permute.xlu0 %3207
      %3209 = vrot.lane.b32.xlu0 %v3184, 64
      %v3210 = vpop.permute.xlu0 %3209
      %3211 = vrot.lane.b32.xlu0 %v3185, 64
      %v3212 = vpop.permute.xlu0 %3211
      %3213 = vrot.lane.b32.xlu0 %v3186, 64
      %v3214 = vpop.permute.xlu0 %3213
      %3215 = vrot.lane.b32.xlu0 %v3187, 64
      %v3216 = vpop.permute.xlu0 %3215
      %3217 = vrot.lane.b32.xlu0 %v3188, 64
      %v3218 = vpop.permute.xlu0 %3217
      %3219 = vrot.lane.b32.xlu0 %v3189, 64
      %v3220 = vpop.permute.xlu0 %3219
      %3221 = vrot.lane.b32.xlu0 %v3190, 64
      %v3222 = vpop.permute.xlu0 %3221
      %v3223 = vunpack.c.l.b16 %v1779
      %v3224 = vunpack.c.l.b16 %v1789
      %v3225 = vunpack.c.l.b16 %v1803
      %v3226 = vunpack.c.l.b16 %v1813
      %v3227 = vunpack.c.l.b16 %v1827
      %v3228 = vunpack.c.l.b16 %v1837
      %v3229 = vunpack.c.l.b16 %v1851
      %v3230 = vunpack.c.l.b16 %v1861
      %v3231 = vunpack.c.l.b16 %v1875
      %v3232 = vunpack.c.l.b16 %v1885
      %v3233 = vunpack.c.l.b16 %v1899
      %v3234 = vunpack.c.l.b16 %v1909
      %v3235 = vunpack.c.l.b16 %v1923
      %v3236 = vunpack.c.l.b16 %v1933
      %v3237 = vunpack.c.l.b16 %v1947
      %v3238 = vunpack.c.l.b16 %v1957
      %v3239 = vunpack.c.l.b16 %v1971
      %v3240 = vunpack.c.l.b16 %v1981
      %v3241 = vunpack.c.l.b16 %v1995
      %v3242 = vunpack.c.l.b16 %v2005
      %v3243 = vunpack.c.l.b16 %v2019
      %v3244 = vunpack.c.l.b16 %v2029
      %v3245 = vunpack.c.l.b16 %v2043
      %v3246 = vunpack.c.l.b16 %v2053
      %v3247 = vunpack.c.l.b16 %v2067
      %v3248 = vunpack.c.l.b16 %v2077
      %v3249 = vunpack.c.l.b16 %v2091
      %v3250 = vunpack.c.l.b16 %v2101
      %v3251 = vunpack.c.l.b16 %v2115
      %v3252 = vunpack.c.l.b16 %v2125
      %v3253 = vunpack.c.l.b16 %v2139
      %v3254 = vunpack.c.l.b16 %v2149
      %v3255 = vpack.c.b16 %v3224, %v3223
      %v3256 = vpack.c.b16 %v3226, %v3225
      %v3257 = vpack.c.b16 %v3228, %v3227
      %v3258 = vpack.c.b16 %v3230, %v3229
      %v3259 = vpack.c.b16 %v3232, %v3231
      %v3260 = vpack.c.b16 %v3234, %v3233
      %v3261 = vpack.c.b16 %v3236, %v3235
      %v3262 = vpack.c.b16 %v3238, %v3237
      %v3263 = vpack.c.b16 %v3240, %v3239
      %v3264 = vpack.c.b16 %v3242, %v3241
      %v3265 = vpack.c.b16 %v3244, %v3243
      %v3266 = vpack.c.b16 %v3246, %v3245
      %v3267 = vpack.c.b16 %v3248, %v3247
      %v3268 = vpack.c.b16 %v3250, %v3249
      %v3269 = vpack.c.b16 %v3252, %v3251
      %v3270 = vpack.c.b16 %v3254, %v3253
      %v3271 = vunpack.c.l.b16 %v2217
      %v3272 = vunpack.c.l.b16 %v2220
      %v3273 = vunpack.c.l.b16 %v2224
      %v3274 = vunpack.c.l.b16 %v2227
      %v3275 = vunpack.c.l.b16 %v2231
      %v3276 = vunpack.c.l.b16 %v2234
      %v3277 = vunpack.c.l.b16 %v2238
      %v3278 = vunpack.c.l.b16 %v2241
      %v3279 = vunpack.c.l.b16 %v2245
      %v3280 = vunpack.c.l.b16 %v2248
      %v3281 = vunpack.c.l.b16 %v2252
      %v3282 = vunpack.c.l.b16 %v2255
      %v3283 = vunpack.c.l.b16 %v2259
      %v3284 = vunpack.c.l.b16 %v2262
      %v3285 = vunpack.c.l.b16 %v2266
      %v3286 = vunpack.c.l.b16 %v2269
      %v3287 = vunpack.c.l.b16 %v2273
      %v3288 = vunpack.c.l.b16 %v2276
      %v3289 = vunpack.c.l.b16 %v2280
      %v3290 = vunpack.c.l.b16 %v2283
      %v3291 = vunpack.c.l.b16 %v2287
      %v3292 = vunpack.c.l.b16 %v2290
      %v3293 = vunpack.c.l.b16 %v2294
      %v3294 = vunpack.c.l.b16 %v2297
      %v3295 = vunpack.c.l.b16 %v2301
      %v3296 = vunpack.c.l.b16 %v2304
      %v3297 = vunpack.c.l.b16 %v2308
      %v3298 = vunpack.c.l.b16 %v2311
      %v3299 = vunpack.c.l.b16 %v2315
      %v3300 = vunpack.c.l.b16 %v2318
      %v3301 = vunpack.c.l.b16 %v2322
      %v3302 = vunpack.c.l.b16 %v2325
      %v3303 = vpack.c.b16 %v3272, %v3271
      %v3304 = vpack.c.b16 %v3274, %v3273
      %v3305 = vpack.c.b16 %v3276, %v3275
      %v3306 = vpack.c.b16 %v3278, %v3277
      %v3307 = vpack.c.b16 %v3280, %v3279
      %v3308 = vpack.c.b16 %v3282, %v3281
      %v3309 = vpack.c.b16 %v3284, %v3283
      %v3310 = vpack.c.b16 %v3286, %v3285
      %v3311 = vpack.c.b16 %v3288, %v3287
      %v3312 = vpack.c.b16 %v3290, %v3289
      %v3313 = vpack.c.b16 %v3292, %v3291
      %v3314 = vpack.c.b16 %v3294, %v3293
      %v3315 = vpack.c.b16 %v3296, %v3295
      %v3316 = vpack.c.b16 %v3298, %v3297
      %v3317 = vpack.c.b16 %v3300, %v3299
      %v3318 = vpack.c.b16 %v3302, %v3301
      %3319 = vrot.lane.b32.xlu0 %v3303, 64
      %v3320 = vpop.permute.xlu0 %3319
      %3321 = vrot.lane.b32.xlu0 %v3304, 64
      %v3322 = vpop.permute.xlu0 %3321
      %3323 = vrot.lane.b32.xlu0 %v3305, 64
      %v3324 = vpop.permute.xlu0 %3323
      %3325 = vrot.lane.b32.xlu0 %v3306, 64
      %v3326 = vpop.permute.xlu0 %3325
      %3327 = vrot.lane.b32.xlu0 %v3307, 64
      %v3328 = vpop.permute.xlu0 %3327
      %3329 = vrot.lane.b32.xlu0 %v3308, 64
      %v3330 = vpop.permute.xlu0 %3329
      %3331 = vrot.lane.b32.xlu0 %v3309, 64
      %v3332 = vpop.permute.xlu0 %3331
      %3333 = vrot.lane.b32.xlu0 %v3310, 64
      %v3334 = vpop.permute.xlu0 %3333
      %3335 = vrot.lane.b32.xlu0 %v3311, 64
      %v3336 = vpop.permute.xlu0 %3335
      %3337 = vrot.lane.b32.xlu0 %v3312, 64
      %v3338 = vpop.permute.xlu0 %3337
      %3339 = vrot.lane.b32.xlu0 %v3313, 64
      %v3340 = vpop.permute.xlu0 %3339
      %3341 = vrot.lane.b32.xlu0 %v3314, 64
      %v3342 = vpop.permute.xlu0 %3341
      %3343 = vrot.lane.b32.xlu0 %v3315, 64
      %v3344 = vpop.permute.xlu0 %3343
      %3345 = vrot.lane.b32.xlu0 %v3316, 64
      %v3346 = vpop.permute.xlu0 %3345
      %3347 = vrot.lane.b32.xlu0 %v3317, 64
      %v3348 = vpop.permute.xlu0 %3347
      %3349 = vrot.lane.b32.xlu0 %v3318, 64
      %v3350 = vpop.permute.xlu0 %3349
      %v3367 = vunpack.c.l.b16 %v2327
      %v3368 = vunpack.c.l.b16 %v2328
      %v3369 = vunpack.c.l.b16 %v2329
      %v3370 = vunpack.c.l.b16 %v2330
      %v3371 = vunpack.c.l.b16 %v2331
      %v3372 = vunpack.c.l.b16 %v2332
      %v3373 = vunpack.c.l.b16 %v2333
      %v3374 = vunpack.c.l.b16 %v2334
      %v3375 = vunpack.c.l.b16 %v2335
      %v3376 = vunpack.c.l.b16 %v2336
      %v3377 = vunpack.c.l.b16 %v2337
      %v3378 = vunpack.c.l.b16 %v2338
      %v3379 = vunpack.c.l.b16 %v2339
      %v3380 = vunpack.c.l.b16 %v2340
      %v3381 = vunpack.c.l.b16 %v2341
      %v3382 = vunpack.c.l.b16 %v2342
      %v3383 = vunpack.c.l.b16 %v2343
      %v3384 = vunpack.c.l.b16 %v2344
      %v3385 = vunpack.c.l.b16 %v2345
      %v3386 = vunpack.c.l.b16 %v2346
      %v3387 = vunpack.c.l.b16 %v2347
      %v3388 = vunpack.c.l.b16 %v2348
      %v3389 = vunpack.c.l.b16 %v2349
      %v3390 = vunpack.c.l.b16 %v2350
      %v3391 = vunpack.c.l.b16 %v2351
      %v3392 = vunpack.c.l.b16 %v2352
      %v3393 = vunpack.c.l.b16 %v2353
      %v3394 = vunpack.c.l.b16 %v2354
      %v3395 = vunpack.c.l.b16 %v2355
      %v3396 = vunpack.c.l.b16 %v2356
      %v3397 = vunpack.c.l.b16 %v2357
      %v3398 = vunpack.c.l.b16 %v2358
      %v3399 = vpack.c.b16 %v3368, %v3367
      %v3400 = vpack.c.b16 %v3370, %v3369
      %v3401 = vpack.c.b16 %v3372, %v3371
      %v3402 = vpack.c.b16 %v3374, %v3373
      %v3403 = vpack.c.b16 %v3376, %v3375
      %v3404 = vpack.c.b16 %v3378, %v3377
      %v3405 = vpack.c.b16 %v3380, %v3379
      %v3406 = vpack.c.b16 %v3382, %v3381
      %v3407 = vpack.c.b16 %v3384, %v3383
      %v3408 = vpack.c.b16 %v3386, %v3385
      %v3409 = vpack.c.b16 %v3388, %v3387
      %v3410 = vpack.c.b16 %v3390, %v3389
      %v3411 = vpack.c.b16 %v3392, %v3391
      %v3412 = vpack.c.b16 %v3394, %v3393
      %v3413 = vpack.c.b16 %v3396, %v3395
      %v3414 = vpack.c.b16 %v3398, %v3397
      %v3415 = vunpack.c.l.b16 %v2388
      %v3416 = vunpack.c.l.b16 %v2398
      %v3417 = vunpack.c.l.b16 %v2412
      %v3418 = vunpack.c.l.b16 %v2422
      %v3419 = vunpack.c.l.b16 %v2436
      %v3420 = vunpack.c.l.b16 %v2446
      %v3421 = vunpack.c.l.b16 %v2460
      %v3422 = vunpack.c.l.b16 %v2470
      %v3423 = vunpack.c.l.b16 %v2484
      %v3424 = vunpack.c.l.b16 %v2494
      %v3425 = vunpack.c.l.b16 %v2508
      %v3426 = vunpack.c.l.b16 %v2518
      %v3427 = vunpack.c.l.b16 %v2532
      %v3428 = vunpack.c.l.b16 %v2542
      %v3429 = vunpack.c.l.b16 %v2556
      %v3430 = vunpack.c.l.b16 %v2566
      %v3431 = vunpack.c.l.b16 %v2580
      %v3432 = vunpack.c.l.b16 %v2590
      %v3433 = vunpack.c.l.b16 %v2604
      %v3434 = vunpack.c.l.b16 %v2614
      %v3435 = vunpack.c.l.b16 %v2628
      %v3436 = vunpack.c.l.b16 %v2638
      %v3437 = vunpack.c.l.b16 %v2652
      %v3438 = vunpack.c.l.b16 %v2662
      %v3439 = vunpack.c.l.b16 %v2676
      %v3440 = vunpack.c.l.b16 %v2686
      %v3441 = vunpack.c.l.b16 %v2700
      %v3442 = vunpack.c.l.b16 %v2710
      %v3443 = vunpack.c.l.b16 %v2724
      %v3444 = vunpack.c.l.b16 %v2734
      %v3445 = vunpack.c.l.b16 %v2748
      %v3446 = vunpack.c.l.b16 %v2758
      %v3447 = vpack.c.b16 %v3416, %v3415
      %v3448 = vpack.c.b16 %v3418, %v3417
      %v3449 = vpack.c.b16 %v3420, %v3419
      %v3450 = vpack.c.b16 %v3422, %v3421
      %v3451 = vpack.c.b16 %v3424, %v3423
      %v3452 = vpack.c.b16 %v3426, %v3425
      %v3453 = vpack.c.b16 %v3428, %v3427
      %v3454 = vpack.c.b16 %v3430, %v3429
      %v3455 = vpack.c.b16 %v3432, %v3431
      %v3456 = vpack.c.b16 %v3434, %v3433
      %v3457 = vpack.c.b16 %v3436, %v3435
      %v3458 = vpack.c.b16 %v3438, %v3437
      %v3459 = vpack.c.b16 %v3440, %v3439
      %v3460 = vpack.c.b16 %v3442, %v3441
      %v3461 = vpack.c.b16 %v3444, %v3443
      %v3462 = vpack.c.b16 %v3446, %v3445
      %3463 = vrot.lane.b32.xlu0 %v3447, 64
      %v3464 = vpop.permute.xlu0 %3463
      %3465 = vrot.lane.b32.xlu0 %v3448, 64
      %v3466 = vpop.permute.xlu0 %3465
      %3467 = vrot.lane.b32.xlu0 %v3449, 64
      %v3468 = vpop.permute.xlu0 %3467
      %3469 = vrot.lane.b32.xlu0 %v3450, 64
      %v3470 = vpop.permute.xlu0 %3469
      %3471 = vrot.lane.b32.xlu0 %v3451, 64
      %v3472 = vpop.permute.xlu0 %3471
      %3473 = vrot.lane.b32.xlu0 %v3452, 64
      %v3474 = vpop.permute.xlu0 %3473
      %3475 = vrot.lane.b32.xlu0 %v3453, 64
      %v3476 = vpop.permute.xlu0 %3475
      %3477 = vrot.lane.b32.xlu0 %v3454, 64
      %v3478 = vpop.permute.xlu0 %3477
      %3479 = vrot.lane.b32.xlu0 %v3455, 64
      %v3480 = vpop.permute.xlu0 %3479
      %3481 = vrot.lane.b32.xlu0 %v3456, 64
      %v3482 = vpop.permute.xlu0 %3481
      %3483 = vrot.lane.b32.xlu0 %v3457, 64
      %v3484 = vpop.permute.xlu0 %3483
      %3485 = vrot.lane.b32.xlu0 %v3458, 64
      %v3486 = vpop.permute.xlu0 %3485
      %3487 = vrot.lane.b32.xlu0 %v3459, 64
      %v3488 = vpop.permute.xlu0 %3487
      %3489 = vrot.lane.b32.xlu0 %v3460, 64
      %v3490 = vpop.permute.xlu0 %3489
      %3491 = vrot.lane.b32.xlu0 %v3461, 64
      %v3492 = vpop.permute.xlu0 %3491
      %3493 = vrot.lane.b32.xlu0 %v3462, 64
      %v3494 = vpop.permute.xlu0 %3493
      %v3495 = vunpack.c.l.b16 %v2826
      %v3496 = vunpack.c.l.b16 %v2829
      %v3497 = vunpack.c.l.b16 %v2833
      %v3498 = vunpack.c.l.b16 %v2836
      %v3499 = vunpack.c.l.b16 %v2840
      %v3500 = vunpack.c.l.b16 %v2843
      %v3501 = vunpack.c.l.b16 %v2847
      %v3502 = vunpack.c.l.b16 %v2850
      %v3503 = vunpack.c.l.b16 %v2854
      %v3504 = vunpack.c.l.b16 %v2857
      %v3505 = vunpack.c.l.b16 %v2861
      %v3506 = vunpack.c.l.b16 %v2864
      %v3507 = vunpack.c.l.b16 %v2868
      %v3508 = vunpack.c.l.b16 %v2871
      %v3509 = vunpack.c.l.b16 %v2875
      %v3510 = vunpack.c.l.b16 %v2878
      %v3511 = vunpack.c.l.b16 %v2882
      %v3512 = vunpack.c.l.b16 %v2885
      %v3513 = vunpack.c.l.b16 %v2889
      %v3514 = vunpack.c.l.b16 %v2892
      %v3515 = vunpack.c.l.b16 %v2896
      %v3516 = vunpack.c.l.b16 %v2899
      %v3517 = vunpack.c.l.b16 %v2903
      %v3518 = vunpack.c.l.b16 %v2906
      %v3519 = vunpack.c.l.b16 %v2910
      %v3520 = vunpack.c.l.b16 %v2913
      %v3521 = vunpack.c.l.b16 %v2917
      %v3522 = vunpack.c.l.b16 %v2920
      %v3523 = vunpack.c.l.b16 %v2924
      %v3524 = vunpack.c.l.b16 %v2927
      %v3525 = vunpack.c.l.b16 %v2931
      %v3526 = vunpack.c.l.b16 %v2934
      %v3527 = vpack.c.b16 %v3496, %v3495
      %v3528 = vpack.c.b16 %v3498, %v3497
      %v3529 = vpack.c.b16 %v3500, %v3499
      %v3530 = vpack.c.b16 %v3502, %v3501
      %v3531 = vpack.c.b16 %v3504, %v3503
      %v3532 = vpack.c.b16 %v3506, %v3505
      %v3533 = vpack.c.b16 %v3508, %v3507
      %v3534 = vpack.c.b16 %v3510, %v3509
      %v3535 = vpack.c.b16 %v3512, %v3511
      %v3536 = vpack.c.b16 %v3514, %v3513
      %v3537 = vpack.c.b16 %v3516, %v3515
      %v3538 = vpack.c.b16 %v3518, %v3517
      %v3539 = vpack.c.b16 %v3520, %v3519
      %v3540 = vpack.c.b16 %v3522, %v3521
      %v3541 = vpack.c.b16 %v3524, %v3523
      %v3542 = vpack.c.b16 %v3526, %v3525
      %vm3543 = vcmask 523264
      %v3546 = vsel %vm3543, %v2983, %v3048
      %v3550 = vsel %vm3543, %v2984, %v3050
      %v3554 = vsel %vm3543, %v2985, %v3052
      %v3558 = vsel %vm3543, %v2986, %v3054
      %v3562 = vsel %vm3543, %v2987, %v3056
      %v3566 = vsel %vm3543, %v2988, %v3058
      %v3570 = vsel %vm3543, %v2989, %v3060
      %v3574 = vsel %vm3543, %v2990, %v3062
      %v3578 = vsel %vm3543, %v2991, %v3064
      %v3582 = vsel %vm3543, %v2992, %v3066
      %v3586 = vsel %vm3543, %v2993, %v3068
      %v3590 = vsel %vm3543, %v2994, %v3070
      %v3594 = vsel %vm3543, %v2995, %v3072
      %v3598 = vsel %vm3543, %v2996, %v3074
      %v3602 = vsel %vm3543, %v2997, %v3076
      %v3606 = vsel %vm3543, %v2998, %v3078
      %v3610 = vsel %vm3543, %v3111, %v3192
      %v3614 = vsel %vm3543, %v3112, %v3194
      %v3618 = vsel %vm3543, %v3113, %v3196
      %v3622 = vsel %vm3543, %v3114, %v3198
      %v3626 = vsel %vm3543, %v3115, %v3200
      %v3630 = vsel %vm3543, %v3116, %v3202
      %v3634 = vsel %vm3543, %v3117, %v3204
      %v3638 = vsel %vm3543, %v3118, %v3206
      %v3642 = vsel %vm3543, %v3119, %v3208
      %v3646 = vsel %vm3543, %v3120, %v3210
      %v3650 = vsel %vm3543, %v3121, %v3212
      %v3654 = vsel %vm3543, %v3122, %v3214
      %v3658 = vsel %vm3543, %v3123, %v3216
      %v3662 = vsel %vm3543, %v3124, %v3218
      %v3666 = vsel %vm3543, %v3125, %v3220
      %v3670 = vsel %vm3543, %v3126, %v3222
      %v3674 = vsel %vm3543, %v3255, %v3320
      %v3678 = vsel %vm3543, %v3256, %v3322
      %v3682 = vsel %vm3543, %v3257, %v3324
      %v3686 = vsel %vm3543, %v3258, %v3326
      %v3690 = vsel %vm3543, %v3259, %v3328
      %v3694 = vsel %vm3543, %v3260, %v3330
      %v3698 = vsel %vm3543, %v3261, %v3332
      %v3702 = vsel %vm3543, %v3262, %v3334
      %v3706 = vsel %vm3543, %v3263, %v3336
      %v3710 = vsel %vm3543, %v3264, %v3338
      %v3714 = vsel %vm3543, %v3265, %v3340
      %v3718 = vsel %vm3543, %v3266, %v3342
      %v3722 = vsel %vm3543, %v3267, %v3344
      %v3726 = vsel %vm3543, %v3268, %v3346
      %v3730 = vsel %vm3543, %v3269, %v3348
      %v3734 = vsel %vm3543, %v3270, %v3350
      %v3738 = vsel %vm3543, %v3399, %v3464
      %v3742 = vsel %vm3543, %v3400, %v3466
      %v3746 = vsel %vm3543, %v3401, %v3468
      %v3750 = vsel %vm3543, %v3402, %v3470
      %v3754 = vsel %vm3543, %v3403, %v3472
      %v3758 = vsel %vm3543, %v3404, %v3474
      %v3762 = vsel %vm3543, %v3405, %v3476
      %v3766 = vsel %vm3543, %v3406, %v3478
      %v3770 = vsel %vm3543, %v3407, %v3480
      %v3774 = vsel %vm3543, %v3408, %v3482
      %v3778 = vsel %vm3543, %v3409, %v3484
      %v3782 = vsel %vm3543, %v3410, %v3486
      %v3786 = vsel %vm3543, %v3411, %v3488
      %v3790 = vsel %vm3543, %v3412, %v3490
      %v3794 = vsel %vm3543, %v3413, %v3492
      %v3798 = vsel %vm3543, %v3414, %v3494
      %v3800 = vld [vmem:[%s1] sm:$0xff]
      %v3801 = vld [vmem:[%s1 + $0x8] sm:$0xff]
      %v3802 = vld [vmem:[%s1 + $0x10] sm:$0xff]
      %v3803 = vld [vmem:[%s1 + $0x18] sm:$0xff]
      %v3804 = vld [vmem:[%s1 + $0x20] sm:$0xff]
      %v3805 = vld [vmem:[%s1 + $0x28] sm:$0xff]
      %v3806 = vld [vmem:[%s1 + $0x30] sm:$0xff]
      %v3807 = vld [vmem:[%s1 + $0x38] sm:$0xff]
      %v3808 = vld [vmem:[%s1 + $0x40] sm:$0xff]
      %v3809 = vld [vmem:[%s1 + $0x48] sm:$0xff]
      %v3810 = vld [vmem:[%s1 + $0x50] sm:$0xff]
      %v3811 = vld [vmem:[%s1 + $0x58] sm:$0xff]
      %v3812 = vld [vmem:[%s1 + $0x60] sm:$0xff]
      %v3813 = vld [vmem:[%s1 + $0x68] sm:$0xff]
      %v3814 = vld [vmem:[%s1 + $0x70] sm:$0xff]
      %v3815 = vld [vmem:[%s1 + $0x78] sm:$0xff]
      %v3816 = vld [vmem:[%s1 + $0x80] sm:$0xff]
      %v3817 = vld [vmem:[%s1 + $0x88] sm:$0xff]
      %v3818 = vld [vmem:[%s1 + $0x90] sm:$0xff]
      %v3819 = vld [vmem:[%s1 + $0x98] sm:$0xff]
      %v3820 = vld [vmem:[%s1 + $0xa0] sm:$0xff]
      %v3821 = vld [vmem:[%s1 + $0xa8] sm:$0xff]
      %v3822 = vld [vmem:[%s1 + $0xb0] sm:$0xff]
      %v3823 = vld [vmem:[%s1 + $0xb8] sm:$0xff]
      %v3824 = vld [vmem:[%s1 + $0xc0] sm:$0xff]
      %v3825 = vld [vmem:[%s1 + $0xc8] sm:$0xff]
      %v3826 = vld [vmem:[%s1 + $0xd0] sm:$0xff]
      %v3827 = vld [vmem:[%s1 + $0xd8] sm:$0xff]
      %v3828 = vld [vmem:[%s1 + $0xe0] sm:$0xff]
      %v3829 = vld [vmem:[%s1 + $0xe8] sm:$0xff]
      %v3830 = vld [vmem:[%s1 + $0xf0] sm:$0xff]
      %v3831 = vld [vmem:[%s1 + $0xf8] sm:$0xff]
      %v3832 = vld [vmem:[%s1 + $0x100] sm:$0xff]
      %v3833 = vld [vmem:[%s1 + $0x108] sm:$0xff]
      %v3834 = vld [vmem:[%s1 + $0x110] sm:$0xff]
      %v3835 = vld [vmem:[%s1 + $0x118] sm:$0xff]
      %v3836 = vld [vmem:[%s1 + $0x120] sm:$0xff]
      %v3837 = vld [vmem:[%s1 + $0x128] sm:$0xff]
      %v3838 = vld [vmem:[%s1 + $0x130] sm:$0xff]
      %v3839 = vld [vmem:[%s1 + $0x138] sm:$0xff]
      %v3840 = vld [vmem:[%s1 + $0x140] sm:$0xff]
      %v3841 = vld [vmem:[%s1 + $0x148] sm:$0xff]
      %v3842 = vld [vmem:[%s1 + $0x150] sm:$0xff]
      %v3843 = vld [vmem:[%s1 + $0x158] sm:$0xff]
      %v3844 = vld [vmem:[%s1 + $0x160] sm:$0xff]
      %v3845 = vld [vmem:[%s1 + $0x168] sm:$0xff]
      %v3846 = vld [vmem:[%s1 + $0x170] sm:$0xff]
      %v3847 = vld [vmem:[%s1 + $0x178] sm:$0xff]
      %v3848 = vld [vmem:[%s1 + $0x180] sm:$0xff]
      %v3849 = vld [vmem:[%s1 + $0x188] sm:$0xff]
      %v3850 = vld [vmem:[%s1 + $0x190] sm:$0xff]
      %v3851 = vld [vmem:[%s1 + $0x198] sm:$0xff]
      %v3852 = vld [vmem:[%s1 + $0x1a0] sm:$0xff]
      %v3853 = vld [vmem:[%s1 + $0x1a8] sm:$0xff]
      %v3854 = vld [vmem:[%s1 + $0x1b0] sm:$0xff]
      %v3855 = vld [vmem:[%s1 + $0x1b8] sm:$0xff]
      %v3856 = vld [vmem:[%s1 + $0x1c0] sm:$0xff]
      %v3857 = vld [vmem:[%s1 + $0x1c8] sm:$0xff]
      %v3858 = vld [vmem:[%s1 + $0x1d0] sm:$0xff]
      %v3859 = vld [vmem:[%s1 + $0x1d8] sm:$0xff]
      %v3860 = vld [vmem:[%s1 + $0x1e0] sm:$0xff]
      %v3861 = vld [vmem:[%s1 + $0x1e8] sm:$0xff]
      %v3862 = vld [vmem:[%s1 + $0x1f0] sm:$0xff]
      %v3863 = vld [vmem:[%s1 + $0x1f8] sm:$0xff]
      %v3864 = vld [vmem:[%s1 + $0x200] sm:$0xff]
      %v3865 = vld [vmem:[%s1 + $0x208] sm:$0xff]
      %v3866 = vld [vmem:[%s1 + $0x210] sm:$0xff]
      %v3867 = vld [vmem:[%s1 + $0x218] sm:$0xff]
      %v3868 = vld [vmem:[%s1 + $0x220] sm:$0xff]
      %v3869 = vld [vmem:[%s1 + $0x228] sm:$0xff]
      %v3870 = vld [vmem:[%s1 + $0x230] sm:$0xff]
      %v3871 = vld [vmem:[%s1 + $0x238] sm:$0xff]
      %v3872 = vld [vmem:[%s2] sm:$0x3]
      %v3874 = vlaneseq
      %v3875 = vshrl.u32 %v3874, 7
      %v3876 = vsub.s32 0, %v3875
      %v3877 = vrot.slane %v3872, %v3876
      %v3878 = vlaneseq
      %v3879 = vshrl.u32 %v3878, 7
      %v3880 = vsub.s32 1, %v3879
      %v3881 = vrot.slane %v3872, %v3880
      %v3956 = vunpack.c.l.b16 %v3800
      %v3957 = vunpack.c.h.b16 %v3800
      %v3958 = vunpack.c.l.b16 %v3801
      %v3959 = vunpack.c.h.b16 %v3801
      %v3960 = vunpack.c.l.b16 %v3802
      %v3961 = vunpack.c.h.b16 %v3802
      %v3962 = vunpack.c.l.b16 %v3803
      %v3963 = vunpack.c.h.b16 %v3803
      %v3964 = vunpack.c.l.b16 %v3804
      %v3965 = vunpack.c.h.b16 %v3804
      %v3966 = vunpack.c.l.b16 %v3805
      %v3967 = vunpack.c.h.b16 %v3805
      %v3968 = vunpack.c.l.b16 %v3806
      %v3969 = vunpack.c.h.b16 %v3806
      %v3970 = vunpack.c.l.b16 %v3807
      %v3971 = vunpack.c.h.b16 %v3807
      %v3972 = vunpack.c.l.b16 %v3808
      %v3973 = vunpack.c.h.b16 %v3808
      %v3974 = vunpack.c.l.b16 %v3809
      %v3975 = vunpack.c.h.b16 %v3809
      %v3976 = vunpack.c.l.b16 %v3810
      %v3977 = vunpack.c.h.b16 %v3810
      %v3978 = vunpack.c.l.b16 %v3811
      %v3979 = vunpack.c.h.b16 %v3811
      %v3980 = vunpack.c.l.b16 %v3812
      %v3981 = vunpack.c.h.b16 %v3812
      %v3982 = vunpack.c.l.b16 %v3813
      %v3983 = vunpack.c.h.b16 %v3813
      %v3984 = vunpack.c.l.b16 %v3814
      %v3985 = vunpack.c.h.b16 %v3814
      %v3986 = vunpack.c.l.b16 %v3815
      %v3987 = vunpack.c.h.b16 %v3815
      %v3988 = vunpack.c.l.b16 %v3816
      %v3989 = vunpack.c.h.b16 %v3816
      %v3990 = vunpack.c.l.b16 %v3817
      %v3991 = vunpack.c.h.b16 %v3817
      %v3992 = vunpack.c.l.b16 %v3818
      %v3993 = vunpack.c.h.b16 %v3818
      %v3994 = vunpack.c.l.b16 %v3819
      %v3995 = vunpack.c.h.b16 %v3819
      %v3996 = vunpack.c.l.b16 %v3820
      %v3997 = vunpack.c.h.b16 %v3820
      %v3998 = vunpack.c.l.b16 %v3821
      %v3999 = vunpack.c.h.b16 %v3821
      %v4000 = vunpack.c.l.b16 %v3822
      %v4001 = vunpack.c.h.b16 %v3822
      %v4002 = vunpack.c.l.b16 %v3823
      %v4003 = vunpack.c.h.b16 %v3823
      %v4004 = vunpack.c.l.b16 %v3824
      %v4005 = vunpack.c.h.b16 %v3824
      %v4006 = vunpack.c.l.b16 %v3825
      %v4007 = vunpack.c.h.b16 %v3825
      %v4008 = vunpack.c.l.b16 %v3826
      %v4009 = vunpack.c.h.b16 %v3826
      %v4010 = vunpack.c.l.b16 %v3827
      %v4011 = vunpack.c.h.b16 %v3827
      %v4012 = vunpack.c.l.b16 %v3828
      %v4013 = vunpack.c.h.b16 %v3828
      %v4014 = vunpack.c.l.b16 %v3829
      %v4015 = vunpack.c.h.b16 %v3829
      %v4016 = vunpack.c.l.b16 %v3830
      %v4017 = vunpack.c.h.b16 %v3830
      %v4018 = vunpack.c.l.b16 %v3831
      %v4019 = vunpack.c.h.b16 %v3831
      %v4020 = vunpack.c.l.b16 %v3832
      %v4021 = vunpack.c.h.b16 %v3832
      %v4022 = vunpack.c.l.b16 %v3833
      %v4023 = vunpack.c.h.b16 %v3833
      %v4024 = vunpack.c.l.b16 %v3834
      %v4025 = vunpack.c.h.b16 %v3834
      %v4026 = vunpack.c.l.b16 %v3835
      %v4027 = vunpack.c.h.b16 %v3835
      %v4028 = vunpack.c.l.b16 %v3836
      %v4029 = vunpack.c.h.b16 %v3836
      %v4030 = vunpack.c.l.b16 %v3837
      %v4031 = vunpack.c.h.b16 %v3837
      %v4032 = vunpack.c.l.b16 %v3838
      %v4033 = vunpack.c.h.b16 %v3838
      %v4034 = vunpack.c.l.b16 %v3839
      %v4035 = vunpack.c.h.b16 %v3839
      %v4036 = vunpack.c.l.b16 %v3840
      %v4037 = vunpack.c.h.b16 %v3840
      %v4038 = vunpack.c.l.b16 %v3841
      %v4039 = vunpack.c.h.b16 %v3841
      %v4040 = vunpack.c.l.b16 %v3842
      %v4041 = vunpack.c.h.b16 %v3842
      %v4042 = vunpack.c.l.b16 %v3843
      %v4043 = vunpack.c.h.b16 %v3843
      %v4044 = vunpack.c.l.b16 %v3844
      %v4045 = vunpack.c.h.b16 %v3844
      %v4046 = vunpack.c.l.b16 %v3845
      %v4047 = vunpack.c.h.b16 %v3845
      %v4048 = vunpack.c.l.b16 %v3846
      %v4049 = vunpack.c.h.b16 %v3846
      %v4050 = vunpack.c.l.b16 %v3847
      %v4051 = vunpack.c.h.b16 %v3847
      %v4052 = vunpack.c.l.b16 %v3848
      %v4053 = vunpack.c.h.b16 %v3848
      %v4054 = vunpack.c.l.b16 %v3849
      %v4055 = vunpack.c.h.b16 %v3849
      %v4056 = vunpack.c.l.b16 %v3850
      %v4057 = vunpack.c.h.b16 %v3850
      %v4058 = vunpack.c.l.b16 %v3851
      %v4059 = vunpack.c.h.b16 %v3851
      %v4060 = vunpack.c.l.b16 %v3852
      %v4061 = vunpack.c.h.b16 %v3852
      %v4062 = vunpack.c.l.b16 %v3853
      %v4063 = vunpack.c.h.b16 %v3853
      %v4064 = vunpack.c.l.b16 %v3854
      %v4065 = vunpack.c.h.b16 %v3854
      %v4066 = vunpack.c.l.b16 %v3855
      %v4067 = vunpack.c.h.b16 %v3855
      %v4068 = vunpack.c.l.b16 %v3856
      %v4069 = vunpack.c.h.b16 %v3856
      %v4070 = vunpack.c.l.b16 %v3857
      %v4071 = vunpack.c.h.b16 %v3857
      %v4072 = vunpack.c.l.b16 %v3858
      %v4073 = vunpack.c.h.b16 %v3858
      %v4074 = vunpack.c.l.b16 %v3859
      %v4075 = vunpack.c.h.b16 %v3859
      %v4076 = vunpack.c.l.b16 %v3860
      %v4077 = vunpack.c.h.b16 %v3860
      %v4078 = vunpack.c.l.b16 %v3861
      %v4079 = vunpack.c.h.b16 %v3861
      %v4080 = vunpack.c.l.b16 %v3862
      %v4081 = vunpack.c.h.b16 %v3862
      %v4082 = vunpack.c.l.b16 %v3863
      %v4083 = vunpack.c.h.b16 %v3863
      %v4084 = vunpack.c.l.b16 %v3864
      %v4085 = vunpack.c.h.b16 %v3864
      %v4086 = vunpack.c.l.b16 %v3865
      %v4087 = vunpack.c.h.b16 %v3865
      %v4088 = vunpack.c.l.b16 %v3866
      %v4089 = vunpack.c.h.b16 %v3866
      %v4090 = vunpack.c.l.b16 %v3867
      %v4091 = vunpack.c.h.b16 %v3867
      %v4092 = vunpack.c.l.b16 %v3868
      %v4093 = vunpack.c.h.b16 %v3868
      %v4094 = vunpack.c.l.b16 %v3869
      %v4095 = vunpack.c.h.b16 %v3869
      %v4096 = vunpack.c.l.b16 %v3870
      %v4097 = vunpack.c.h.b16 %v3870
      %v4098 = vunpack.c.l.b16 %v3871
      %v4099 = vunpack.c.h.b16 %v3871
      %v4100 = vpack.c.b16 %v3958, %v3956
      %v4101 = vpack.c.b16 %v3959, %v3957
      %v4102 = vpack.c.b16 %v3962, %v3960
      %v4103 = vpack.c.b16 %v3963, %v3961
      %v4104 = vpack.c.b16 %v3966, %v3964
      %v4105 = vpack.c.b16 %v3967, %v3965
      %v4106 = vpack.c.b16 %v3970, %v3968
      %v4107 = vpack.c.b16 %v3971, %v3969
      %v4108 = vpack.c.b16 %v3974, %v3972
      %v4109 = vpack.c.b16 %v3975, %v3973
      %v4110 = vpack.c.b16 %v3978, %v3976
      %v4111 = vpack.c.b16 %v3979, %v3977
      %v4112 = vpack.c.b16 %v3982, %v3980
      %v4113 = vpack.c.b16 %v3983, %v3981
      %v4114 = vpack.c.b16 %v3986, %v3984
      %v4115 = vpack.c.b16 %v3987, %v3985
      %v4116 = vpack.c.b16 %v3990, %v3988
      %v4117 = vpack.c.b16 %v3991, %v3989
      %v4118 = vpack.c.b16 %v3994, %v3992
      %v4119 = vpack.c.b16 %v3995, %v3993
      %v4120 = vpack.c.b16 %v3998, %v3996
      %v4121 = vpack.c.b16 %v3999, %v3997
      %v4122 = vpack.c.b16 %v4002, %v4000
      %v4123 = vpack.c.b16 %v4003, %v4001
      %v4124 = vpack.c.b16 %v4006, %v4004
      %v4125 = vpack.c.b16 %v4007, %v4005
      %v4126 = vpack.c.b16 %v4010, %v4008
      %v4127 = vpack.c.b16 %v4011, %v4009
      %v4128 = vpack.c.b16 %v4014, %v4012
      %v4129 = vpack.c.b16 %v4015, %v4013
      %v4130 = vpack.c.b16 %v4018, %v4016
      %v4131 = vpack.c.b16 %v4019, %v4017
      %v4132 = vpack.c.b16 %v4022, %v4020
      %v4133 = vpack.c.b16 %v4023, %v4021
      %v4134 = vpack.c.b16 %v4026, %v4024
      %v4135 = vpack.c.b16 %v4027, %v4025
      %v4136 = vpack.c.b16 %v4030, %v4028
      %v4137 = vpack.c.b16 %v4031, %v4029
      %v4138 = vpack.c.b16 %v4034, %v4032
      %v4139 = vpack.c.b16 %v4035, %v4033
      %v4140 = vpack.c.b16 %v4038, %v4036
      %v4141 = vpack.c.b16 %v4039, %v4037
      %v4142 = vpack.c.b16 %v4042, %v4040
      %v4143 = vpack.c.b16 %v4043, %v4041
      %v4144 = vpack.c.b16 %v4046, %v4044
      %v4145 = vpack.c.b16 %v4047, %v4045
      %v4146 = vpack.c.b16 %v4050, %v4048
      %v4147 = vpack.c.b16 %v4051, %v4049
      %v4148 = vpack.c.b16 %v4054, %v4052
      %v4149 = vpack.c.b16 %v4055, %v4053
      %v4150 = vpack.c.b16 %v4058, %v4056
      %v4151 = vpack.c.b16 %v4059, %v4057
      %v4152 = vpack.c.b16 %v4062, %v4060
      %v4153 = vpack.c.b16 %v4063, %v4061
      %v4154 = vpack.c.b16 %v4066, %v4064
      %v4155 = vpack.c.b16 %v4067, %v4065
      %v4156 = vpack.c.b16 %v4070, %v4068
      %v4157 = vpack.c.b16 %v4071, %v4069
      %v4158 = vpack.c.b16 %v4074, %v4072
      %v4159 = vpack.c.b16 %v4075, %v4073
      %v4160 = vpack.c.b16 %v4078, %v4076
      %v4161 = vpack.c.b16 %v4079, %v4077
      %v4162 = vpack.c.b16 %v4082, %v4080
      %v4163 = vpack.c.b16 %v4083, %v4081
      %v4164 = vpack.c.b16 %v4086, %v4084
      %v4165 = vpack.c.b16 %v4087, %v4085
      %v4166 = vpack.c.b16 %v4090, %v4088
      %v4167 = vpack.c.b16 %v4091, %v4089
      %v4168 = vpack.c.b16 %v4094, %v4092
      %v4169 = vpack.c.b16 %v4095, %v4093
      %v4170 = vpack.c.b16 %v4098, %v4096
      %v4171 = vpack.c.b16 %v4099, %v4097
      %v4245 = vsel %vm3543, %v3527, 0
      %v4248 = vsel %vm3543, %v3528, 0
      %v4251 = vsel %vm3543, %v3529, 0
      %v4254 = vsel %vm3543, %v3530, 0
      %v4257 = vsel %vm3543, %v3531, 0
      %v4260 = vsel %vm3543, %v3532, 0
      %v4263 = vsel %vm3543, %v3533, 0
      %v4266 = vsel %vm3543, %v3534, 0
      %v4269 = vsel %vm3543, %v3535, 0
      %v4272 = vsel %vm3543, %v3536, 0
      %v4275 = vsel %vm3543, %v3537, 0
      %v4278 = vsel %vm3543, %v3538, 0
      %v4281 = vsel %vm3543, %v3539, 0
      %v4284 = vsel %vm3543, %v3540, 0
      %v4287 = vsel %vm3543, %v3541, 0
      %v4290 = vsel %vm3543, %v3542, 0
      %4292 = vmatprep.subr.bf16.mxu0 %v4101
      %4293 = vmatpush1.bf16.msra.mxu0 %v4100
      %4294 = vmatprep.subr.bf16.mxu0 %v4103
      %4295 = vmatpush1.bf16.msra.mxu0 %v4102
      %4296 = vmatprep.subr.bf16.mxu0 %v4105
      %4297 = vmatpush1.bf16.msra.mxu0 %v4104
      %4298 = vmatprep.subr.bf16.mxu0 %v4107
      %4299 = vmatpush1.bf16.msra.mxu0 %v4106
      %4300 = vmatprep.subr.bf16.mxu0 %v4109
      %4301 = vmatpush1.bf16.msra.mxu0 %v4108
      %4302 = vmatprep.subr.bf16.mxu0 %v4111
      %4303 = vmatpush1.bf16.msra.mxu0 %v4110
      %4304 = vmatprep.subr.bf16.mxu0 %v4113
      %4305 = vmatpush1.bf16.msra.mxu0 %v4112
      %4306 = vmatprep.subr.bf16.mxu0 %v4115
      %4307 = vmatpush1.bf16.msra.mxu0 %v4114
      %4308 = vmatprep.subr.bf16.mxu0 %v4117
      %4309 = vmatpush1.bf16.msra.mxu0 %v4116
      %4310 = vmatprep.subr.bf16.mxu0 %v4119
      %4311 = vmatpush1.bf16.msra.mxu0 %v4118
      %4312 = vmatprep.subr.bf16.mxu0 %v4121
      %4313 = vmatpush1.bf16.msra.mxu0 %v4120
      %4314 = vmatprep.subr.bf16.mxu0 %v4123
      %4315 = vmatpush1.bf16.msra.mxu0 %v4122
      %4316 = vmatprep.subr.bf16.mxu0 %v4125
      %4317 = vmatpush1.bf16.msra.mxu0 %v4124
      %4318 = vmatprep.subr.bf16.mxu0 %v4127
      %4319 = vmatpush1.bf16.msra.mxu0 %v4126
      %4320 = vmatprep.subr.bf16.mxu0 %v4129
      %4321 = vmatpush1.bf16.msra.mxu0 %v4128
      %4322 = vmatprep.subr.bf16.mxu0 %v4131
      %4323 = vmatpush1.bf16.msra.mxu0 %v4130
      %4324 = vmatprep.mubr.bf16.mxu0 %v3610
      %4325 = vmatmul.mubr.bf16.gmra.mrb[0].mxu0 %v3546
      %v4326 = vpop.f32.mrb[0].mxu0
      %v4327 = vadd.f32 %v3877, %v4326
      %v4328 = vpop.f32.mrb[0].mxu0
      %v4329 = vadd.f32 %v3881, %v4328
      %v4330 = vpop.f32.mrb[0].mxu0
      %v4331 = vadd.f32 %v3877, %v4330
      %v4332 = vpop.f32.mrb[0].mxu0
      %v4333 = vadd.f32 %v3881, %v4332
      %4334 = vmatprep.mubr.bf16.mxu0 %v3614
      %4335 = vmatmul.mubr.bf16.gmra.mrb[0].mxu0 %v3550
      %v4336 = vpop.f32.mrb[0].mxu0
      %v4337 = vadd.f32 %v3877, %v4336
      %v4338 = vpop.f32.mrb[0].mxu0
      %v4339 = vadd.f32 %v3881, %v4338
      %v4340 = vpop.f32.mrb[0].mxu0
      %v4341 = vadd.f32 %v3877, %v4340
      %v4342 = vpop.f32.mrb[0].mxu0
      %v4343 = vadd.f32 %v3881, %v4342
      %4344 = vmatprep.mubr.bf16.mxu0 %v3618
      %4345 = vmatmul.mubr.bf16.gmra.mrb[0].mxu0 %v3554
      %v4346 = vpop.f32.mrb[0].mxu0
      %v4347 = vadd.f32 %v3877, %v4346
      %v4348 = vpop.f32.mrb[0].mxu0
      %v4349 = vadd.f32 %v3881, %v4348
      %v4350 = vpop.f32.mrb[0].mxu0
      %v4351 = vadd.f32 %v3877, %v4350
      %v4352 = vpop.f32.mrb[0].mxu0
      %v4353 = vadd.f32 %v3881, %v4352
      %4354 = vmatprep.mubr.bf16.mxu0 %v3622
      %4355 = vmatmul.mubr.bf16.gmra.mrb[0].mxu0 %v3558
      %v4356 = vpop.f32.mrb[0].mxu0
      %v4357 = vadd.f32 %v3877, %v4356
      %v4358 = vpop.f32.mrb[0].mxu0
      %v4359 = vadd.f32 %v3881, %v4358
      %v4360 = vpop.f32.mrb[0].mxu0
      %v4361 = vadd.f32 %v3877, %v4360
      %v4362 = vpop.f32.mrb[0].mxu0
      %v4363 = vadd.f32 %v3881, %v4362
      %4364 = vmatprep.mubr.bf16.mxu0 %v3626
      %4365 = vmatmul.mubr.bf16.gmra.mrb[0].mxu0 %v3562
      %v4366 = vpop.f32.mrb[0].mxu0
      %v4367 = vadd.f32 %v3877, %v4366
      %v4368 = vpop.f32.mrb[0].mxu0
      %v4369 = vadd.f32 %v3881, %v4368
      %v4370 = vpop.f32.mrb[0].mxu0
      %v4371 = vadd.f32 %v3877, %v4370
      %v4372 = vpop.f32.mrb[0].mxu0
      %v4373 = vadd.f32 %v3881, %v4372
      %4374 = vmatprep.mubr.bf16.mxu0 %v3630
      %4375 = vmatmul.mubr.bf16.gmra.mrb[0].mxu0 %v3566
      %v4376 = vpop.f32.mrb[0].mxu0
      %v4377 = vadd.f32 %v3877, %v4376
      %v4378 = vpop.f32.mrb[0].mxu0
      %v4379 = vadd.f32 %v3881, %v4378
      %v4380 = vpop.f32.mrb[0].mxu0
      %v4381 = vadd.f32 %v3877, %v4380
      %v4382 = vpop.f32.mrb[0].mxu0
      %v4383 = vadd.f32 %v3881, %v4382
      %4384 = vmatprep.mubr.bf16.mxu0 %v3634
      %4385 = vmatmul.mubr.bf16.gmra.mrb[0].mxu0 %v3570
      %v4386 = vpop.f32.mrb[0].mxu0
      %v4387 = vadd.f32 %v3877, %v4386
      %v4388 = vpop.f32.mrb[0].mxu0
      %v4389 = vadd.f32 %v3881, %v4388
      %v4390 = vpop.f32.mrb[0].mxu0
      %v4391 = vadd.f32 %v3877, %v4390
      %v4392 = vpop.f32.mrb[0].mxu0
      %v4393 = vadd.f32 %v3881, %v4392
      %4394 = vmatprep.mubr.bf16.mxu0 %v3638
      %4395 = vmatmul.mubr.bf16.gmra.mrb[0].mxu0 %v3574
      %v4396 = vpop.f32.mrb[0].mxu0
      %v4397 = vadd.f32 %v3877, %v4396
      %v4398 = vpop.f32.mrb[0].mxu0
      %v4399 = vadd.f32 %v3881, %v4398
      %v4400 = vpop.f32.mrb[0].mxu0
      %v4401 = vadd.f32 %v3877, %v4400
      %v4402 = vpop.f32.mrb[0].mxu0
      %v4403 = vadd.f32 %v3881, %v4402
      %4404 = vmatprep.mubr.bf16.mxu0 %v3642
      %4405 = vmatmul.mubr.bf16.gmra.mrb[0].mxu0 %v3578
      %v4406 = vpop.f32.mrb[0].mxu0
      %v4407 = vadd.f32 %v3877, %v4406
      %v4408 = vpop.f32.mrb[0].mxu0
      %v4409 = vadd.f32 %v3881, %v4408
      %v4410 = vpop.f32.mrb[0].mxu0
      %v4411 = vadd.f32 %v3877, %v4410
      %v4412 = vpop.f32.mrb[0].mxu0
      %v4413 = vadd.f32 %v3881, %v4412
      %4414 = vmatprep.mubr.bf16.mxu0 %v3646
      %4415 = vmatmul.mubr.bf16.gmra.mrb[0].mxu0 %v3582
      %v4416 = vpop.f32.mrb[0].mxu0
      %v4417 = vadd.f32 %v3877, %v4416
      %v4418 = vpop.f32.mrb[0].mxu0
      %v4419 = vadd.f32 %v3881, %v4418
      %v4420 = vpop.f32.mrb[0].mxu0
      %v4421 = vadd.f32 %v3877, %v4420
      %v4422 = vpop.f32.mrb[0].mxu0
      %v4423 = vadd.f32 %v3881, %v4422
      %4424 = vmatprep.mubr.bf16.mxu0 %v3650
      %4425 = vmatmul.mubr.bf16.gmra.mrb[0].mxu0 %v3586
      %v4426 = vpop.f32.mrb[0].mxu0
      %v4427 = vadd.f32 %v3877, %v4426
      %v4428 = vpop.f32.mrb[0].mxu0
      %v4429 = vadd.f32 %v3881, %v4428
      %v4430 = vpop.f32.mrb[0].mxu0
      %v4431 = vadd.f32 %v3877, %v4430
      %v4432 = vpop.f32.mrb[0].mxu0
      %v4433 = vadd.f32 %v3881, %v4432
      %4434 = vmatprep.mubr.bf16.mxu0 %v3654
      %4435 = vmatmul.mubr.bf16.gmra.mrb[0].mxu0 %v3590
      %v4436 = vpop.f32.mrb[0].mxu0
      %v4437 = vadd.f32 %v3877, %v4436
      %v4438 = vpop.f32.mrb[0].mxu0
      %v4439 = vadd.f32 %v3881, %v4438
      %v4440 = vpop.f32.mrb[0].mxu0
      %v4441 = vadd.f32 %v3877, %v4440
      %v4442 = vpop.f32.mrb[0].mxu0
      %v4443 = vadd.f32 %v3881, %v4442
      %4444 = vmatprep.mubr.bf16.mxu0 %v3658
      %4445 = vmatmul.mubr.bf16.gmra.mrb[0].mxu0 %v3594
      %v4446 = vpop.f32.mrb[0].mxu0
      %v4447 = vadd.f32 %v3877, %v4446
      %v4448 = vpop.f32.mrb[0].mxu0
      %v4449 = vadd.f32 %v3881, %v4448
      %v4450 = vpop.f32.mrb[0].mxu0
      %v4451 = vadd.f32 %v3877, %v4450
      %v4452 = vpop.f32.mrb[0].mxu0
      %v4453 = vadd.f32 %v3881, %v4452
      %4454 = vmatprep.mubr.bf16.mxu0 %v3662
      %4455 = vmatmul.mubr.bf16.gmra.mrb[0].mxu0 %v3598
      %v4456 = vpop.f32.mrb[0].mxu0
      %v4457 = vadd.f32 %v3877, %v4456
      %v4458 = vpop.f32.mrb[0].mxu0
      %v4459 = vadd.f32 %v3881, %v4458
      %v4460 = vpop.f32.mrb[0].mxu0
      %v4461 = vadd.f32 %v3877, %v4460
      %v4462 = vpop.f32.mrb[0].mxu0
      %v4463 = vadd.f32 %v3881, %v4462
      %4464 = vmatprep.mubr.bf16.mxu0 %v3666
      %4465 = vmatmul.mubr.bf16.gmra.mrb[0].mxu0 %v3602
      %v4466 = vpop.f32.mrb[0].mxu0
      %v4467 = vadd.f32 %v3877, %v4466
      %v4468 = vpop.f32.mrb[0].mxu0
      %v4469 = vadd.f32 %v3881, %v4468
      %v4470 = vpop.f32.mrb[0].mxu0
      %v4471 = vadd.f32 %v3877, %v4470
      %v4472 = vpop.f32.mrb[0].mxu0
      %v4473 = vadd.f32 %v3881, %v4472
      %4474 = vmatprep.mubr.bf16.mxu0 %v3670
      %4475 = vmatmul.mubr.bf16.gmra.mrb[0].mxu0 %v3606
      %v4476 = vpop.f32.mrb[0].mxu0
      %v4477 = vadd.f32 %v3877, %v4476
      %v4478 = vpop.f32.mrb[0].mxu0
      %v4479 = vadd.f32 %v3881, %v4478
      %v4480 = vpop.f32.mrb[0].mxu0
      %v4481 = vadd.f32 %v3877, %v4480
      %v4482 = vpop.f32.mrb[0].mxu0
      %v4483 = vadd.f32 %v3881, %v4482
      %4484 = vdwg.mxu0
      %4485 = vmatprep.subr.bf16.mxu0 %v4133
      %4486 = vmatpush1.bf16.msra.mxu0 %v4132
      %4487 = vmatprep.subr.bf16.mxu0 %v4135
      %4488 = vmatpush1.bf16.msra.mxu0 %v4134
      %4489 = vmatprep.subr.bf16.mxu0 %v4137
      %4490 = vmatpush1.bf16.msra.mxu0 %v4136
      %4491 = vmatprep.subr.bf16.mxu0 %v4139
      %4492 = vmatpush1.bf16.msra.mxu0 %v4138
      %4493 = vmatprep.subr.bf16.mxu0 %v4141
      %4494 = vmatpush1.bf16.msra.mxu0 %v4140
      %4495 = vmatprep.subr.bf16.mxu0 %v4143
      %4496 = vmatpush1.bf16.msra.mxu0 %v4142
      %4497 = vmatprep.subr.bf16.mxu0 %v4145
      %4498 = vmatpush1.bf16.msra.mxu0 %v4144
      %4499 = vmatprep.subr.bf16.mxu0 %v4147
      %4500 = vmatpush1.bf16.msra.mxu0 %v4146
      %4501 = vmatprep.subr.bf16.mxu0 %v4149
      %4502 = vmatpush1.bf16.msra.mxu0 %v4148
      %4503 = vmatprep.subr.bf16.mxu0 %v4151
      %4504 = vmatpush1.bf16.msra.mxu0 %v4150
      %4505 = vmatprep.subr.bf16.mxu0 %v4153
      %4506 = vmatpush1.bf16.msra.mxu0 %v4152
      %4507 = vmatprep.subr.bf16.mxu0 %v4155
      %4508 = vmatpush1.bf16.msra.mxu0 %v4154
      %4509 = vmatprep.subr.bf16.mxu0 %v4157
      %4510 = vmatpush1.bf16.msra.mxu0 %v4156
      %4511 = vmatprep.subr.bf16.mxu0 %v4159
      %4512 = vmatpush1.bf16.msra.mxu0 %v4158
      %4513 = vmatprep.subr.bf16.mxu0 %v4161
      %4514 = vmatpush1.bf16.msra.mxu0 %v4160
      %4515 = vmatprep.subr.bf16.mxu0 %v4163
      %4516 = vmatpush1.bf16.msra.mxu0 %v4162
      %4517 = vmatprep.mubr.bf16.mxu0 %v3738
      %4518 = vmatmul.mubr.bf16.gmra.mrb[0].mxu0 %v3674
      %v4519 = vpop.f32.mrb[0].mxu0
      %v4520 = vadd.f32 %v4327, %v4519
      %v4521 = vpop.f32.mrb[0].mxu0
      %v4522 = vadd.f32 %v4329, %v4521
      %v4523 = vpop.f32.mrb[0].mxu0
      %v4524 = vadd.f32 %v4331, %v4523
      %v4525 = vpop.f32.mrb[0].mxu0
      %v4526 = vadd.f32 %v4333, %v4525
      %4527 = vmatprep.mubr.bf16.mxu0 %v3742
      %4528 = vmatmul.mubr.bf16.gmra.mrb[0].mxu0 %v3678
      %v4529 = vpop.f32.mrb[0].mxu0
      %v4530 = vadd.f32 %v4337, %v4529
      %v4531 = vpop.f32.mrb[0].mxu0
      %v4532 = vadd.f32 %v4339, %v4531
      %v4533 = vpop.f32.mrb[0].mxu0
      %v4534 = vadd.f32 %v4341, %v4533
      %v4535 = vpop.f32.mrb[0].mxu0
      %v4536 = vadd.f32 %v4343, %v4535
      %4537 = vmatprep.mubr.bf16.mxu0 %v3746
      %4538 = vmatmul.mubr.bf16.gmra.mrb[0].mxu0 %v3682
      %v4539 = vpop.f32.mrb[0].mxu0
      %v4540 = vadd.f32 %v4347, %v4539
      %v4541 = vpop.f32.mrb[0].mxu0
      %v4542 = vadd.f32 %v4349, %v4541
      %v4543 = vpop.f32.mrb[0].mxu0
      %v4544 = vadd.f32 %v4351, %v4543
      %v4545 = vpop.f32.mrb[0].mxu0
      %v4546 = vadd.f32 %v4353, %v4545
      %4547 = vmatprep.mubr.bf16.mxu0 %v3750
      %4548 = vmatmul.mubr.bf16.gmra.mrb[0].mxu0 %v3686
      %v4549 = vpop.f32.mrb[0].mxu0
      %v4550 = vadd.f32 %v4357, %v4549
      %v4551 = vpop.f32.mrb[0].mxu0
      %v4552 = vadd.f32 %v4359, %v4551
      %v4553 = vpop.f32.mrb[0].mxu0
      %v4554 = vadd.f32 %v4361, %v4553
      %v4555 = vpop.f32.mrb[0].mxu0
      %v4556 = vadd.f32 %v4363, %v4555
      %4557 = vmatprep.mubr.bf16.mxu0 %v3754
      %4558 = vmatmul.mubr.bf16.gmra.mrb[0].mxu0 %v3690
      %v4559 = vpop.f32.mrb[0].mxu0
      %v4560 = vadd.f32 %v4367, %v4559
      %v4561 = vpop.f32.mrb[0].mxu0
      %v4562 = vadd.f32 %v4369, %v4561
      %v4563 = vpop.f32.mrb[0].mxu0
      %v4564 = vadd.f32 %v4371, %v4563
      %v4565 = vpop.f32.mrb[0].mxu0
      %v4566 = vadd.f32 %v4373, %v4565
      %4567 = vmatprep.mubr.bf16.mxu0 %v3758
      %4568 = vmatmul.mubr.bf16.gmra.mrb[0].mxu0 %v3694
      %v4569 = vpop.f32.mrb[0].mxu0
      %v4570 = vadd.f32 %v4377, %v4569
      %v4571 = vpop.f32.mrb[0].mxu0
      %v4572 = vadd.f32 %v4379, %v4571
      %v4573 = vpop.f32.mrb[0].mxu0
      %v4574 = vadd.f32 %v4381, %v4573
      %v4575 = vpop.f32.mrb[0].mxu0
      %v4576 = vadd.f32 %v4383, %v4575
      %4577 = vmatprep.mubr.bf16.mxu0 %v3762
      %4578 = vmatmul.mubr.bf16.gmra.mrb[0].mxu0 %v3698
      %v4579 = vpop.f32.mrb[0].mxu0
      %v4580 = vadd.f32 %v4387, %v4579
      %v4581 = vpop.f32.mrb[0].mxu0
      %v4582 = vadd.f32 %v4389, %v4581
      %v4583 = vpop.f32.mrb[0].mxu0
      %v4584 = vadd.f32 %v4391, %v4583
      %v4585 = vpop.f32.mrb[0].mxu0
      %v4586 = vadd.f32 %v4393, %v4585
      %4587 = vmatprep.mubr.bf16.mxu0 %v3766
      %4588 = vmatmul.mubr.bf16.gmra.mrb[0].mxu0 %v3702
      %v4589 = vpop.f32.mrb[0].mxu0
      %v4590 = vadd.f32 %v4397, %v4589
      %v4591 = vpop.f32.mrb[0].mxu0
      %v4592 = vadd.f32 %v4399, %v4591
      %v4593 = vpop.f32.mrb[0].mxu0
      %v4594 = vadd.f32 %v4401, %v4593
      %v4595 = vpop.f32.mrb[0].mxu0
      %v4596 = vadd.f32 %v4403, %v4595
      %4597 = vmatprep.mubr.bf16.mxu0 %v3770
      %4598 = vmatmul.mubr.bf16.gmra.mrb[0].mxu0 %v3706
      %v4599 = vpop.f32.mrb[0].mxu0
      %v4600 = vadd.f32 %v4407, %v4599
      %v4601 = vpop.f32.mrb[0].mxu0
      %v4602 = vadd.f32 %v4409, %v4601
      %v4603 = vpop.f32.mrb[0].mxu0
      %v4604 = vadd.f32 %v4411, %v4603
      %v4605 = vpop.f32.mrb[0].mxu0
      %v4606 = vadd.f32 %v4413, %v4605
      %4607 = vmatprep.mubr.bf16.mxu0 %v3774
      %4608 = vmatmul.mubr.bf16.gmra.mrb[0].mxu0 %v3710
      %v4609 = vpop.f32.mrb[0].mxu0
      %v4610 = vadd.f32 %v4417, %v4609
      %v4611 = vpop.f32.mrb[0].mxu0
      %v4612 = vadd.f32 %v4419, %v4611
      %v4613 = vpop.f32.mrb[0].mxu0
      %v4614 = vadd.f32 %v4421, %v4613
      %v4615 = vpop.f32.mrb[0].mxu0
      %v4616 = vadd.f32 %v4423, %v4615
      %4617 = vmatprep.mubr.bf16.mxu0 %v3778
      %4618 = vmatmul.mubr.bf16.gmra.mrb[0].mxu0 %v3714
      %v4619 = vpop.f32.mrb[0].mxu0
      %v4620 = vadd.f32 %v4427, %v4619
      %v4621 = vpop.f32.mrb[0].mxu0
      %v4622 = vadd.f32 %v4429, %v4621
      %v4623 = vpop.f32.mrb[0].mxu0
      %v4624 = vadd.f32 %v4431, %v4623
      %v4625 = vpop.f32.mrb[0].mxu0
      %v4626 = vadd.f32 %v4433, %v4625
      %4627 = vmatprep.mubr.bf16.mxu0 %v3782
      %4628 = vmatmul.mubr.bf16.gmra.mrb[0].mxu0 %v3718
      %v4629 = vpop.f32.mrb[0].mxu0
      %v4630 = vadd.f32 %v4437, %v4629
      %v4631 = vpop.f32.mrb[0].mxu0
      %v4632 = vadd.f32 %v4439, %v4631
      %v4633 = vpop.f32.mrb[0].mxu0
      %v4634 = vadd.f32 %v4441, %v4633
      %v4635 = vpop.f32.mrb[0].mxu0
      %v4636 = vadd.f32 %v4443, %v4635
      %4637 = vmatprep.mubr.bf16.mxu0 %v3786
      %4638 = vmatmul.mubr.bf16.gmra.mrb[0].mxu0 %v3722
      %v4639 = vpop.f32.mrb[0].mxu0
      %v4640 = vadd.f32 %v4447, %v4639
      %v4641 = vpop.f32.mrb[0].mxu0
      %v4642 = vadd.f32 %v4449, %v4641
      %v4643 = vpop.f32.mrb[0].mxu0
      %v4644 = vadd.f32 %v4451, %v4643
      %v4645 = vpop.f32.mrb[0].mxu0
      %v4646 = vadd.f32 %v4453, %v4645
      %4647 = vmatprep.mubr.bf16.mxu0 %v3790
      %4648 = vmatmul.mubr.bf16.gmra.mrb[0].mxu0 %v3726
      %v4649 = vpop.f32.mrb[0].mxu0
      %v4650 = vadd.f32 %v4457, %v4649
      %v4651 = vpop.f32.mrb[0].mxu0
      %v4652 = vadd.f32 %v4459, %v4651
      %v4653 = vpop.f32.mrb[0].mxu0
      %v4654 = vadd.f32 %v4461, %v4653
      %v4655 = vpop.f32.mrb[0].mxu0
      %v4656 = vadd.f32 %v4463, %v4655
      %4657 = vmatprep.mubr.bf16.mxu0 %v3794
      %4658 = vmatmul.mubr.bf16.gmra.mrb[0].mxu0 %v3730
      %v4659 = vpop.f32.mrb[0].mxu0
      %v4660 = vadd.f32 %v4467, %v4659
      %v4661 = vpop.f32.mrb[0].mxu0
      %v4662 = vadd.f32 %v4469, %v4661
      %v4663 = vpop.f32.mrb[0].mxu0
      %v4664 = vadd.f32 %v4471, %v4663
      %v4665 = vpop.f32.mrb[0].mxu0
      %v4666 = vadd.f32 %v4473, %v4665
      %4667 = vmatprep.mubr.bf16.mxu0 %v3798
      %4668 = vmatmul.mubr.bf16.gmra.mrb[0].mxu0 %v3734
      %v4669 = vpop.f32.mrb[0].mxu0
      %v4670 = vadd.f32 %v4477, %v4669
      %v4671 = vpop.f32.mrb[0].mxu0
      %v4672 = vadd.f32 %v4479, %v4671
      %v4673 = vpop.f32.mrb[0].mxu0
      %v4674 = vadd.f32 %v4481, %v4673
      %v4675 = vpop.f32.mrb[0].mxu0
      %v4676 = vadd.f32 %v4483, %v4675
      %4677 = vdwg.mxu0
      %4678 = vmatprep.subr.bf16.mxu0 %v4165
      %4679 = vmatpush1.bf16.msra.mxu0 %v4164
      %4680 = vmatprep.subr.bf16.mxu0 %v4167
      %4681 = vmatpush1.bf16.msra.mxu0 %v4166
      %4682 = vmatprep.subr.bf16.mxu0 %v4169
      %4683 = vmatpush1.bf16.msra.mxu0 %v4168
      %4684 = vmatprep.subr.bf16.mxu0 %v4171
      %4685 = vmatpush1.bf16.msra.mxu0 %v4170
      %4686 = vmatprep.subr.bf16.mxu0 0
      %4687 = vmatpush1.bf16.msra.mxu0 0
      %4688 = vmatprep.subr.bf16.mxu0 0
      %4689 = vmatpush1.bf16.msra.mxu0 0
      %4690 = vmatprep.subr.bf16.mxu0 0
      %4691 = vmatpush1.bf16.msra.mxu0 0
      %4692 = vmatprep.subr.bf16.mxu0 0
      %4693 = vmatpush1.bf16.msra.mxu0 0
      %4694 = vmatprep.subr.bf16.mxu0 0
      %4695 = vmatpush1.bf16.msra.mxu0 0
      %4696 = vmatprep.subr.bf16.mxu0 0
      %4697 = vmatpush1.bf16.msra.mxu0 0
      %4698 = vmatprep.subr.bf16.mxu0 0
      %4699 = vmatpush1.bf16.msra.mxu0 0
      %4700 = vmatprep.subr.bf16.mxu0 0
      %4701 = vmatpush1.bf16.msra.mxu0 0
      %4702 = vmatprep.subr.bf16.mxu0 0
      %4703 = vmatpush1.bf16.msra.mxu0 0
      %4704 = vmatprep.subr.bf16.mxu0 0
      %4705 = vmatpush1.bf16.msra.mxu0 0
      %4706 = vmatprep.subr.bf16.mxu0 0
      %4707 = vmatpush1.bf16.msra.mxu0 0
      %4708 = vmatprep.subr.bf16.mxu0 0
      %4709 = vmatpush1.bf16.msra.mxu0 0
      %4710 = vmatprep.mubr.bf16.mxu0 0
      %4711 = vmatmul.mubr.bf16.gmra.mrb[0].mxu0 %v4245
      %v4712 = vpop.f32.mrb[0].mxu0
      %v4713 = vadd.f32 %v4520, %v4712
      %v4714 = vpop.f32.mrb[0].mxu0
      %v4715 = vadd.f32 %v4522, %v4714
      %v4716 = vpop.f32.mrb[0].mxu0
      %v4717 = vadd.f32 %v4524, %v4716
      %v4718 = vpop.f32.mrb[0].mxu0
      %v4719 = vadd.f32 %v4526, %v4718
      %4720 = vmatprep.mubr.bf16.mxu0 0
      %4721 = vmatmul.mubr.bf16.gmra.mrb[0].mxu0 %v4248
      %v4722 = vpop.f32.mrb[0].mxu0
      %v4723 = vadd.f32 %v4530, %v4722
      %v4724 = vpop.f32.mrb[0].mxu0
      %v4725 = vadd.f32 %v4532, %v4724
      %v4726 = vpop.f32.mrb[0].mxu0
      %v4727 = vadd.f32 %v4534, %v4726
      %v4728 = vpop.f32.mrb[0].mxu0
      %v4729 = vadd.f32 %v4536, %v4728
      %4730 = vmatprep.mubr.bf16.mxu0 0
      %4731 = vmatmul.mubr.bf16.gmra.mrb[0].mxu0 %v4251
      %v4732 = vpop.f32.mrb[0].mxu0
      %v4733 = vadd.f32 %v4540, %v4732
      %v4734 = vpop.f32.mrb[0].mxu0
      %v4735 = vadd.f32 %v4542, %v4734
      %v4736 = vpop.f32.mrb[0].mxu0
      %v4737 = vadd.f32 %v4544, %v4736
      %v4738 = vpop.f32.mrb[0].mxu0
      %v4739 = vadd.f32 %v4546, %v4738
      %4740 = vmatprep.mubr.bf16.mxu0 0
      %4741 = vmatmul.mubr.bf16.gmra.mrb[0].mxu0 %v4254
      %v4742 = vpop.f32.mrb[0].mxu0
      %v4743 = vadd.f32 %v4550, %v4742
      %v4744 = vpop.f32.mrb[0].mxu0
      %v4745 = vadd.f32 %v4552, %v4744
      %v4746 = vpop.f32.mrb[0].mxu0
      %v4747 = vadd.f32 %v4554, %v4746
      %v4748 = vpop.f32.mrb[0].mxu0
      %v4749 = vadd.f32 %v4556, %v4748
      %4750 = vmatprep.mubr.bf16.mxu0 0
      %4751 = vmatmul.mubr.bf16.gmra.mrb[0].mxu0 %v4257
      %v4752 = vpop.f32.mrb[0].mxu0
      %v4753 = vadd.f32 %v4560, %v4752
      %v4754 = vpop.f32.mrb[0].mxu0
      %v4755 = vadd.f32 %v4562, %v4754
      %v4756 = vpop.f32.mrb[0].mxu0
      %v4757 = vadd.f32 %v4564, %v4756
      %v4758 = vpop.f32.mrb[0].mxu0
      %v4759 = vadd.f32 %v4566, %v4758
      %4760 = vmatprep.mubr.bf16.mxu0 0
      %4761 = vmatmul.mubr.bf16.gmra.mrb[0].mxu0 %v4260
      %v4762 = vpop.f32.mrb[0].mxu0
      %v4763 = vadd.f32 %v4570, %v4762
      %v4764 = vpop.f32.mrb[0].mxu0
      %v4765 = vadd.f32 %v4572, %v4764
      %v4766 = vpop.f32.mrb[0].mxu0
      %v4767 = vadd.f32 %v4574, %v4766
      %v4768 = vpop.f32.mrb[0].mxu0
      %v4769 = vadd.f32 %v4576, %v4768
      %4770 = vmatprep.mubr.bf16.mxu0 0
      %4771 = vmatmul.mubr.bf16.gmra.mrb[0].mxu0 %v4263
      %v4772 = vpop.f32.mrb[0].mxu0
      %v4773 = vadd.f32 %v4580, %v4772
      %v4774 = vpop.f32.mrb[0].mxu0
      %v4775 = vadd.f32 %v4582, %v4774
      %v4776 = vpop.f32.mrb[0].mxu0
      %v4777 = vadd.f32 %v4584, %v4776
      %v4778 = vpop.f32.mrb[0].mxu0
      %v4779 = vadd.f32 %v4586, %v4778
      %4780 = vmatprep.mubr.bf16.mxu0 0
      %4781 = vmatmul.mubr.bf16.gmra.mrb[0].mxu0 %v4266
      %v4782 = vpop.f32.mrb[0].mxu0
      %v4783 = vadd.f32 %v4590, %v4782
      %v4784 = vpop.f32.mrb[0].mxu0
      %v4785 = vadd.f32 %v4592, %v4784
      %v4786 = vpop.f32.mrb[0].mxu0
      %v4787 = vadd.f32 %v4594, %v4786
      %v4788 = vpop.f32.mrb[0].mxu0
      %v4789 = vadd.f32 %v4596, %v4788
      %4790 = vmatprep.mubr.bf16.mxu0 0
      %4791 = vmatmul.mubr.bf16.gmra.mrb[0].mxu0 %v4269
      %v4792 = vpop.f32.mrb[0].mxu0
      %v4793 = vadd.f32 %v4600, %v4792
      %v4794 = vpop.f32.mrb[0].mxu0
      %v4795 = vadd.f32 %v4602, %v4794
      %v4796 = vpop.f32.mrb[0].mxu0
      %v4797 = vadd.f32 %v4604, %v4796
      %v4798 = vpop.f32.mrb[0].mxu0
      %v4799 = vadd.f32 %v4606, %v4798
      %4800 = vmatprep.mubr.bf16.mxu0 0
      %4801 = vmatmul.mubr.bf16.gmra.mrb[0].mxu0 %v4272
      %v4802 = vpop.f32.mrb[0].mxu0
      %v4803 = vadd.f32 %v4610, %v4802
      %v4804 = vpop.f32.mrb[0].mxu0
      %v4805 = vadd.f32 %v4612, %v4804
      %v4806 = vpop.f32.mrb[0].mxu0
      %v4807 = vadd.f32 %v4614, %v4806
      %v4808 = vpop.f32.mrb[0].mxu0
      %v4809 = vadd.f32 %v4616, %v4808
      %4810 = vmatprep.mubr.bf16.mxu0 0
      %4811 = vmatmul.mubr.bf16.gmra.mrb[0].mxu0 %v4275
      %v4812 = vpop.f32.mrb[0].mxu0
      %v4813 = vadd.f32 %v4620, %v4812
      %v4814 = vpop.f32.mrb[0].mxu0
      %v4815 = vadd.f32 %v4622, %v4814
      %v4816 = vpop.f32.mrb[0].mxu0
      %v4817 = vadd.f32 %v4624, %v4816
      %v4818 = vpop.f32.mrb[0].mxu0
      %v4819 = vadd.f32 %v4626, %v4818
      %4820 = vmatprep.mubr.bf16.mxu0 0
      %4821 = vmatmul.mubr.bf16.gmra.mrb[0].mxu0 %v4278
      %v4822 = vpop.f32.mrb[0].mxu0
      %v4823 = vadd.f32 %v4630, %v4822
      %v4824 = vpop.f32.mrb[0].mxu0
      %v4825 = vadd.f32 %v4632, %v4824
      %v4826 = vpop.f32.mrb[0].mxu0
      %v4827 = vadd.f32 %v4634, %v4826
      %v4828 = vpop.f32.mrb[0].mxu0
      %v4829 = vadd.f32 %v4636, %v4828
      %4830 = vmatprep.mubr.bf16.mxu0 0
      %4831 = vmatmul.mubr.bf16.gmra.mrb[0].mxu0 %v4281
      %v4832 = vpop.f32.mrb[0].mxu0
      %v4833 = vadd.f32 %v4640, %v4832
      %v4834 = vpop.f32.mrb[0].mxu0
      %v4835 = vadd.f32 %v4642, %v4834
      %v4836 = vpop.f32.mrb[0].mxu0
      %v4837 = vadd.f32 %v4644, %v4836
      %v4838 = vpop.f32.mrb[0].mxu0
      %v4839 = vadd.f32 %v4646, %v4838
      %4840 = vmatprep.mubr.bf16.mxu0 0
      %4841 = vmatmul.mubr.bf16.gmra.mrb[0].mxu0 %v4284
      %v4842 = vpop.f32.mrb[0].mxu0
      %v4843 = vadd.f32 %v4650, %v4842
      %v4844 = vpop.f32.mrb[0].mxu0
      %v4845 = vadd.f32 %v4652, %v4844
      %v4846 = vpop.f32.mrb[0].mxu0
      %v4847 = vadd.f32 %v4654, %v4846
      %v4848 = vpop.f32.mrb[0].mxu0
      %v4849 = vadd.f32 %v4656, %v4848
      %4850 = vmatprep.mubr.bf16.mxu0 0
      %4851 = vmatmul.mubr.bf16.gmra.mrb[0].mxu0 %v4287
      %v4852 = vpop.f32.mrb[0].mxu0
      %v4853 = vadd.f32 %v4660, %v4852
      %v4854 = vpop.f32.mrb[0].mxu0
      %v4855 = vadd.f32 %v4662, %v4854
      %v4856 = vpop.f32.mrb[0].mxu0
      %v4857 = vadd.f32 %v4664, %v4856
      %v4858 = vpop.f32.mrb[0].mxu0
      %v4859 = vadd.f32 %v4666, %v4858
      %4860 = vmatprep.mubr.bf16.mxu0 0
      %4861 = vmatmul.mubr.bf16.gmra.mrb[0].mxu0 %v4290
      %v4862 = vpop.f32.mrb[0].mxu0
      %v4863 = vadd.f32 %v4670, %v4862
      %v4864 = vpop.f32.mrb[0].mxu0
      %v4865 = vadd.f32 %v4672, %v4864
      %v4866 = vpop.f32.mrb[0].mxu0
      %v4867 = vadd.f32 %v4674, %v4866
      %v4868 = vpop.f32.mrb[0].mxu0
      %v4869 = vadd.f32 %v4676, %v4868
      %4870 = vdwg.mxu0
      %v4871 = vld [vmem:[%s3] sm:$0x3]
      %v4872 = vld [vmem:[%s4] sm:$0x3]
      %v4873 = vadd.f32 %v4713, %v4717
      %v4874 = vadd.f32 %v4873, %v4723
      %v4875 = vadd.f32 %v4874, %v4727
      %v4876 = vadd.f32 %v4875, %v4733
      %v4877 = vadd.f32 %v4876, %v4737
      %v4878 = vadd.f32 %v4877, %v4743
      %v4879 = vadd.f32 %v4878, %v4747
      %v4880 = vadd.f32 %v4879, %v4753
      %v4881 = vadd.f32 %v4880, %v4757
      %v4882 = vadd.f32 %v4881, %v4763
      %v4883 = vadd.f32 %v4882, %v4767
      %v4884 = vadd.f32 %v4883, %v4773
      %v4885 = vadd.f32 %v4884, %v4777
      %v4886 = vadd.f32 %v4885, %v4783
      %v4887 = vadd.f32 %v4886, %v4787
      %v4888 = vadd.f32 %v4887, %v4793
      %v4889 = vadd.f32 %v4888, %v4797
      %v4890 = vadd.f32 %v4889, %v4803
      %v4891 = vadd.f32 %v4890, %v4807
      %v4892 = vadd.f32 %v4891, %v4813
      %v4893 = vadd.f32 %v4892, %v4817
      %v4894 = vadd.f32 %v4893, %v4823
      %v4895 = vadd.f32 %v4894, %v4827
      %v4896 = vadd.f32 %v4895, %v4833
      %v4897 = vadd.f32 %v4896, %v4837
      %v4898 = vadd.f32 %v4897, %v4843
      %v4899 = vadd.f32 %v4898, %v4847
      %v4900 = vadd.f32 %v4899, %v4853
      %v4901 = vadd.f32 %v4900, %v4857
      %v4902 = vadd.f32 %v4901, %v4863
      %v4903 = vadd.f32 %v4902, %v4867
      %v4904 = vrot.slane %v4903, 4
      %v4905 = vadd.f32 %v4903, %v4904
      %v4906 = vrot.slane %v4905, 2
      %v4907 = vadd.f32 %v4905, %v4906
      %v4908 = vrot.slane %v4907, 1
      %v4909 = vadd.f32 %v4907, %v4908
      %v4910 = vadd.f32 %v4715, %v4719
      %v4911 = vadd.f32 %v4910, %v4725
      %v4912 = vadd.f32 %v4911, %v4729
      %v4913 = vadd.f32 %v4912, %v4735
      %v4914 = vadd.f32 %v4913, %v4739
      %v4915 = vadd.f32 %v4914, %v4745
      %v4916 = vadd.f32 %v4915, %v4749
      %v4917 = vadd.f32 %v4916, %v4755
      %v4918 = vadd.f32 %v4917, %v4759
      %v4919 = vadd.f32 %v4918, %v4765
      %v4920 = vadd.f32 %v4919, %v4769
      %v4921 = vadd.f32 %v4920, %v4775
      %v4922 = vadd.f32 %v4921, %v4779
      %v4923 = vadd.f32 %v4922, %v4785
      %v4924 = vadd.f32 %v4923, %v4789
      %v4925 = vadd.f32 %v4924, %v4795
      %v4926 = vadd.f32 %v4925, %v4799
      %v4927 = vadd.f32 %v4926, %v4805
      %v4928 = vadd.f32 %v4927, %v4809
      %v4929 = vadd.f32 %v4928, %v4815
      %v4930 = vadd.f32 %v4929, %v4819
      %v4931 = vadd.f32 %v4930, %v4825
      %v4932 = vadd.f32 %v4931, %v4829
      %v4933 = vadd.f32 %v4932, %v4835
      %v4934 = vadd.f32 %v4933, %v4839
      %v4935 = vadd.f32 %v4934, %v4845
      %v4936 = vadd.f32 %v4935, %v4849
      %v4937 = vadd.f32 %v4936, %v4855
      %v4938 = vadd.f32 %v4937, %v4859
      %v4939 = vadd.f32 %v4938, %v4865
      %v4940 = vadd.f32 %v4939, %v4869
      %v4941 = vrot.slane %v4940, 4
      %v4942 = vadd.f32 %v4940, %v4941
      %v4943 = vrot.slane %v4942, 2
      %v4944 = vadd.f32 %v4942, %v4943
      %v4945 = vrot.slane %v4944, 1
      %v4946 = vadd.f32 %v4944, %v4945
      %4948 = vrot.lane.b32.xlu0 %v4909, 64
      %v4949 = vpop.permute.xlu0 %4948
      %v4951 = vadd.f32 %v4909, %v4949
      %v4952 = vadd.f32 %v4951, %v4946
      %4954 = vrot.lane.b32.xlu0 %v4946, 64
      %v4955 = vpop.permute.xlu0 %4954
      %v4957 = vadd.f32 %v4952, %v4955
      %v4958 = vmul.f32 %v4957, 0.0009765625
      %4960 = vrot.lane.b32.xlu0 %v4958, 64
      %v4961 = vpop.permute.xlu0 %4960
      %v4963 = vsel %vm3543, %v4958, %v4961
      %v4964 = vlaneseq
      %v4965 = vshrl.u32 %v4964, 7
      %v4966 = vsub.s32 0, %v4965
      %v4967 = vrot.slane %v4963, %v4966
      %v4968 = vsub.f32 %v4713, %v4967
      %v4969 = vsub.f32 %v4715, %v4967
      %v4970 = vsub.f32 %v4717, %v4967
      %v4971 = vsub.f32 %v4719, %v4967
      %v4972 = vsub.f32 %v4723, %v4967
      %v4973 = vsub.f32 %v4725, %v4967
      %v4974 = vsub.f32 %v4727, %v4967
      %v4975 = vsub.f32 %v4729, %v4967
      %v4976 = vsub.f32 %v4733, %v4967
      %v4977 = vsub.f32 %v4735, %v4967
      %v4978 = vsub.f32 %v4737, %v4967
      %v4979 = vsub.f32 %v4739, %v4967
      %v4980 = vsub.f32 %v4743, %v4967
      %v4981 = vsub.f32 %v4745, %v4967
      %v4982 = vsub.f32 %v4747, %v4967
      %v4983 = vsub.f32 %v4749, %v4967
      %v4984 = vsub.f32 %v4753, %v4967
      %v4985 = vsub.f32 %v4755, %v4967
      %v4986 = vsub.f32 %v4757, %v4967
      %v4987 = vsub.f32 %v4759, %v4967
      %v4988 = vsub.f32 %v4763, %v4967
      %v4989 = vsub.f32 %v4765, %v4967
      %v4990 = vsub.f32 %v4767, %v4967
      %v4991 = vsub.f32 %v4769, %v4967
      %v4992 = vsub.f32 %v4773, %v4967
      %v4993 = vsub.f32 %v4775, %v4967
      %v4994 = vsub.f32 %v4777, %v4967
      %v4995 = vsub.f32 %v4779, %v4967
      %v4996 = vsub.f32 %v4783, %v4967
      %v4997 = vsub.f32 %v4785, %v4967
      %v4998 = vsub.f32 %v4787, %v4967
      %v4999 = vsub.f32 %v4789, %v4967
      %v5000 = vsub.f32 %v4793, %v4967
      %v5001 = vsub.f32 %v4795, %v4967
      %v5002 = vsub.f32 %v4797, %v4967
      %v5003 = vsub.f32 %v4799, %v4967
      %v5004 = vsub.f32 %v4803, %v4967
      %v5005 = vsub.f32 %v4805, %v4967
      %v5006 = vsub.f32 %v4807, %v4967
      %v5007 = vsub.f32 %v4809, %v4967
      %v5008 = vsub.f32 %v4813, %v4967
      %v5009 = vsub.f32 %v4815, %v4967
      %v5010 = vsub.f32 %v4817, %v4967
      %v5011 = vsub.f32 %v4819, %v4967
      %v5012 = vsub.f32 %v4823, %v4967
      %v5013 = vsub.f32 %v4825, %v4967
      %v5014 = vsub.f32 %v4827, %v4967
      %v5015 = vsub.f32 %v4829, %v4967
      %v5016 = vsub.f32 %v4833, %v4967
      %v5017 = vsub.f32 %v4835, %v4967
      %v5018 = vsub.f32 %v4837, %v4967
      %v5019 = vsub.f32 %v4839, %v4967
      %v5020 = vsub.f32 %v4843, %v4967
      %v5021 = vsub.f32 %v4845, %v4967
      %v5022 = vsub.f32 %v4847, %v4967
      %v5023 = vsub.f32 %v4849, %v4967
      %v5024 = vsub.f32 %v4853, %v4967
      %v5025 = vsub.f32 %v4855, %v4967
      %v5026 = vsub.f32 %v4857, %v4967
      %v5027 = vsub.f32 %v4859, %v4967
      %v5028 = vsub.f32 %v4863, %v4967
      %v5029 = vsub.f32 %v4865, %v4967
      %v5030 = vsub.f32 %v4867, %v4967
      %v5031 = vsub.f32 %v4869, %v4967
      %v5032 = vmul.f32 %v4968, %v4968
      %v5033 = vmul.f32 %v4969, %v4969
      %v5034 = vmul.f32 %v4970, %v4970
      %v5035 = vmul.f32 %v4971, %v4971
      %v5036 = vmul.f32 %v4972, %v4972
      %v5037 = vmul.f32 %v4973, %v4973
      %v5038 = vmul.f32 %v4974, %v4974
      %v5039 = vmul.f32 %v4975, %v4975
      %v5040 = vmul.f32 %v4976, %v4976
      %v5041 = vmul.f32 %v4977, %v4977
      %v5042 = vmul.f32 %v4978, %v4978
      %v5043 = vmul.f32 %v4979, %v4979
      %v5044 = vmul.f32 %v4980, %v4980
      %v5045 = vmul.f32 %v4981, %v4981
      %v5046 = vmul.f32 %v4982, %v4982
      %v5047 = vmul.f32 %v4983, %v4983
      %v5048 = vmul.f32 %v4984, %v4984
      %v5049 = vmul.f32 %v4985, %v4985
      %v5050 = vmul.f32 %v4986, %v4986
      %v5051 = vmul.f32 %v4987, %v4987
      %v5052 = vmul.f32 %v4988, %v4988
      %v5053 = vmul.f32 %v4989, %v4989
      %v5054 = vmul.f32 %v4990, %v4990
      %v5055 = vmul.f32 %v4991, %v4991
      %v5056 = vmul.f32 %v4992, %v4992
      %v5057 = vmul.f32 %v4993, %v4993
      %v5058 = vmul.f32 %v4994, %v4994
      %v5059 = vmul.f32 %v4995, %v4995
      %v5060 = vmul.f32 %v4996, %v4996
      %v5061 = vmul.f32 %v4997, %v4997
      %v5062 = vmul.f32 %v4998, %v4998
      %v5063 = vmul.f32 %v4999, %v4999
      %v5064 = vmul.f32 %v5000, %v5000
      %v5065 = vmul.f32 %v5001, %v5001
      %v5066 = vmul.f32 %v5002, %v5002
      %v5067 = vmul.f32 %v5003, %v5003
      %v5068 = vmul.f32 %v5004, %v5004
      %v5069 = vmul.f32 %v5005, %v5005
      %v5070 = vmul.f32 %v5006, %v5006
      %v5071 = vmul.f32 %v5007, %v5007
      %v5072 = vmul.f32 %v5008, %v5008
      %v5073 = vmul.f32 %v5009, %v5009
      %v5074 = vmul.f32 %v5010, %v5010
      %v5075 = vmul.f32 %v5011, %v5011
      %v5076 = vmul.f32 %v5012, %v5012
      %v5077 = vmul.f32 %v5013, %v5013
      %v5078 = vmul.f32 %v5014, %v5014
      %v5079 = vmul.f32 %v5015, %v5015
      %v5080 = vmul.f32 %v5016, %v5016
      %v5081 = vmul.f32 %v5017, %v5017
      %v5082 = vmul.f32 %v5018, %v5018
      %v5083 = vmul.f32 %v5019, %v5019
      %v5084 = vmul.f32 %v5020, %v5020
      %v5085 = vmul.f32 %v5021, %v5021
      %v5086 = vmul.f32 %v5022, %v5022
      %v5087 = vmul.f32 %v5023, %v5023
      %v5088 = vmul.f32 %v5024, %v5024
      %v5089 = vmul.f32 %v5025, %v5025
      %v5090 = vmul.f32 %v5026, %v5026
      %v5091 = vmul.f32 %v5027, %v5027
      %v5092 = vmul.f32 %v5028, %v5028
      %v5093 = vmul.f32 %v5029, %v5029
      %v5094 = vmul.f32 %v5030, %v5030
      %v5095 = vmul.f32 %v5031, %v5031
      %v5096 = vadd.f32 %v5032, %v5034
      %v5097 = vadd.f32 %v5096, %v5036
      %v5098 = vadd.f32 %v5097, %v5038
      %v5099 = vadd.f32 %v5098, %v5040
      %v5100 = vadd.f32 %v5099, %v5042
      %v5101 = vadd.f32 %v5100, %v5044
      %v5102 = vadd.f32 %v5101, %v5046
      %v5103 = vadd.f32 %v5102, %v5048
      %v5104 = vadd.f32 %v5103, %v5050
      %v5105 = vadd.f32 %v5104, %v5052
      %v5106 = vadd.f32 %v5105, %v5054
      %v5107 = vadd.f32 %v5106, %v5056
      %v5108 = vadd.f32 %v5107, %v5058
      %v5109 = vadd.f32 %v5108, %v5060
      %v5110 = vadd.f32 %v5109, %v5062
      %v5111 = vadd.f32 %v5110, %v5064
      %v5112 = vadd.f32 %v5111, %v5066
      %v5113 = vadd.f32 %v5112, %v5068
      %v5114 = vadd.f32 %v5113, %v5070
      %v5115 = vadd.f32 %v5114, %v5072
      %v5116 = vadd.f32 %v5115, %v5074
      %v5117 = vadd.f32 %v5116, %v5076
      %v5118 = vadd.f32 %v5117, %v5078
      %v5119 = vadd.f32 %v5118, %v5080
      %v5120 = vadd.f32 %v5119, %v5082
      %v5121 = vadd.f32 %v5120, %v5084
      %v5122 = vadd.f32 %v5121, %v5086
      %v5123 = vadd.f32 %v5122, %v5088
      %v5124 = vadd.f32 %v5123, %v5090
      %v5125 = vadd.f32 %v5124, %v5092
      %v5126 = vadd.f32 %v5125, %v5094
      %v5127 = vrot.slane %v5126, 4
      %v5128 = vadd.f32 %v5126, %v5127
      %v5129 = vrot.slane %v5128, 2
      %v5130 = vadd.f32 %v5128, %v5129
      %v5131 = vrot.slane %v5130, 1
      %v5132 = vadd.f32 %v5130, %v5131
      %v5133 = vadd.f32 %v5033, %v5035
      %v5134 = vadd.f32 %v5133, %v5037
      %v5135 = vadd.f32 %v5134, %v5039
      %v5136 = vadd.f32 %v5135, %v5041
      %v5137 = vadd.f32 %v5136, %v5043
      %v5138 = vadd.f32 %v5137, %v5045
      %v5139 = vadd.f32 %v5138, %v5047
      %v5140 = vadd.f32 %v5139, %v5049
      %v5141 = vadd.f32 %v5140, %v5051
      %v5142 = vadd.f32 %v5141, %v5053
      %v5143 = vadd.f32 %v5142, %v5055
      %v5144 = vadd.f32 %v5143, %v5057
      %v5145 = vadd.f32 %v5144, %v5059
      %v5146 = vadd.f32 %v5145, %v5061
      %v5147 = vadd.f32 %v5146, %v5063
      %v5148 = vadd.f32 %v5147, %v5065
      %v5149 = vadd.f32 %v5148, %v5067
      %v5150 = vadd.f32 %v5149, %v5069
      %v5151 = vadd.f32 %v5150, %v5071
      %v5152 = vadd.f32 %v5151, %v5073
      %v5153 = vadd.f32 %v5152, %v5075
      %v5154 = vadd.f32 %v5153, %v5077
      %v5155 = vadd.f32 %v5154, %v5079
      %v5156 = vadd.f32 %v5155, %v5081
      %v5157 = vadd.f32 %v5156, %v5083
      %v5158 = vadd.f32 %v5157, %v5085
      %v5159 = vadd.f32 %v5158, %v5087
      %v5160 = vadd.f32 %v5159, %v5089
      %v5161 = vadd.f32 %v5160, %v5091
      %v5162 = vadd.f32 %v5161, %v5093
      %v5163 = vadd.f32 %v5162, %v5095
      %v5164 = vrot.slane %v5163, 4
      %v5165 = vadd.f32 %v5163, %v5164
      %v5166 = vrot.slane %v5165, 2
      %v5167 = vadd.f32 %v5165, %v5166
      %v5168 = vrot.slane %v5167, 1
      %v5169 = vadd.f32 %v5167, %v5168
      %5171 = vrot.lane.b32.xlu0 %v5132, 64
      %v5172 = vpop.permute.xlu0 %5171
      %v5174 = vadd.f32 %v5132, %v5172
      %v5175 = vadd.f32 %v5174, %v5169
      %5177 = vrot.lane.b32.xlu0 %v5169, 64
      %v5178 = vpop.permute.xlu0 %5177
      %v5180 = vadd.f32 %v5175, %v5178
      %v5181 = vmul.f32 %v5180, 0.0009765625
      %v5182 = vadd.f32 %v5181, 1e-05
      %v5183 = vrsqrt.pop %v5182
      %5185 = vrot.lane.b32.xlu0 %v5183, 64
      %v5186 = vpop.permute.xlu0 %5185
      %v5188 = vsel %vm3543, %v5183, %v5186
      %v5189 = vlaneseq
      %v5190 = vshrl.u32 %v5189, 7
      %v5191 = vsub.s32 0, %v5190
      %v5192 = vrot.slane %v5188, %v5191
      %v5193 = vmul.f32 %v4968, %v5192
      %v5194 = vmul.f32 %v4969, %v5192
      %v5195 = vmul.f32 %v4970, %v5192
      %v5196 = vmul.f32 %v4971, %v5192
      %v5197 = vmul.f32 %v4972, %v5192
      %v5198 = vmul.f32 %v4973, %v5192
      %v5199 = vmul.f32 %v4974, %v5192
      %v5200 = vmul.f32 %v4975, %v5192
      %v5201 = vmul.f32 %v4976, %v5192
      %v5202 = vmul.f32 %v4977, %v5192
      %v5203 = vmul.f32 %v4978, %v5192
      %v5204 = vmul.f32 %v4979, %v5192
      %v5205 = vmul.f32 %v4980, %v5192
      %v5206 = vmul.f32 %v4981, %v5192
      %v5207 = vmul.f32 %v4982, %v5192
      %v5208 = vmul.f32 %v4983, %v5192
      %v5209 = vmul.f32 %v4984, %v5192
      %v5210 = vmul.f32 %v4985, %v5192
      %v5211 = vmul.f32 %v4986, %v5192
      %v5212 = vmul.f32 %v4987, %v5192
      %v5213 = vmul.f32 %v4988, %v5192
      %v5214 = vmul.f32 %v4989, %v5192
      %v5215 = vmul.f32 %v4990, %v5192
      %v5216 = vmul.f32 %v4991, %v5192
      %v5217 = vmul.f32 %v4992, %v5192
      %v5218 = vmul.f32 %v4993, %v5192
      %v5219 = vmul.f32 %v4994, %v5192
      %v5220 = vmul.f32 %v4995, %v5192
      %v5221 = vmul.f32 %v4996, %v5192
      %v5222 = vmul.f32 %v4997, %v5192
      %v5223 = vmul.f32 %v4998, %v5192
      %v5224 = vmul.f32 %v4999, %v5192
      %v5225 = vmul.f32 %v5000, %v5192
      %v5226 = vmul.f32 %v5001, %v5192
      %v5227 = vmul.f32 %v5002, %v5192
      %v5228 = vmul.f32 %v5003, %v5192
      %v5229 = vmul.f32 %v5004, %v5192
      %v5230 = vmul.f32 %v5005, %v5192
      %v5231 = vmul.f32 %v5006, %v5192
      %v5232 = vmul.f32 %v5007, %v5192
      %v5233 = vmul.f32 %v5008, %v5192
      %v5234 = vmul.f32 %v5009, %v5192
      %v5235 = vmul.f32 %v5010, %v5192
      %v5236 = vmul.f32 %v5011, %v5192
      %v5237 = vmul.f32 %v5012, %v5192
      %v5238 = vmul.f32 %v5013, %v5192
      %v5239 = vmul.f32 %v5014, %v5192
      %v5240 = vmul.f32 %v5015, %v5192
      %v5241 = vmul.f32 %v5016, %v5192
      %v5242 = vmul.f32 %v5017, %v5192
      %v5243 = vmul.f32 %v5018, %v5192
      %v5244 = vmul.f32 %v5019, %v5192
      %v5245 = vmul.f32 %v5020, %v5192
      %v5246 = vmul.f32 %v5021, %v5192
      %v5247 = vmul.f32 %v5022, %v5192
      %v5248 = vmul.f32 %v5023, %v5192
      %v5249 = vmul.f32 %v5024, %v5192
      %v5250 = vmul.f32 %v5025, %v5192
      %v5251 = vmul.f32 %v5026, %v5192
      %v5252 = vmul.f32 %v5027, %v5192
      %v5253 = vmul.f32 %v5028, %v5192
      %v5254 = vmul.f32 %v5029, %v5192
      %v5255 = vmul.f32 %v5030, %v5192
      %v5256 = vmul.f32 %v5031, %v5192
      %v5258 = vlaneseq
      %v5259 = vshrl.u32 %v5258, 7
      %v5260 = vsub.s32 0, %v5259
      %v5261 = vrot.slane %v4871, %v5260
      %v5262 = vlaneseq
      %v5263 = vshrl.u32 %v5262, 7
      %v5264 = vsub.s32 1, %v5263
      %v5265 = vrot.slane %v4871, %v5264
      %v5268 = vmul.f32 %v5193, %v5261
      %v5269 = vmul.f32 %v5194, %v5265
      %v5270 = vmul.f32 %v5195, %v5261
      %v5271 = vmul.f32 %v5196, %v5265
      %v5272 = vmul.f32 %v5197, %v5261
      %v5273 = vmul.f32 %v5198, %v5265
      %v5274 = vmul.f32 %v5199, %v5261
      %v5275 = vmul.f32 %v5200, %v5265
      %v5276 = vmul.f32 %v5201, %v5261
      %v5277 = vmul.f32 %v5202, %v5265
      %v5278 = vmul.f32 %v5203, %v5261
      %v5279 = vmul.f32 %v5204, %v5265
      %v5280 = vmul.f32 %v5205, %v5261
      %v5281 = vmul.f32 %v5206, %v5265
      %v5282 = vmul.f32 %v5207, %v5261
      %v5283 = vmul.f32 %v5208, %v5265
      %v5284 = vmul.f32 %v5209, %v5261
      %v5285 = vmul.f32 %v5210, %v5265
      %v5286 = vmul.f32 %v5211, %v5261
      %v5287 = vmul.f32 %v5212, %v5265
      %v5288 = vmul.f32 %v5213, %v5261
      %v5289 = vmul.f32 %v5214, %v5265
      %v5290 = vmul.f32 %v5215, %v5261
      %v5291 = vmul.f32 %v5216, %v5265
      %v5292 = vmul.f32 %v5217, %v5261
      %v5293 = vmul.f32 %v5218, %v5265
      %v5294 = vmul.f32 %v5219, %v5261
      %v5295 = vmul.f32 %v5220, %v5265
      %v5296 = vmul.f32 %v5221, %v5261
      %v5297 = vmul.f32 %v5222, %v5265
      %v5298 = vmul.f32 %v5223, %v5261
      %v5299 = vmul.f32 %v5224, %v5265
      %v5300 = vmul.f32 %v5225, %v5261
      %v5301 = vmul.f32 %v5226, %v5265
      %v5302 = vmul.f32 %v5227, %v5261
      %v5303 = vmul.f32 %v5228, %v5265
      %v5304 = vmul.f32 %v5229, %v5261
      %v5305 = vmul.f32 %v5230, %v5265
      %v5306 = vmul.f32 %v5231, %v5261
      %v5307 = vmul.f32 %v5232, %v5265
      %v5308 = vmul.f32 %v5233, %v5261
      %v5309 = vmul.f32 %v5234, %v5265
      %v5310 = vmul.f32 %v5235, %v5261
      %v5311 = vmul.f32 %v5236, %v5265
      %v5312 = vmul.f32 %v5237, %v5261
      %v5313 = vmul.f32 %v5238, %v5265
      %v5314 = vmul.f32 %v5239, %v5261
      %v5315 = vmul.f32 %v5240, %v5265
      %v5316 = vmul.f32 %v5241, %v5261
      %v5317 = vmul.f32 %v5242, %v5265
      %v5318 = vmul.f32 %v5243, %v5261
      %v5319 = vmul.f32 %v5244, %v5265
      %v5320 = vmul.f32 %v5245, %v5261
      %v5321 = vmul.f32 %v5246, %v5265
      %v5322 = vmul.f32 %v5247, %v5261
      %v5323 = vmul.f32 %v5248, %v5265
      %v5324 = vmul.f32 %v5249, %v5261
      %v5325 = vmul.f32 %v5250, %v5265
      %v5326 = vmul.f32 %v5251, %v5261
      %v5327 = vmul.f32 %v5252, %v5265
      %v5328 = vmul.f32 %v5253, %v5261
      %v5329 = vmul.f32 %v5254, %v5265
      %v5330 = vmul.f32 %v5255, %v5261
      %v5331 = vmul.f32 %v5256, %v5265
      %v5333 = vlaneseq
      %v5334 = vshrl.u32 %v5333, 7
      %v5335 = vsub.s32 0, %v5334
      %v5336 = vrot.slane %v4872, %v5335
      %v5337 = vlaneseq
      %v5338 = vshrl.u32 %v5337, 7
      %v5339 = vsub.s32 1, %v5338
      %v5340 = vrot.slane %v4872, %v5339
      %v5343 = vadd.f32 %v5268, %v5336
      %v5344 = vadd.f32 %v5269, %v5340
      %v5345 = vadd.f32 %v5270, %v5336
      %v5346 = vadd.f32 %v5271, %v5340
      %v5347 = vadd.f32 %v5272, %v5336
      %v5348 = vadd.f32 %v5273, %v5340
      %v5349 = vadd.f32 %v5274, %v5336
      %v5350 = vadd.f32 %v5275, %v5340
      %v5351 = vadd.f32 %v5276, %v5336
      %v5352 = vadd.f32 %v5277, %v5340
      %v5353 = vadd.f32 %v5278, %v5336
      %v5354 = vadd.f32 %v5279, %v5340
      %v5355 = vadd.f32 %v5280, %v5336
      %v5356 = vadd.f32 %v5281, %v5340
      %v5357 = vadd.f32 %v5282, %v5336
      %v5358 = vadd.f32 %v5283, %v5340
      %v5359 = vadd.f32 %v5284, %v5336
      %v5360 = vadd.f32 %v5285, %v5340
      %v5361 = vadd.f32 %v5286, %v5336
      %v5362 = vadd.f32 %v5287, %v5340
      %v5363 = vadd.f32 %v5288, %v5336
      %v5364 = vadd.f32 %v5289, %v5340
      %v5365 = vadd.f32 %v5290, %v5336
      %v5366 = vadd.f32 %v5291, %v5340
      %v5367 = vadd.f32 %v5292, %v5336
      %v5368 = vadd.f32 %v5293, %v5340
      %v5369 = vadd.f32 %v5294, %v5336
      %v5370 = vadd.f32 %v5295, %v5340
      %v5371 = vadd.f32 %v5296, %v5336
      %v5372 = vadd.f32 %v5297, %v5340
      %v5373 = vadd.f32 %v5298, %v5336
      %v5374 = vadd.f32 %v5299, %v5340
      %v5375 = vadd.f32 %v5300, %v5336
      %v5376 = vadd.f32 %v5301, %v5340
      %v5377 = vadd.f32 %v5302, %v5336
      %v5378 = vadd.f32 %v5303, %v5340
      %v5379 = vadd.f32 %v5304, %v5336
      %v5380 = vadd.f32 %v5305, %v5340
      %v5381 = vadd.f32 %v5306, %v5336
      %v5382 = vadd.f32 %v5307, %v5340
      %v5383 = vadd.f32 %v5308, %v5336
      %v5384 = vadd.f32 %v5309, %v5340
      %v5385 = vadd.f32 %v5310, %v5336
      %v5386 = vadd.f32 %v5311, %v5340
      %v5387 = vadd.f32 %v5312, %v5336
      %v5388 = vadd.f32 %v5313, %v5340
      %v5389 = vadd.f32 %v5314, %v5336
      %v5390 = vadd.f32 %v5315, %v5340
      %v5391 = vadd.f32 %v5316, %v5336
      %v5392 = vadd.f32 %v5317, %v5340
      %v5393 = vadd.f32 %v5318, %v5336
      %v5394 = vadd.f32 %v5319, %v5340
      %v5395 = vadd.f32 %v5320, %v5336
      %v5396 = vadd.f32 %v5321, %v5340
      %v5397 = vadd.f32 %v5322, %v5336
      %v5398 = vadd.f32 %v5323, %v5340
      %v5399 = vadd.f32 %v5324, %v5336
      %v5400 = vadd.f32 %v5325, %v5340
      %v5401 = vadd.f32 %v5326, %v5336
      %v5402 = vadd.f32 %v5327, %v5340
      %v5403 = vadd.f32 %v5328, %v5336
      %v5404 = vadd.f32 %v5329, %v5340
      %v5405 = vadd.f32 %v5330, %v5336
      %v5406 = vadd.f32 %v5331, %v5340
      %v5407 = vmax.f32 %v5343, 0.0
      %v5408 = vmax.f32 %v5344, 0.0
      %v5409 = vmax.f32 %v5345, 0.0
      %v5410 = vmax.f32 %v5346, 0.0
      %v5411 = vmax.f32 %v5347, 0.0
      %v5412 = vmax.f32 %v5348, 0.0
      %v5413 = vmax.f32 %v5349, 0.0
      %v5414 = vmax.f32 %v5350, 0.0
      %v5415 = vmax.f32 %v5351, 0.0
      %v5416 = vmax.f32 %v5352, 0.0
      %v5417 = vmax.f32 %v5353, 0.0
      %v5418 = vmax.f32 %v5354, 0.0
      %v5419 = vmax.f32 %v5355, 0.0
      %v5420 = vmax.f32 %v5356, 0.0
      %v5421 = vmax.f32 %v5357, 0.0
      %v5422 = vmax.f32 %v5358, 0.0
      %v5423 = vmax.f32 %v5359, 0.0
      %v5424 = vmax.f32 %v5360, 0.0
      %v5425 = vmax.f32 %v5361, 0.0
      %v5426 = vmax.f32 %v5362, 0.0
      %v5427 = vmax.f32 %v5363, 0.0
      %v5428 = vmax.f32 %v5364, 0.0
      %v5429 = vmax.f32 %v5365, 0.0
      %v5430 = vmax.f32 %v5366, 0.0
      %v5431 = vmax.f32 %v5367, 0.0
      %v5432 = vmax.f32 %v5368, 0.0
      %v5433 = vmax.f32 %v5369, 0.0
      %v5434 = vmax.f32 %v5370, 0.0
      %v5435 = vmax.f32 %v5371, 0.0
      %v5436 = vmax.f32 %v5372, 0.0
      %v5437 = vmax.f32 %v5373, 0.0
      %v5438 = vmax.f32 %v5374, 0.0
      %v5439 = vmax.f32 %v5375, 0.0
      %v5440 = vmax.f32 %v5376, 0.0
      %v5441 = vmax.f32 %v5377, 0.0
      %v5442 = vmax.f32 %v5378, 0.0
      %v5443 = vmax.f32 %v5379, 0.0
      %v5444 = vmax.f32 %v5380, 0.0
      %v5445 = vmax.f32 %v5381, 0.0
      %v5446 = vmax.f32 %v5382, 0.0
      %v5447 = vmax.f32 %v5383, 0.0
      %v5448 = vmax.f32 %v5384, 0.0
      %v5449 = vmax.f32 %v5385, 0.0
      %v5450 = vmax.f32 %v5386, 0.0
      %v5451 = vmax.f32 %v5387, 0.0
      %v5452 = vmax.f32 %v5388, 0.0
      %v5453 = vmax.f32 %v5389, 0.0
      %v5454 = vmax.f32 %v5390, 0.0
      %v5455 = vmax.f32 %v5391, 0.0
      %v5456 = vmax.f32 %v5392, 0.0
      %v5457 = vmax.f32 %v5393, 0.0
      %v5458 = vmax.f32 %v5394, 0.0
      %v5459 = vmax.f32 %v5395, 0.0
      %v5460 = vmax.f32 %v5396, 0.0
      %v5461 = vmax.f32 %v5397, 0.0
      %v5462 = vmax.f32 %v5398, 0.0
      %v5463 = vmax.f32 %v5399, 0.0
      %v5464 = vmax.f32 %v5400, 0.0
      %v5465 = vmax.f32 %v5401, 0.0
      %v5466 = vmax.f32 %v5402, 0.0
      %v5467 = vmax.f32 %v5403, 0.0
      %v5468 = vmax.f32 %v5404, 0.0
      %v5469 = vmax.f32 %v5405, 0.0
      %v5470 = vmax.f32 %v5406, 0.0
      %v5471 = vpack.c.bf16 %v5409, %v5407
      %v5472 = vpack.c.bf16 %v5410, %v5408
      %v5473 = vpack.c.bf16 %v5413, %v5411
      %v5474 = vpack.c.bf16 %v5414, %v5412
      %v5475 = vpack.c.bf16 %v5417, %v5415
      %v5476 = vpack.c.bf16 %v5418, %v5416
      %v5477 = vpack.c.bf16 %v5421, %v5419
      %v5478 = vpack.c.bf16 %v5422, %v5420
      %v5479 = vpack.c.bf16 %v5425, %v5423
      %v5480 = vpack.c.bf16 %v5426, %v5424
      %v5481 = vpack.c.bf16 %v5429, %v5427
      %v5482 = vpack.c.bf16 %v5430, %v5428
      %v5483 = vpack.c.bf16 %v5433, %v5431
      %v5484 = vpack.c.bf16 %v5434, %v5432
      %v5485 = vpack.c.bf16 %v5437, %v5435
      %v5486 = vpack.c.bf16 %v5438, %v5436
      %v5487 = vpack.c.bf16 %v5441, %v5439
      %v5488 = vpack.c.bf16 %v5442, %v5440
      %v5489 = vpack.c.bf16 %v5445, %v5443
      %v5490 = vpack.c.bf16 %v5446, %v5444
      %v5491 = vpack.c.bf16 %v5449, %v5447
      %v5492 = vpack.c.bf16 %v5450, %v5448
      %v5493 = vpack.c.bf16 %v5453, %v5451
      %v5494 = vpack.c.bf16 %v5454, %v5452
      %v5495 = vpack.c.bf16 %v5457, %v5455
      %v5496 = vpack.c.bf16 %v5458, %v5456
      %v5497 = vpack.c.bf16 %v5461, %v5459
      %v5498 = vpack.c.bf16 %v5462, %v5460
      %v5499 = vpack.c.bf16 %v5465, %v5463
      %v5500 = vpack.c.bf16 %v5466, %v5464
      %v5501 = vpack.c.bf16 %v5469, %v5467
      %v5502 = vpack.c.bf16 %v5470, %v5468
      %v5535 = vunpack.c.l.b16 %v5471
      %v5536 = vunpack.c.l.b16 %v5472
      %v5537 = vunpack.c.h.b16 %v5471
      %v5538 = vunpack.c.h.b16 %v5472
      %v5539 = vunpack.c.l.b16 %v5473
      %v5540 = vunpack.c.l.b16 %v5474
      %v5541 = vunpack.c.h.b16 %v5473
      %v5542 = vunpack.c.h.b16 %v5474
      %v5543 = vunpack.c.l.b16 %v5475
      %v5544 = vunpack.c.l.b16 %v5476
      %v5545 = vunpack.c.h.b16 %v5475
      %v5546 = vunpack.c.h.b16 %v5476
      %v5547 = vunpack.c.l.b16 %v5477
      %v5548 = vunpack.c.l.b16 %v5478
      %v5549 = vunpack.c.h.b16 %v5477
      %v5550 = vunpack.c.h.b16 %v5478
      %v5551 = vunpack.c.l.b16 %v5479
      %v5552 = vunpack.c.l.b16 %v5480
      %v5553 = vunpack.c.h.b16 %v5479
      %v5554 = vunpack.c.h.b16 %v5480
      %v5555 = vunpack.c.l.b16 %v5481
      %v5556 = vunpack.c.l.b16 %v5482
      %v5557 = vunpack.c.h.b16 %v5481
      %v5558 = vunpack.c.h.b16 %v5482
      %v5559 = vunpack.c.l.b16 %v5483
      %v5560 = vunpack.c.l.b16 %v5484
      %v5561 = vunpack.c.h.b16 %v5483
      %v5562 = vunpack.c.h.b16 %v5484
      %v5563 = vunpack.c.l.b16 %v5485
      %v5564 = vunpack.c.l.b16 %v5486
      %v5565 = vunpack.c.h.b16 %v5485
      %v5566 = vunpack.c.h.b16 %v5486
      %v5567 = vunpack.c.l.b16 %v5487
      %v5568 = vunpack.c.l.b16 %v5488
      %v5569 = vunpack.c.h.b16 %v5487
      %v5570 = vunpack.c.h.b16 %v5488
      %v5571 = vunpack.c.l.b16 %v5489
      %v5572 = vunpack.c.l.b16 %v5490
      %v5573 = vunpack.c.h.b16 %v5489
      %v5574 = vunpack.c.h.b16 %v5490
      %v5575 = vunpack.c.l.b16 %v5491
      %v5576 = vunpack.c.l.b16 %v5492
      %v5577 = vunpack.c.h.b16 %v5491
      %v5578 = vunpack.c.h.b16 %v5492
      %v5579 = vunpack.c.l.b16 %v5493
      %v5580 = vunpack.c.l.b16 %v5494
      %v5581 = vunpack.c.h.b16 %v5493
      %v5582 = vunpack.c.h.b16 %v5494
      %v5583 = vunpack.c.l.b16 %v5495
      %v5584 = vunpack.c.l.b16 %v5496
      %v5585 = vunpack.c.h.b16 %v5495
      %v5586 = vunpack.c.h.b16 %v5496
      %v5587 = vunpack.c.l.b16 %v5497
      %v5588 = vunpack.c.l.b16 %v5498
      %v5589 = vunpack.c.h.b16 %v5497
      %v5590 = vunpack.c.h.b16 %v5498
      %v5591 = vunpack.c.l.b16 %v5499
      %v5592 = vunpack.c.l.b16 %v5500
      %v5593 = vunpack.c.h.b16 %v5499
      %v5594 = vunpack.c.h.b16 %v5500
      %v5595 = vunpack.c.l.b16 %v5501
      %v5596 = vunpack.c.l.b16 %v5502
      %v5597 = vunpack.c.h.b16 %v5501
      %v5598 = vunpack.c.h.b16 %v5502
      %v5599 = vpack.c.b16 %v5536, %v5535
      %v5600 = vpack.c.b16 %v5538, %v5537
      %v5601 = vpack.c.b16 %v5540, %v5539
      %v5602 = vpack.c.b16 %v5542, %v5541
      %v5603 = vpack.c.b16 %v5544, %v5543
      %v5604 = vpack.c.b16 %v5546, %v5545
      %v5605 = vpack.c.b16 %v5548, %v5547
      %v5606 = vpack.c.b16 %v5550, %v5549
      %v5607 = vpack.c.b16 %v5552, %v5551
      %v5608 = vpack.c.b16 %v5554, %v5553
      %v5609 = vpack.c.b16 %v5556, %v5555
      %v5610 = vpack.c.b16 %v5558, %v5557
      %v5611 = vpack.c.b16 %v5560, %v5559
      %v5612 = vpack.c.b16 %v5562, %v5561
      %v5613 = vpack.c.b16 %v5564, %v5563
      %v5614 = vpack.c.b16 %v5566, %v5565
      %v5615 = vpack.c.b16 %v5568, %v5567
      %v5616 = vpack.c.b16 %v5570, %v5569
      %v5617 = vpack.c.b16 %v5572, %v5571
      %v5618 = vpack.c.b16 %v5574, %v5573
      %v5619 = vpack.c.b16 %v5576, %v5575
      %v5620 = vpack.c.b16 %v5578, %v5577
      %v5621 = vpack.c.b16 %v5580, %v5579
      %v5622 = vpack.c.b16 %v5582, %v5581
      %v5623 = vpack.c.b16 %v5584, %v5583
      %v5624 = vpack.c.b16 %v5586, %v5585
      %v5625 = vpack.c.b16 %v5588, %v5587
      %v5626 = vpack.c.b16 %v5590, %v5589
      %v5627 = vpack.c.b16 %v5592, %v5591
      %v5628 = vpack.c.b16 %v5594, %v5593
      %v5629 = vpack.c.b16 %v5596, %v5595
      %v5630 = vpack.c.b16 %v5598, %v5597
      %v5632 = vshrl.u32 %v5599, 16
      %v5634 = vrot.slane %v5632, 7
      %v5635 = vshll.u32 %v5599, 16
      %v5637 = vor.u32 %v5634, %v5635
      %v5638 = vrot.slane %v5634, 4
      %v5640 = vshrl.u32 %v5600, 16
      %v5642 = vrot.slane %v5640, 7
      %v5643 = vshll.u32 %v5600, 16
      %v5645 = vor.u32 %v5642, %v5643
      %v5646 = vsel %vm668, %v5638, %v5645
      %v5647 = vrot.slane %v5642, 4
      %v5649 = vshrl.u32 %v5601, 16
      %v5651 = vrot.slane %v5649, 7
      %v5652 = vshll.u32 %v5601, 16
      %v5654 = vor.u32 %v5651, %v5652
      %v5655 = vrot.slane %v5651, 4
      %v5657 = vshrl.u32 %v5602, 16
      %v5659 = vrot.slane %v5657, 7
      %v5660 = vshll.u32 %v5602, 16
      %v5662 = vor.u32 %v5659, %v5660
      %v5663 = vsel %vm668, %v5655, %v5662
      %v5664 = vrot.slane %v5659, 4
      %v5666 = vshrl.u32 %v5603, 16
      %v5668 = vrot.slane %v5666, 7
      %v5669 = vshll.u32 %v5603, 16
      %v5671 = vor.u32 %v5668, %v5669
      %v5672 = vrot.slane %v5668, 4
      %v5674 = vshrl.u32 %v5604, 16
      %v5676 = vrot.slane %v5674, 7
      %v5677 = vshll.u32 %v5604, 16
      %v5679 = vor.u32 %v5676, %v5677
      %v5680 = vsel %vm668, %v5672, %v5679
      %v5681 = vrot.slane %v5676, 4
      %v5683 = vshrl.u32 %v5605, 16
      %v5685 = vrot.slane %v5683, 7
      %v5686 = vshll.u32 %v5605, 16
      %v5688 = vor.u32 %v5685, %v5686
      %v5689 = vrot.slane %v5685, 4
      %v5691 = vshrl.u32 %v5606, 16
      %v5693 = vrot.slane %v5691, 7
      %v5694 = vshll.u32 %v5606, 16
      %v5696 = vor.u32 %v5693, %v5694
      %v5697 = vsel %vm668, %v5689, %v5696
      %v5698 = vrot.slane %v5693, 4
      %v5700 = vshrl.u32 %v5607, 16
      %v5702 = vrot.slane %v5700, 7
      %v5703 = vshll.u32 %v5607, 16
      %v5705 = vor.u32 %v5702, %v5703
      %v5706 = vrot.slane %v5702, 4
      %v5708 = vshrl.u32 %v5608, 16
      %v5710 = vrot.slane %v5708, 7
      %v5711 = vshll.u32 %v5608, 16
      %v5713 = vor.u32 %v5710, %v5711
      %v5714 = vsel %vm668, %v5706, %v5713
      %v5715 = vrot.slane %v5710, 4
      %v5717 = vshrl.u32 %v5609, 16
      %v5719 = vrot.slane %v5717, 7
      %v5720 = vshll.u32 %v5609, 16
      %v5722 = vor.u32 %v5719, %v5720
      %v5723 = vrot.slane %v5719, 4
      %v5725 = vshrl.u32 %v5610, 16
      %v5727 = vrot.slane %v5725, 7
      %v5728 = vshll.u32 %v5610, 16
      %v5730 = vor.u32 %v5727, %v5728
      %v5731 = vsel %vm668, %v5723, %v5730
      %v5732 = vrot.slane %v5727, 4
      %v5734 = vshrl.u32 %v5611, 16
      %v5736 = vrot.slane %v5734, 7
      %v5737 = vshll.u32 %v5611, 16
      %v5739 = vor.u32 %v5736, %v5737
      %v5740 = vrot.slane %v5736, 4
      %v5742 = vshrl.u32 %v5612, 16
      %v5744 = vrot.slane %v5742, 7
      %v5745 = vshll.u32 %v5612, 16
      %v5747 = vor.u32 %v5744, %v5745
      %v5748 = vsel %vm668, %v5740, %v5747
      %v5749 = vrot.slane %v5744, 4
      %v5751 = vshrl.u32 %v5613, 16
      %v5753 = vrot.slane %v5751, 7
      %v5754 = vshll.u32 %v5613, 16
      %v5756 = vor.u32 %v5753, %v5754
      %v5757 = vrot.slane %v5753, 4
      %v5759 = vshrl.u32 %v5614, 16
      %v5761 = vrot.slane %v5759, 7
      %v5762 = vshll.u32 %v5614, 16
      %v5764 = vor.u32 %v5761, %v5762
      %v5765 = vsel %vm668, %v5757, %v5764
      %v5766 = vrot.slane %v5761, 4
      %v5768 = vshrl.u32 %v5615, 16
      %v5770 = vrot.slane %v5768, 7
      %v5771 = vshll.u32 %v5615, 16
      %v5773 = vor.u32 %v5770, %v5771
      %v5774 = vrot.slane %v5770, 4
      %v5776 = vshrl.u32 %v5616, 16
      %v5778 = vrot.slane %v5776, 7
      %v5779 = vshll.u32 %v5616, 16
      %v5781 = vor.u32 %v5778, %v5779
      %v5782 = vsel %vm668, %v5774, %v5781
      %v5783 = vrot.slane %v5778, 4
      %v5785 = vshrl.u32 %v5617, 16
      %v5787 = vrot.slane %v5785, 7
      %v5788 = vshll.u32 %v5617, 16
      %v5790 = vor.u32 %v5787, %v5788
      %v5791 = vrot.slane %v5787, 4
      %v5793 = vshrl.u32 %v5618, 16
      %v5795 = vrot.slane %v5793, 7
      %v5796 = vshll.u32 %v5618, 16
      %v5798 = vor.u32 %v5795, %v5796
      %v5799 = vsel %vm668, %v5791, %v5798
      %v5800 = vrot.slane %v5795, 4
      %v5802 = vshrl.u32 %v5619, 16
      %v5804 = vrot.slane %v5802, 7
      %v5805 = vshll.u32 %v5619, 16
      %v5807 = vor.u32 %v5804, %v5805
      %v5808 = vrot.slane %v5804, 4
      %v5810 = vshrl.u32 %v5620, 16
      %v5812 = vrot.slane %v5810, 7
      %v5813 = vshll.u32 %v5620, 16
      %v5815 = vor.u32 %v5812, %v5813
      %v5816 = vsel %vm668, %v5808, %v5815
      %v5817 = vrot.slane %v5812, 4
      %v5819 = vshrl.u32 %v5621, 16
      %v5821 = vrot.slane %v5819, 7
      %v5822 = vshll.u32 %v5621, 16
      %v5824 = vor.u32 %v5821, %v5822
      %v5825 = vrot.slane %v5821, 4
      %v5827 = vshrl.u32 %v5622, 16
      %v5829 = vrot.slane %v5827, 7
      %v5830 = vshll.u32 %v5622, 16
      %v5832 = vor.u32 %v5829, %v5830
      %v5833 = vsel %vm668, %v5825, %v5832
      %v5834 = vrot.slane %v5829, 4
      %v5836 = vshrl.u32 %v5623, 16
      %v5838 = vrot.slane %v5836, 7
      %v5839 = vshll.u32 %v5623, 16
      %v5841 = vor.u32 %v5838, %v5839
      %v5842 = vrot.slane %v5838, 4
      %v5844 = vshrl.u32 %v5624, 16
      %v5846 = vrot.slane %v5844, 7
      %v5847 = vshll.u32 %v5624, 16
      %v5849 = vor.u32 %v5846, %v5847
      %v5850 = vsel %vm668, %v5842, %v5849
      %v5851 = vrot.slane %v5846, 4
      %v5853 = vshrl.u32 %v5625, 16
      %v5855 = vrot.slane %v5853, 7
      %v5856 = vshll.u32 %v5625, 16
      %v5858 = vor.u32 %v5855, %v5856
      %v5859 = vrot.slane %v5855, 4
      %v5861 = vshrl.u32 %v5626, 16
      %v5863 = vrot.slane %v5861, 7
      %v5864 = vshll.u32 %v5626, 16
      %v5866 = vor.u32 %v5863, %v5864
      %v5867 = vsel %vm668, %v5859, %v5866
      %v5868 = vrot.slane %v5863, 4
      %v5870 = vshrl.u32 %v5627, 16
      %v5872 = vrot.slane %v5870, 7
      %v5873 = vshll.u32 %v5627, 16
      %v5875 = vor.u32 %v5872, %v5873
      %v5876 = vrot.slane %v5872, 4
      %v5878 = vshrl.u32 %v5628, 16
      %v5880 = vrot.slane %v5878, 7
      %v5881 = vshll.u32 %v5628, 16
      %v5883 = vor.u32 %v5880, %v5881
      %v5884 = vsel %vm668, %v5876, %v5883
      %v5885 = vrot.slane %v5880, 4
      %v5887 = vshrl.u32 %v5629, 16
      %v5889 = vrot.slane %v5887, 7
      %v5890 = vshll.u32 %v5629, 16
      %v5892 = vor.u32 %v5889, %v5890
      %v5893 = vrot.slane %v5889, 4
      %v5895 = vshrl.u32 %v5630, 16
      %v5897 = vrot.slane %v5895, 7
      %v5898 = vshll.u32 %v5630, 16
      %v5900 = vor.u32 %v5897, %v5898
      %v5901 = vsel %vm668, %v5893, %v5900
      %v5902 = vrot.slane %v5897, 4
      %s5951 = scalar_lea.vmem [#allocation3], 24
      %vm5952 = vcmask 1043456
      %vm5953 = vmand %vm5952, %vm454
      %vm5954 = vcmask 1047556
      %vm5955 = vmand %vm5954, %vm578
      %vm5956 = vmor %vm5955, %vm5953
      %v5957 = vld [vmem:[%s5951] sm:$0xff]
      %v5958 = vsel %vm5956, %v5637, %v5957
      %5959 = vst [vmem:[%s5951] sm:$0xff] %v5958
      %5960 = vst [vmem:[%s5951 + $0x8] sm:$0xff] %v5646
      %v5961 = vld [vmem:[%s5951 + $0x10] sm:$0x11]
      %v5962 = vsel %vm522, %v5647, %v5961
      %5963 = vst [vmem:[%s5951 + $0x10] sm:$0x11] %v5962
      %v5964 = vld [vmem:[%s5951 + $0x18] sm:$0xff]
      %v5965 = vsel %vm5956, %v5654, %v5964
      %5966 = vst [vmem:[%s5951 + $0x18] sm:$0xff] %v5965
      %5967 = vst [vmem:[%s5951 + $0x20] sm:$0xff] %v5663
      %v5968 = vld [vmem:[%s5951 + $0x28] sm:$0x11]
      %v5969 = vsel %vm522, %v5664, %v5968
      %5970 = vst [vmem:[%s5951 + $0x28] sm:$0x11] %v5969
      %v5971 = vld [vmem:[%s5951 + $0x30] sm:$0xff]
      %v5972 = vsel %vm5956, %v5671, %v5971
      %5973 = vst [vmem:[%s5951 + $0x30] sm:$0xff] %v5972
      %5974 = vst [vmem:[%s5951 + $0x38] sm:$0xff] %v5680
      %v5975 = vld [vmem:[%s5951 + $0x40] sm:$0x11]
      %v5976 = vsel %vm522, %v5681, %v5975
      %5977 = vst [vmem:[%s5951 + $0x40] sm:$0x11] %v5976
      %v5978 = vld [vmem:[%s5951 + $0x48] sm:$0xff]
      %v5979 = vsel %vm5956, %v5688, %v5978
      %5980 = vst [vmem:[%s5951 + $0x48] sm:$0xff] %v5979
      %5981 = vst [vmem:[%s5951 + $0x50] sm:$0xff] %v5697
      %v5982 = vld [vmem:[%s5951 + $0x58] sm:$0x11]
      %v5983 = vsel %vm522, %v5698, %v5982
      %5984 = vst [vmem:[%s5951 + $0x58] sm:$0x11] %v5983
      %v5985 = vld [vmem:[%s5951 + $0x60] sm:$0xff]
      %v5986 = vsel %vm5956, %v5705, %v5985
      %5987 = vst [vmem:[%s5951 + $0x60] sm:$0xff] %v5986
      %5988 = vst [vmem:[%s5951 + $0x68] sm:$0xff] %v5714
      %v5989 = vld [vmem:[%s5951 + $0x70] sm:$0x11]
      %v5990 = vsel %vm522, %v5715, %v5989
      %5991 = vst [vmem:[%s5951 + $0x70] sm:$0x11] %v5990
      %v5992 = vld [vmem:[%s5951 + $0x78] sm:$0xff]
      %v5993 = vsel %vm5956, %v5722, %v5992
      %5994 = vst [vmem:[%s5951 + $0x78] sm:$0xff] %v5993
      %5995 = vst [vmem:[%s5951 + $0x80] sm:$0xff] %v5731
      %v5996 = vld [vmem:[%s5951 + $0x88] sm:$0x11]
      %v5997 = vsel %vm522, %v5732, %v5996
      %5998 = vst [vmem:[%s5951 + $0x88] sm:$0x11] %v5997
      %v5999 = vld [vmem:[%s5951 + $0x90] sm:$0xff]
      %v6000 = vsel %vm5956, %v5739, %v5999
      %6001 = vst [vmem:[%s5951 + $0x90] sm:$0xff] %v6000
      %6002 = vst [vmem:[%s5951 + $0x98] sm:$0xff] %v5748
      %v6003 = vld [vmem:[%s5951 + $0xa0] sm:$0x11]
      %v6004 = vsel %vm522, %v5749, %v6003
      %6005 = vst [vmem:[%s5951 + $0xa0] sm:$0x11] %v6004
      %v6006 = vld [vmem:[%s5951 + $0xa8] sm:$0xff]
      %v6007 = vsel %vm5956, %v5756, %v6006
      %6008 = vst [vmem:[%s5951 + $0xa8] sm:$0xff] %v6007
      %6009 = vst [vmem:[%s5951 + $0xb0] sm:$0xff] %v5765
      %v6010 = vld [vmem:[%s5951 + $0xb8] sm:$0x11]
      %v6011 = vsel %vm522, %v5766, %v6010
      %6012 = vst [vmem:[%s5951 + $0xb8] sm:$0x11] %v6011
      %v6013 = vld [vmem:[%s5951 + $0xc0] sm:$0xff]
      %v6014 = vsel %vm5956, %v5773, %v6013
      %6015 = vst [vmem:[%s5951 + $0xc0] sm:$0xff] %v6014
      %6016 = vst [vmem:[%s5951 + $0xc8] sm:$0xff] %v5782
      %v6017 = vld [vmem:[%s5951 + $0xd0] sm:$0x11]
      %v6018 = vsel %vm522, %v5783, %v6017
      %6019 = vst [vmem:[%s5951 + $0xd0] sm:$0x11] %v6018
      %v6020 = vld [vmem:[%s5951 + $0xd8] sm:$0xff]
      %v6021 = vsel %vm5956, %v5790, %v6020
      %6022 = vst [vmem:[%s5951 + $0xd8] sm:$0xff] %v6021
      %6023 = vst [vmem:[%s5951 + $0xe0] sm:$0xff] %v5799
      %v6024 = vld [vmem:[%s5951 + $0xe8] sm:$0x11]
      %v6025 = vsel %vm522, %v5800, %v6024
      %6026 = vst [vmem:[%s5951 + $0xe8] sm:$0x11] %v6025
      %v6027 = vld [vmem:[%s5951 + $0xf0] sm:$0xff]
      %v6028 = vsel %vm5956, %v5807, %v6027
      %6029 = vst [vmem:[%s5951 + $0xf0] sm:$0xff] %v6028
      %6030 = vst [vmem:[%s5951 + $0xf8] sm:$0xff] %v5816
      %v6031 = vld [vmem:[%s5951 + $0x100] sm:$0x11]
      %v6032 = vsel %vm522, %v5817, %v6031
      %6033 = vst [vmem:[%s5951 + $0x100] sm:$0x11] %v6032
      %v6034 = vld [vmem:[%s5951 + $0x108] sm:$0xff]
      %v6035 = vsel %vm5956, %v5824, %v6034
      %6036 = vst [vmem:[%s5951 + $0x108] sm:$0xff] %v6035
      %6037 = vst [vmem:[%s5951 + $0x110] sm:$0xff] %v5833
      %v6038 = vld [vmem:[%s5951 + $0x118] sm:$0x11]
      %v6039 = vsel %vm522, %v5834, %v6038
      %6040 = vst [vmem:[%s5951 + $0x118] sm:$0x11] %v6039
      %v6041 = vld [vmem:[%s5951 + $0x120] sm:$0xff]
      %v6042 = vsel %vm5956, %v5841, %v6041
      %6043 = vst [vmem:[%s5951 + $0x120] sm:$0xff] %v6042
      %6044 = vst [vmem:[%s5951 + $0x128] sm:$0xff] %v5850
      %v6045 = vld [vmem:[%s5951 + $0x130] sm:$0x11]
      %v6046 = vsel %vm522, %v5851, %v6045
      %6047 = vst [vmem:[%s5951 + $0x130] sm:$0x11] %v6046
      %v6048 = vld [vmem:[%s5951 + $0x138] sm:$0xff]
      %v6049 = vsel %vm5956, %v5858, %v6048
      %6050 = vst [vmem:[%s5951 + $0x138] sm:$0xff] %v6049
      %6051 = vst [vmem:[%s5951 + $0x140] sm:$0xff] %v5867
      %v6052 = vld [vmem:[%s5951 + $0x148] sm:$0x11]
      %v6053 = vsel %vm522, %v5868, %v6052
      %6054 = vst [vmem:[%s5951 + $0x148] sm:$0x11] %v6053
      %v6055 = vld [vmem:[%s5951 + $0x150] sm:$0xff]
      %v6056 = vsel %vm5956, %v5875, %v6055
      %6057 = vst [vmem:[%s5951 + $0x150] sm:$0xff] %v6056
      %6058 = vst [vmem:[%s5951 + $0x158] sm:$0xff] %v5884
      %v6059 = vld [vmem:[%s5951 + $0x160] sm:$0x11]
      %v6060 = vsel %vm522, %v5885, %v6059
      %6061 = vst [vmem:[%s5951 + $0x160] sm:$0x11] %v6060
      %v6062 = vld [vmem:[%s5951 + $0x168] sm:$0xff]
      %v6063 = vsel %vm5956, %v5892, %v6062
      %6064 = vst [vmem:[%s5951 + $0x168] sm:$0xff] %v6063
      %6065 = vst [vmem:[%s5951 + $0x170] sm:$0xff] %v5901
      %v6066 = vld [vmem:[%s5951 + $0x178] sm:$0x11]
      %v6067 = vsel %vm522, %v5902, %v6066
      %6068 = vst [vmem:[%s5951 + $0x178] sm:$0x11] %v6067
      %v6069 = vld [vmem:[%s5951] sm:$0xf]
      %v6070 = vld [vmem:[%s5951 + $0x8] sm:$0xf]
      %v6071 = vld [vmem:[%s5951 + $0x10] sm:$0x1]
      %v6072 = vld [vmem:[%s5951 + $0x18] sm:$0xf]
      %v6073 = vld [vmem:[%s5951 + $0x20] sm:$0xf]
      %v6074 = vld [vmem:[%s5951 + $0x28] sm:$0x1]
      %v6075 = vld [vmem:[%s5951 + $0x30] sm:$0xf]
      %v6076 = vld [vmem:[%s5951 + $0x38] sm:$0xf]
      %v6077 = vld [vmem:[%s5951 + $0x40] sm:$0x1]
      %v6078 = vld [vmem:[%s5951 + $0x48] sm:$0xf]
      %v6079 = vld [vmem:[%s5951 + $0x50] sm:$0xf]
      %v6080 = vld [vmem:[%s5951 + $0x58] sm:$0x1]
      %v6081 = vld [vmem:[%s5951 + $0x60] sm:$0xf]
      %v6082 = vld [vmem:[%s5951 + $0x68] sm:$0xf]
      %v6083 = vld [vmem:[%s5951 + $0x70] sm:$0x1]
      %v6084 = vld [vmem:[%s5951 + $0x78] sm:$0xf]
      %v6085 = vld [vmem:[%s5951 + $0x80] sm:$0xf]
      %v6086 = vld [vmem:[%s5951 + $0x88] sm:$0x1]
      %v6087 = vld [vmem:[%s5951 + $0x90] sm:$0xf]
      %v6088 = vld [vmem:[%s5951 + $0x98] sm:$0xf]
      %v6089 = vld [vmem:[%s5951 + $0xa0] sm:$0x1]
      %v6090 = vld [vmem:[%s5951 + $0xa8] sm:$0xf]
      %v6091 = vld [vmem:[%s5951 + $0xb0] sm:$0xf]
      %v6092 = vld [vmem:[%s5951 + $0xb8] sm:$0x1]
      %v6093 = vld [vmem:[%s5951 + $0xc0] sm:$0xf]
      %v6094 = vld [vmem:[%s5951 + $0xc8] sm:$0xf]
      %v6095 = vld [vmem:[%s5951 + $0xd0] sm:$0x1]
      %v6096 = vld [vmem:[%s5951 + $0xd8] sm:$0xf]
      %v6097 = vld [vmem:[%s5951 + $0xe0] sm:$0xf]
      %v6098 = vld [vmem:[%s5951 + $0xe8] sm:$0x1]
      %v6099 = vld [vmem:[%s5951 + $0xf0] sm:$0xf]
      %v6100 = vld [vmem:[%s5951 + $0xf8] sm:$0xf]
      %v6101 = vld [vmem:[%s5951 + $0x100] sm:$0x1]
      %v6102 = vld [vmem:[%s5951 + $0x108] sm:$0xf]
      %v6103 = vld [vmem:[%s5951 + $0x110] sm:$0xf]
      %v6104 = vld [vmem:[%s5951 + $0x118] sm:$0x1]
      %v6105 = vld [vmem:[%s5951 + $0x120] sm:$0xf]
      %v6106 = vld [vmem:[%s5951 + $0x128] sm:$0xf]
      %v6107 = vld [vmem:[%s5951 + $0x130] sm:$0x1]
      %v6108 = vld [vmem:[%s5951 + $0x138] sm:$0xf]
      %v6109 = vld [vmem:[%s5951 + $0x140] sm:$0xf]
      %v6110 = vld [vmem:[%s5951 + $0x148] sm:$0x1]
      %v6111 = vld [vmem:[%s5951 + $0x150] sm:$0xf]
      %v6112 = vld [vmem:[%s5951 + $0x158] sm:$0xf]
      %v6113 = vld [vmem:[%s5951 + $0x160] sm:$0x1]
      %v6114 = vld [vmem:[%s5951 + $0x168] sm:$0xf]
      %v6115 = vld [vmem:[%s5951 + $0x170] sm:$0xf]
      %v6116 = vld [vmem:[%s5951 + $0x178] sm:$0x1]
      %v6118 = vshrl.u32 %v6069, 16
      %v6120 = vrot.slane %v6118, 4
      %v6121 = vshll.u32 %v6069, 16
      %v6123 = vrot.slane %v6121, 5
      %v6124 = vor.u32 %v6120, %v6123
      %v6125 = vrot.slane %v6124, 4
      %v6127 = vshll.u32 %v6070, 16
      %v6129 = vrot.slane %v6127, 5
      %v6130 = vsel %vm1154, %v6125, %v6129
      %v6131 = vshrl.u32 %v6070, 16
      %v6133 = vrot.slane %v6131, 4
      %v6134 = vor.u32 %v6133, %v6129
      %v6135 = vrot.slane %v6134, 4
      %v6137 = vshll.u32 %v6071, 16
      %v6139 = vrot.slane %v6137, 5
      %v6140 = vsel %vm1154, %v6135, %v6139
      %v6142 = vshrl.u32 %v6072, 16
      %v6144 = vrot.slane %v6142, 4
      %v6145 = vshll.u32 %v6072, 16
      %v6147 = vrot.slane %v6145, 5
      %v6148 = vor.u32 %v6144, %v6147
      %v6149 = vrot.slane %v6148, 4
      %v6151 = vshll.u32 %v6073, 16
      %v6153 = vrot.slane %v6151, 5
      %v6154 = vsel %vm1154, %v6149, %v6153
      %v6155 = vshrl.u32 %v6073, 16
      %v6157 = vrot.slane %v6155, 4
      %v6158 = vor.u32 %v6157, %v6153
      %v6159 = vrot.slane %v6158, 4
      %v6161 = vshll.u32 %v6074, 16
      %v6163 = vrot.slane %v6161, 5
      %v6164 = vsel %vm1154, %v6159, %v6163
      %v6166 = vshrl.u32 %v6075, 16
      %v6168 = vrot.slane %v6166, 4
      %v6169 = vshll.u32 %v6075, 16
      %v6171 = vrot.slane %v6169, 5
      %v6172 = vor.u32 %v6168, %v6171
      %v6173 = vrot.slane %v6172, 4
      %v6175 = vshll.u32 %v6076, 16
      %v6177 = vrot.slane %v6175, 5
      %v6178 = vsel %vm1154, %v6173, %v6177
      %v6179 = vshrl.u32 %v6076, 16
      %v6181 = vrot.slane %v6179, 4
      %v6182 = vor.u32 %v6181, %v6177
      %v6183 = vrot.slane %v6182, 4
      %v6185 = vshll.u32 %v6077, 16
      %v6187 = vrot.slane %v6185, 5
      %v6188 = vsel %vm1154, %v6183, %v6187
      %v6190 = vshrl.u32 %v6078, 16
      %v6192 = vrot.slane %v6190, 4
      %v6193 = vshll.u32 %v6078, 16
      %v6195 = vrot.slane %v6193, 5
      %v6196 = vor.u32 %v6192, %v6195
      %v6197 = vrot.slane %v6196, 4
      %v6199 = vshll.u32 %v6079, 16
      %v6201 = vrot.slane %v6199, 5
      %v6202 = vsel %vm1154, %v6197, %v6201
      %v6203 = vshrl.u32 %v6079, 16
      %v6205 = vrot.slane %v6203, 4
      %v6206 = vor.u32 %v6205, %v6201
      %v6207 = vrot.slane %v6206, 4
      %v6209 = vshll.u32 %v6080, 16
      %v6211 = vrot.slane %v6209, 5
      %v6212 = vsel %vm1154, %v6207, %v6211
      %v6214 = vshrl.u32 %v6081, 16
      %v6216 = vrot.slane %v6214, 4
      %v6217 = vshll.u32 %v6081, 16
      %v6219 = vrot.slane %v6217, 5
      %v6220 = vor.u32 %v6216, %v6219
      %v6221 = vrot.slane %v6220, 4
      %v6223 = vshll.u32 %v6082, 16
      %v6225 = vrot.slane %v6223, 5
      %v6226 = vsel %vm1154, %v6221, %v6225
      %v6227 = vshrl.u32 %v6082, 16
      %v6229 = vrot.slane %v6227, 4
      %v6230 = vor.u32 %v6229, %v6225
      %v6231 = vrot.slane %v6230, 4
      %v6233 = vshll.u32 %v6083, 16
      %v6235 = vrot.slane %v6233, 5
      %v6236 = vsel %vm1154, %v6231, %v6235
      %v6238 = vshrl.u32 %v6084, 16
      %v6240 = vrot.slane %v6238, 4
      %v6241 = vshll.u32 %v6084, 16
      %v6243 = vrot.slane %v6241, 5
      %v6244 = vor.u32 %v6240, %v6243
      %v6245 = vrot.slane %v6244, 4
      %v6247 = vshll.u32 %v6085, 16
      %v6249 = vrot.slane %v6247, 5
      %v6250 = vsel %vm1154, %v6245, %v6249
      %v6251 = vshrl.u32 %v6085, 16
      %v6253 = vrot.slane %v6251, 4
      %v6254 = vor.u32 %v6253, %v6249
      %v6255 = vrot.slane %v6254, 4
      %v6257 = vshll.u32 %v6086, 16
      %v6259 = vrot.slane %v6257, 5
      %v6260 = vsel %vm1154, %v6255, %v6259
      %v6262 = vshrl.u32 %v6087, 16
      %v6264 = vrot.slane %v6262, 4
      %v6265 = vshll.u32 %v6087, 16
      %v6267 = vrot.slane %v6265, 5
      %v6268 = vor.u32 %v6264, %v6267
      %v6269 = vrot.slane %v6268, 4
      %v6271 = vshll.u32 %v6088, 16
      %v6273 = vrot.slane %v6271, 5
      %v6274 = vsel %vm1154, %v6269, %v6273
      %v6275 = vshrl.u32 %v6088, 16
      %v6277 = vrot.slane %v6275, 4
      %v6278 = vor.u32 %v6277, %v6273
      %v6279 = vrot.slane %v6278, 4
      %v6281 = vshll.u32 %v6089, 16
      %v6283 = vrot.slane %v6281, 5
      %v6284 = vsel %vm1154, %v6279, %v6283
      %v6286 = vshrl.u32 %v6090, 16
      %v6288 = vrot.slane %v6286, 4
      %v6289 = vshll.u32 %v6090, 16
      %v6291 = vrot.slane %v6289, 5
      %v6292 = vor.u32 %v6288, %v6291
      %v6293 = vrot.slane %v6292, 4
      %v6295 = vshll.u32 %v6091, 16
      %v6297 = vrot.slane %v6295, 5
      %v6298 = vsel %vm1154, %v6293, %v6297
      %v6299 = vshrl.u32 %v6091, 16
      %v6301 = vrot.slane %v6299, 4
      %v6302 = vor.u32 %v6301, %v6297
      %v6303 = vrot.slane %v6302, 4
      %v6305 = vshll.u32 %v6092, 16
      %v6307 = vrot.slane %v6305, 5
      %v6308 = vsel %vm1154, %v6303, %v6307
      %v6310 = vshrl.u32 %v6093, 16
      %v6312 = vrot.slane %v6310, 4
      %v6313 = vshll.u32 %v6093, 16
      %v6315 = vrot.slane %v6313, 5
      %v6316 = vor.u32 %v6312, %v6315
      %v6317 = vrot.slane %v6316, 4
      %v6319 = vshll.u32 %v6094, 16
      %v6321 = vrot.slane %v6319, 5
      %v6322 = vsel %vm1154, %v6317, %v6321
      %v6323 = vshrl.u32 %v6094, 16
      %v6325 = vrot.slane %v6323, 4
      %v6326 = vor.u32 %v6325, %v6321
      %v6327 = vrot.slane %v6326, 4
      %v6329 = vshll.u32 %v6095, 16
      %v6331 = vrot.slane %v6329, 5
      %v6332 = vsel %vm1154, %v6327, %v6331
      %v6334 = vshrl.u32 %v6096, 16
      %v6336 = vrot.slane %v6334, 4
      %v6337 = vshll.u32 %v6096, 16
      %v6339 = vrot.slane %v6337, 5
      %v6340 = vor.u32 %v6336, %v6339
      %v6341 = vrot.slane %v6340, 4
      %v6343 = vshll.u32 %v6097, 16
      %v6345 = vrot.slane %v6343, 5
      %v6346 = vsel %vm1154, %v6341, %v6345
      %v6347 = vshrl.u32 %v6097, 16
      %v6349 = vrot.slane %v6347, 4
      %v6350 = vor.u32 %v6349, %v6345
      %v6351 = vrot.slane %v6350, 4
      %v6353 = vshll.u32 %v6098, 16
      %v6355 = vrot.slane %v6353, 5
      %v6356 = vsel %vm1154, %v6351, %v6355
      %v6358 = vshrl.u32 %v6099, 16
      %v6360 = vrot.slane %v6358, 4
      %v6361 = vshll.u32 %v6099, 16
      %v6363 = vrot.slane %v6361, 5
      %v6364 = vor.u32 %v6360, %v6363
      %v6365 = vrot.slane %v6364, 4
      %v6367 = vshll.u32 %v6100, 16
      %v6369 = vrot.slane %v6367, 5
      %v6370 = vsel %vm1154, %v6365, %v6369
      %v6371 = vshrl.u32 %v6100, 16
      %v6373 = vrot.slane %v6371, 4
      %v6374 = vor.u32 %v6373, %v6369
      %v6375 = vrot.slane %v6374, 4
      %v6377 = vshll.u32 %v6101, 16
      %v6379 = vrot.slane %v6377, 5
      %v6380 = vsel %vm1154, %v6375, %v6379
      %v6382 = vshrl.u32 %v6102, 16
      %v6384 = vrot.slane %v6382, 4
      %v6385 = vshll.u32 %v6102, 16
      %v6387 = vrot.slane %v6385, 5
      %v6388 = vor.u32 %v6384, %v6387
      %v6389 = vrot.slane %v6388, 4
      %v6391 = vshll.u32 %v6103, 16
      %v6393 = vrot.slane %v6391, 5
      %v6394 = vsel %vm1154, %v6389, %v6393
      %v6395 = vshrl.u32 %v6103, 16
      %v6397 = vrot.slane %v6395, 4
      %v6398 = vor.u32 %v6397, %v6393
      %v6399 = vrot.slane %v6398, 4
      %v6401 = vshll.u32 %v6104, 16
      %v6403 = vrot.slane %v6401, 5
      %v6404 = vsel %vm1154, %v6399, %v6403
      %v6406 = vshrl.u32 %v6105, 16
      %v6408 = vrot.slane %v6406, 4
      %v6409 = vshll.u32 %v6105, 16
      %v6411 = vrot.slane %v6409, 5
      %v6412 = vor.u32 %v6408, %v6411
      %v6413 = vrot.slane %v6412, 4
      %v6415 = vshll.u32 %v6106, 16
      %v6417 = vrot.slane %v6415, 5
      %v6418 = vsel %vm1154, %v6413, %v6417
      %v6419 = vshrl.u32 %v6106, 16
      %v6421 = vrot.slane %v6419, 4
      %v6422 = vor.u32 %v6421, %v6417
      %v6423 = vrot.slane %v6422, 4
      %v6425 = vshll.u32 %v6107, 16
      %v6427 = vrot.slane %v6425, 5
      %v6428 = vsel %vm1154, %v6423, %v6427
      %v6430 = vshrl.u32 %v6108, 16
      %v6432 = vrot.slane %v6430, 4
      %v6433 = vshll.u32 %v6108, 16
      %v6435 = vrot.slane %v6433, 5
      %v6436 = vor.u32 %v6432, %v6435
      %v6437 = vrot.slane %v6436, 4
      %v6439 = vshll.u32 %v6109, 16
      %v6441 = vrot.slane %v6439, 5
      %v6442 = vsel %vm1154, %v6437, %v6441
      %v6443 = vshrl.u32 %v6109, 16
      %v6445 = vrot.slane %v6443, 4
      %v6446 = vor.u32 %v6445, %v6441
      %v6447 = vrot.slane %v6446, 4
      %v6449 = vshll.u32 %v6110, 16
      %v6451 = vrot.slane %v6449, 5
      %v6452 = vsel %vm1154, %v6447, %v6451
      %v6454 = vshrl.u32 %v6111, 16
      %v6456 = vrot.slane %v6454, 4
      %v6457 = vshll.u32 %v6111, 16
      %v6459 = vrot.slane %v6457, 5
      %v6460 = vor.u32 %v6456, %v6459
      %v6461 = vrot.slane %v6460, 4
      %v6463 = vshll.u32 %v6112, 16
      %v6465 = vrot.slane %v6463, 5
      %v6466 = vsel %vm1154, %v6461, %v6465
      %v6467 = vshrl.u32 %v6112, 16
      %v6469 = vrot.slane %v6467, 4
      %v6470 = vor.u32 %v6469, %v6465
      %v6471 = vrot.slane %v6470, 4
      %v6473 = vshll.u32 %v6113, 16
      %v6475 = vrot.slane %v6473, 5
      %v6476 = vsel %vm1154, %v6471, %v6475
      %v6478 = vshrl.u32 %v6114, 16
      %v6480 = vrot.slane %v6478, 4
      %v6481 = vshll.u32 %v6114, 16
      %v6483 = vrot.slane %v6481, 5
      %v6484 = vor.u32 %v6480, %v6483
      %v6485 = vrot.slane %v6484, 4
      %v6487 = vshll.u32 %v6115, 16
      %v6489 = vrot.slane %v6487, 5
      %v6490 = vsel %vm1154, %v6485, %v6489
      %v6491 = vshrl.u32 %v6115, 16
      %v6493 = vrot.slane %v6491, 4
      %v6494 = vor.u32 %v6493, %v6489
      %v6495 = vrot.slane %v6494, 4
      %v6497 = vshll.u32 %v6116, 16
      %v6499 = vrot.slane %v6497, 5
      %v6500 = vsel %vm1154, %v6495, %v6499
      %v6501 = vld [vmem:[%s5951] sm:$0xe]
      %v6502 = vld [vmem:[%s5951 + $0x18] sm:$0xe]
      %v6503 = vld [vmem:[%s5951 + $0x30] sm:$0xe]
      %v6504 = vld [vmem:[%s5951 + $0x48] sm:$0xe]
      %v6505 = vld [vmem:[%s5951 + $0x60] sm:$0xe]
      %v6506 = vld [vmem:[%s5951 + $0x78] sm:$0xe]
      %v6507 = vld [vmem:[%s5951 + $0x90] sm:$0xe]
      %v6508 = vld [vmem:[%s5951 + $0xa8] sm:$0xe]
      %v6509 = vld [vmem:[%s5951 + $0xc0] sm:$0xe]
      %v6510 = vld [vmem:[%s5951 + $0xd8] sm:$0xe]
      %v6511 = vld [vmem:[%s5951 + $0xf0] sm:$0xe]
      %v6512 = vld [vmem:[%s5951 + $0x108] sm:$0xe]
      %v6513 = vld [vmem:[%s5951 + $0x120] sm:$0xe]
      %v6514 = vld [vmem:[%s5951 + $0x138] sm:$0xe]
      %v6515 = vld [vmem:[%s5951 + $0x150] sm:$0xe]
      %v6516 = vld [vmem:[%s5951 + $0x168] sm:$0xe]
      %v6565 = vrot.slane %v6501, 5
      %v6566 = vrot.slane %v6565, 4
      %v6567 = vrot.slane %v6070, 5
      %v6568 = vsel %vm1605, %v6566, %v6567
      %v6569 = vrot.slane %v6567, 4
      %v6570 = vrot.slane %v6071, 5
      %v6571 = vsel %vm1605, %v6569, %v6570
      %v6572 = vrot.slane %v6502, 5
      %v6573 = vrot.slane %v6572, 4
      %v6574 = vrot.slane %v6073, 5
      %v6575 = vsel %vm1605, %v6573, %v6574
      %v6576 = vrot.slane %v6574, 4
      %v6577 = vrot.slane %v6074, 5
      %v6578 = vsel %vm1605, %v6576, %v6577
      %v6579 = vrot.slane %v6503, 5
      %v6580 = vrot.slane %v6579, 4
      %v6581 = vrot.slane %v6076, 5
      %v6582 = vsel %vm1605, %v6580, %v6581
      %v6583 = vrot.slane %v6581, 4
      %v6584 = vrot.slane %v6077, 5
      %v6585 = vsel %vm1605, %v6583, %v6584
      %v6586 = vrot.slane %v6504, 5
      %v6587 = vrot.slane %v6586, 4
      %v6588 = vrot.slane %v6079, 5
      %v6589 = vsel %vm1605, %v6587, %v6588
      %v6590 = vrot.slane %v6588, 4
      %v6591 = vrot.slane %v6080, 5
      %v6592 = vsel %vm1605, %v6590, %v6591
      %v6593 = vrot.slane %v6505, 5
      %v6594 = vrot.slane %v6593, 4
      %v6595 = vrot.slane %v6082, 5
      %v6596 = vsel %vm1605, %v6594, %v6595
      %v6597 = vrot.slane %v6595, 4
      %v6598 = vrot.slane %v6083, 5
      %v6599 = vsel %vm1605, %v6597, %v6598
      %v6600 = vrot.slane %v6506, 5
      %v6601 = vrot.slane %v6600, 4
      %v6602 = vrot.slane %v6085, 5
      %v6603 = vsel %vm1605, %v6601, %v6602
      %v6604 = vrot.slane %v6602, 4
      %v6605 = vrot.slane %v6086, 5
      %v6606 = vsel %vm1605, %v6604, %v6605
      %v6607 = vrot.slane %v6507, 5
      %v6608 = vrot.slane %v6607, 4
      %v6609 = vrot.slane %v6088, 5
      %v6610 = vsel %vm1605, %v6608, %v6609
      %v6611 = vrot.slane %v6609, 4
      %v6612 = vrot.slane %v6089, 5
      %v6613 = vsel %vm1605, %v6611, %v6612
      %v6614 = vrot.slane %v6508, 5
      %v6615 = vrot.slane %v6614, 4
      %v6616 = vrot.slane %v6091, 5
      %v6617 = vsel %vm1605, %v6615, %v6616
      %v6618 = vrot.slane %v6616, 4
      %v6619 = vrot.slane %v6092, 5
      %v6620 = vsel %vm1605, %v6618, %v6619
      %v6621 = vrot.slane %v6509, 5
      %v6622 = vrot.slane %v6621, 4
      %v6623 = vrot.slane %v6094, 5
      %v6624 = vsel %vm1605, %v6622, %v6623
      %v6625 = vrot.slane %v6623, 4
      %v6626 = vrot.slane %v6095, 5
      %v6627 = vsel %vm1605, %v6625, %v6626
      %v6628 = vrot.slane %v6510, 5
      %v6629 = vrot.slane %v6628, 4
      %v6630 = vrot.slane %v6097, 5
      %v6631 = vsel %vm1605, %v6629, %v6630
      %v6632 = vrot.slane %v6630, 4
      %v6633 = vrot.slane %v6098, 5
      %v6634 = vsel %vm1605, %v6632, %v6633
      %v6635 = vrot.slane %v6511, 5
      %v6636 = vrot.slane %v6635, 4
      %v6637 = vrot.slane %v6100, 5
      %v6638 = vsel %vm1605, %v6636, %v6637
      %v6639 = vrot.slane %v6637, 4
      %v6640 = vrot.slane %v6101, 5
      %v6641 = vsel %vm1605, %v6639, %v6640
      %v6642 = vrot.slane %v6512, 5
      %v6643 = vrot.slane %v6642, 4
      %v6644 = vrot.slane %v6103, 5
      %v6645 = vsel %vm1605, %v6643, %v6644
      %v6646 = vrot.slane %v6644, 4
      %v6647 = vrot.slane %v6104, 5
      %v6648 = vsel %vm1605, %v6646, %v6647
      %v6649 = vrot.slane %v6513, 5
      %v6650 = vrot.slane %v6649, 4
      %v6651 = vrot.slane %v6106, 5
      %v6652 = vsel %vm1605, %v6650, %v6651
      %v6653 = vrot.slane %v6651, 4
      %v6654 = vrot.slane %v6107, 5
      %v6655 = vsel %vm1605, %v6653, %v6654
      %v6656 = vrot.slane %v6514, 5
      %v6657 = vrot.slane %v6656, 4
      %v6658 = vrot.slane %v6109, 5
      %v6659 = vsel %vm1605, %v6657, %v6658
      %v6660 = vrot.slane %v6658, 4
      %v6661 = vrot.slane %v6110, 5
      %v6662 = vsel %vm1605, %v6660, %v6661
      %v6663 = vrot.slane %v6515, 5
      %v6664 = vrot.slane %v6663, 4
      %v6665 = vrot.slane %v6112, 5
      %v6666 = vsel %vm1605, %v6664, %v6665
      %v6667 = vrot.slane %v6665, 4
      %v6668 = vrot.slane %v6113, 5
      %v6669 = vsel %vm1605, %v6667, %v6668
      %v6670 = vrot.slane %v6516, 5
      %v6671 = vrot.slane %v6670, 4
      %v6672 = vrot.slane %v6115, 5
      %v6673 = vsel %vm1605, %v6671, %v6672
      %v6674 = vrot.slane %v6672, 4
      %v6675 = vrot.slane %v6116, 5
      %v6676 = vsel %vm1605, %v6674, %v6675
      %v6677 = vld [vmem:[#allocation3 + $0x4] sm:$0xf]
      %v6678 = vld [vmem:[#allocation3 + $0xc] sm:$0xf]
      %v6679 = vld [vmem:[#allocation3 + $0x14] sm:$0x1]
      %v6680 = vld [vmem:[#allocation3 + $0x1c] sm:$0xf]
      %v6681 = vld [vmem:[#allocation3 + $0x24] sm:$0xf]
      %v6682 = vld [vmem:[#allocation3 + $0x2c] sm:$0x1]
      %v6683 = vld [vmem:[#allocation3 + $0x34] sm:$0xf]
      %v6684 = vld [vmem:[#allocation3 + $0x3c] sm:$0xf]
      %v6685 = vld [vmem:[#allocation3 + $0x44] sm:$0x1]
      %v6686 = vld [vmem:[#allocation3 + $0x4c] sm:$0xf]
      %v6687 = vld [vmem:[#allocation3 + $0x54] sm:$0xf]
      %v6688 = vld [vmem:[#allocation3 + $0x5c] sm:$0x1]
      %v6689 = vld [vmem:[#allocation3 + $0x64] sm:$0xf]
      %v6690 = vld [vmem:[#allocation3 + $0x6c] sm:$0xf]
      %v6691 = vld [vmem:[#allocation3 + $0x74] sm:$0x1]
      %v6692 = vld [vmem:[#allocation3 + $0x7c] sm:$0xf]
      %v6693 = vld [vmem:[#allocation3 + $0x84] sm:$0xf]
      %v6694 = vld [vmem:[#allocation3 + $0x8c] sm:$0x1]
      %v6695 = vld [vmem:[#allocation3 + $0x94] sm:$0xf]
      %v6696 = vld [vmem:[#allocation3 + $0x9c] sm:$0xf]
      %v6697 = vld [vmem:[#allocation3 + $0xa4] sm:$0x1]
      %v6698 = vld [vmem:[#allocation3 + $0xac] sm:$0xf]
      %v6699 = vld [vmem:[#allocation3 + $0xb4] sm:$0xf]
      %v6700 = vld [vmem:[#allocation3 + $0xbc] sm:$0x1]
      %v6701 = vld [vmem:[#allocation3 + $0xc4] sm:$0xf]
      %v6702 = vld [vmem:[#allocation3 + $0xcc] sm:$0xf]
      %v6703 = vld [vmem:[#allocation3 + $0xd4] sm:$0x1]
      %v6704 = vld [vmem:[#allocation3 + $0xdc] sm:$0xf]
      %v6705 = vld [vmem:[#allocation3 + $0xe4] sm:$0xf]
      %v6706 = vld [vmem:[#allocation3 + $0xec] sm:$0x1]
      %v6707 = vld [vmem:[#allocation3 + $0xf4] sm:$0xf]
      %v6708 = vld [vmem:[#allocation3 + $0xfc] sm:$0xf]
      %v6709 = vld [vmem:[#allocation3 + $0x104] sm:$0x1]
      %v6710 = vld [vmem:[#allocation3 + $0x10c] sm:$0xf]
      %v6711 = vld [vmem:[#allocation3 + $0x114] sm:$0xf]
      %v6712 = vld [vmem:[#allocation3 + $0x11c] sm:$0x1]
      %v6713 = vld [vmem:[#allocation3 + $0x124] sm:$0xf]
      %v6714 = vld [vmem:[#allocation3 + $0x12c] sm:$0xf]
      %v6715 = vld [vmem:[#allocation3 + $0x134] sm:$0x1]
      %v6716 = vld [vmem:[#allocation3 + $0x13c] sm:$0xf]
      %v6717 = vld [vmem:[#allocation3 + $0x144] sm:$0xf]
      %v6718 = vld [vmem:[#allocation3 + $0x14c] sm:$0x1]
      %v6719 = vld [vmem:[#allocation3 + $0x154] sm:$0xf]
      %v6720 = vld [vmem:[#allocation3 + $0x15c] sm:$0xf]
      %v6721 = vld [vmem:[#allocation3 + $0x164] sm:$0x1]
      %v6722 = vld [vmem:[#allocation3 + $0x16c] sm:$0xf]
      %v6723 = vld [vmem:[#allocation3 + $0x174] sm:$0xf]
      %v6724 = vld [vmem:[#allocation3 + $0x17c] sm:$0x1]
      %v6726 = vshrl.u32 %v6677, 16
      %v6728 = vrot.slane %v6726, 4
      %v6729 = vshll.u32 %v6677, 16
      %v6731 = vrot.slane %v6729, 5
      %v6732 = vor.u32 %v6728, %v6731
      %v6733 = vrot.slane %v6732, 4
      %v6735 = vshll.u32 %v6678, 16
      %v6737 = vrot.slane %v6735, 5
      %v6738 = vsel %vm1154, %v6733, %v6737
      %v6739 = vshrl.u32 %v6678, 16
      %v6741 = vrot.slane %v6739, 4
      %v6742 = vor.u32 %v6741, %v6737
      %v6743 = vrot.slane %v6742, 4
      %v6745 = vshll.u32 %v6679, 16
      %v6747 = vrot.slane %v6745, 5
      %v6748 = vsel %vm1154, %v6743, %v6747
      %v6750 = vshrl.u32 %v6680, 16
      %v6752 = vrot.slane %v6750, 4
      %v6753 = vshll.u32 %v6680, 16
      %v6755 = vrot.slane %v6753, 5
      %v6756 = vor.u32 %v6752, %v6755
      %v6757 = vrot.slane %v6756, 4
      %v6759 = vshll.u32 %v6681, 16
      %v6761 = vrot.slane %v6759, 5
      %v6762 = vsel %vm1154, %v6757, %v6761
      %v6763 = vshrl.u32 %v6681, 16
      %v6765 = vrot.slane %v6763, 4
      %v6766 = vor.u32 %v6765, %v6761
      %v6767 = vrot.slane %v6766, 4
      %v6769 = vshll.u32 %v6682, 16
      %v6771 = vrot.slane %v6769, 5
      %v6772 = vsel %vm1154, %v6767, %v6771
      %v6774 = vshrl.u32 %v6683, 16
      %v6776 = vrot.slane %v6774, 4
      %v6777 = vshll.u32 %v6683, 16
      %v6779 = vrot.slane %v6777, 5
      %v6780 = vor.u32 %v6776, %v6779
      %v6781 = vrot.slane %v6780, 4
      %v6783 = vshll.u32 %v6684, 16
      %v6785 = vrot.slane %v6783, 5
      %v6786 = vsel %vm1154, %v6781, %v6785
      %v6787 = vshrl.u32 %v6684, 16
      %v6789 = vrot.slane %v6787, 4
      %v6790 = vor.u32 %v6789, %v6785
      %v6791 = vrot.slane %v6790, 4
      %v6793 = vshll.u32 %v6685, 16
      %v6795 = vrot.slane %v6793, 5
      %v6796 = vsel %vm1154, %v6791, %v6795
      %v6798 = vshrl.u32 %v6686, 16
      %v6800 = vrot.slane %v6798, 4
      %v6801 = vshll.u32 %v6686, 16
      %v6803 = vrot.slane %v6801, 5
      %v6804 = vor.u32 %v6800, %v6803
      %v6805 = vrot.slane %v6804, 4
      %v6807 = vshll.u32 %v6687, 16
      %v6809 = vrot.slane %v6807, 5
      %v6810 = vsel %vm1154, %v6805, %v6809
      %v6811 = vshrl.u32 %v6687, 16
      %v6813 = vrot.slane %v6811, 4
      %v6814 = vor.u32 %v6813, %v6809
      %v6815 = vrot.slane %v6814, 4
      %v6817 = vshll.u32 %v6688, 16
      %v6819 = vrot.slane %v6817, 5
      %v6820 = vsel %vm1154, %v6815, %v6819
      %v6822 = vshrl.u32 %v6689, 16
      %v6824 = vrot.slane %v6822, 4
      %v6825 = vshll.u32 %v6689, 16
      %v6827 = vrot.slane %v6825, 5
      %v6828 = vor.u32 %v6824, %v6827
      %v6829 = vrot.slane %v6828, 4
      %v6831 = vshll.u32 %v6690, 16
      %v6833 = vrot.slane %v6831, 5
      %v6834 = vsel %vm1154, %v6829, %v6833
      %v6835 = vshrl.u32 %v6690, 16
      %v6837 = vrot.slane %v6835, 4
      %v6838 = vor.u32 %v6837, %v6833
      %v6839 = vrot.slane %v6838, 4
      %v6841 = vshll.u32 %v6691, 16
      %v6843 = vrot.slane %v6841, 5
      %v6844 = vsel %vm1154, %v6839, %v6843
      %v6846 = vshrl.u32 %v6692, 16
      %v6848 = vrot.slane %v6846, 4
      %v6849 = vshll.u32 %v6692, 16
      %v6851 = vrot.slane %v6849, 5
      %v6852 = vor.u32 %v6848, %v6851
      %v6853 = vrot.slane %v6852, 4
      %v6855 = vshll.u32 %v6693, 16
      %v6857 = vrot.slane %v6855, 5
      %v6858 = vsel %vm1154, %v6853, %v6857
      %v6859 = vshrl.u32 %v6693, 16
      %v6861 = vrot.slane %v6859, 4
      %v6862 = vor.u32 %v6861, %v6857
      %v6863 = vrot.slane %v6862, 4
      %v6865 = vshll.u32 %v6694, 16
      %v6867 = vrot.slane %v6865, 5
      %v6868 = vsel %vm1154, %v6863, %v6867
      %v6870 = vshrl.u32 %v6695, 16
      %v6872 = vrot.slane %v6870, 4
      %v6873 = vshll.u32 %v6695, 16
      %v6875 = vrot.slane %v6873, 5
      %v6876 = vor.u32 %v6872, %v6875
      %v6877 = vrot.slane %v6876, 4
      %v6879 = vshll.u32 %v6696, 16
      %v6881 = vrot.slane %v6879, 5
      %v6882 = vsel %vm1154, %v6877, %v6881
      %v6883 = vshrl.u32 %v6696, 16
      %v6885 = vrot.slane %v6883, 4
      %v6886 = vor.u32 %v6885, %v6881
      %v6887 = vrot.slane %v6886, 4
      %v6889 = vshll.u32 %v6697, 16
      %v6891 = vrot.slane %v6889, 5
      %v6892 = vsel %vm1154, %v6887, %v6891
      %v6894 = vshrl.u32 %v6698, 16
      %v6896 = vrot.slane %v6894, 4
      %v6897 = vshll.u32 %v6698, 16
      %v6899 = vrot.slane %v6897, 5
      %v6900 = vor.u32 %v6896, %v6899
      %v6901 = vrot.slane %v6900, 4
      %v6903 = vshll.u32 %v6699, 16
      %v6905 = vrot.slane %v6903, 5
      %v6906 = vsel %vm1154, %v6901, %v6905
      %v6907 = vshrl.u32 %v6699, 16
      %v6909 = vrot.slane %v6907, 4
      %v6910 = vor.u32 %v6909, %v6905
      %v6911 = vrot.slane %v6910, 4
      %v6913 = vshll.u32 %v6700, 16
      %v6915 = vrot.slane %v6913, 5
      %v6916 = vsel %vm1154, %v6911, %v6915
      %v6918 = vshrl.u32 %v6701, 16
      %v6920 = vrot.slane %v6918, 4
      %v6921 = vshll.u32 %v6701, 16
      %v6923 = vrot.slane %v6921, 5
      %v6924 = vor.u32 %v6920, %v6923
      %v6925 = vrot.slane %v6924, 4
      %v6927 = vshll.u32 %v6702, 16
      %v6929 = vrot.slane %v6927, 5
      %v6930 = vsel %vm1154, %v6925, %v6929
      %v6931 = vshrl.u32 %v6702, 16
      %v6933 = vrot.slane %v6931, 4
      %v6934 = vor.u32 %v6933, %v6929
      %v6935 = vrot.slane %v6934, 4
      %v6937 = vshll.u32 %v6703, 16
      %v6939 = vrot.slane %v6937, 5
      %v6940 = vsel %vm1154, %v6935, %v6939
      %v6942 = vshrl.u32 %v6704, 16
      %v6944 = vrot.slane %v6942, 4
      %v6945 = vshll.u32 %v6704, 16
      %v6947 = vrot.slane %v6945, 5
      %v6948 = vor.u32 %v6944, %v6947
      %v6949 = vrot.slane %v6948, 4
      %v6951 = vshll.u32 %v6705, 16
      %v6953 = vrot.slane %v6951, 5
      %v6954 = vsel %vm1154, %v6949, %v6953
      %v6955 = vshrl.u32 %v6705, 16
      %v6957 = vrot.slane %v6955, 4
      %v6958 = vor.u32 %v6957, %v6953
      %v6959 = vrot.slane %v6958, 4
      %v6961 = vshll.u32 %v6706, 16
      %v6963 = vrot.slane %v6961, 5
      %v6964 = vsel %vm1154, %v6959, %v6963
      %v6966 = vshrl.u32 %v6707, 16
      %v6968 = vrot.slane %v6966, 4
      %v6969 = vshll.u32 %v6707, 16
      %v6971 = vrot.slane %v6969, 5
      %v6972 = vor.u32 %v6968, %v6971
      %v6973 = vrot.slane %v6972, 4
      %v6975 = vshll.u32 %v6708, 16
      %v6977 = vrot.slane %v6975, 5
      %v6978 = vsel %vm1154, %v6973, %v6977
      %v6979 = vshrl.u32 %v6708, 16
      %v6981 = vrot.slane %v6979, 4
      %v6982 = vor.u32 %v6981, %v6977
      %v6983 = vrot.slane %v6982, 4
      %v6985 = vshll.u32 %v6709, 16
      %v6987 = vrot.slane %v6985, 5
      %v6988 = vsel %vm1154, %v6983, %v6987
      %v6990 = vshrl.u32 %v6710, 16
      %v6992 = vrot.slane %v6990, 4
      %v6993 = vshll.u32 %v6710, 16
      %v6995 = vrot.slane %v6993, 5
      %v6996 = vor.u32 %v6992, %v6995
      %v6997 = vrot.slane %v6996, 4
      %v6999 = vshll.u32 %v6711, 16
      %v7001 = vrot.slane %v6999, 5
      %v7002 = vsel %vm1154, %v6997, %v7001
      %v7003 = vshrl.u32 %v6711, 16
      %v7005 = vrot.slane %v7003, 4
      %v7006 = vor.u32 %v7005, %v7001
      %v7007 = vrot.slane %v7006, 4
      %v7009 = vshll.u32 %v6712, 16
      %v7011 = vrot.slane %v7009, 5
      %v7012 = vsel %vm1154, %v7007, %v7011
      %v7014 = vshrl.u32 %v6713, 16
      %v7016 = vrot.slane %v7014, 4
      %v7017 = vshll.u32 %v6713, 16
      %v7019 = vrot.slane %v7017, 5
      %v7020 = vor.u32 %v7016, %v7019
      %v7021 = vrot.slane %v7020, 4
      %v7023 = vshll.u32 %v6714, 16
      %v7025 = vrot.slane %v7023, 5
      %v7026 = vsel %vm1154, %v7021, %v7025
      %v7027 = vshrl.u32 %v6714, 16
      %v7029 = vrot.slane %v7027, 4
      %v7030 = vor.u32 %v7029, %v7025
      %v7031 = vrot.slane %v7030, 4
      %v7033 = vshll.u32 %v6715, 16
      %v7035 = vrot.slane %v7033, 5
      %v7036 = vsel %vm1154, %v7031, %v7035
      %v7038 = vshrl.u32 %v6716, 16
      %v7040 = vrot.slane %v7038, 4
      %v7041 = vshll.u32 %v6716, 16
      %v7043 = vrot.slane %v7041, 5
      %v7044 = vor.u32 %v7040, %v7043
      %v7045 = vrot.slane %v7044, 4
      %v7047 = vshll.u32 %v6717, 16
      %v7049 = vrot.slane %v7047, 5
      %v7050 = vsel %vm1154, %v7045, %v7049
      %v7051 = vshrl.u32 %v6717, 16
      %v7053 = vrot.slane %v7051, 4
      %v7054 = vor.u32 %v7053, %v7049
      %v7055 = vrot.slane %v7054, 4
      %v7057 = vshll.u32 %v6718, 16
      %v7059 = vrot.slane %v7057, 5
      %v7060 = vsel %vm1154, %v7055, %v7059
      %v7062 = vshrl.u32 %v6719, 16
      %v7064 = vrot.slane %v7062, 4
      %v7065 = vshll.u32 %v6719, 16
      %v7067 = vrot.slane %v7065, 5
      %v7068 = vor.u32 %v7064, %v7067
      %v7069 = vrot.slane %v7068, 4
      %v7071 = vshll.u32 %v6720, 16
      %v7073 = vrot.slane %v7071, 5
      %v7074 = vsel %vm1154, %v7069, %v7073
      %v7075 = vshrl.u32 %v6720, 16
      %v7077 = vrot.slane %v7075, 4
      %v7078 = vor.u32 %v7077, %v7073
      %v7079 = vrot.slane %v7078, 4
      %v7081 = vshll.u32 %v6721, 16
      %v7083 = vrot.slane %v7081, 5
      %v7084 = vsel %vm1154, %v7079, %v7083
      %v7086 = vshrl.u32 %v6722, 16
      %v7088 = vrot.slane %v7086, 4
      %v7089 = vshll.u32 %v6722, 16
      %v7091 = vrot.slane %v7089, 5
      %v7092 = vor.u32 %v7088, %v7091
      %v7093 = vrot.slane %v7092, 4
      %v7095 = vshll.u32 %v6723, 16
      %v7097 = vrot.slane %v7095, 5
      %v7098 = vsel %vm1154, %v7093, %v7097
      %v7099 = vshrl.u32 %v6723, 16
      %v7101 = vrot.slane %v7099, 4
      %v7102 = vor.u32 %v7101, %v7097
      %v7103 = vrot.slane %v7102, 4
      %v7105 = vshll.u32 %v6724, 16
      %v7107 = vrot.slane %v7105, 5
      %v7108 = vsel %vm1154, %v7103, %v7107
      %v7109 = vld [vmem:[#allocation3 + $0x4] sm:$0xe]
      %v7110 = vld [vmem:[#allocation3 + $0x1c] sm:$0xe]
      %v7111 = vld [vmem:[#allocation3 + $0x34] sm:$0xe]
      %v7112 = vld [vmem:[#allocation3 + $0x4c] sm:$0xe]
      %v7113 = vld [vmem:[#allocation3 + $0x64] sm:$0xe]
      %v7114 = vld [vmem:[#allocation3 + $0x7c] sm:$0xe]
      %v7115 = vld [vmem:[#allocation3 + $0x94] sm:$0xe]
      %v7116 = vld [vmem:[#allocation3 + $0xac] sm:$0xe]
      %v7117 = vld [vmem:[#allocation3 + $0xc4] sm:$0xe]
      %v7118 = vld [vmem:[#allocation3 + $0xdc] sm:$0xe]
      %v7119 = vld [vmem:[#allocation3 + $0xf4] sm:$0xe]
      %v7120 = vld [vmem:[#allocation3 + $0x10c] sm:$0xe]
      %v7121 = vld [vmem:[#allocation3 + $0x124] sm:$0xe]
      %v7122 = vld [vmem:[#allocation3 + $0x13c] sm:$0xe]
      %v7123 = vld [vmem:[#allocation3 + $0x154] sm:$0xe]
      %v7124 = vld [vmem:[#allocation3 + $0x16c] sm:$0xe]
      %v7173 = vrot.slane %v7109, 5
      %v7174 = vrot.slane %v7173, 4
      %v7175 = vrot.slane %v6678, 5
      %v7176 = vsel %vm1605, %v7174, %v7175
      %v7177 = vrot.slane %v7175, 4
      %v7178 = vrot.slane %v6679, 5
      %v7179 = vsel %vm1605, %v7177, %v7178
      %v7180 = vrot.slane %v7110, 5
      %v7181 = vrot.slane %v7180, 4
      %v7182 = vrot.slane %v6681, 5
      %v7183 = vsel %vm1605, %v7181, %v7182
      %v7184 = vrot.slane %v7182, 4
      %v7185 = vrot.slane %v6682, 5
      %v7186 = vsel %vm1605, %v7184, %v7185
      %v7187 = vrot.slane %v7111, 5
      %v7188 = vrot.slane %v7187, 4
      %v7189 = vrot.slane %v6684, 5
      %v7190 = vsel %vm1605, %v7188, %v7189
      %v7191 = vrot.slane %v7189, 4
      %v7192 = vrot.slane %v6685, 5
      %v7193 = vsel %vm1605, %v7191, %v7192
      %v7194 = vrot.slane %v7112, 5
      %v7195 = vrot.slane %v7194, 4
      %v7196 = vrot.slane %v6687, 5
      %v7197 = vsel %vm1605, %v7195, %v7196
      %v7198 = vrot.slane %v7196, 4
      %v7199 = vrot.slane %v6688, 5
      %v7200 = vsel %vm1605, %v7198, %v7199
      %v7201 = vrot.slane %v7113, 5
      %v7202 = vrot.slane %v7201, 4
      %v7203 = vrot.slane %v6690, 5
      %v7204 = vsel %vm1605, %v7202, %v7203
      %v7205 = vrot.slane %v7203, 4
      %v7206 = vrot.slane %v6691, 5
      %v7207 = vsel %vm1605, %v7205, %v7206
      %v7208 = vrot.slane %v7114, 5
      %v7209 = vrot.slane %v7208, 4
      %v7210 = vrot.slane %v6693, 5
      %v7211 = vsel %vm1605, %v7209, %v7210
      %v7212 = vrot.slane %v7210, 4
      %v7213 = vrot.slane %v6694, 5
      %v7214 = vsel %vm1605, %v7212, %v7213
      %v7215 = vrot.slane %v7115, 5
      %v7216 = vrot.slane %v7215, 4
      %v7217 = vrot.slane %v6696, 5
      %v7218 = vsel %vm1605, %v7216, %v7217
      %v7219 = vrot.slane %v7217, 4
      %v7220 = vrot.slane %v6697, 5
      %v7221 = vsel %vm1605, %v7219, %v7220
      %v7222 = vrot.slane %v7116, 5
      %v7223 = vrot.slane %v7222, 4
      %v7224 = vrot.slane %v6699, 5
      %v7225 = vsel %vm1605, %v7223, %v7224
      %v7226 = vrot.slane %v7224, 4
      %v7227 = vrot.slane %v6700, 5
      %v7228 = vsel %vm1605, %v7226, %v7227
      %v7229 = vrot.slane %v7117, 5
      %v7230 = vrot.slane %v7229, 4
      %v7231 = vrot.slane %v6702, 5
      %v7232 = vsel %vm1605, %v7230, %v7231
      %v7233 = vrot.slane %v7231, 4
      %v7234 = vrot.slane %v6703, 5
      %v7235 = vsel %vm1605, %v7233, %v7234
      %v7236 = vrot.slane %v7118, 5
      %v7237 = vrot.slane %v7236, 4
      %v7238 = vrot.slane %v6705, 5
      %v7239 = vsel %vm1605, %v7237, %v7238
      %v7240 = vrot.slane %v7238, 4
      %v7241 = vrot.slane %v6706, 5
      %v7242 = vsel %vm1605, %v7240, %v7241
      %v7243 = vrot.slane %v7119, 5
      %v7244 = vrot.slane %v7243, 4
      %v7245 = vrot.slane %v6708, 5
      %v7246 = vsel %vm1605, %v7244, %v7245
      %v7247 = vrot.slane %v7245, 4
      %v7248 = vrot.slane %v6709, 5
      %v7249 = vsel %vm1605, %v7247, %v7248
      %v7250 = vrot.slane %v7120, 5
      %v7251 = vrot.slane %v7250, 4
      %v7252 = vrot.slane %v6711, 5
      %v7253 = vsel %vm1605, %v7251, %v7252
      %v7254 = vrot.slane %v7252, 4
      %v7255 = vrot.slane %v6712, 5
      %v7256 = vsel %vm1605, %v7254, %v7255
      %v7257 = vrot.slane %v7121, 5
      %v7258 = vrot.slane %v7257, 4
      %v7259 = vrot.slane %v6714, 5
      %v7260 = vsel %vm1605, %v7258, %v7259
      %v7261 = vrot.slane %v7259, 4
      %v7262 = vrot.slane %v6715, 5
      %v7263 = vsel %vm1605, %v7261, %v7262
      %v7264 = vrot.slane %v7122, 5
      %v7265 = vrot.slane %v7264, 4
      %v7266 = vrot.slane %v6717, 5
      %v7267 = vsel %vm1605, %v7265, %v7266
      %v7268 = vrot.slane %v7266, 4
      %v7269 = vrot.slane %v6718, 5
      %v7270 = vsel %vm1605, %v7268, %v7269
      %v7271 = vrot.slane %v7123, 5
      %v7272 = vrot.slane %v7271, 4
      %v7273 = vrot.slane %v6720, 5
      %v7274 = vsel %vm1605, %v7272, %v7273
      %v7275 = vrot.slane %v7273, 4
      %v7276 = vrot.slane %v6721, 5
      %v7277 = vsel %vm1605, %v7275, %v7276
      %v7278 = vrot.slane %v7124, 5
      %v7279 = vrot.slane %v7278, 4
      %v7280 = vrot.slane %v6723, 5
      %v7281 = vsel %vm1605, %v7279, %v7280
      %v7282 = vrot.slane %v7280, 4
      %v7283 = vrot.slane %v6724, 5
      %v7284 = vsel %vm1605, %v7282, %v7283
      %v7285 = vld [vmem:[%s5951 + $0x4] sm:$0xf]
      %v7286 = vld [vmem:[%s5951 + $0xc] sm:$0xf]
      %v7287 = vld [vmem:[%s5951 + $0x14] sm:$0x1]
      %v7288 = vld [vmem:[%s5951 + $0x1c] sm:$0xf]
      %v7289 = vld [vmem:[%s5951 + $0x24] sm:$0xf]
      %v7290 = vld [vmem:[%s5951 + $0x2c] sm:$0x1]
      %v7291 = vld [vmem:[%s5951 + $0x34] sm:$0xf]
      %v7292 = vld [vmem:[%s5951 + $0x3c] sm:$0xf]
      %v7293 = vld [vmem:[%s5951 + $0x44] sm:$0x1]
      %v7294 = vld [vmem:[%s5951 + $0x4c] sm:$0xf]
      %v7295 = vld [vmem:[%s5951 + $0x54] sm:$0xf]
      %v7296 = vld [vmem:[%s5951 + $0x5c] sm:$0x1]
      %v7297 = vld [vmem:[%s5951 + $0x64] sm:$0xf]
      %v7298 = vld [vmem:[%s5951 + $0x6c] sm:$0xf]
      %v7299 = vld [vmem:[%s5951 + $0x74] sm:$0x1]
      %v7300 = vld [vmem:[%s5951 + $0x7c] sm:$0xf]
      %v7301 = vld [vmem:[%s5951 + $0x84] sm:$0xf]
      %v7302 = vld [vmem:[%s5951 + $0x8c] sm:$0x1]
      %v7303 = vld [vmem:[%s5951 + $0x94] sm:$0xf]
      %v7304 = vld [vmem:[%s5951 + $0x9c] sm:$0xf]
      %v7305 = vld [vmem:[%s5951 + $0xa4] sm:$0x1]
      %v7306 = vld [vmem:[%s5951 + $0xac] sm:$0xf]
      %v7307 = vld [vmem:[%s5951 + $0xb4] sm:$0xf]
      %v7308 = vld [vmem:[%s5951 + $0xbc] sm:$0x1]
      %v7309 = vld [vmem:[%s5951 + $0xc4] sm:$0xf]
      %v7310 = vld [vmem:[%s5951 + $0xcc] sm:$0xf]
      %v7311 = vld [vmem:[%s5951 + $0xd4] sm:$0x1]
      %v7312 = vld [vmem:[%s5951 + $0xdc] sm:$0xf]
      %v7313 = vld [vmem:[%s5951 + $0xe4] sm:$0xf]
      %v7314 = vld [vmem:[%s5951 + $0xec] sm:$0x1]
      %v7315 = vld [vmem:[%s5951 + $0xf4] sm:$0xf]
      %v7316 = vld [vmem:[%s5951 + $0xfc] sm:$0xf]
      %v7317 = vld [vmem:[%s5951 + $0x104] sm:$0x1]
      %v7318 = vld [vmem:[%s5951 + $0x10c] sm:$0xf]
      %v7319 = vld [vmem:[%s5951 + $0x114] sm:$0xf]
      %v7320 = vld [vmem:[%s5951 + $0x11c] sm:$0x1]
      %v7321 = vld [vmem:[%s5951 + $0x124] sm:$0xf]
      %v7322 = vld [vmem:[%s5951 + $0x12c] sm:$0xf]
      %v7323 = vld [vmem:[%s5951 + $0x134] sm:$0x1]
      %v7324 = vld [vmem:[%s5951 + $0x13c] sm:$0xf]
      %v7325 = vld [vmem:[%s5951 + $0x144] sm:$0xf]
      %v7326 = vld [vmem:[%s5951 + $0x14c] sm:$0x1]
      %v7327 = vld [vmem:[%s5951 + $0x154] sm:$0xf]
      %v7328 = vld [vmem:[%s5951 + $0x15c] sm:$0xf]
      %v7329 = vld [vmem:[%s5951 + $0x164] sm:$0x1]
      %v7330 = vld [vmem:[%s5951 + $0x16c] sm:$0xf]
      %v7331 = vld [vmem:[%s5951 + $0x174] sm:$0xf]
      %v7332 = vld [vmem:[%s5951 + $0x17c] sm:$0x1]
      %v7334 = vshrl.u32 %v7285, 16
      %v7336 = vrot.slane %v7334, 4
      %v7337 = vshll.u32 %v7285, 16
      %v7339 = vrot.slane %v7337, 5
      %v7340 = vor.u32 %v7336, %v7339
      %v7341 = vrot.slane %v7340, 4
      %v7343 = vshll.u32 %v7286, 16
      %v7345 = vrot.slane %v7343, 5
      %v7346 = vsel %vm1154, %v7341, %v7345
      %v7347 = vshrl.u32 %v7286, 16
      %v7349 = vrot.slane %v7347, 4
      %v7350 = vor.u32 %v7349, %v7345
      %v7351 = vrot.slane %v7350, 4
      %v7353 = vshll.u32 %v7287, 16
      %v7355 = vrot.slane %v7353, 5
      %v7356 = vsel %vm1154, %v7351, %v7355
      %v7358 = vshrl.u32 %v7288, 16
      %v7360 = vrot.slane %v7358, 4
      %v7361 = vshll.u32 %v7288, 16
      %v7363 = vrot.slane %v7361, 5
      %v7364 = vor.u32 %v7360, %v7363
      %v7365 = vrot.slane %v7364, 4
      %v7367 = vshll.u32 %v7289, 16
      %v7369 = vrot.slane %v7367, 5
      %v7370 = vsel %vm1154, %v7365, %v7369
      %v7371 = vshrl.u32 %v7289, 16
      %v7373 = vrot.slane %v7371, 4
      %v7374 = vor.u32 %v7373, %v7369
      %v7375 = vrot.slane %v7374, 4
      %v7377 = vshll.u32 %v7290, 16
      %v7379 = vrot.slane %v7377, 5
      %v7380 = vsel %vm1154, %v7375, %v7379
      %v7382 = vshrl.u32 %v7291, 16
      %v7384 = vrot.slane %v7382, 4
      %v7385 = vshll.u32 %v7291, 16
      %v7387 = vrot.slane %v7385, 5
      %v7388 = vor.u32 %v7384, %v7387
      %v7389 = vrot.slane %v7388, 4
      %v7391 = vshll.u32 %v7292, 16
      %v7393 = vrot.slane %v7391, 5
      %v7394 = vsel %vm1154, %v7389, %v7393
      %v7395 = vshrl.u32 %v7292, 16
      %v7397 = vrot.slane %v7395, 4
      %v7398 = vor.u32 %v7397, %v7393
      %v7399 = vrot.slane %v7398, 4
      %v7401 = vshll.u32 %v7293, 16
      %v7403 = vrot.slane %v7401, 5
      %v7404 = vsel %vm1154, %v7399, %v7403
      %v7406 = vshrl.u32 %v7294, 16
      %v7408 = vrot.slane %v7406, 4
      %v7409 = vshll.u32 %v7294, 16
      %v7411 = vrot.slane %v7409, 5
      %v7412 = vor.u32 %v7408, %v7411
      %v7413 = vrot.slane %v7412, 4
      %v7415 = vshll.u32 %v7295, 16
      %v7417 = vrot.slane %v7415, 5
      %v7418 = vsel %vm1154, %v7413, %v7417
      %v7419 = vshrl.u32 %v7295, 16
      %v7421 = vrot.slane %v7419, 4
      %v7422 = vor.u32 %v7421, %v7417
      %v7423 = vrot.slane %v7422, 4
      %v7425 = vshll.u32 %v7296, 16
      %v7427 = vrot.slane %v7425, 5
      %v7428 = vsel %vm1154, %v7423, %v7427
      %v7430 = vshrl.u32 %v7297, 16
      %v7432 = vrot.slane %v7430, 4
      %v7433 = vshll.u32 %v7297, 16
      %v7435 = vrot.slane %v7433, 5
      %v7436 = vor.u32 %v7432, %v7435
      %v7437 = vrot.slane %v7436, 4
      %v7439 = vshll.u32 %v7298, 16
      %v7441 = vrot.slane %v7439, 5
      %v7442 = vsel %vm1154, %v7437, %v7441
      %v7443 = vshrl.u32 %v7298, 16
      %v7445 = vrot.slane %v7443, 4
      %v7446 = vor.u32 %v7445, %v7441
      %v7447 = vrot.slane %v7446, 4
      %v7449 = vshll.u32 %v7299, 16
      %v7451 = vrot.slane %v7449, 5
      %v7452 = vsel %vm1154, %v7447, %v7451
      %v7454 = vshrl.u32 %v7300, 16
      %v7456 = vrot.slane %v7454, 4
      %v7457 = vshll.u32 %v7300, 16
      %v7459 = vrot.slane %v7457, 5
      %v7460 = vor.u32 %v7456, %v7459
      %v7461 = vrot.slane %v7460, 4
      %v7463 = vshll.u32 %v7301, 16
      %v7465 = vrot.slane %v7463, 5
      %v7466 = vsel %vm1154, %v7461, %v7465
      %v7467 = vshrl.u32 %v7301, 16
      %v7469 = vrot.slane %v7467, 4
      %v7470 = vor.u32 %v7469, %v7465
      %v7471 = vrot.slane %v7470, 4
      %v7473 = vshll.u32 %v7302, 16
      %v7475 = vrot.slane %v7473, 5
      %v7476 = vsel %vm1154, %v7471, %v7475
      %v7478 = vshrl.u32 %v7303, 16
      %v7480 = vrot.slane %v7478, 4
      %v7481 = vshll.u32 %v7303, 16
      %v7483 = vrot.slane %v7481, 5
      %v7484 = vor.u32 %v7480, %v7483
      %v7485 = vrot.slane %v7484, 4
      %v7487 = vshll.u32 %v7304, 16
      %v7489 = vrot.slane %v7487, 5
      %v7490 = vsel %vm1154, %v7485, %v7489
      %v7491 = vshrl.u32 %v7304, 16
      %v7493 = vrot.slane %v7491, 4
      %v7494 = vor.u32 %v7493, %v7489
      %v7495 = vrot.slane %v7494, 4
      %v7497 = vshll.u32 %v7305, 16
      %v7499 = vrot.slane %v7497, 5
      %v7500 = vsel %vm1154, %v7495, %v7499
      %v7502 = vshrl.u32 %v7306, 16
      %v7504 = vrot.slane %v7502, 4
      %v7505 = vshll.u32 %v7306, 16
      %v7507 = vrot.slane %v7505, 5
      %v7508 = vor.u32 %v7504, %v7507
      %v7509 = vrot.slane %v7508, 4
      %v7511 = vshll.u32 %v7307, 16
      %v7513 = vrot.slane %v7511, 5
      %v7514 = vsel %vm1154, %v7509, %v7513
      %v7515 = vshrl.u32 %v7307, 16
      %v7517 = vrot.slane %v7515, 4
      %v7518 = vor.u32 %v7517, %v7513
      %v7519 = vrot.slane %v7518, 4
      %v7521 = vshll.u32 %v7308, 16
      %v7523 = vrot.slane %v7521, 5
      %v7524 = vsel %vm1154, %v7519, %v7523
      %v7526 = vshrl.u32 %v7309, 16
      %v7528 = vrot.slane %v7526, 4
      %v7529 = vshll.u32 %v7309, 16
      %v7531 = vrot.slane %v7529, 5
      %v7532 = vor.u32 %v7528, %v7531
      %v7533 = vrot.slane %v7532, 4
      %v7535 = vshll.u32 %v7310, 16
      %v7537 = vrot.slane %v7535, 5
      %v7538 = vsel %vm1154, %v7533, %v7537
      %v7539 = vshrl.u32 %v7310, 16
      %v7541 = vrot.slane %v7539, 4
      %v7542 = vor.u32 %v7541, %v7537
      %v7543 = vrot.slane %v7542, 4
      %v7545 = vshll.u32 %v7311, 16
      %v7547 = vrot.slane %v7545, 5
      %v7548 = vsel %vm1154, %v7543, %v7547
      %v7550 = vshrl.u32 %v7312, 16
      %v7552 = vrot.slane %v7550, 4
      %v7553 = vshll.u32 %v7312, 16
      %v7555 = vrot.slane %v7553, 5
      %v7556 = vor.u32 %v7552, %v7555
      %v7557 = vrot.slane %v7556, 4
      %v7559 = vshll.u32 %v7313, 16
      %v7561 = vrot.slane %v7559, 5
      %v7562 = vsel %vm1154, %v7557, %v7561
      %v7563 = vshrl.u32 %v7313, 16
      %v7565 = vrot.slane %v7563, 4
      %v7566 = vor.u32 %v7565, %v7561
      %v7567 = vrot.slane %v7566, 4
      %v7569 = vshll.u32 %v7314, 16
      %v7571 = vrot.slane %v7569, 5
      %v7572 = vsel %vm1154, %v7567, %v7571
      %v7574 = vshrl.u32 %v7315, 16
      %v7576 = vrot.slane %v7574, 4
      %v7577 = vshll.u32 %v7315, 16
      %v7579 = vrot.slane %v7577, 5
      %v7580 = vor.u32 %v7576, %v7579
      %v7581 = vrot.slane %v7580, 4
      %v7583 = vshll.u32 %v7316, 16
      %v7585 = vrot.slane %v7583, 5
      %v7586 = vsel %vm1154, %v7581, %v7585
      %v7587 = vshrl.u32 %v7316, 16
      %v7589 = vrot.slane %v7587, 4
      %v7590 = vor.u32 %v7589, %v7585
      %v7591 = vrot.slane %v7590, 4
      %v7593 = vshll.u32 %v7317, 16
      %v7595 = vrot.slane %v7593, 5
      %v7596 = vsel %vm1154, %v7591, %v7595
      %v7598 = vshrl.u32 %v7318, 16
      %v7600 = vrot.slane %v7598, 4
      %v7601 = vshll.u32 %v7318, 16
      %v7603 = vrot.slane %v7601, 5
      %v7604 = vor.u32 %v7600, %v7603
      %v7605 = vrot.slane %v7604, 4
      %v7607 = vshll.u32 %v7319, 16
      %v7609 = vrot.slane %v7607, 5
      %v7610 = vsel %vm1154, %v7605, %v7609
      %v7611 = vshrl.u32 %v7319, 16
      %v7613 = vrot.slane %v7611, 4
      %v7614 = vor.u32 %v7613, %v7609
      %v7615 = vrot.slane %v7614, 4
      %v7617 = vshll.u32 %v7320, 16
      %v7619 = vrot.slane %v7617, 5
      %v7620 = vsel %vm1154, %v7615, %v7619
      %v7622 = vshrl.u32 %v7321, 16
      %v7624 = vrot.slane %v7622, 4
      %v7625 = vshll.u32 %v7321, 16
      %v7627 = vrot.slane %v7625, 5
      %v7628 = vor.u32 %v7624, %v7627
      %v7629 = vrot.slane %v7628, 4
      %v7631 = vshll.u32 %v7322, 16
      %v7633 = vrot.slane %v7631, 5
      %v7634 = vsel %vm1154, %v7629, %v7633
      %v7635 = vshrl.u32 %v7322, 16
      %v7637 = vrot.slane %v7635, 4
      %v7638 = vor.u32 %v7637, %v7633
      %v7639 = vrot.slane %v7638, 4
      %v7641 = vshll.u32 %v7323, 16
      %v7643 = vrot.slane %v7641, 5
      %v7644 = vsel %vm1154, %v7639, %v7643
      %v7646 = vshrl.u32 %v7324, 16
      %v7648 = vrot.slane %v7646, 4
      %v7649 = vshll.u32 %v7324, 16
      %v7651 = vrot.slane %v7649, 5
      %v7652 = vor.u32 %v7648, %v7651
      %v7653 = vrot.slane %v7652, 4
      %v7655 = vshll.u32 %v7325, 16
      %v7657 = vrot.slane %v7655, 5
      %v7658 = vsel %vm1154, %v7653, %v7657
      %v7659 = vshrl.u32 %v7325, 16
      %v7661 = vrot.slane %v7659, 4
      %v7662 = vor.u32 %v7661, %v7657
      %v7663 = vrot.slane %v7662, 4
      %v7665 = vshll.u32 %v7326, 16
      %v7667 = vrot.slane %v7665, 5
      %v7668 = vsel %vm1154, %v7663, %v7667
      %v7670 = vshrl.u32 %v7327, 16
      %v7672 = vrot.slane %v7670, 4
      %v7673 = vshll.u32 %v7327, 16
      %v7675 = vrot.slane %v7673, 5
      %v7676 = vor.u32 %v7672, %v7675
      %v7677 = vrot.slane %v7676, 4
      %v7679 = vshll.u32 %v7328, 16
      %v7681 = vrot.slane %v7679, 5
      %v7682 = vsel %vm1154, %v7677, %v7681
      %v7683 = vshrl.u32 %v7328, 16
      %v7685 = vrot.slane %v7683, 4
      %v7686 = vor.u32 %v7685, %v7681
      %v7687 = vrot.slane %v7686, 4
      %v7689 = vshll.u32 %v7329, 16
      %v7691 = vrot.slane %v7689, 5
      %v7692 = vsel %vm1154, %v7687, %v7691
      %v7694 = vshrl.u32 %v7330, 16
      %v7696 = vrot.slane %v7694, 4
      %v7697 = vshll.u32 %v7330, 16
      %v7699 = vrot.slane %v7697, 5
      %v7700 = vor.u32 %v7696, %v7699
      %v7701 = vrot.slane %v7700, 4
      %v7703 = vshll.u32 %v7331, 16
      %v7705 = vrot.slane %v7703, 5
      %v7706 = vsel %vm1154, %v7701, %v7705
      %v7707 = vshrl.u32 %v7331, 16
      %v7709 = vrot.slane %v7707, 4
      %v7710 = vor.u32 %v7709, %v7705
      %v7711 = vrot.slane %v7710, 4
      %v7713 = vshll.u32 %v7332, 16
      %v7715 = vrot.slane %v7713, 5
      %v7716 = vsel %vm1154, %v7711, %v7715
      %v7717 = vld [vmem:[%s5951 + $0x4] sm:$0xe]
      %v7718 = vld [vmem:[%s5951 + $0x1c] sm:$0xe]
      %v7719 = vld [vmem:[%s5951 + $0x34] sm:$0xe]
      %v7720 = vld [vmem:[%s5951 + $0x4c] sm:$0xe]
      %v7721 = vld [vmem:[%s5951 + $0x64] sm:$0xe]
      %v7722 = vld [vmem:[%s5951 + $0x7c] sm:$0xe]
      %v7723 = vld [vmem:[%s5951 + $0x94] sm:$0xe]
      %v7724 = vld [vmem:[%s5951 + $0xac] sm:$0xe]
      %v7725 = vld [vmem:[%s5951 + $0xc4] sm:$0xe]
      %v7726 = vld [vmem:[%s5951 + $0xdc] sm:$0xe]
      %v7727 = vld [vmem:[%s5951 + $0xf4] sm:$0xe]
      %v7728 = vld [vmem:[%s5951 + $0x10c] sm:$0xe]
      %v7729 = vld [vmem:[%s5951 + $0x124] sm:$0xe]
      %v7730 = vld [vmem:[%s5951 + $0x13c] sm:$0xe]
      %v7731 = vld [vmem:[%s5951 + $0x154] sm:$0xe]
      %v7732 = vld [vmem:[%s5951 + $0x16c] sm:$0xe]
      %v7781 = vrot.slane %v7717, 5
      %v7782 = vrot.slane %v7781, 4
      %v7783 = vrot.slane %v7286, 5
      %v7784 = vsel %vm1605, %v7782, %v7783
      %v7785 = vrot.slane %v7783, 4
      %v7786 = vrot.slane %v7287, 5
      %v7787 = vsel %vm1605, %v7785, %v7786
      %v7788 = vrot.slane %v7718, 5
      %v7789 = vrot.slane %v7788, 4
      %v7790 = vrot.slane %v7289, 5
      %v7791 = vsel %vm1605, %v7789, %v7790
      %v7792 = vrot.slane %v7790, 4
      %v7793 = vrot.slane %v7290, 5
      %v7794 = vsel %vm1605, %v7792, %v7793
      %v7795 = vrot.slane %v7719, 5
      %v7796 = vrot.slane %v7795, 4
      %v7797 = vrot.slane %v7292, 5
      %v7798 = vsel %vm1605, %v7796, %v7797
      %v7799 = vrot.slane %v7797, 4
      %v7800 = vrot.slane %v7293, 5
      %v7801 = vsel %vm1605, %v7799, %v7800
      %v7802 = vrot.slane %v7720, 5
      %v7803 = vrot.slane %v7802, 4
      %v7804 = vrot.slane %v7295, 5
      %v7805 = vsel %vm1605, %v7803, %v7804
      %v7806 = vrot.slane %v7804, 4
      %v7807 = vrot.slane %v7296, 5
      %v7808 = vsel %vm1605, %v7806, %v7807
      %v7809 = vrot.slane %v7721, 5
      %v7810 = vrot.slane %v7809, 4
      %v7811 = vrot.slane %v7298, 5
      %v7812 = vsel %vm1605, %v7810, %v7811
      %v7813 = vrot.slane %v7811, 4
      %v7814 = vrot.slane %v7299, 5
      %v7815 = vsel %vm1605, %v7813, %v7814
      %v7816 = vrot.slane %v7722, 5
      %v7817 = vrot.slane %v7816, 4
      %v7818 = vrot.slane %v7301, 5
      %v7819 = vsel %vm1605, %v7817, %v7818
      %v7820 = vrot.slane %v7818, 4
      %v7821 = vrot.slane %v7302, 5
      %v7822 = vsel %vm1605, %v7820, %v7821
      %v7823 = vrot.slane %v7723, 5
      %v7824 = vrot.slane %v7823, 4
      %v7825 = vrot.slane %v7304, 5
      %v7826 = vsel %vm1605, %v7824, %v7825
      %v7827 = vrot.slane %v7825, 4
      %v7828 = vrot.slane %v7305, 5
      %v7829 = vsel %vm1605, %v7827, %v7828
      %v7830 = vrot.slane %v7724, 5
      %v7831 = vrot.slane %v7830, 4
      %v7832 = vrot.slane %v7307, 5
      %v7833 = vsel %vm1605, %v7831, %v7832
      %v7834 = vrot.slane %v7832, 4
      %v7835 = vrot.slane %v7308, 5
      %v7836 = vsel %vm1605, %v7834, %v7835
      %v7837 = vrot.slane %v7725, 5
      %v7838 = vrot.slane %v7837, 4
      %v7839 = vrot.slane %v7310, 5
      %v7840 = vsel %vm1605, %v7838, %v7839
      %v7841 = vrot.slane %v7839, 4
      %v7842 = vrot.slane %v7311, 5
      %v7843 = vsel %vm1605, %v7841, %v7842
      %v7844 = vrot.slane %v7726, 5
      %v7845 = vrot.slane %v7844, 4
      %v7846 = vrot.slane %v7313, 5
      %v7847 = vsel %vm1605, %v7845, %v7846
      %v7848 = vrot.slane %v7846, 4
      %v7849 = vrot.slane %v7314, 5
      %v7850 = vsel %vm1605, %v7848, %v7849
      %v7851 = vrot.slane %v7727, 5
      %v7852 = vrot.slane %v7851, 4
      %v7853 = vrot.slane %v7316, 5
      %v7854 = vsel %vm1605, %v7852, %v7853
      %v7855 = vrot.slane %v7853, 4
      %v7856 = vrot.slane %v7317, 5
      %v7857 = vsel %vm1605, %v7855, %v7856
      %v7858 = vrot.slane %v7728, 5
      %v7859 = vrot.slane %v7858, 4
      %v7860 = vrot.slane %v7319, 5
      %v7861 = vsel %vm1605, %v7859, %v7860
      %v7862 = vrot.slane %v7860, 4
      %v7863 = vrot.slane %v7320, 5
      %v7864 = vsel %vm1605, %v7862, %v7863
      %v7865 = vrot.slane %v7729, 5
      %v7866 = vrot.slane %v7865, 4
      %v7867 = vrot.slane %v7322, 5
      %v7868 = vsel %vm1605, %v7866, %v7867
      %v7869 = vrot.slane %v7867, 4
      %v7870 = vrot.slane %v7323, 5
      %v7871 = vsel %vm1605, %v7869, %v7870
      %v7872 = vrot.slane %v7730, 5
      %v7873 = vrot.slane %v7872, 4
      %v7874 = vrot.slane %v7325, 5
      %v7875 = vsel %vm1605, %v7873, %v7874
      %v7876 = vrot.slane %v7874, 4
      %v7877 = vrot.slane %v7326, 5
      %v7878 = vsel %vm1605, %v7876, %v7877
      %v7879 = vrot.slane %v7731, 5
      %v7880 = vrot.slane %v7879, 4
      %v7881 = vrot.slane %v7328, 5
      %v7882 = vsel %vm1605, %v7880, %v7881
      %v7883 = vrot.slane %v7881, 4
      %v7884 = vrot.slane %v7329, 5
      %v7885 = vsel %vm1605, %v7883, %v7884
      %v7886 = vrot.slane %v7732, 5
      %v7887 = vrot.slane %v7886, 4
      %v7888 = vrot.slane %v7331, 5
      %v7889 = vsel %vm1605, %v7887, %v7888
      %v7890 = vrot.slane %v7888, 4
      %v7891 = vrot.slane %v7332, 5
      %v7892 = vsel %vm1605, %v7890, %v7891
      %s7893 = scalar_lea.vmem [#allocation3], 48
      %v7894 = vld [vmem:[%s7893] sm:$0xf]
      %v7895 = vld [vmem:[%s7893 + $0x8] sm:$0xf]
      %v7896 = vld [vmem:[%s7893 + $0x10] sm:$0x1]
      %v7897 = vld [vmem:[%s7893 + $0x18] sm:$0xf]
      %v7898 = vld [vmem:[%s7893 + $0x20] sm:$0xf]
      %v7899 = vld [vmem:[%s7893 + $0x28] sm:$0x1]
      %v7900 = vld [vmem:[%s7893 + $0x30] sm:$0xf]
      %v7901 = vld [vmem:[%s7893 + $0x38] sm:$0xf]
      %v7902 = vld [vmem:[%s7893 + $0x40] sm:$0x1]
      %v7903 = vld [vmem:[%s7893 + $0x48] sm:$0xf]
      %v7904 = vld [vmem:[%s7893 + $0x50] sm:$0xf]
      %v7905 = vld [vmem:[%s7893 + $0x58] sm:$0x1]
      %v7906 = vld [vmem:[%s7893 + $0x60] sm:$0xf]
      %v7907 = vld [vmem:[%s7893 + $0x68] sm:$0xf]
      %v7908 = vld [vmem:[%s7893 + $0x70] sm:$0x1]
      %v7909 = vld [vmem:[%s7893 + $0x78] sm:$0xf]
      %v7910 = vld [vmem:[%s7893 + $0x80] sm:$0xf]
      %v7911 = vld [vmem:[%s7893 + $0x88] sm:$0x1]
      %v7912 = vld [vmem:[%s7893 + $0x90] sm:$0xf]
      %v7913 = vld [vmem:[%s7893 + $0x98] sm:$0xf]
      %v7914 = vld [vmem:[%s7893 + $0xa0] sm:$0x1]
      %v7915 = vld [vmem:[%s7893 + $0xa8] sm:$0xf]
      %v7916 = vld [vmem:[%s7893 + $0xb0] sm:$0xf]
      %v7917 = vld [vmem:[%s7893 + $0xb8] sm:$0x1]
      %v7918 = vld [vmem:[%s7893 + $0xc0] sm:$0xf]
      %v7919 = vld [vmem:[%s7893 + $0xc8] sm:$0xf]
      %v7920 = vld [vmem:[%s7893 + $0xd0] sm:$0x1]
      %v7921 = vld [vmem:[%s7893 + $0xd8] sm:$0xf]
      %v7922 = vld [vmem:[%s7893 + $0xe0] sm:$0xf]
      %v7923 = vld [vmem:[%s7893 + $0xe8] sm:$0x1]
      %v7924 = vld [vmem:[%s7893 + $0xf0] sm:$0xf]
      %v7925 = vld [vmem:[%s7893 + $0xf8] sm:$0xf]
      %v7926 = vld [vmem:[%s7893 + $0x100] sm:$0x1]
      %v7927 = vld [vmem:[%s7893 + $0x108] sm:$0xf]
      %v7928 = vld [vmem:[%s7893 + $0x110] sm:$0xf]
      %v7929 = vld [vmem:[%s7893 + $0x118] sm:$0x1]
      %v7930 = vld [vmem:[%s7893 + $0x120] sm:$0xf]
      %v7931 = vld [vmem:[%s7893 + $0x128] sm:$0xf]
      %v7932 = vld [vmem:[%s7893 + $0x130] sm:$0x1]
      %v7933 = vld [vmem:[%s7893 + $0x138] sm:$0xf]
      %v7934 = vld [vmem:[%s7893 + $0x140] sm:$0xf]
      %v7935 = vld [vmem:[%s7893 + $0x148] sm:$0x1]
      %v7936 = vld [vmem:[%s7893 + $0x150] sm:$0xf]
      %v7937 = vld [vmem:[%s7893 + $0x158] sm:$0xf]
      %v7938 = vld [vmem:[%s7893 + $0x160] sm:$0x1]
      %v7939 = vld [vmem:[%s7893 + $0x168] sm:$0xf]
      %v7940 = vld [vmem:[%s7893 + $0x170] sm:$0xf]
      %v7941 = vld [vmem:[%s7893 + $0x178] sm:$0x1]
      %v7943 = vshrl.u32 %v7894, 16
      %v7945 = vrot.slane %v7943, 4
      %v7946 = vshll.u32 %v7894, 16
      %v7948 = vrot.slane %v7946, 5
      %v7949 = vor.u32 %v7945, %v7948
      %v7950 = vrot.slane %v7949, 4
      %v7952 = vshll.u32 %v7895, 16
      %v7954 = vrot.slane %v7952, 5
      %v7955 = vsel %vm1154, %v7950, %v7954
      %v7956 = vshrl.u32 %v7895, 16
      %v7958 = vrot.slane %v7956, 4
      %v7959 = vor.u32 %v7958, %v7954
      %v7960 = vrot.slane %v7959, 4
      %v7962 = vshll.u32 %v7896, 16
      %v7964 = vrot.slane %v7962, 5
      %v7965 = vsel %vm1154, %v7960, %v7964
      %v7967 = vshrl.u32 %v7897, 16
      %v7969 = vrot.slane %v7967, 4
      %v7970 = vshll.u32 %v7897, 16
      %v7972 = vrot.slane %v7970, 5
      %v7973 = vor.u32 %v7969, %v7972
      %v7974 = vrot.slane %v7973, 4
      %v7976 = vshll.u32 %v7898, 16
      %v7978 = vrot.slane %v7976, 5
      %v7979 = vsel %vm1154, %v7974, %v7978
      %v7980 = vshrl.u32 %v7898, 16
      %v7982 = vrot.slane %v7980, 4
      %v7983 = vor.u32 %v7982, %v7978
      %v7984 = vrot.slane %v7983, 4
      %v7986 = vshll.u32 %v7899, 16
      %v7988 = vrot.slane %v7986, 5
      %v7989 = vsel %vm1154, %v7984, %v7988
      %v7991 = vshrl.u32 %v7900, 16
      %v7993 = vrot.slane %v7991, 4
      %v7994 = vshll.u32 %v7900, 16
      %v7996 = vrot.slane %v7994, 5
      %v7997 = vor.u32 %v7993, %v7996
      %v7998 = vrot.slane %v7997, 4
      %v8000 = vshll.u32 %v7901, 16
      %v8002 = vrot.slane %v8000, 5
      %v8003 = vsel %vm1154, %v7998, %v8002
      %v8004 = vshrl.u32 %v7901, 16
      %v8006 = vrot.slane %v8004, 4
      %v8007 = vor.u32 %v8006, %v8002
      %v8008 = vrot.slane %v8007, 4
      %v8010 = vshll.u32 %v7902, 16
      %v8012 = vrot.slane %v8010, 5
      %v8013 = vsel %vm1154, %v8008, %v8012
      %v8015 = vshrl.u32 %v7903, 16
      %v8017 = vrot.slane %v8015, 4
      %v8018 = vshll.u32 %v7903, 16
      %v8020 = vrot.slane %v8018, 5
      %v8021 = vor.u32 %v8017, %v8020
      %v8022 = vrot.slane %v8021, 4
      %v8024 = vshll.u32 %v7904, 16
      %v8026 = vrot.slane %v8024, 5
      %v8027 = vsel %vm1154, %v8022, %v8026
      %v8028 = vshrl.u32 %v7904, 16
      %v8030 = vrot.slane %v8028, 4
      %v8031 = vor.u32 %v8030, %v8026
      %v8032 = vrot.slane %v8031, 4
      %v8034 = vshll.u32 %v7905, 16
      %v8036 = vrot.slane %v8034, 5
      %v8037 = vsel %vm1154, %v8032, %v8036
      %v8039 = vshrl.u32 %v7906, 16
      %v8041 = vrot.slane %v8039, 4
      %v8042 = vshll.u32 %v7906, 16
      %v8044 = vrot.slane %v8042, 5
      %v8045 = vor.u32 %v8041, %v8044
      %v8046 = vrot.slane %v8045, 4
      %v8048 = vshll.u32 %v7907, 16
      %v8050 = vrot.slane %v8048, 5
      %v8051 = vsel %vm1154, %v8046, %v8050
      %v8052 = vshrl.u32 %v7907, 16
      %v8054 = vrot.slane %v8052, 4
      %v8055 = vor.u32 %v8054, %v8050
      %v8056 = vrot.slane %v8055, 4
      %v8058 = vshll.u32 %v7908, 16
      %v8060 = vrot.slane %v8058, 5
      %v8061 = vsel %vm1154, %v8056, %v8060
      %v8063 = vshrl.u32 %v7909, 16
      %v8065 = vrot.slane %v8063, 4
      %v8066 = vshll.u32 %v7909, 16
      %v8068 = vrot.slane %v8066, 5
      %v8069 = vor.u32 %v8065, %v8068
      %v8070 = vrot.slane %v8069, 4
      %v8072 = vshll.u32 %v7910, 16
      %v8074 = vrot.slane %v8072, 5
      %v8075 = vsel %vm1154, %v8070, %v8074
      %v8076 = vshrl.u32 %v7910, 16
      %v8078 = vrot.slane %v8076, 4
      %v8079 = vor.u32 %v8078, %v8074
      %v8080 = vrot.slane %v8079, 4
      %v8082 = vshll.u32 %v7911, 16
      %v8084 = vrot.slane %v8082, 5
      %v8085 = vsel %vm1154, %v8080, %v8084
      %v8087 = vshrl.u32 %v7912, 16
      %v8089 = vrot.slane %v8087, 4
      %v8090 = vshll.u32 %v7912, 16
      %v8092 = vrot.slane %v8090, 5
      %v8093 = vor.u32 %v8089, %v8092
      %v8094 = vrot.slane %v8093, 4
      %v8096 = vshll.u32 %v7913, 16
      %v8098 = vrot.slane %v8096, 5
      %v8099 = vsel %vm1154, %v8094, %v8098
      %v8100 = vshrl.u32 %v7913, 16
      %v8102 = vrot.slane %v8100, 4
      %v8103 = vor.u32 %v8102, %v8098
      %v8104 = vrot.slane %v8103, 4
      %v8106 = vshll.u32 %v7914, 16
      %v8108 = vrot.slane %v8106, 5
      %v8109 = vsel %vm1154, %v8104, %v8108
      %v8111 = vshrl.u32 %v7915, 16
      %v8113 = vrot.slane %v8111, 4
      %v8114 = vshll.u32 %v7915, 16
      %v8116 = vrot.slane %v8114, 5
      %v8117 = vor.u32 %v8113, %v8116
      %v8118 = vrot.slane %v8117, 4
      %v8120 = vshll.u32 %v7916, 16
      %v8122 = vrot.slane %v8120, 5
      %v8123 = vsel %vm1154, %v8118, %v8122
      %v8124 = vshrl.u32 %v7916, 16
      %v8126 = vrot.slane %v8124, 4
      %v8127 = vor.u32 %v8126, %v8122
      %v8128 = vrot.slane %v8127, 4
      %v8130 = vshll.u32 %v7917, 16
      %v8132 = vrot.slane %v8130, 5
      %v8133 = vsel %vm1154, %v8128, %v8132
      %v8135 = vshrl.u32 %v7918, 16
      %v8137 = vrot.slane %v8135, 4
      %v8138 = vshll.u32 %v7918, 16
      %v8140 = vrot.slane %v8138, 5
      %v8141 = vor.u32 %v8137, %v8140
      %v8142 = vrot.slane %v8141, 4
      %v8144 = vshll.u32 %v7919, 16
      %v8146 = vrot.slane %v8144, 5
      %v8147 = vsel %vm1154, %v8142, %v8146
      %v8148 = vshrl.u32 %v7919, 16
      %v8150 = vrot.slane %v8148, 4
      %v8151 = vor.u32 %v8150, %v8146
      %v8152 = vrot.slane %v8151, 4
      %v8154 = vshll.u32 %v7920, 16
      %v8156 = vrot.slane %v8154, 5
      %v8157 = vsel %vm1154, %v8152, %v8156
      %v8159 = vshrl.u32 %v7921, 16
      %v8161 = vrot.slane %v8159, 4
      %v8162 = vshll.u32 %v7921, 16
      %v8164 = vrot.slane %v8162, 5
      %v8165 = vor.u32 %v8161, %v8164
      %v8166 = vrot.slane %v8165, 4
      %v8168 = vshll.u32 %v7922, 16
      %v8170 = vrot.slane %v8168, 5
      %v8171 = vsel %vm1154, %v8166, %v8170
      %v8172 = vshrl.u32 %v7922, 16
      %v8174 = vrot.slane %v8172, 4
      %v8175 = vor.u32 %v8174, %v8170
      %v8176 = vrot.slane %v8175, 4
      %v8178 = vshll.u32 %v7923, 16
      %v8180 = vrot.slane %v8178, 5
      %v8181 = vsel %vm1154, %v8176, %v8180
      %v8183 = vshrl.u32 %v7924, 16
      %v8185 = vrot.slane %v8183, 4
      %v8186 = vshll.u32 %v7924, 16
      %v8188 = vrot.slane %v8186, 5
      %v8189 = vor.u32 %v8185, %v8188
      %v8190 = vrot.slane %v8189, 4
      %v8192 = vshll.u32 %v7925, 16
      %v8194 = vrot.slane %v8192, 5
      %v8195 = vsel %vm1154, %v8190, %v8194
      %v8196 = vshrl.u32 %v7925, 16
      %v8198 = vrot.slane %v8196, 4
      %v8199 = vor.u32 %v8198, %v8194
      %v8200 = vrot.slane %v8199, 4
      %v8202 = vshll.u32 %v7926, 16
      %v8204 = vrot.slane %v8202, 5
      %v8205 = vsel %vm1154, %v8200, %v8204
      %v8207 = vshrl.u32 %v7927, 16
      %v8209 = vrot.slane %v8207, 4
      %v8210 = vshll.u32 %v7927, 16
      %v8212 = vrot.slane %v8210, 5
      %v8213 = vor.u32 %v8209, %v8212
      %v8214 = vrot.slane %v8213, 4
      %v8216 = vshll.u32 %v7928, 16
      %v8218 = vrot.slane %v8216, 5
      %v8219 = vsel %vm1154, %v8214, %v8218
      %v8220 = vshrl.u32 %v7928, 16
      %v8222 = vrot.slane %v8220, 4
      %v8223 = vor.u32 %v8222, %v8218
      %v8224 = vrot.slane %v8223, 4
      %v8226 = vshll.u32 %v7929, 16
      %v8228 = vrot.slane %v8226, 5
      %v8229 = vsel %vm1154, %v8224, %v8228
      %v8231 = vshrl.u32 %v7930, 16
      %v8233 = vrot.slane %v8231, 4
      %v8234 = vshll.u32 %v7930, 16
      %v8236 = vrot.slane %v8234, 5
      %v8237 = vor.u32 %v8233, %v8236
      %v8238 = vrot.slane %v8237, 4
      %v8240 = vshll.u32 %v7931, 16
      %v8242 = vrot.slane %v8240, 5
      %v8243 = vsel %vm1154, %v8238, %v8242
      %v8244 = vshrl.u32 %v7931, 16
      %v8246 = vrot.slane %v8244, 4
      %v8247 = vor.u32 %v8246, %v8242
      %v8248 = vrot.slane %v8247, 4
      %v8250 = vshll.u32 %v7932, 16
      %v8252 = vrot.slane %v8250, 5
      %v8253 = vsel %vm1154, %v8248, %v8252
      %v8255 = vshrl.u32 %v7933, 16
      %v8257 = vrot.slane %v8255, 4
      %v8258 = vshll.u32 %v7933, 16
      %v8260 = vrot.slane %v8258, 5
      %v8261 = vor.u32 %v8257, %v8260
      %v8262 = vrot.slane %v8261, 4
      %v8264 = vshll.u32 %v7934, 16
      %v8266 = vrot.slane %v8264, 5
      %v8267 = vsel %vm1154, %v8262, %v8266
      %v8268 = vshrl.u32 %v7934, 16
      %v8270 = vrot.slane %v8268, 4
      %v8271 = vor.u32 %v8270, %v8266
      %v8272 = vrot.slane %v8271, 4
      %v8274 = vshll.u32 %v7935, 16
      %v8276 = vrot.slane %v8274, 5
      %v8277 = vsel %vm1154, %v8272, %v8276
      %v8279 = vshrl.u32 %v7936, 16
      %v8281 = vrot.slane %v8279, 4
      %v8282 = vshll.u32 %v7936, 16
      %v8284 = vrot.slane %v8282, 5
      %v8285 = vor.u32 %v8281, %v8284
      %v8286 = vrot.slane %v8285, 4
      %v8288 = vshll.u32 %v7937, 16
      %v8290 = vrot.slane %v8288, 5
      %v8291 = vsel %vm1154, %v8286, %v8290
      %v8292 = vshrl.u32 %v7937, 16
      %v8294 = vrot.slane %v8292, 4
      %v8295 = vor.u32 %v8294, %v8290
      %v8296 = vrot.slane %v8295, 4
      %v8298 = vshll.u32 %v7938, 16
      %v8300 = vrot.slane %v8298, 5
      %v8301 = vsel %vm1154, %v8296, %v8300
      %v8303 = vshrl.u32 %v7939, 16
      %v8305 = vrot.slane %v8303, 4
      %v8306 = vshll.u32 %v7939, 16
      %v8308 = vrot.slane %v8306, 5
      %v8309 = vor.u32 %v8305, %v8308
      %v8310 = vrot.slane %v8309, 4
      %v8312 = vshll.u32 %v7940, 16
      %v8314 = vrot.slane %v8312, 5
      %v8315 = vsel %vm1154, %v8310, %v8314
      %v8316 = vshrl.u32 %v7940, 16
      %v8318 = vrot.slane %v8316, 4
      %v8319 = vor.u32 %v8318, %v8314
      %v8320 = vrot.slane %v8319, 4
      %v8322 = vshll.u32 %v7941, 16
      %v8324 = vrot.slane %v8322, 5
      %v8325 = vsel %vm1154, %v8320, %v8324
      %v8326 = vld [vmem:[%s7893] sm:$0xe]
      %v8327 = vld [vmem:[%s7893 + $0x18] sm:$0xe]
      %v8328 = vld [vmem:[%s7893 + $0x30] sm:$0xe]
      %v8329 = vld [vmem:[%s7893 + $0x48] sm:$0xe]
      %v8330 = vld [vmem:[%s7893 + $0x60] sm:$0xe]
      %v8331 = vld [vmem:[%s7893 + $0x78] sm:$0xe]
      %v8332 = vld [vmem:[%s7893 + $0x90] sm:$0xe]
      %v8333 = vld [vmem:[%s7893 + $0xa8] sm:$0xe]
      %v8334 = vld [vmem:[%s7893 + $0xc0] sm:$0xe]
      %v8335 = vld [vmem:[%s7893 + $0xd8] sm:$0xe]
      %v8336 = vld [vmem:[%s7893 + $0xf0] sm:$0xe]
      %v8337 = vld [vmem:[%s7893 + $0x108] sm:$0xe]
      %v8338 = vld [vmem:[%s7893 + $0x120] sm:$0xe]
      %v8339 = vld [vmem:[%s7893 + $0x138] sm:$0xe]
      %v8340 = vld [vmem:[%s7893 + $0x150] sm:$0xe]
      %v8341 = vld [vmem:[%s7893 + $0x168] sm:$0xe]
      %v8390 = vrot.slane %v8326, 5
      %v8391 = vrot.slane %v8390, 4
      %v8392 = vrot.slane %v7895, 5
      %v8393 = vsel %vm1605, %v8391, %v8392
      %v8394 = vrot.slane %v8392, 4
      %v8395 = vrot.slane %v7896, 5
      %v8396 = vsel %vm1605, %v8394, %v8395
      %v8397 = vrot.slane %v8327, 5
      %v8398 = vrot.slane %v8397, 4
      %v8399 = vrot.slane %v7898, 5
      %v8400 = vsel %vm1605, %v8398, %v8399
      %v8401 = vrot.slane %v8399, 4
      %v8402 = vrot.slane %v7899, 5
      %v8403 = vsel %vm1605, %v8401, %v8402
      %v8404 = vrot.slane %v8328, 5
      %v8405 = vrot.slane %v8404, 4
      %v8406 = vrot.slane %v7901, 5
      %v8407 = vsel %vm1605, %v8405, %v8406
      %v8408 = vrot.slane %v8406, 4
      %v8409 = vrot.slane %v7902, 5
      %v8410 = vsel %vm1605, %v8408, %v8409
      %v8411 = vrot.slane %v8329, 5
      %v8412 = vrot.slane %v8411, 4
      %v8413 = vrot.slane %v7904, 5
      %v8414 = vsel %vm1605, %v8412, %v8413
      %v8415 = vrot.slane %v8413, 4
      %v8416 = vrot.slane %v7905, 5
      %v8417 = vsel %vm1605, %v8415, %v8416
      %v8418 = vrot.slane %v8330, 5
      %v8419 = vrot.slane %v8418, 4
      %v8420 = vrot.slane %v7907, 5
      %v8421 = vsel %vm1605, %v8419, %v8420
      %v8422 = vrot.slane %v8420, 4
      %v8423 = vrot.slane %v7908, 5
      %v8424 = vsel %vm1605, %v8422, %v8423
      %v8425 = vrot.slane %v8331, 5
      %v8426 = vrot.slane %v8425, 4
      %v8427 = vrot.slane %v7910, 5
      %v8428 = vsel %vm1605, %v8426, %v8427
      %v8429 = vrot.slane %v8427, 4
      %v8430 = vrot.slane %v7911, 5
      %v8431 = vsel %vm1605, %v8429, %v8430
      %v8432 = vrot.slane %v8332, 5
      %v8433 = vrot.slane %v8432, 4
      %v8434 = vrot.slane %v7913, 5
      %v8435 = vsel %vm1605, %v8433, %v8434
      %v8436 = vrot.slane %v8434, 4
      %v8437 = vrot.slane %v7914, 5
      %v8438 = vsel %vm1605, %v8436, %v8437
      %v8439 = vrot.slane %v8333, 5
      %v8440 = vrot.slane %v8439, 4
      %v8441 = vrot.slane %v7916, 5
      %v8442 = vsel %vm1605, %v8440, %v8441
      %v8443 = vrot.slane %v8441, 4
      %v8444 = vrot.slane %v7917, 5
      %v8445 = vsel %vm1605, %v8443, %v8444
      %v8446 = vrot.slane %v8334, 5
      %v8447 = vrot.slane %v8446, 4
      %v8448 = vrot.slane %v7919, 5
      %v8449 = vsel %vm1605, %v8447, %v8448
      %v8450 = vrot.slane %v8448, 4
      %v8451 = vrot.slane %v7920, 5
      %v8452 = vsel %vm1605, %v8450, %v8451
      %v8453 = vrot.slane %v8335, 5
      %v8454 = vrot.slane %v8453, 4
      %v8455 = vrot.slane %v7922, 5
      %v8456 = vsel %vm1605, %v8454, %v8455
      %v8457 = vrot.slane %v8455, 4
      %v8458 = vrot.slane %v7923, 5
      %v8459 = vsel %vm1605, %v8457, %v8458
      %v8460 = vrot.slane %v8336, 5
      %v8461 = vrot.slane %v8460, 4
      %v8462 = vrot.slane %v7925, 5
      %v8463 = vsel %vm1605, %v8461, %v8462
      %v8464 = vrot.slane %v8462, 4
      %v8465 = vrot.slane %v7926, 5
      %v8466 = vsel %vm1605, %v8464, %v8465
      %v8467 = vrot.slane %v8337, 5
      %v8468 = vrot.slane %v8467, 4
      %v8469 = vrot.slane %v7928, 5
      %v8470 = vsel %vm1605, %v8468, %v8469
      %v8471 = vrot.slane %v8469, 4
      %v8472 = vrot.slane %v7929, 5
      %v8473 = vsel %vm1605, %v8471, %v8472
      %v8474 = vrot.slane %v8338, 5
      %v8475 = vrot.slane %v8474, 4
      %v8476 = vrot.slane %v7931, 5
      %v8477 = vsel %vm1605, %v8475, %v8476
      %v8478 = vrot.slane %v8476, 4
      %v8479 = vrot.slane %v7932, 5
      %v8480 = vsel %vm1605, %v8478, %v8479
      %v8481 = vrot.slane %v8339, 5
      %v8482 = vrot.slane %v8481, 4
      %v8483 = vrot.slane %v7934, 5
      %v8484 = vsel %vm1605, %v8482, %v8483
      %v8485 = vrot.slane %v8483, 4
      %v8486 = vrot.slane %v7935, 5
      %v8487 = vsel %vm1605, %v8485, %v8486
      %v8488 = vrot.slane %v8340, 5
      %v8489 = vrot.slane %v8488, 4
      %v8490 = vrot.slane %v7937, 5
      %v8491 = vsel %vm1605, %v8489, %v8490
      %v8492 = vrot.slane %v8490, 4
      %v8493 = vrot.slane %v7938, 5
      %v8494 = vsel %vm1605, %v8492, %v8493
      %v8495 = vrot.slane %v8341, 5
      %v8496 = vrot.slane %v8495, 4
      %v8497 = vrot.slane %v7940, 5
      %v8498 = vsel %vm1605, %v8496, %v8497
      %v8499 = vrot.slane %v8497, 4
      %v8500 = vrot.slane %v7941, 5
      %v8501 = vsel %vm1605, %v8499, %v8500
      %v8502 = vunpack.c.l.b16 %v6130
      %v8503 = vunpack.c.l.b16 %v6140
      %v8504 = vunpack.c.l.b16 %v6154
      %v8505 = vunpack.c.l.b16 %v6164
      %v8506 = vunpack.c.l.b16 %v6178
      %v8507 = vunpack.c.l.b16 %v6188
      %v8508 = vunpack.c.l.b16 %v6202
      %v8509 = vunpack.c.l.b16 %v6212
      %v8510 = vunpack.c.l.b16 %v6226
      %v8511 = vunpack.c.l.b16 %v6236
      %v8512 = vunpack.c.l.b16 %v6250
      %v8513 = vunpack.c.l.b16 %v6260
      %v8514 = vunpack.c.l.b16 %v6274
      %v8515 = vunpack.c.l.b16 %v6284
      %v8516 = vunpack.c.l.b16 %v6298
      %v8517 = vunpack.c.l.b16 %v6308
      %v8518 = vunpack.c.l.b16 %v6322
      %v8519 = vunpack.c.l.b16 %v6332
      %v8520 = vunpack.c.l.b16 %v6346
      %v8521 = vunpack.c.l.b16 %v6356
      %v8522 = vunpack.c.l.b16 %v6370
      %v8523 = vunpack.c.l.b16 %v6380
      %v8524 = vunpack.c.l.b16 %v6394
      %v8525 = vunpack.c.l.b16 %v6404
      %v8526 = vunpack.c.l.b16 %v6418
      %v8527 = vunpack.c.l.b16 %v6428
      %v8528 = vunpack.c.l.b16 %v6442
      %v8529 = vunpack.c.l.b16 %v6452
      %v8530 = vunpack.c.l.b16 %v6466
      %v8531 = vunpack.c.l.b16 %v6476
      %v8532 = vunpack.c.l.b16 %v6490
      %v8533 = vunpack.c.l.b16 %v6500
      %v8534 = vpack.c.b16 %v8503, %v8502
      %v8535 = vpack.c.b16 %v8505, %v8504
      %v8536 = vpack.c.b16 %v8507, %v8506
      %v8537 = vpack.c.b16 %v8509, %v8508
      %v8538 = vpack.c.b16 %v8511, %v8510
      %v8539 = vpack.c.b16 %v8513, %v8512
      %v8540 = vpack.c.b16 %v8515, %v8514
      %v8541 = vpack.c.b16 %v8517, %v8516
      %v8542 = vpack.c.b16 %v8519, %v8518
      %v8543 = vpack.c.b16 %v8521, %v8520
      %v8544 = vpack.c.b16 %v8523, %v8522
      %v8545 = vpack.c.b16 %v8525, %v8524
      %v8546 = vpack.c.b16 %v8527, %v8526
      %v8547 = vpack.c.b16 %v8529, %v8528
      %v8548 = vpack.c.b16 %v8531, %v8530
      %v8549 = vpack.c.b16 %v8533, %v8532
      %v8566 = vunpack.c.l.b16 %v6069
      %v8567 = vunpack.c.l.b16 %v6070
      %v8568 = vunpack.c.l.b16 %v6072
      %v8569 = vunpack.c.l.b16 %v6073
      %v8570 = vunpack.c.l.b16 %v6075
      %v8571 = vunpack.c.l.b16 %v6076
      %v8572 = vunpack.c.l.b16 %v6078
      %v8573 = vunpack.c.l.b16 %v6079
      %v8574 = vunpack.c.l.b16 %v6081
      %v8575 = vunpack.c.l.b16 %v6082
      %v8576 = vunpack.c.l.b16 %v6084
      %v8577 = vunpack.c.l.b16 %v6085
      %v8578 = vunpack.c.l.b16 %v6087
      %v8579 = vunpack.c.l.b16 %v6088
      %v8580 = vunpack.c.l.b16 %v6090
      %v8581 = vunpack.c.l.b16 %v6091
      %v8582 = vunpack.c.l.b16 %v6093
      %v8583 = vunpack.c.l.b16 %v6094
      %v8584 = vunpack.c.l.b16 %v6096
      %v8585 = vunpack.c.l.b16 %v6097
      %v8586 = vunpack.c.l.b16 %v6099
      %v8587 = vunpack.c.l.b16 %v6100
      %v8588 = vunpack.c.l.b16 %v6102
      %v8589 = vunpack.c.l.b16 %v6103
      %v8590 = vunpack.c.l.b16 %v6105
      %v8591 = vunpack.c.l.b16 %v6106
      %v8592 = vunpack.c.l.b16 %v6108
      %v8593 = vunpack.c.l.b16 %v6109
      %v8594 = vunpack.c.l.b16 %v6111
      %v8595 = vunpack.c.l.b16 %v6112
      %v8596 = vunpack.c.l.b16 %v6114
      %v8597 = vunpack.c.l.b16 %v6115
      %v8598 = vpack.c.b16 %v8567, %v8566
      %v8599 = vpack.c.b16 %v8569, %v8568
      %v8600 = vpack.c.b16 %v8571, %v8570
      %v8601 = vpack.c.b16 %v8573, %v8572
      %v8602 = vpack.c.b16 %v8575, %v8574
      %v8603 = vpack.c.b16 %v8577, %v8576
      %v8604 = vpack.c.b16 %v8579, %v8578
      %v8605 = vpack.c.b16 %v8581, %v8580
      %v8606 = vpack.c.b16 %v8583, %v8582
      %v8607 = vpack.c.b16 %v8585, %v8584
      %v8608 = vpack.c.b16 %v8587, %v8586
      %v8609 = vpack.c.b16 %v8589, %v8588
      %v8610 = vpack.c.b16 %v8591, %v8590
      %v8611 = vpack.c.b16 %v8593, %v8592
      %v8612 = vpack.c.b16 %v8595, %v8594
      %v8613 = vpack.c.b16 %v8597, %v8596
      %8614 = vrot.lane.b32.xlu0 %v8534, 64
      %v8615 = vpop.permute.xlu0 %8614
      %8616 = vrot.lane.b32.xlu0 %v8535, 64
      %v8617 = vpop.permute.xlu0 %8616
      %8618 = vrot.lane.b32.xlu0 %v8536, 64
      %v8619 = vpop.permute.xlu0 %8618
      %8620 = vrot.lane.b32.xlu0 %v8537, 64
      %v8621 = vpop.permute.xlu0 %8620
      %8622 = vrot.lane.b32.xlu0 %v8538, 64
      %v8623 = vpop.permute.xlu0 %8622
      %8624 = vrot.lane.b32.xlu0 %v8539, 64
      %v8625 = vpop.permute.xlu0 %8624
      %8626 = vrot.lane.b32.xlu0 %v8540, 64
      %v8627 = vpop.permute.xlu0 %8626
      %8628 = vrot.lane.b32.xlu0 %v8541, 64
      %v8629 = vpop.permute.xlu0 %8628
      %8630 = vrot.lane.b32.xlu0 %v8542, 64
      %v8631 = vpop.permute.xlu0 %8630
      %8632 = vrot.lane.b32.xlu0 %v8543, 64
      %v8633 = vpop.permute.xlu0 %8632
      %8634 = vrot.lane.b32.xlu0 %v8544, 64
      %v8635 = vpop.permute.xlu0 %8634
      %8636 = vrot.lane.b32.xlu0 %v8545, 64
      %v8637 = vpop.permute.xlu0 %8636
      %8638 = vrot.lane.b32.xlu0 %v8546, 64
      %v8639 = vpop.permute.xlu0 %8638
      %8640 = vrot.lane.b32.xlu0 %v8547, 64
      %v8641 = vpop.permute.xlu0 %8640
      %8642 = vrot.lane.b32.xlu0 %v8548, 64
      %v8643 = vpop.permute.xlu0 %8642
      %8644 = vrot.lane.b32.xlu0 %v8549, 64
      %v8645 = vpop.permute.xlu0 %8644
      %v8646 = vunpack.c.l.b16 %v6568
      %v8647 = vunpack.c.l.b16 %v6571
      %v8648 = vunpack.c.l.b16 %v6575
      %v8649 = vunpack.c.l.b16 %v6578
      %v8650 = vunpack.c.l.b16 %v6582
      %v8651 = vunpack.c.l.b16 %v6585
      %v8652 = vunpack.c.l.b16 %v6589
      %v8653 = vunpack.c.l.b16 %v6592
      %v8654 = vunpack.c.l.b16 %v6596
      %v8655 = vunpack.c.l.b16 %v6599
      %v8656 = vunpack.c.l.b16 %v6603
      %v8657 = vunpack.c.l.b16 %v6606
      %v8658 = vunpack.c.l.b16 %v6610
      %v8659 = vunpack.c.l.b16 %v6613
      %v8660 = vunpack.c.l.b16 %v6617
      %v8661 = vunpack.c.l.b16 %v6620
      %v8662 = vunpack.c.l.b16 %v6624
      %v8663 = vunpack.c.l.b16 %v6627
      %v8664 = vunpack.c.l.b16 %v6631
      %v8665 = vunpack.c.l.b16 %v6634
      %v8666 = vunpack.c.l.b16 %v6638
      %v8667 = vunpack.c.l.b16 %v6641
      %v8668 = vunpack.c.l.b16 %v6645
      %v8669 = vunpack.c.l.b16 %v6648
      %v8670 = vunpack.c.l.b16 %v6652
      %v8671 = vunpack.c.l.b16 %v6655
      %v8672 = vunpack.c.l.b16 %v6659
      %v8673 = vunpack.c.l.b16 %v6662
      %v8674 = vunpack.c.l.b16 %v6666
      %v8675 = vunpack.c.l.b16 %v6669
      %v8676 = vunpack.c.l.b16 %v6673
      %v8677 = vunpack.c.l.b16 %v6676
      %v8678 = vpack.c.b16 %v8647, %v8646
      %v8679 = vpack.c.b16 %v8649, %v8648
      %v8680 = vpack.c.b16 %v8651, %v8650
      %v8681 = vpack.c.b16 %v8653, %v8652
      %v8682 = vpack.c.b16 %v8655, %v8654
      %v8683 = vpack.c.b16 %v8657, %v8656
      %v8684 = vpack.c.b16 %v8659, %v8658
      %v8685 = vpack.c.b16 %v8661, %v8660
      %v8686 = vpack.c.b16 %v8663, %v8662
      %v8687 = vpack.c.b16 %v8665, %v8664
      %v8688 = vpack.c.b16 %v8667, %v8666
      %v8689 = vpack.c.b16 %v8669, %v8668
      %v8690 = vpack.c.b16 %v8671, %v8670
      %v8691 = vpack.c.b16 %v8673, %v8672
      %v8692 = vpack.c.b16 %v8675, %v8674
      %v8693 = vpack.c.b16 %v8677, %v8676
      %8694 = vrot.lane.b32.xlu0 %v8678, 64
      %v8695 = vpop.permute.xlu0 %8694
      %8696 = vrot.lane.b32.xlu0 %v8679, 64
      %v8697 = vpop.permute.xlu0 %8696
      %8698 = vrot.lane.b32.xlu0 %v8680, 64
      %v8699 = vpop.permute.xlu0 %8698
      %8700 = vrot.lane.b32.xlu0 %v8681, 64
      %v8701 = vpop.permute.xlu0 %8700
      %8702 = vrot.lane.b32.xlu0 %v8682, 64
      %v8703 = vpop.permute.xlu0 %8702
      %8704 = vrot.lane.b32.xlu0 %v8683, 64
      %v8705 = vpop.permute.xlu0 %8704
      %8706 = vrot.lane.b32.xlu0 %v8684, 64
      %v8707 = vpop.permute.xlu0 %8706
      %8708 = vrot.lane.b32.xlu0 %v8685, 64
      %v8709 = vpop.permute.xlu0 %8708
      %8710 = vrot.lane.b32.xlu0 %v8686, 64
      %v8711 = vpop.permute.xlu0 %8710
      %8712 = vrot.lane.b32.xlu0 %v8687, 64
      %v8713 = vpop.permute.xlu0 %8712
      %8714 = vrot.lane.b32.xlu0 %v8688, 64
      %v8715 = vpop.permute.xlu0 %8714
      %8716 = vrot.lane.b32.xlu0 %v8689, 64
      %v8717 = vpop.permute.xlu0 %8716
      %8718 = vrot.lane.b32.xlu0 %v8690, 64
      %v8719 = vpop.permute.xlu0 %8718
      %8720 = vrot.lane.b32.xlu0 %v8691, 64
      %v8721 = vpop.permute.xlu0 %8720
      %8722 = vrot.lane.b32.xlu0 %v8692, 64
      %v8723 = vpop.permute.xlu0 %8722
      %8724 = vrot.lane.b32.xlu0 %v8693, 64
      %v8725 = vpop.permute.xlu0 %8724
      %v8726 = vunpack.c.l.b16 %v6738
      %v8727 = vunpack.c.l.b16 %v6748
      %v8728 = vunpack.c.l.b16 %v6762
      %v8729 = vunpack.c.l.b16 %v6772
      %v8730 = vunpack.c.l.b16 %v6786
      %v8731 = vunpack.c.l.b16 %v6796
      %v8732 = vunpack.c.l.b16 %v6810
      %v8733 = vunpack.c.l.b16 %v6820
      %v8734 = vunpack.c.l.b16 %v6834
      %v8735 = vunpack.c.l.b16 %v6844
      %v8736 = vunpack.c.l.b16 %v6858
      %v8737 = vunpack.c.l.b16 %v6868
      %v8738 = vunpack.c.l.b16 %v6882
      %v8739 = vunpack.c.l.b16 %v6892
      %v8740 = vunpack.c.l.b16 %v6906
      %v8741 = vunpack.c.l.b16 %v6916
      %v8742 = vunpack.c.l.b16 %v6930
      %v8743 = vunpack.c.l.b16 %v6940
      %v8744 = vunpack.c.l.b16 %v6954
      %v8745 = vunpack.c.l.b16 %v6964
      %v8746 = vunpack.c.l.b16 %v6978
      %v8747 = vunpack.c.l.b16 %v6988
      %v8748 = vunpack.c.l.b16 %v7002
      %v8749 = vunpack.c.l.b16 %v7012
      %v8750 = vunpack.c.l.b16 %v7026
      %v8751 = vunpack.c.l.b16 %v7036
      %v8752 = vunpack.c.l.b16 %v7050
      %v8753 = vunpack.c.l.b16 %v7060
      %v8754 = vunpack.c.l.b16 %v7074
      %v8755 = vunpack.c.l.b16 %v7084
      %v8756 = vunpack.c.l.b16 %v7098
      %v8757 = vunpack.c.l.b16 %v7108
      %v8758 = vpack.c.b16 %v8727, %v8726
      %v8759 = vpack.c.b16 %v8729, %v8728
      %v8760 = vpack.c.b16 %v8731, %v8730
      %v8761 = vpack.c.b16 %v8733, %v8732
      %v8762 = vpack.c.b16 %v8735, %v8734
      %v8763 = vpack.c.b16 %v8737, %v8736
      %v8764 = vpack.c.b16 %v8739, %v8738
      %v8765 = vpack.c.b16 %v8741, %v8740
      %v8766 = vpack.c.b16 %v8743, %v8742
      %v8767 = vpack.c.b16 %v8745, %v8744
      %v8768 = vpack.c.b16 %v8747, %v8746
      %v8769 = vpack.c.b16 %v8749, %v8748
      %v8770 = vpack.c.b16 %v8751, %v8750
      %v8771 = vpack.c.b16 %v8753, %v8752
      %v8772 = vpack.c.b16 %v8755, %v8754
      %v8773 = vpack.c.b16 %v8757, %v8756
      %v8790 = vunpack.c.l.b16 %v6677
      %v8791 = vunpack.c.l.b16 %v6678
      %v8792 = vunpack.c.l.b16 %v6680
      %v8793 = vunpack.c.l.b16 %v6681
      %v8794 = vunpack.c.l.b16 %v6683
      %v8795 = vunpack.c.l.b16 %v6684
      %v8796 = vunpack.c.l.b16 %v6686
      %v8797 = vunpack.c.l.b16 %v6687
      %v8798 = vunpack.c.l.b16 %v6689
      %v8799 = vunpack.c.l.b16 %v6690
      %v8800 = vunpack.c.l.b16 %v6692
      %v8801 = vunpack.c.l.b16 %v6693
      %v8802 = vunpack.c.l.b16 %v6695
      %v8803 = vunpack.c.l.b16 %v6696
      %v8804 = vunpack.c.l.b16 %v6698
      %v8805 = vunpack.c.l.b16 %v6699
      %v8806 = vunpack.c.l.b16 %v6701
      %v8807 = vunpack.c.l.b16 %v6702
      %v8808 = vunpack.c.l.b16 %v6704
      %v8809 = vunpack.c.l.b16 %v6705
      %v8810 = vunpack.c.l.b16 %v6707
      %v8811 = vunpack.c.l.b16 %v6708
      %v8812 = vunpack.c.l.b16 %v6710
      %v8813 = vunpack.c.l.b16 %v6711
      %v8814 = vunpack.c.l.b16 %v6713
      %v8815 = vunpack.c.l.b16 %v6714
      %v8816 = vunpack.c.l.b16 %v6716
      %v8817 = vunpack.c.l.b16 %v6717
      %v8818 = vunpack.c.l.b16 %v6719
      %v8819 = vunpack.c.l.b16 %v6720
      %v8820 = vunpack.c.l.b16 %v6722
      %v8821 = vunpack.c.l.b16 %v6723
      %v8822 = vpack.c.b16 %v8791, %v8790
      %v8823 = vpack.c.b16 %v8793, %v8792
      %v8824 = vpack.c.b16 %v8795, %v8794
      %v8825 = vpack.c.b16 %v8797, %v8796
      %v8826 = vpack.c.b16 %v8799, %v8798
      %v8827 = vpack.c.b16 %v8801, %v8800
      %v8828 = vpack.c.b16 %v8803, %v8802
      %v8829 = vpack.c.b16 %v8805, %v8804
      %v8830 = vpack.c.b16 %v8807, %v8806
      %v8831 = vpack.c.b16 %v8809, %v8808
      %v8832 = vpack.c.b16 %v8811, %v8810
      %v8833 = vpack.c.b16 %v8813, %v8812
      %v8834 = vpack.c.b16 %v8815, %v8814
      %v8835 = vpack.c.b16 %v8817, %v8816
      %v8836 = vpack.c.b16 %v8819, %v8818
      %v8837 = vpack.c.b16 %v8821, %v8820
      %8838 = vrot.lane.b32.xlu0 %v8758, 64
      %v8839 = vpop.permute.xlu0 %8838
      %8840 = vrot.lane.b32.xlu0 %v8759, 64
      %v8841 = vpop.permute.xlu0 %8840
      %8842 = vrot.lane.b32.xlu0 %v8760, 64
      %v8843 = vpop.permute.xlu0 %8842
      %8844 = vrot.lane.b32.xlu0 %v8761, 64
      %v8845 = vpop.permute.xlu0 %8844
      %8846 = vrot.lane.b32.xlu0 %v8762, 64
      %v8847 = vpop.permute.xlu0 %8846
      %8848 = vrot.lane.b32.xlu0 %v8763, 64
      %v8849 = vpop.permute.xlu0 %8848
      %8850 = vrot.lane.b32.xlu0 %v8764, 64
      %v8851 = vpop.permute.xlu0 %8850
      %8852 = vrot.lane.b32.xlu0 %v8765, 64
      %v8853 = vpop.permute.xlu0 %8852
      %8854 = vrot.lane.b32.xlu0 %v8766, 64
      %v8855 = vpop.permute.xlu0 %8854
      %8856 = vrot.lane.b32.xlu0 %v8767, 64
      %v8857 = vpop.permute.xlu0 %8856
      %8858 = vrot.lane.b32.xlu0 %v8768, 64
      %v8859 = vpop.permute.xlu0 %8858
      %8860 = vrot.lane.b32.xlu0 %v8769, 64
      %v8861 = vpop.permute.xlu0 %8860
      %8862 = vrot.lane.b32.xlu0 %v8770, 64
      %v8863 = vpop.permute.xlu0 %8862
      %8864 = vrot.lane.b32.xlu0 %v8771, 64
      %v8865 = vpop.permute.xlu0 %8864
      %8866 = vrot.lane.b32.xlu0 %v8772, 64
      %v8867 = vpop.permute.xlu0 %8866
      %8868 = vrot.lane.b32.xlu0 %v8773, 64
      %v8869 = vpop.permute.xlu0 %8868
      %v8870 = vunpack.c.l.b16 %v7176
      %v8871 = vunpack.c.l.b16 %v7179
      %v8872 = vunpack.c.l.b16 %v7183
      %v8873 = vunpack.c.l.b16 %v7186
      %v8874 = vunpack.c.l.b16 %v7190
      %v8875 = vunpack.c.l.b16 %v7193
      %v8876 = vunpack.c.l.b16 %v7197
      %v8877 = vunpack.c.l.b16 %v7200
      %v8878 = vunpack.c.l.b16 %v7204
      %v8879 = vunpack.c.l.b16 %v7207
      %v8880 = vunpack.c.l.b16 %v7211
      %v8881 = vunpack.c.l.b16 %v7214
      %v8882 = vunpack.c.l.b16 %v7218
      %v8883 = vunpack.c.l.b16 %v7221
      %v8884 = vunpack.c.l.b16 %v7225
      %v8885 = vunpack.c.l.b16 %v7228
      %v8886 = vunpack.c.l.b16 %v7232
      %v8887 = vunpack.c.l.b16 %v7235
      %v8888 = vunpack.c.l.b16 %v7239
      %v8889 = vunpack.c.l.b16 %v7242
      %v8890 = vunpack.c.l.b16 %v7246
      %v8891 = vunpack.c.l.b16 %v7249
      %v8892 = vunpack.c.l.b16 %v7253
      %v8893 = vunpack.c.l.b16 %v7256
      %v8894 = vunpack.c.l.b16 %v7260
      %v8895 = vunpack.c.l.b16 %v7263
      %v8896 = vunpack.c.l.b16 %v7267
      %v8897 = vunpack.c.l.b16 %v7270
      %v8898 = vunpack.c.l.b16 %v7274
      %v8899 = vunpack.c.l.b16 %v7277
      %v8900 = vunpack.c.l.b16 %v7281
      %v8901 = vunpack.c.l.b16 %v7284
      %v8902 = vpack.c.b16 %v8871, %v8870
      %v8903 = vpack.c.b16 %v8873, %v8872
      %v8904 = vpack.c.b16 %v8875, %v8874
      %v8905 = vpack.c.b16 %v8877, %v8876
      %v8906 = vpack.c.b16 %v8879, %v8878
      %v8907 = vpack.c.b16 %v8881, %v8880
      %v8908 = vpack.c.b16 %v8883, %v8882
      %v8909 = vpack.c.b16 %v8885, %v8884
      %v8910 = vpack.c.b16 %v8887, %v8886
      %v8911 = vpack.c.b16 %v8889, %v8888
      %v8912 = vpack.c.b16 %v8891, %v8890
      %v8913 = vpack.c.b16 %v8893, %v8892
      %v8914 = vpack.c.b16 %v8895, %v8894
      %v8915 = vpack.c.b16 %v8897, %v8896
      %v8916 = vpack.c.b16 %v8899, %v8898
      %v8917 = vpack.c.b16 %v8901, %v8900
      %8918 = vrot.lane.b32.xlu0 %v8902, 64
      %v8919 = vpop.permute.xlu0 %8918
      %8920 = vrot.lane.b32.xlu0 %v8903, 64
      %v8921 = vpop.permute.xlu0 %8920
      %8922 = vrot.lane.b32.xlu0 %v8904, 64
      %v8923 = vpop.permute.xlu0 %8922
      %8924 = vrot.lane.b32.xlu0 %v8905, 64
      %v8925 = vpop.permute.xlu0 %8924
      %8926 = vrot.lane.b32.xlu0 %v8906, 64
      %v8927 = vpop.permute.xlu0 %8926
      %8928 = vrot.lane.b32.xlu0 %v8907, 64
      %v8929 = vpop.permute.xlu0 %8928
      %8930 = vrot.lane.b32.xlu0 %v8908, 64
      %v8931 = vpop.permute.xlu0 %8930
      %8932 = vrot.lane.b32.xlu0 %v8909, 64
      %v8933 = vpop.permute.xlu0 %8932
      %8934 = vrot.lane.b32.xlu0 %v8910, 64
      %v8935 = vpop.permute.xlu0 %8934
      %8936 = vrot.lane.b32.xlu0 %v8911, 64
      %v8937 = vpop.permute.xlu0 %8936
      %8938 = vrot.lane.b32.xlu0 %v8912, 64
      %v8939 = vpop.permute.xlu0 %8938
      %8940 = vrot.lane.b32.xlu0 %v8913, 64
      %v8941 = vpop.permute.xlu0 %8940
      %8942 = vrot.lane.b32.xlu0 %v8914, 64
      %v8943 = vpop.permute.xlu0 %8942
      %8944 = vrot.lane.b32.xlu0 %v8915, 64
      %v8945 = vpop.permute.xlu0 %8944
      %8946 = vrot.lane.b32.xlu0 %v8916, 64
      %v8947 = vpop.permute.xlu0 %8946
      %8948 = vrot.lane.b32.xlu0 %v8917, 64
      %v8949 = vpop.permute.xlu0 %8948
      %v8950 = vunpack.c.l.b16 %v7346
      %v8951 = vunpack.c.l.b16 %v7356
      %v8952 = vunpack.c.l.b16 %v7370
      %v8953 = vunpack.c.l.b16 %v7380
      %v8954 = vunpack.c.l.b16 %v7394
      %v8955 = vunpack.c.l.b16 %v7404
      %v8956 = vunpack.c.l.b16 %v7418
      %v8957 = vunpack.c.l.b16 %v7428
      %v8958 = vunpack.c.l.b16 %v7442
      %v8959 = vunpack.c.l.b16 %v7452
      %v8960 = vunpack.c.l.b16 %v7466
      %v8961 = vunpack.c.l.b16 %v7476
      %v8962 = vunpack.c.l.b16 %v7490
      %v8963 = vunpack.c.l.b16 %v7500
      %v8964 = vunpack.c.l.b16 %v7514
      %v8965 = vunpack.c.l.b16 %v7524
      %v8966 = vunpack.c.l.b16 %v7538
      %v8967 = vunpack.c.l.b16 %v7548
      %v8968 = vunpack.c.l.b16 %v7562
      %v8969 = vunpack.c.l.b16 %v7572
      %v8970 = vunpack.c.l.b16 %v7586
      %v8971 = vunpack.c.l.b16 %v7596
      %v8972 = vunpack.c.l.b16 %v7610
      %v8973 = vunpack.c.l.b16 %v7620
      %v8974 = vunpack.c.l.b16 %v7634
      %v8975 = vunpack.c.l.b16 %v7644
      %v8976 = vunpack.c.l.b16 %v7658
      %v8977 = vunpack.c.l.b16 %v7668
      %v8978 = vunpack.c.l.b16 %v7682
      %v8979 = vunpack.c.l.b16 %v7692
      %v8980 = vunpack.c.l.b16 %v7706
      %v8981 = vunpack.c.l.b16 %v7716
      %v8982 = vpack.c.b16 %v8951, %v8950
      %v8983 = vpack.c.b16 %v8953, %v8952
      %v8984 = vpack.c.b16 %v8955, %v8954
      %v8985 = vpack.c.b16 %v8957, %v8956
      %v8986 = vpack.c.b16 %v8959, %v8958
      %v8987 = vpack.c.b16 %v8961, %v8960
      %v8988 = vpack.c.b16 %v8963, %v8962
      %v8989 = vpack.c.b16 %v8965, %v8964
      %v8990 = vpack.c.b16 %v8967, %v8966
      %v8991 = vpack.c.b16 %v8969, %v8968
      %v8992 = vpack.c.b16 %v8971, %v8970
      %v8993 = vpack.c.b16 %v8973, %v8972
      %v8994 = vpack.c.b16 %v8975, %v8974
      %v8995 = vpack.c.b16 %v8977, %v8976
      %v8996 = vpack.c.b16 %v8979, %v8978
      %v8997 = vpack.c.b16 %v8981, %v8980
      %v9014 = vunpack.c.l.b16 %v7285
      %v9015 = vunpack.c.l.b16 %v7286
      %v9016 = vunpack.c.l.b16 %v7288
      %v9017 = vunpack.c.l.b16 %v7289
      %v9018 = vunpack.c.l.b16 %v7291
      %v9019 = vunpack.c.l.b16 %v7292
      %v9020 = vunpack.c.l.b16 %v7294
      %v9021 = vunpack.c.l.b16 %v7295
      %v9022 = vunpack.c.l.b16 %v7297
      %v9023 = vunpack.c.l.b16 %v7298
      %v9024 = vunpack.c.l.b16 %v7300
      %v9025 = vunpack.c.l.b16 %v7301
      %v9026 = vunpack.c.l.b16 %v7303
      %v9027 = vunpack.c.l.b16 %v7304
      %v9028 = vunpack.c.l.b16 %v7306
      %v9029 = vunpack.c.l.b16 %v7307
      %v9030 = vunpack.c.l.b16 %v7309
      %v9031 = vunpack.c.l.b16 %v7310
      %v9032 = vunpack.c.l.b16 %v7312
      %v9033 = vunpack.c.l.b16 %v7313
      %v9034 = vunpack.c.l.b16 %v7315
      %v9035 = vunpack.c.l.b16 %v7316
      %v9036 = vunpack.c.l.b16 %v7318
      %v9037 = vunpack.c.l.b16 %v7319
      %v9038 = vunpack.c.l.b16 %v7321
      %v9039 = vunpack.c.l.b16 %v7322
      %v9040 = vunpack.c.l.b16 %v7324
      %v9041 = vunpack.c.l.b16 %v7325
      %v9042 = vunpack.c.l.b16 %v7327
      %v9043 = vunpack.c.l.b16 %v7328
      %v9044 = vunpack.c.l.b16 %v7330
      %v9045 = vunpack.c.l.b16 %v7331
      %v9046 = vpack.c.b16 %v9015, %v9014
      %v9047 = vpack.c.b16 %v9017, %v9016
      %v9048 = vpack.c.b16 %v9019, %v9018
      %v9049 = vpack.c.b16 %v9021, %v9020
      %v9050 = vpack.c.b16 %v9023, %v9022
      %v9051 = vpack.c.b16 %v9025, %v9024
      %v9052 = vpack.c.b16 %v9027, %v9026
      %v9053 = vpack.c.b16 %v9029, %v9028
      %v9054 = vpack.c.b16 %v9031, %v9030
      %v9055 = vpack.c.b16 %v9033, %v9032
      %v9056 = vpack.c.b16 %v9035, %v9034
      %v9057 = vpack.c.b16 %v9037, %v9036
      %v9058 = vpack.c.b16 %v9039, %v9038
      %v9059 = vpack.c.b16 %v9041, %v9040
      %v9060 = vpack.c.b16 %v9043, %v9042
      %v9061 = vpack.c.b16 %v9045, %v9044
      %9062 = vrot.lane.b32.xlu0 %v8982, 64
      %v9063 = vpop.permute.xlu0 %9062
      %9064 = vrot.lane.b32.xlu0 %v8983, 64
      %v9065 = vpop.permute.xlu0 %9064
      %9066 = vrot.lane.b32.xlu0 %v8984, 64
      %v9067 = vpop.permute.xlu0 %9066
      %9068 = vrot.lane.b32.xlu0 %v8985, 64
      %v9069 = vpop.permute.xlu0 %9068
      %9070 = vrot.lane.b32.xlu0 %v8986, 64
      %v9071 = vpop.permute.xlu0 %9070
      %9072 = vrot.lane.b32.xlu0 %v8987, 64
      %v9073 = vpop.permute.xlu0 %9072
      %9074 = vrot.lane.b32.xlu0 %v8988, 64
      %v9075 = vpop.permute.xlu0 %9074
      %9076 = vrot.lane.b32.xlu0 %v8989, 64
      %v9077 = vpop.permute.xlu0 %9076
      %9078 = vrot.lane.b32.xlu0 %v8990, 64
      %v9079 = vpop.permute.xlu0 %9078
      %9080 = vrot.lane.b32.xlu0 %v8991, 64
      %v9081 = vpop.permute.xlu0 %9080
      %9082 = vrot.lane.b32.xlu0 %v8992, 64
      %v9083 = vpop.permute.xlu0 %9082
      %9084 = vrot.lane.b32.xlu0 %v8993, 64
      %v9085 = vpop.permute.xlu0 %9084
      %9086 = vrot.lane.b32.xlu0 %v8994, 64
      %v9087 = vpop.permute.xlu0 %9086
      %9088 = vrot.lane.b32.xlu0 %v8995, 64
      %v9089 = vpop.permute.xlu0 %9088
      %9090 = vrot.lane.b32.xlu0 %v8996, 64
      %v9091 = vpop.permute.xlu0 %9090
      %9092 = vrot.lane.b32.xlu0 %v8997, 64
      %v9093 = vpop.permute.xlu0 %9092
      %v9094 = vunpack.c.l.b16 %v7784
      %v9095 = vunpack.c.l.b16 %v7787
      %v9096 = vunpack.c.l.b16 %v7791
      %v9097 = vunpack.c.l.b16 %v7794
      %v9098 = vunpack.c.l.b16 %v7798
      %v9099 = vunpack.c.l.b16 %v7801
      %v9100 = vunpack.c.l.b16 %v7805
      %v9101 = vunpack.c.l.b16 %v7808
      %v9102 = vunpack.c.l.b16 %v7812
      %v9103 = vunpack.c.l.b16 %v7815
      %v9104 = vunpack.c.l.b16 %v7819
      %v9105 = vunpack.c.l.b16 %v7822
      %v9106 = vunpack.c.l.b16 %v7826
      %v9107 = vunpack.c.l.b16 %v7829
      %v9108 = vunpack.c.l.b16 %v7833
      %v9109 = vunpack.c.l.b16 %v7836
      %v9110 = vunpack.c.l.b16 %v7840
      %v9111 = vunpack.c.l.b16 %v7843
      %v9112 = vunpack.c.l.b16 %v7847
      %v9113 = vunpack.c.l.b16 %v7850
      %v9114 = vunpack.c.l.b16 %v7854
      %v9115 = vunpack.c.l.b16 %v7857
      %v9116 = vunpack.c.l.b16 %v7861
      %v9117 = vunpack.c.l.b16 %v7864
      %v9118 = vunpack.c.l.b16 %v7868
      %v9119 = vunpack.c.l.b16 %v7871
      %v9120 = vunpack.c.l.b16 %v7875
      %v9121 = vunpack.c.l.b16 %v7878
      %v9122 = vunpack.c.l.b16 %v7882
      %v9123 = vunpack.c.l.b16 %v7885
      %v9124 = vunpack.c.l.b16 %v7889
      %v9125 = vunpack.c.l.b16 %v7892
      %v9126 = vpack.c.b16 %v9095, %v9094
      %v9127 = vpack.c.b16 %v9097, %v9096
      %v9128 = vpack.c.b16 %v9099, %v9098
      %v9129 = vpack.c.b16 %v9101, %v9100
      %v9130 = vpack.c.b16 %v9103, %v9102
      %v9131 = vpack.c.b16 %v9105, %v9104
      %v9132 = vpack.c.b16 %v9107, %v9106
      %v9133 = vpack.c.b16 %v9109, %v9108
      %v9134 = vpack.c.b16 %v9111, %v9110
      %v9135 = vpack.c.b16 %v9113, %v9112
      %v9136 = vpack.c.b16 %v9115, %v9114
      %v9137 = vpack.c.b16 %v9117, %v9116
      %v9138 = vpack.c.b16 %v9119, %v9118
      %v9139 = vpack.c.b16 %v9121, %v9120
      %v9140 = vpack.c.b16 %v9123, %v9122
      %v9141 = vpack.c.b16 %v9125, %v9124
      %9142 = vrot.lane.b32.xlu0 %v9126, 64
      %v9143 = vpop.permute.xlu0 %9142
      %9144 = vrot.lane.b32.xlu0 %v9127, 64
      %v9145 = vpop.permute.xlu0 %9144
      %9146 = vrot.lane.b32.xlu0 %v9128, 64
      %v9147 = vpop.permute.xlu0 %9146
      %9148 = vrot.lane.b32.xlu0 %v9129, 64
      %v9149 = vpop.permute.xlu0 %9148
      %9150 = vrot.lane.b32.xlu0 %v9130, 64
      %v9151 = vpop.permute.xlu0 %9150
      %9152 = vrot.lane.b32.xlu0 %v9131, 64
      %v9153 = vpop.permute.xlu0 %9152
      %9154 = vrot.lane.b32.xlu0 %v9132, 64
      %v9155 = vpop.permute.xlu0 %9154
      %9156 = vrot.lane.b32.xlu0 %v9133, 64
      %v9157 = vpop.permute.xlu0 %9156
      %9158 = vrot.lane.b32.xlu0 %v9134, 64
      %v9159 = vpop.permute.xlu0 %9158
      %9160 = vrot.lane.b32.xlu0 %v9135, 64
      %v9161 = vpop.permute.xlu0 %9160
      %9162 = vrot.lane.b32.xlu0 %v9136, 64
      %v9163 = vpop.permute.xlu0 %9162
      %9164 = vrot.lane.b32.xlu0 %v9137, 64
      %v9165 = vpop.permute.xlu0 %9164
      %9166 = vrot.lane.b32.xlu0 %v9138, 64
      %v9167 = vpop.permute.xlu0 %9166
      %9168 = vrot.lane.b32.xlu0 %v9139, 64
      %v9169 = vpop.permute.xlu0 %9168
      %9170 = vrot.lane.b32.xlu0 %v9140, 64
      %v9171 = vpop.permute.xlu0 %9170
      %9172 = vrot.lane.b32.xlu0 %v9141, 64
      %v9173 = vpop.permute.xlu0 %9172
      %v9174 = vunpack.c.l.b16 %v7955
      %v9175 = vunpack.c.l.b16 %v7965
      %v9176 = vunpack.c.l.b16 %v7979
      %v9177 = vunpack.c.l.b16 %v7989
      %v9178 = vunpack.c.l.b16 %v8003
      %v9179 = vunpack.c.l.b16 %v8013
      %v9180 = vunpack.c.l.b16 %v8027
      %v9181 = vunpack.c.l.b16 %v8037
      %v9182 = vunpack.c.l.b16 %v8051
      %v9183 = vunpack.c.l.b16 %v8061
      %v9184 = vunpack.c.l.b16 %v8075
      %v9185 = vunpack.c.l.b16 %v8085
      %v9186 = vunpack.c.l.b16 %v8099
      %v9187 = vunpack.c.l.b16 %v8109
      %v9188 = vunpack.c.l.b16 %v8123
      %v9189 = vunpack.c.l.b16 %v8133
      %v9190 = vunpack.c.l.b16 %v8147
      %v9191 = vunpack.c.l.b16 %v8157
      %v9192 = vunpack.c.l.b16 %v8171
      %v9193 = vunpack.c.l.b16 %v8181
      %v9194 = vunpack.c.l.b16 %v8195
      %v9195 = vunpack.c.l.b16 %v8205
      %v9196 = vunpack.c.l.b16 %v8219
      %v9197 = vunpack.c.l.b16 %v8229
      %v9198 = vunpack.c.l.b16 %v8243
      %v9199 = vunpack.c.l.b16 %v8253
      %v9200 = vunpack.c.l.b16 %v8267
      %v9201 = vunpack.c.l.b16 %v8277
      %v9202 = vunpack.c.l.b16 %v8291
      %v9203 = vunpack.c.l.b16 %v8301
      %v9204 = vunpack.c.l.b16 %v8315
      %v9205 = vunpack.c.l.b16 %v8325
      %v9206 = vpack.c.b16 %v9175, %v9174
      %v9207 = vpack.c.b16 %v9177, %v9176
      %v9208 = vpack.c.b16 %v9179, %v9178
      %v9209 = vpack.c.b16 %v9181, %v9180
      %v9210 = vpack.c.b16 %v9183, %v9182
      %v9211 = vpack.c.b16 %v9185, %v9184
      %v9212 = vpack.c.b16 %v9187, %v9186
      %v9213 = vpack.c.b16 %v9189, %v9188
      %v9214 = vpack.c.b16 %v9191, %v9190
      %v9215 = vpack.c.b16 %v9193, %v9192
      %v9216 = vpack.c.b16 %v9195, %v9194
      %v9217 = vpack.c.b16 %v9197, %v9196
      %v9218 = vpack.c.b16 %v9199, %v9198
      %v9219 = vpack.c.b16 %v9201, %v9200
      %v9220 = vpack.c.b16 %v9203, %v9202
      %v9221 = vpack.c.b16 %v9205, %v9204
      %v9238 = vunpack.c.l.b16 %v7894
      %v9239 = vunpack.c.l.b16 %v7895
      %v9240 = vunpack.c.l.b16 %v7897
      %v9241 = vunpack.c.l.b16 %v7898
      %v9242 = vunpack.c.l.b16 %v7900
      %v9243 = vunpack.c.l.b16 %v7901
      %v9244 = vunpack.c.l.b16 %v7903
      %v9245 = vunpack.c.l.b16 %v7904
      %v9246 = vunpack.c.l.b16 %v7906
      %v9247 = vunpack.c.l.b16 %v7907
      %v9248 = vunpack.c.l.b16 %v7909
      %v9249 = vunpack.c.l.b16 %v7910
      %v9250 = vunpack.c.l.b16 %v7912
      %v9251 = vunpack.c.l.b16 %v7913
      %v9252 = vunpack.c.l.b16 %v7915
      %v9253 = vunpack.c.l.b16 %v7916
      %v9254 = vunpack.c.l.b16 %v7918
      %v9255 = vunpack.c.l.b16 %v7919
      %v9256 = vunpack.c.l.b16 %v7921
      %v9257 = vunpack.c.l.b16 %v7922
      %v9258 = vunpack.c.l.b16 %v7924
      %v9259 = vunpack.c.l.b16 %v7925
      %v9260 = vunpack.c.l.b16 %v7927
      %v9261 = vunpack.c.l.b16 %v7928
      %v9262 = vunpack.c.l.b16 %v7930
      %v9263 = vunpack.c.l.b16 %v7931
      %v9264 = vunpack.c.l.b16 %v7933
      %v9265 = vunpack.c.l.b16 %v7934
      %v9266 = vunpack.c.l.b16 %v7936
      %v9267 = vunpack.c.l.b16 %v7937
      %v9268 = vunpack.c.l.b16 %v7939
      %v9269 = vunpack.c.l.b16 %v7940
      %v9270 = vpack.c.b16 %v9239, %v9238
      %v9271 = vpack.c.b16 %v9241, %v9240
      %v9272 = vpack.c.b16 %v9243, %v9242
      %v9273 = vpack.c.b16 %v9245, %v9244
      %v9274 = vpack.c.b16 %v9247, %v9246
      %v9275 = vpack.c.b16 %v9249, %v9248
      %v9276 = vpack.c.b16 %v9251, %v9250
      %v9277 = vpack.c.b16 %v9253, %v9252
      %v9278 = vpack.c.b16 %v9255, %v9254
      %v9279 = vpack.c.b16 %v9257, %v9256
      %v9280 = vpack.c.b16 %v9259, %v9258
      %v9281 = vpack.c.b16 %v9261, %v9260
      %v9282 = vpack.c.b16 %v9263, %v9262
      %v9283 = vpack.c.b16 %v9265, %v9264
      %v9284 = vpack.c.b16 %v9267, %v9266
      %v9285 = vpack.c.b16 %v9269, %v9268
      %9286 = vrot.lane.b32.xlu0 %v9206, 64
      %v9287 = vpop.permute.xlu0 %9286
      %9288 = vrot.lane.b32.xlu0 %v9207, 64
      %v9289 = vpop.permute.xlu0 %9288
      %9290 = vrot.lane.b32.xlu0 %v9208, 64
      %v9291 = vpop.permute.xlu0 %9290
      %9292 = vrot.lane.b32.xlu0 %v9209, 64
      %v9293 = vpop.permute.xlu0 %9292
      %9294 = vrot.lane.b32.xlu0 %v9210, 64
      %v9295 = vpop.permute.xlu0 %9294
      %9296 = vrot.lane.b32.xlu0 %v9211, 64
      %v9297 = vpop.permute.xlu0 %9296
      %9298 = vrot.lane.b32.xlu0 %v9212, 64
      %v9299 = vpop.permute.xlu0 %9298
      %9300 = vrot.lane.b32.xlu0 %v9213, 64
      %v9301 = vpop.permute.xlu0 %9300
      %9302 = vrot.lane.b32.xlu0 %v9214, 64
      %v9303 = vpop.permute.xlu0 %9302
      %9304 = vrot.lane.b32.xlu0 %v9215, 64
      %v9305 = vpop.permute.xlu0 %9304
      %9306 = vrot.lane.b32.xlu0 %v9216, 64
      %v9307 = vpop.permute.xlu0 %9306
      %9308 = vrot.lane.b32.xlu0 %v9217, 64
      %v9309 = vpop.permute.xlu0 %9308
      %9310 = vrot.lane.b32.xlu0 %v9218, 64
      %v9311 = vpop.permute.xlu0 %9310
      %9312 = vrot.lane.b32.xlu0 %v9219, 64
      %v9313 = vpop.permute.xlu0 %9312
      %9314 = vrot.lane.b32.xlu0 %v9220, 64
      %v9315 = vpop.permute.xlu0 %9314
      %9316 = vrot.lane.b32.xlu0 %v9221, 64
      %v9317 = vpop.permute.xlu0 %9316
      %v9318 = vunpack.c.l.b16 %v8393
      %v9319 = vunpack.c.l.b16 %v8396
      %v9320 = vunpack.c.l.b16 %v8400
      %v9321 = vunpack.c.l.b16 %v8403
      %v9322 = vunpack.c.l.b16 %v8407
      %v9323 = vunpack.c.l.b16 %v8410
      %v9324 = vunpack.c.l.b16 %v8414
      %v9325 = vunpack.c.l.b16 %v8417
      %v9326 = vunpack.c.l.b16 %v8421
      %v9327 = vunpack.c.l.b16 %v8424
      %v9328 = vunpack.c.l.b16 %v8428
      %v9329 = vunpack.c.l.b16 %v8431
      %v9330 = vunpack.c.l.b16 %v8435
      %v9331 = vunpack.c.l.b16 %v8438
      %v9332 = vunpack.c.l.b16 %v8442
      %v9333 = vunpack.c.l.b16 %v8445
      %v9334 = vunpack.c.l.b16 %v8449
      %v9335 = vunpack.c.l.b16 %v8452
      %v9336 = vunpack.c.l.b16 %v8456
      %v9337 = vunpack.c.l.b16 %v8459
      %v9338 = vunpack.c.l.b16 %v8463
      %v9339 = vunpack.c.l.b16 %v8466
      %v9340 = vunpack.c.l.b16 %v8470
      %v9341 = vunpack.c.l.b16 %v8473
      %v9342 = vunpack.c.l.b16 %v8477
      %v9343 = vunpack.c.l.b16 %v8480
      %v9344 = vunpack.c.l.b16 %v8484
      %v9345 = vunpack.c.l.b16 %v8487
      %v9346 = vunpack.c.l.b16 %v8491
      %v9347 = vunpack.c.l.b16 %v8494
      %v9348 = vunpack.c.l.b16 %v8498
      %v9349 = vunpack.c.l.b16 %v8501
      %v9350 = vpack.c.b16 %v9319, %v9318
      %v9351 = vpack.c.b16 %v9321, %v9320
      %v9352 = vpack.c.b16 %v9323, %v9322
      %v9353 = vpack.c.b16 %v9325, %v9324
      %v9354 = vpack.c.b16 %v9327, %v9326
      %v9355 = vpack.c.b16 %v9329, %v9328
      %v9356 = vpack.c.b16 %v9331, %v9330
      %v9357 = vpack.c.b16 %v9333, %v9332
      %v9358 = vpack.c.b16 %v9335, %v9334
      %v9359 = vpack.c.b16 %v9337, %v9336
      %v9360 = vpack.c.b16 %v9339, %v9338
      %v9361 = vpack.c.b16 %v9341, %v9340
      %v9362 = vpack.c.b16 %v9343, %v9342
      %v9363 = vpack.c.b16 %v9345, %v9344
      %v9364 = vpack.c.b16 %v9347, %v9346
      %v9365 = vpack.c.b16 %v9349, %v9348
      %9366 = vrot.lane.b32.xlu0 %v9350, 64
      %v9367 = vpop.permute.xlu0 %9366
      %9368 = vrot.lane.b32.xlu0 %v9351, 64
      %v9369 = vpop.permute.xlu0 %9368
      %9370 = vrot.lane.b32.xlu0 %v9352, 64
      %v9371 = vpop.permute.xlu0 %9370
      %9372 = vrot.lane.b32.xlu0 %v9353, 64
      %v9373 = vpop.permute.xlu0 %9372
      %9374 = vrot.lane.b32.xlu0 %v9354, 64
      %v9375 = vpop.permute.xlu0 %9374
      %9376 = vrot.lane.b32.xlu0 %v9355, 64
      %v9377 = vpop.permute.xlu0 %9376
      %9378 = vrot.lane.b32.xlu0 %v9356, 64
      %v9379 = vpop.permute.xlu0 %9378
      %9380 = vrot.lane.b32.xlu0 %v9357, 64
      %v9381 = vpop.permute.xlu0 %9380
      %9382 = vrot.lane.b32.xlu0 %v9358, 64
      %v9383 = vpop.permute.xlu0 %9382
      %9384 = vrot.lane.b32.xlu0 %v9359, 64
      %v9385 = vpop.permute.xlu0 %9384
      %9386 = vrot.lane.b32.xlu0 %v9360, 64
      %v9387 = vpop.permute.xlu0 %9386
      %9388 = vrot.lane.b32.xlu0 %v9361, 64
      %v9389 = vpop.permute.xlu0 %9388
      %9390 = vrot.lane.b32.xlu0 %v9362, 64
      %v9391 = vpop.permute.xlu0 %9390
      %9392 = vrot.lane.b32.xlu0 %v9363, 64
      %v9393 = vpop.permute.xlu0 %9392
      %9394 = vrot.lane.b32.xlu0 %v9364, 64
      %v9395 = vpop.permute.xlu0 %9394
      %9396 = vrot.lane.b32.xlu0 %v9365, 64
      %v9397 = vpop.permute.xlu0 %9396
      %v9400 = vsel %vm3543, %v8534, %v8598
      %v9404 = vsel %vm3543, %v8535, %v8599
      %v9408 = vsel %vm3543, %v8536, %v8600
      %v9412 = vsel %vm3543, %v8537, %v8601
      %v9416 = vsel %vm3543, %v8538, %v8602
      %v9420 = vsel %vm3543, %v8539, %v8603
      %v9424 = vsel %vm3543, %v8540, %v8604
      %v9428 = vsel %vm3543, %v8541, %v8605
      %v9432 = vsel %vm3543, %v8542, %v8606
      %v9436 = vsel %vm3543, %v8543, %v8607
      %v9440 = vsel %vm3543, %v8544, %v8608
      %v9444 = vsel %vm3543, %v8545, %v8609
      %v9448 = vsel %vm3543, %v8546, %v8610
      %v9452 = vsel %vm3543, %v8547, %v8611
      %v9456 = vsel %vm3543, %v8548, %v8612
      %v9460 = vsel %vm3543, %v8549, %v8613
      %v9464 = vsel %vm3543, %v8615, %v8695
      %v9468 = vsel %vm3543, %v8617, %v8697
      %v9472 = vsel %vm3543, %v8619, %v8699
      %v9476 = vsel %vm3543, %v8621, %v8701
      %v9480 = vsel %vm3543, %v8623, %v8703
      %v9484 = vsel %vm3543, %v8625, %v8705
      %v9488 = vsel %vm3543, %v8627, %v8707
      %v9492 = vsel %vm3543, %v8629, %v8709
      %v9496 = vsel %vm3543, %v8631, %v8711
      %v9500 = vsel %vm3543, %v8633, %v8713
      %v9504 = vsel %vm3543, %v8635, %v8715
      %v9508 = vsel %vm3543, %v8637, %v8717
      %v9512 = vsel %vm3543, %v8639, %v8719
      %v9516 = vsel %vm3543, %v8641, %v8721
      %v9520 = vsel %vm3543, %v8643, %v8723
      %v9524 = vsel %vm3543, %v8645, %v8725
      %v9528 = vsel %vm3543, %v8758, %v8822
      %v9532 = vsel %vm3543, %v8759, %v8823
      %v9536 = vsel %vm3543, %v8760, %v8824
      %v9540 = vsel %vm3543, %v8761, %v8825
      %v9544 = vsel %vm3543, %v8762, %v8826
      %v9548 = vsel %vm3543, %v8763, %v8827
      %v9552 = vsel %vm3543, %v8764, %v8828
      %v9556 = vsel %vm3543, %v8765, %v8829
      %v9560 = vsel %vm3543, %v8766, %v8830
      %v9564 = vsel %vm3543, %v8767, %v8831
      %v9568 = vsel %vm3543, %v8768, %v8832
      %v9572 = vsel %vm3543, %v8769, %v8833
      %v9576 = vsel %vm3543, %v8770, %v8834
      %v9580 = vsel %vm3543, %v8771, %v8835
      %v9584 = vsel %vm3543, %v8772, %v8836
      %v9588 = vsel %vm3543, %v8773, %v8837
      %v9592 = vsel %vm3543, %v8839, %v8919
      %v9596 = vsel %vm3543, %v8841, %v8921
      %v9600 = vsel %vm3543, %v8843, %v8923
      %v9604 = vsel %vm3543, %v8845, %v8925
      %v9608 = vsel %vm3543, %v8847, %v8927
      %v9612 = vsel %vm3543, %v8849, %v8929
      %v9616 = vsel %vm3543, %v8851, %v8931
      %v9620 = vsel %vm3543, %v8853, %v8933
      %v9624 = vsel %vm3543, %v8855, %v8935
      %v9628 = vsel %vm3543, %v8857, %v8937
      %v9632 = vsel %vm3543, %v8859, %v8939
      %v9636 = vsel %vm3543, %v8861, %v8941
      %v9640 = vsel %vm3543, %v8863, %v8943
      %v9644 = vsel %vm3543, %v8865, %v8945
      %v9648 = vsel %vm3543, %v8867, %v8947
      %v9652 = vsel %vm3543, %v8869, %v8949
      %v9656 = vsel %vm3543, %v8982, %v9046
      %v9660 = vsel %vm3543, %v8983, %v9047
      %v9664 = vsel %vm3543, %v8984, %v9048
      %v9668 = vsel %vm3543, %v8985, %v9049
      %v9672 = vsel %vm3543, %v8986, %v9050
      %v9676 = vsel %vm3543, %v8987, %v9051
      %v9680 = vsel %vm3543, %v8988, %v9052
      %v9684 = vsel %vm3543, %v8989, %v9053
      %v9688 = vsel %vm3543, %v8990, %v9054
      %v9692 = vsel %vm3543, %v8991, %v9055
      %v9696 = vsel %vm3543, %v8992, %v9056
      %v9700 = vsel %vm3543, %v8993, %v9057
      %v9704 = vsel %vm3543, %v8994, %v9058
      %v9708 = vsel %vm3543, %v8995, %v9059
      %v9712 = vsel %vm3543, %v8996, %v9060
      %v9716 = vsel %vm3543, %v8997, %v9061
      %v9720 = vsel %vm3543, %v9063, %v9143
      %v9724 = vsel %vm3543, %v9065, %v9145
      %v9728 = vsel %vm3543, %v9067, %v9147
      %v9732 = vsel %vm3543, %v9069, %v9149
      %v9736 = vsel %vm3543, %v9071, %v9151
      %v9740 = vsel %vm3543, %v9073, %v9153
      %v9744 = vsel %vm3543, %v9075, %v9155
      %v9748 = vsel %vm3543, %v9077, %v9157
      %v9752 = vsel %vm3543, %v9079, %v9159
      %v9756 = vsel %vm3543, %v9081, %v9161
      %v9760 = vsel %vm3543, %v9083, %v9163
      %v9764 = vsel %vm3543, %v9085, %v9165
      %v9768 = vsel %vm3543, %v9087, %v9167
      %v9772 = vsel %vm3543, %v9089, %v9169
      %v9776 = vsel %vm3543, %v9091, %v9171
      %v9780 = vsel %vm3543, %v9093, %v9173
      %v9784 = vsel %vm3543, %v9206, %v9270
      %v9788 = vsel %vm3543, %v9207, %v9271
      %v9792 = vsel %vm3543, %v9208, %v9272
      %v9796 = vsel %vm3543, %v9209, %v9273
      %v9800 = vsel %vm3543, %v9210, %v9274
      %v9804 = vsel %vm3543, %v9211, %v9275
      %v9808 = vsel %vm3543, %v9212, %v9276
      %v9812 = vsel %vm3543, %v9213, %v9277
      %v9816 = vsel %vm3543, %v9214, %v9278
      %v9820 = vsel %vm3543, %v9215, %v9279
      %v9824 = vsel %vm3543, %v9216, %v9280
      %v9828 = vsel %vm3543, %v9217, %v9281
      %v9832 = vsel %vm3543, %v9218, %v9282
      %v9836 = vsel %vm3543, %v9219, %v9283
      %v9840 = vsel %vm3543, %v9220, %v9284
      %v9844 = vsel %vm3543, %v9221, %v9285
      %v9848 = vsel %vm3543, %v9287, %v9367
      %v9852 = vsel %vm3543, %v9289, %v9369
      %v9856 = vsel %vm3543, %v9291, %v9371
      %v9860 = vsel %vm3543, %v9293, %v9373
      %v9864 = vsel %vm3543, %v9295, %v9375
      %v9868 = vsel %vm3543, %v9297, %v9377
      %v9872 = vsel %vm3543, %v9299, %v9379
      %v9876 = vsel %vm3543, %v9301, %v9381
      %v9880 = vsel %vm3543, %v9303, %v9383
      %v9884 = vsel %vm3543, %v9305, %v9385
      %v9888 = vsel %vm3543, %v9307, %v9387
      %v9892 = vsel %vm3543, %v9309, %v9389
      %v9896 = vsel %vm3543, %v9311, %v9391
      %v9900 = vsel %vm3543, %v9313, %v9393
      %v9904 = vsel %vm3543, %v9315, %v9395
      %v9908 = vsel %vm3543, %v9317, %v9397
      %v9910 = vld [vmem:[%s5] sm:$0xff]
      %v9911 = vld [vmem:[%s5 + $0x8] sm:$0xff]
      %v9912 = vld [vmem:[%s5 + $0x10] sm:$0xff]
      %v9913 = vld [vmem:[%s5 + $0x18] sm:$0xff]
      %v9914 = vld [vmem:[%s5 + $0x20] sm:$0xff]
      %v9915 = vld [vmem:[%s5 + $0x28] sm:$0xff]
      %v9916 = vld [vmem:[%s5 + $0x30] sm:$0xff]
      %v9917 = vld [vmem:[%s5 + $0x38] sm:$0xff]
      %v9918 = vld [vmem:[%s5 + $0x40] sm:$0xff]
      %v9919 = vld [vmem:[%s5 + $0x48] sm:$0xff]
      %v9920 = vld [vmem:[%s5 + $0x50] sm:$0xff]
      %v9921 = vld [vmem:[%s5 + $0x58] sm:$0xff]
      %v9922 = vld [vmem:[%s5 + $0x60] sm:$0xff]
      %v9923 = vld [vmem:[%s5 + $0x68] sm:$0xff]
      %v9924 = vld [vmem:[%s5 + $0x70] sm:$0xff]
      %v9925 = vld [vmem:[%s5 + $0x78] sm:$0xff]
      %v9926 = vld [vmem:[%s5 + $0x80] sm:$0xff]
      %v9927 = vld [vmem:[%s5 + $0x88] sm:$0xff]
      %v9928 = vld [vmem:[%s5 + $0x90] sm:$0xff]
      %v9929 = vld [vmem:[%s5 + $0x98] sm:$0xff]
      %v9930 = vld [vmem:[%s5 + $0xa0] sm:$0xff]
      %v9931 = vld [vmem:[%s5 + $0xa8] sm:$0xff]
      %v9932 = vld [vmem:[%s5 + $0xb0] sm:$0xff]
      %v9933 = vld [vmem:[%s5 + $0xb8] sm:$0xff]
      %v9934 = vld [vmem:[%s5 + $0xc0] sm:$0xff]
      %v9935 = vld [vmem:[%s5 + $0xc8] sm:$0xff]
      %v9936 = vld [vmem:[%s5 + $0xd0] sm:$0xff]
      %v9937 = vld [vmem:[%s5 + $0xd8] sm:$0xff]
      %v9938 = vld [vmem:[%s5 + $0xe0] sm:$0xff]
      %v9939 = vld [vmem:[%s5 + $0xe8] sm:$0xff]
      %v9940 = vld [vmem:[%s5 + $0xf0] sm:$0xff]
      %v9941 = vld [vmem:[%s5 + $0xf8] sm:$0xff]
      %v9942 = vld [vmem:[%s5 + $0x100] sm:$0xff]
      %v9943 = vld [vmem:[%s5 + $0x108] sm:$0xff]
      %v9944 = vld [vmem:[%s5 + $0x110] sm:$0xff]
      %v9945 = vld [vmem:[%s5 + $0x118] sm:$0xff]
      %v9946 = vld [vmem:[%s5 + $0x120] sm:$0xff]
      %v9947 = vld [vmem:[%s5 + $0x128] sm:$0xff]
      %v9948 = vld [vmem:[%s5 + $0x130] sm:$0xff]
      %v9949 = vld [vmem:[%s5 + $0x138] sm:$0xff]
      %v9950 = vld [vmem:[%s5 + $0x140] sm:$0xff]
      %v9951 = vld [vmem:[%s5 + $0x148] sm:$0xff]
      %v9952 = vld [vmem:[%s5 + $0x150] sm:$0xff]
      %v9953 = vld [vmem:[%s5 + $0x158] sm:$0xff]
      %v9954 = vld [vmem:[%s5 + $0x160] sm:$0xff]
      %v9955 = vld [vmem:[%s5 + $0x168] sm:$0xff]
      %v9956 = vld [vmem:[%s5 + $0x170] sm:$0xff]
      %v9957 = vld [vmem:[%s5 + $0x178] sm:$0xff]
      %v9958 = vld [vmem:[%s5 + $0x180] sm:$0xff]
      %v9959 = vld [vmem:[%s5 + $0x188] sm:$0xff]
      %v9960 = vld [vmem:[%s5 + $0x190] sm:$0xff]
      %v9961 = vld [vmem:[%s5 + $0x198] sm:$0xff]
      %v9962 = vld [vmem:[%s5 + $0x1a0] sm:$0xff]
      %v9963 = vld [vmem:[%s5 + $0x1a8] sm:$0xff]
      %v9964 = vld [vmem:[%s5 + $0x1b0] sm:$0xff]
      %v9965 = vld [vmem:[%s5 + $0x1b8] sm:$0xff]
      %v9966 = vld [vmem:[%s5 + $0x1c0] sm:$0xff]
      %v9967 = vld [vmem:[%s5 + $0x1c8] sm:$0xff]
      %v9968 = vld [vmem:[%s5 + $0x1d0] sm:$0xff]
      %v9969 = vld [vmem:[%s5 + $0x1d8] sm:$0xff]
      %v9970 = vld [vmem:[%s5 + $0x1e0] sm:$0xff]
      %v9971 = vld [vmem:[%s5 + $0x1e8] sm:$0xff]
      %v9972 = vld [vmem:[%s5 + $0x1f0] sm:$0xff]
      %v9973 = vld [vmem:[%s5 + $0x1f8] sm:$0xff]
      %v9974 = vld [vmem:[%s5 + $0x200] sm:$0xff]
      %v9975 = vld [vmem:[%s5 + $0x208] sm:$0xff]
      %v9976 = vld [vmem:[%s5 + $0x210] sm:$0xff]
      %v9977 = vld [vmem:[%s5 + $0x218] sm:$0xff]
      %v9978 = vld [vmem:[%s5 + $0x220] sm:$0xff]
      %v9979 = vld [vmem:[%s5 + $0x228] sm:$0xff]
      %v9980 = vld [vmem:[%s5 + $0x230] sm:$0xff]
      %v9981 = vld [vmem:[%s5 + $0x238] sm:$0xff]
      %v9982 = vld [vmem:[%s5 + $0x240] sm:$0xff]
      %v9983 = vld [vmem:[%s5 + $0x248] sm:$0xff]
      %v9984 = vld [vmem:[%s5 + $0x250] sm:$0xff]
      %v9985 = vld [vmem:[%s5 + $0x258] sm:$0xff]
      %v9986 = vld [vmem:[%s5 + $0x260] sm:$0xff]
      %v9987 = vld [vmem:[%s5 + $0x268] sm:$0xff]
      %v9988 = vld [vmem:[%s5 + $0x270] sm:$0xff]
      %v9989 = vld [vmem:[%s5 + $0x278] sm:$0xff]
      %v9990 = vld [vmem:[%s5 + $0x280] sm:$0xff]
      %v9991 = vld [vmem:[%s5 + $0x288] sm:$0xff]
      %v9992 = vld [vmem:[%s5 + $0x290] sm:$0xff]
      %v9993 = vld [vmem:[%s5 + $0x298] sm:$0xff]
      %v9994 = vld [vmem:[%s5 + $0x2a0] sm:$0xff]
      %v9995 = vld [vmem:[%s5 + $0x2a8] sm:$0xff]
      %v9996 = vld [vmem:[%s5 + $0x2b0] sm:$0xff]
      %v9997 = vld [vmem:[%s5 + $0x2b8] sm:$0xff]
      %v9998 = vld [vmem:[%s5 + $0x2c0] sm:$0xff]
      %v9999 = vld [vmem:[%s5 + $0x2c8] sm:$0xff]
      %v10000 = vld [vmem:[%s5 + $0x2d0] sm:$0xff]
      %v10001 = vld [vmem:[%s5 + $0x2d8] sm:$0xff]
      %v10002 = vld [vmem:[%s5 + $0x2e0] sm:$0xff]
      %v10003 = vld [vmem:[%s5 + $0x2e8] sm:$0xff]
      %v10004 = vld [vmem:[%s5 + $0x2f0] sm:$0xff]
      %v10005 = vld [vmem:[%s5 + $0x2f8] sm:$0xff]
      %v10006 = vld [vmem:[%s5 + $0x300] sm:$0xff]
      %v10007 = vld [vmem:[%s5 + $0x308] sm:$0xff]
      %v10008 = vld [vmem:[%s5 + $0x310] sm:$0xff]
      %v10009 = vld [vmem:[%s5 + $0x318] sm:$0xff]
      %v10010 = vld [vmem:[%s5 + $0x320] sm:$0xff]
      %v10011 = vld [vmem:[%s5 + $0x328] sm:$0xff]
      %v10012 = vld [vmem:[%s5 + $0x330] sm:$0xff]
      %v10013 = vld [vmem:[%s5 + $0x338] sm:$0xff]
      %v10014 = vld [vmem:[%s5 + $0x340] sm:$0xff]
      %v10015 = vld [vmem:[%s5 + $0x348] sm:$0xff]
      %v10016 = vld [vmem:[%s5 + $0x350] sm:$0xff]
      %v10017 = vld [vmem:[%s5 + $0x358] sm:$0xff]
      %v10018 = vld [vmem:[%s5 + $0x360] sm:$0xff]
      %v10019 = vld [vmem:[%s5 + $0x368] sm:$0xff]
      %v10020 = vld [vmem:[%s5 + $0x370] sm:$0xff]
      %v10021 = vld [vmem:[%s5 + $0x378] sm:$0xff]
      %v10022 = vld [vmem:[%s5 + $0x380] sm:$0xff]
      %v10023 = vld [vmem:[%s5 + $0x388] sm:$0xff]
      %v10024 = vld [vmem:[%s5 + $0x390] sm:$0xff]
      %v10025 = vld [vmem:[%s5 + $0x398] sm:$0xff]
      %v10026 = vld [vmem:[%s5 + $0x3a0] sm:$0xff]
      %v10027 = vld [vmem:[%s5 + $0x3a8] sm:$0xff]
      %v10028 = vld [vmem:[%s5 + $0x3b0] sm:$0xff]
      %v10029 = vld [vmem:[%s5 + $0x3b8] sm:$0xff]
      %v10030 = vld [vmem:[%s5 + $0x3c0] sm:$0xff]
      %v10031 = vld [vmem:[%s5 + $0x3c8] sm:$0xff]
      %v10032 = vld [vmem:[%s5 + $0x3d0] sm:$0xff]
      %v10033 = vld [vmem:[%s5 + $0x3d8] sm:$0xff]
      %v10034 = vld [vmem:[%s5 + $0x3e0] sm:$0xff]
      %v10035 = vld [vmem:[%s5 + $0x3e8] sm:$0xff]
      %v10036 = vld [vmem:[%s5 + $0x3f0] sm:$0xff]
      %v10037 = vld [vmem:[%s5 + $0x3f8] sm:$0xff]
      %v10038 = vld [vmem:[%s6] sm:$0x3]
      %v10040 = vlaneseq
      %v10041 = vshrl.u32 %v10040, 7
      %v10042 = vsub.s32 0, %v10041
      %v10043 = vrot.slane %v10038, %v10042
      %v10044 = vlaneseq
      %v10045 = vshrl.u32 %v10044, 7
      %v10046 = vsub.s32 1, %v10045
      %v10047 = vrot.slane %v10038, %v10046
      %v10178 = vunpack.c.l.b16 %v9910
      %v10179 = vunpack.c.h.b16 %v9910
      %v10180 = vunpack.c.l.b16 %v9911
      %v10181 = vunpack.c.h.b16 %v9911
      %v10182 = vunpack.c.l.b16 %v9912
      %v10183 = vunpack.c.h.b16 %v9912
      %v10184 = vunpack.c.l.b16 %v9913
      %v10185 = vunpack.c.h.b16 %v9913
      %v10186 = vunpack.c.l.b16 %v9914
      %v10187 = vunpack.c.h.b16 %v9914
      %v10188 = vunpack.c.l.b16 %v9915
      %v10189 = vunpack.c.h.b16 %v9915
      %v10190 = vunpack.c.l.b16 %v9916
      %v10191 = vunpack.c.h.b16 %v9916
      %v10192 = vunpack.c.l.b16 %v9917
      %v10193 = vunpack.c.h.b16 %v9917
      %v10194 = vunpack.c.l.b16 %v9918
      %v10195 = vunpack.c.h.b16 %v9918
      %v10196 = vunpack.c.l.b16 %v9919
      %v10197 = vunpack.c.h.b16 %v9919
      %v10198 = vunpack.c.l.b16 %v9920
      %v10199 = vunpack.c.h.b16 %v9920
      %v10200 = vunpack.c.l.b16 %v9921
      %v10201 = vunpack.c.h.b16 %v9921
      %v10202 = vunpack.c.l.b16 %v9922
      %v10203 = vunpack.c.h.b16 %v9922
      %v10204 = vunpack.c.l.b16 %v9923
      %v10205 = vunpack.c.h.b16 %v9923
      %v10206 = vunpack.c.l.b16 %v9924
      %v10207 = vunpack.c.h.b16 %v9924
      %v10208 = vunpack.c.l.b16 %v9925
      %v10209 = vunpack.c.h.b16 %v9925
      %v10210 = vunpack.c.l.b16 %v9926
      %v10211 = vunpack.c.h.b16 %v9926
      %v10212 = vunpack.c.l.b16 %v9927
      %v10213 = vunpack.c.h.b16 %v9927
      %v10214 = vunpack.c.l.b16 %v9928
      %v10215 = vunpack.c.h.b16 %v9928
      %v10216 = vunpack.c.l.b16 %v9929
      %v10217 = vunpack.c.h.b16 %v9929
      %v10218 = vunpack.c.l.b16 %v9930
      %v10219 = vunpack.c.h.b16 %v9930
      %v10220 = vunpack.c.l.b16 %v9931
      %v10221 = vunpack.c.h.b16 %v9931
      %v10222 = vunpack.c.l.b16 %v9932
      %v10223 = vunpack.c.h.b16 %v9932
      %v10224 = vunpack.c.l.b16 %v9933
      %v10225 = vunpack.c.h.b16 %v9933
      %v10226 = vunpack.c.l.b16 %v9934
      %v10227 = vunpack.c.h.b16 %v9934
      %v10228 = vunpack.c.l.b16 %v9935
      %v10229 = vunpack.c.h.b16 %v9935
      %v10230 = vunpack.c.l.b16 %v9936
      %v10231 = vunpack.c.h.b16 %v9936
      %v10232 = vunpack.c.l.b16 %v9937
      %v10233 = vunpack.c.h.b16 %v9937
      %v10234 = vunpack.c.l.b16 %v9938
      %v10235 = vunpack.c.h.b16 %v9938
      %v10236 = vunpack.c.l.b16 %v9939
      %v10237 = vunpack.c.h.b16 %v9939
      %v10238 = vunpack.c.l.b16 %v9940
      %v10239 = vunpack.c.h.b16 %v9940
      %v10240 = vunpack.c.l.b16 %v9941
      %v10241 = vunpack.c.h.b16 %v9941
      %v10242 = vunpack.c.l.b16 %v9942
      %v10243 = vunpack.c.h.b16 %v9942
      %v10244 = vunpack.c.l.b16 %v9943
      %v10245 = vunpack.c.h.b16 %v9943
      %v10246 = vunpack.c.l.b16 %v9944
      %v10247 = vunpack.c.h.b16 %v9944
      %v10248 = vunpack.c.l.b16 %v9945
      %v10249 = vunpack.c.h.b16 %v9945
      %v10250 = vunpack.c.l.b16 %v9946
      %v10251 = vunpack.c.h.b16 %v9946
      %v10252 = vunpack.c.l.b16 %v9947
      %v10253 = vunpack.c.h.b16 %v9947
      %v10254 = vunpack.c.l.b16 %v9948
      %v10255 = vunpack.c.h.b16 %v9948
      %v10256 = vunpack.c.l.b16 %v9949
      %v10257 = vunpack.c.h.b16 %v9949
      %v10258 = vunpack.c.l.b16 %v9950
      %v10259 = vunpack.c.h.b16 %v9950
      %v10260 = vunpack.c.l.b16 %v9951
      %v10261 = vunpack.c.h.b16 %v9951
      %v10262 = vunpack.c.l.b16 %v9952
      %v10263 = vunpack.c.h.b16 %v9952
      %v10264 = vunpack.c.l.b16 %v9953
      %v10265 = vunpack.c.h.b16 %v9953
      %v10266 = vunpack.c.l.b16 %v9954
      %v10267 = vunpack.c.h.b16 %v9954
      %v10268 = vunpack.c.l.b16 %v9955
      %v10269 = vunpack.c.h.b16 %v9955
      %v10270 = vunpack.c.l.b16 %v9956
      %v10271 = vunpack.c.h.b16 %v9956
      %v10272 = vunpack.c.l.b16 %v9957
      %v10273 = vunpack.c.h.b16 %v9957
      %v10274 = vunpack.c.l.b16 %v9958
      %v10275 = vunpack.c.h.b16 %v9958
      %v10276 = vunpack.c.l.b16 %v9959
      %v10277 = vunpack.c.h.b16 %v9959
      %v10278 = vunpack.c.l.b16 %v9960
      %v10279 = vunpack.c.h.b16 %v9960
      %v10280 = vunpack.c.l.b16 %v9961
      %v10281 = vunpack.c.h.b16 %v9961
      %v10282 = vunpack.c.l.b16 %v9962
      %v10283 = vunpack.c.h.b16 %v9962
      %v10284 = vunpack.c.l.b16 %v9963
      %v10285 = vunpack.c.h.b16 %v9963
      %v10286 = vunpack.c.l.b16 %v9964
      %v10287 = vunpack.c.h.b16 %v9964
      %v10288 = vunpack.c.l.b16 %v9965
      %v10289 = vunpack.c.h.b16 %v9965
      %v10290 = vunpack.c.l.b16 %v9966
      %v10291 = vunpack.c.h.b16 %v9966
      %v10292 = vunpack.c.l.b16 %v9967
      %v10293 = vunpack.c.h.b16 %v9967
      %v10294 = vunpack.c.l.b16 %v9968
      %v10295 = vunpack.c.h.b16 %v9968
      %v10296 = vunpack.c.l.b16 %v9969
      %v10297 = vunpack.c.h.b16 %v9969
      %v10298 = vunpack.c.l.b16 %v9970
      %v10299 = vunpack.c.h.b16 %v9970
      %v10300 = vunpack.c.l.b16 %v9971
      %v10301 = vunpack.c.h.b16 %v9971
      %v10302 = vunpack.c.l.b16 %v9972
      %v10303 = vunpack.c.h.b16 %v9972
      %v10304 = vunpack.c.l.b16 %v9973
      %v10305 = vunpack.c.h.b16 %v9973
      %v10306 = vunpack.c.l.b16 %v9974
      %v10307 = vunpack.c.h.b16 %v9974
      %v10308 = vunpack.c.l.b16 %v9975
      %v10309 = vunpack.c.h.b16 %v9975
      %v10310 = vunpack.c.l.b16 %v9976
      %v10311 = vunpack.c.h.b16 %v9976
      %v10312 = vunpack.c.l.b16 %v9977
      %v10313 = vunpack.c.h.b16 %v9977
      %v10314 = vunpack.c.l.b16 %v9978
      %v10315 = vunpack.c.h.b16 %v9978
      %v10316 = vunpack.c.l.b16 %v9979
      %v10317 = vunpack.c.h.b16 %v9979
      %v10318 = vunpack.c.l.b16 %v9980
      %v10319 = vunpack.c.h.b16 %v9980
      %v10320 = vunpack.c.l.b16 %v9981
      %v10321 = vunpack.c.h.b16 %v9981
      %v10322 = vunpack.c.l.b16 %v9982
      %v10323 = vunpack.c.h.b16 %v9982
      %v10324 = vunpack.c.l.b16 %v9983
      %v10325 = vunpack.c.h.b16 %v9983
      %v10326 = vunpack.c.l.b16 %v9984
      %v10327 = vunpack.c.h.b16 %v9984
      %v10328 = vunpack.c.l.b16 %v9985
      %v10329 = vunpack.c.h.b16 %v9985
      %v10330 = vunpack.c.l.b16 %v9986
      %v10331 = vunpack.c.h.b16 %v9986
      %v10332 = vunpack.c.l.b16 %v9987
      %v10333 = vunpack.c.h.b16 %v9987
      %v10334 = vunpack.c.l.b16 %v9988
      %v10335 = vunpack.c.h.b16 %v9988
      %v10336 = vunpack.c.l.b16 %v9989
      %v10337 = vunpack.c.h.b16 %v9989
      %v10338 = vunpack.c.l.b16 %v9990
      %v10339 = vunpack.c.h.b16 %v9990
      %v10340 = vunpack.c.l.b16 %v9991
      %v10341 = vunpack.c.h.b16 %v9991
      %v10342 = vunpack.c.l.b16 %v9992
      %v10343 = vunpack.c.h.b16 %v9992
      %v10344 = vunpack.c.l.b16 %v9993
      %v10345 = vunpack.c.h.b16 %v9993
      %v10346 = vunpack.c.l.b16 %v9994
      %v10347 = vunpack.c.h.b16 %v9994
      %v10348 = vunpack.c.l.b16 %v9995
      %v10349 = vunpack.c.h.b16 %v9995
      %v10350 = vunpack.c.l.b16 %v9996
      %v10351 = vunpack.c.h.b16 %v9996
      %v10352 = vunpack.c.l.b16 %v9997
      %v10353 = vunpack.c.h.b16 %v9997
      %v10354 = vunpack.c.l.b16 %v9998
      %v10355 = vunpack.c.h.b16 %v9998
      %v10356 = vunpack.c.l.b16 %v9999
      %v10357 = vunpack.c.h.b16 %v9999
      %v10358 = vunpack.c.l.b16 %v10000
      %v10359 = vunpack.c.h.b16 %v10000
      %v10360 = vunpack.c.l.b16 %v10001
      %v10361 = vunpack.c.h.b16 %v10001
      %v10362 = vunpack.c.l.b16 %v10002
      %v10363 = vunpack.c.h.b16 %v10002
      %v10364 = vunpack.c.l.b16 %v10003
      %v10365 = vunpack.c.h.b16 %v10003
      %v10366 = vunpack.c.l.b16 %v10004
      %v10367 = vunpack.c.h.b16 %v10004
      %v10368 = vunpack.c.l.b16 %v10005
      %v10369 = vunpack.c.h.b16 %v10005
      %v10370 = vunpack.c.l.b16 %v10006
      %v10371 = vunpack.c.h.b16 %v10006
      %v10372 = vunpack.c.l.b16 %v10007
      %v10373 = vunpack.c.h.b16 %v10007
      %v10374 = vunpack.c.l.b16 %v10008
      %v10375 = vunpack.c.h.b16 %v10008
      %v10376 = vunpack.c.l.b16 %v10009
      %v10377 = vunpack.c.h.b16 %v10009
      %v10378 = vunpack.c.l.b16 %v10010
      %v10379 = vunpack.c.h.b16 %v10010
      %v10380 = vunpack.c.l.b16 %v10011
      %v10381 = vunpack.c.h.b16 %v10011
      %v10382 = vunpack.c.l.b16 %v10012
      %v10383 = vunpack.c.h.b16 %v10012
      %v10384 = vunpack.c.l.b16 %v10013
      %v10385 = vunpack.c.h.b16 %v10013
      %v10386 = vunpack.c.l.b16 %v10014
      %v10387 = vunpack.c.h.b16 %v10014
      %v10388 = vunpack.c.l.b16 %v10015
      %v10389 = vunpack.c.h.b16 %v10015
      %v10390 = vunpack.c.l.b16 %v10016
      %v10391 = vunpack.c.h.b16 %v10016
      %v10392 = vunpack.c.l.b16 %v10017
      %v10393 = vunpack.c.h.b16 %v10017
      %v10394 = vunpack.c.l.b16 %v10018
      %v10395 = vunpack.c.h.b16 %v10018
      %v10396 = vunpack.c.l.b16 %v10019
      %v10397 = vunpack.c.h.b16 %v10019
      %v10398 = vunpack.c.l.b16 %v10020
      %v10399 = vunpack.c.h.b16 %v10020
      %v10400 = vunpack.c.l.b16 %v10021
      %v10401 = vunpack.c.h.b16 %v10021
      %v10402 = vunpack.c.l.b16 %v10022
      %v10403 = vunpack.c.h.b16 %v10022
      %v10404 = vunpack.c.l.b16 %v10023
      %v10405 = vunpack.c.h.b16 %v10023
      %v10406 = vunpack.c.l.b16 %v10024
      %v10407 = vunpack.c.h.b16 %v10024
      %v10408 = vunpack.c.l.b16 %v10025
      %v10409 = vunpack.c.h.b16 %v10025
      %v10410 = vunpack.c.l.b16 %v10026
      %v10411 = vunpack.c.h.b16 %v10026
      %v10412 = vunpack.c.l.b16 %v10027
      %v10413 = vunpack.c.h.b16 %v10027
      %v10414 = vunpack.c.l.b16 %v10028
      %v10415 = vunpack.c.h.b16 %v10028
      %v10416 = vunpack.c.l.b16 %v10029
      %v10417 = vunpack.c.h.b16 %v10029
      %v10418 = vunpack.c.l.b16 %v10030
      %v10419 = vunpack.c.h.b16 %v10030
      %v10420 = vunpack.c.l.b16 %v10031
      %v10421 = vunpack.c.h.b16 %v10031
      %v10422 = vunpack.c.l.b16 %v10032
      %v10423 = vunpack.c.h.b16 %v10032
      %v10424 = vunpack.c.l.b16 %v10033
      %v10425 = vunpack.c.h.b16 %v10033
      %v10426 = vunpack.c.l.b16 %v10034
      %v10427 = vunpack.c.h.b16 %v10034
      %v10428 = vunpack.c.l.b16 %v10035
      %v10429 = vunpack.c.h.b16 %v10035
      %v10430 = vunpack.c.l.b16 %v10036
      %v10431 = vunpack.c.h.b16 %v10036
      %v10432 = vunpack.c.l.b16 %v10037
      %v10433 = vunpack.c.h.b16 %v10037
      %v10434 = vpack.c.b16 %v10180, %v10178
      %v10435 = vpack.c.b16 %v10181, %v10179
      %v10436 = vpack.c.b16 %v10184, %v10182
      %v10437 = vpack.c.b16 %v10185, %v10183
      %v10438 = vpack.c.b16 %v10188, %v10186
      %v10439 = vpack.c.b16 %v10189, %v10187
      %v10440 = vpack.c.b16 %v10192, %v10190
      %v10441 = vpack.c.b16 %v10193, %v10191
      %v10442 = vpack.c.b16 %v10196, %v10194
      %v10443 = vpack.c.b16 %v10197, %v10195
      %v10444 = vpack.c.b16 %v10200, %v10198
      %v10445 = vpack.c.b16 %v10201, %v10199
      %v10446 = vpack.c.b16 %v10204, %v10202
      %v10447 = vpack.c.b16 %v10205, %v10203
      %v10448 = vpack.c.b16 %v10208, %v10206
      %v10449 = vpack.c.b16 %v10209, %v10207
      %v10450 = vpack.c.b16 %v10212, %v10210
      %v10451 = vpack.c.b16 %v10213, %v10211
      %v10452 = vpack.c.b16 %v10216, %v10214
      %v10453 = vpack.c.b16 %v10217, %v10215
      %v10454 = vpack.c.b16 %v10220, %v10218
      %v10455 = vpack.c.b16 %v10221, %v10219
      %v10456 = vpack.c.b16 %v10224, %v10222
      %v10457 = vpack.c.b16 %v10225, %v10223
      %v10458 = vpack.c.b16 %v10228, %v10226
      %v10459 = vpack.c.b16 %v10229, %v10227
      %v10460 = vpack.c.b16 %v10232, %v10230
      %v10461 = vpack.c.b16 %v10233, %v10231
      %v10462 = vpack.c.b16 %v10236, %v10234
      %v10463 = vpack.c.b16 %v10237, %v10235
      %v10464 = vpack.c.b16 %v10240, %v10238
      %v10465 = vpack.c.b16 %v10241, %v10239
      %v10466 = vpack.c.b16 %v10244, %v10242
      %v10467 = vpack.c.b16 %v10245, %v10243
      %v10468 = vpack.c.b16 %v10248, %v10246
      %v10469 = vpack.c.b16 %v10249, %v10247
      %v10470 = vpack.c.b16 %v10252, %v10250
      %v10471 = vpack.c.b16 %v10253, %v10251
      %v10472 = vpack.c.b16 %v10256, %v10254
      %v10473 = vpack.c.b16 %v10257, %v10255
      %v10474 = vpack.c.b16 %v10260, %v10258
      %v10475 = vpack.c.b16 %v10261, %v10259
      %v10476 = vpack.c.b16 %v10264, %v10262
      %v10477 = vpack.c.b16 %v10265, %v10263
      %v10478 = vpack.c.b16 %v10268, %v10266
      %v10479 = vpack.c.b16 %v10269, %v10267
      %v10480 = vpack.c.b16 %v10272, %v10270
      %v10481 = vpack.c.b16 %v10273, %v10271
      %v10482 = vpack.c.b16 %v10276, %v10274
      %v10483 = vpack.c.b16 %v10277, %v10275
      %v10484 = vpack.c.b16 %v10280, %v10278
      %v10485 = vpack.c.b16 %v10281, %v10279
      %v10486 = vpack.c.b16 %v10284, %v10282
      %v10487 = vpack.c.b16 %v10285, %v10283
      %v10488 = vpack.c.b16 %v10288, %v10286
      %v10489 = vpack.c.b16 %v10289, %v10287
      %v10490 = vpack.c.b16 %v10292, %v10290
      %v10491 = vpack.c.b16 %v10293, %v10291
      %v10492 = vpack.c.b16 %v10296, %v10294
      %v10493 = vpack.c.b16 %v10297, %v10295
      %v10494 = vpack.c.b16 %v10300, %v10298
      %v10495 = vpack.c.b16 %v10301, %v10299
      %v10496 = vpack.c.b16 %v10304, %v10302
      %v10497 = vpack.c.b16 %v10305, %v10303
      %v10498 = vpack.c.b16 %v10308, %v10306
      %v10499 = vpack.c.b16 %v10309, %v10307
      %v10500 = vpack.c.b16 %v10312, %v10310
      %v10501 = vpack.c.b16 %v10313, %v10311
      %v10502 = vpack.c.b16 %v10316, %v10314
      %v10503 = vpack.c.b16 %v10317, %v10315
      %v10504 = vpack.c.b16 %v10320, %v10318
      %v10505 = vpack.c.b16 %v10321, %v10319
      %v10506 = vpack.c.b16 %v10324, %v10322
      %v10507 = vpack.c.b16 %v10325, %v10323
      %v10508 = vpack.c.b16 %v10328, %v10326
      %v10509 = vpack.c.b16 %v10329, %v10327
      %v10510 = vpack.c.b16 %v10332, %v10330
      %v10511 = vpack.c.b16 %v10333, %v10331
      %v10512 = vpack.c.b16 %v10336, %v10334
      %v10513 = vpack.c.b16 %v10337, %v10335
      %v10514 = vpack.c.b16 %v10340, %v10338
      %v10515 = vpack.c.b16 %v10341, %v10339
      %v10516 = vpack.c.b16 %v10344, %v10342
      %v10517 = vpack.c.b16 %v10345, %v10343
      %v10518 = vpack.c.b16 %v10348, %v10346
      %v10519 = vpack.c.b16 %v10349, %v10347
      %v10520 = vpack.c.b16 %v10352, %v10350
      %v10521 = vpack.c.b16 %v10353, %v10351
      %v10522 = vpack.c.b16 %v10356, %v10354
      %v10523 = vpack.c.b16 %v10357, %v10355
      %v10524 = vpack.c.b16 %v10360, %v10358
      %v10525 = vpack.c.b16 %v10361, %v10359
      %v10526 = vpack.c.b16 %v10364, %v10362
      %v10527 = vpack.c.b16 %v10365, %v10363
      %v10528 = vpack.c.b16 %v10368, %v10366
      %v10529 = vpack.c.b16 %v10369, %v10367
      %v10530 = vpack.c.b16 %v10372, %v10370
      %v10531 = vpack.c.b16 %v10373, %v10371
      %v10532 = vpack.c.b16 %v10376, %v10374
      %v10533 = vpack.c.b16 %v10377, %v10375
      %v10534 = vpack.c.b16 %v10380, %v10378
      %v10535 = vpack.c.b16 %v10381, %v10379
      %v10536 = vpack.c.b16 %v10384, %v10382
      %v10537 = vpack.c.b16 %v10385, %v10383
      %v10538 = vpack.c.b16 %v10388, %v10386
      %v10539 = vpack.c.b16 %v10389, %v10387
      %v10540 = vpack.c.b16 %v10392, %v10390
      %v10541 = vpack.c.b16 %v10393, %v10391
      %v10542 = vpack.c.b16 %v10396, %v10394
      %v10543 = vpack.c.b16 %v10397, %v10395
      %v10544 = vpack.c.b16 %v10400, %v10398
      %v10545 = vpack.c.b16 %v10401, %v10399
      %v10546 = vpack.c.b16 %v10404, %v10402
      %v10547 = vpack.c.b16 %v10405, %v10403
      %v10548 = vpack.c.b16 %v10408, %v10406
      %v10549 = vpack.c.b16 %v10409, %v10407
      %v10550 = vpack.c.b16 %v10412, %v10410
      %v10551 = vpack.c.b16 %v10413, %v10411
      %v10552 = vpack.c.b16 %v10416, %v10414
      %v10553 = vpack.c.b16 %v10417, %v10415
      %v10554 = vpack.c.b16 %v10420, %v10418
      %v10555 = vpack.c.b16 %v10421, %v10419
      %v10556 = vpack.c.b16 %v10424, %v10422
      %v10557 = vpack.c.b16 %v10425, %v10423
      %v10558 = vpack.c.b16 %v10428, %v10426
      %v10559 = vpack.c.b16 %v10429, %v10427
      %v10560 = vpack.c.b16 %v10432, %v10430
      %v10561 = vpack.c.b16 %v10433, %v10431
      %10690 = vmatprep.subr.bf16.mxu0 %v10435
      %10691 = vmatpush1.bf16.msra.mxu0 %v10434
      %10692 = vmatprep.subr.bf16.mxu0 %v10437
      %10693 = vmatpush1.bf16.msra.mxu0 %v10436
      %10694 = vmatprep.subr.bf16.mxu0 %v10439
      %10695 = vmatpush1.bf16.msra.mxu0 %v10438
      %10696 = vmatprep.subr.bf16.mxu0 %v10441
      %10697 = vmatpush1.bf16.msra.mxu0 %v10440
      %10698 = vmatprep.subr.bf16.mxu0 %v10443
      %10699 = vmatpush1.bf16.msra.mxu0 %v10442
      %10700 = vmatprep.subr.bf16.mxu0 %v10445
      %10701 = vmatpush1.bf16.msra.mxu0 %v10444
      %10702 = vmatprep.subr.bf16.mxu0 %v10447
      %10703 = vmatpush1.bf16.msra.mxu0 %v10446
      %10704 = vmatprep.subr.bf16.mxu0 %v10449
      %10705 = vmatpush1.bf16.msra.mxu0 %v10448
      %10706 = vmatprep.subr.bf16.mxu0 %v10451
      %10707 = vmatpush1.bf16.msra.mxu0 %v10450
      %10708 = vmatprep.subr.bf16.mxu0 %v10453
      %10709 = vmatpush1.bf16.msra.mxu0 %v10452
      %10710 = vmatprep.subr.bf16.mxu0 %v10455
      %10711 = vmatpush1.bf16.msra.mxu0 %v10454
      %10712 = vmatprep.subr.bf16.mxu0 %v10457
      %10713 = vmatpush1.bf16.msra.mxu0 %v10456
      %10714 = vmatprep.subr.bf16.mxu0 %v10459
      %10715 = vmatpush1.bf16.msra.mxu0 %v10458
      %10716 = vmatprep.subr.bf16.mxu0 %v10461
      %10717 = vmatpush1.bf16.msra.mxu0 %v10460
      %10718 = vmatprep.subr.bf16.mxu0 %v10463
      %10719 = vmatpush1.bf16.msra.mxu0 %v10462
      %10720 = vmatprep.subr.bf16.mxu0 %v10465
      %10721 = vmatpush1.bf16.msra.mxu0 %v10464
      %10722 = vmatprep.mubr.bf16.mxu0 %v9464
      %10723 = vmatmul.mubr.bf16.gmra.mrb[0].mxu0 %v9400
      %v10724 = vpop.f32.mrb[0].mxu0
      %v10725 = vadd.f32 %v10043, %v10724
      %v10726 = vpop.f32.mrb[0].mxu0
      %v10727 = vadd.f32 %v10047, %v10726
      %v10728 = vpop.f32.mrb[0].mxu0
      %v10729 = vadd.f32 %v10043, %v10728
      %v10730 = vpop.f32.mrb[0].mxu0
      %v10731 = vadd.f32 %v10047, %v10730
      %10732 = vmatprep.mubr.bf16.mxu0 %v9468
      %10733 = vmatmul.mubr.bf16.gmra.mrb[0].mxu0 %v9404
      %v10734 = vpop.f32.mrb[0].mxu0
      %v10735 = vadd.f32 %v10043, %v10734
      %v10736 = vpop.f32.mrb[0].mxu0
      %v10737 = vadd.f32 %v10047, %v10736
      %v10738 = vpop.f32.mrb[0].mxu0
      %v10739 = vadd.f32 %v10043, %v10738
      %v10740 = vpop.f32.mrb[0].mxu0
      %v10741 = vadd.f32 %v10047, %v10740
      %10742 = vmatprep.mubr.bf16.mxu0 %v9472
      %10743 = vmatmul.mubr.bf16.gmra.mrb[0].mxu0 %v9408
      %v10744 = vpop.f32.mrb[0].mxu0
      %v10745 = vadd.f32 %v10043, %v10744
      %v10746 = vpop.f32.mrb[0].mxu0
      %v10747 = vadd.f32 %v10047, %v10746
      %v10748 = vpop.f32.mrb[0].mxu0
      %v10749 = vadd.f32 %v10043, %v10748
      %v10750 = vpop.f32.mrb[0].mxu0
      %v10751 = vadd.f32 %v10047, %v10750
      %10752 = vmatprep.mubr.bf16.mxu0 %v9476
      %10753 = vmatmul.mubr.bf16.gmra.mrb[0].mxu0 %v9412
      %v10754 = vpop.f32.mrb[0].mxu0
      %v10755 = vadd.f32 %v10043, %v10754
      %v10756 = vpop.f32.mrb[0].mxu0
      %v10757 = vadd.f32 %v10047, %v10756
      %v10758 = vpop.f32.mrb[0].mxu0
      %v10759 = vadd.f32 %v10043, %v10758
      %v10760 = vpop.f32.mrb[0].mxu0
      %v10761 = vadd.f32 %v10047, %v10760
      %10762 = vmatprep.mubr.bf16.mxu0 %v9480
      %10763 = vmatmul.mubr.bf16.gmra.mrb[0].mxu0 %v9416
      %v10764 = vpop.f32.mrb[0].mxu0
      %v10765 = vadd.f32 %v10043, %v10764
      %v10766 = vpop.f32.mrb[0].mxu0
      %v10767 = vadd.f32 %v10047, %v10766
      %v10768 = vpop.f32.mrb[0].mxu0
      %v10769 = vadd.f32 %v10043, %v10768
      %v10770 = vpop.f32.mrb[0].mxu0
      %v10771 = vadd.f32 %v10047, %v10770
      %10772 = vmatprep.mubr.bf16.mxu0 %v9484
      %10773 = vmatmul.mubr.bf16.gmra.mrb[0].mxu0 %v9420
      %v10774 = vpop.f32.mrb[0].mxu0
      %v10775 = vadd.f32 %v10043, %v10774
      %v10776 = vpop.f32.mrb[0].mxu0
      %v10777 = vadd.f32 %v10047, %v10776
      %v10778 = vpop.f32.mrb[0].mxu0
      %v10779 = vadd.f32 %v10043, %v10778
      %v10780 = vpop.f32.mrb[0].mxu0
      %v10781 = vadd.f32 %v10047, %v10780
      %10782 = vmatprep.mubr.bf16.mxu0 %v9488
      %10783 = vmatmul.mubr.bf16.gmra.mrb[0].mxu0 %v9424
      %v10784 = vpop.f32.mrb[0].mxu0
      %v10785 = vadd.f32 %v10043, %v10784
      %v10786 = vpop.f32.mrb[0].mxu0
      %v10787 = vadd.f32 %v10047, %v10786
      %v10788 = vpop.f32.mrb[0].mxu0
      %v10789 = vadd.f32 %v10043, %v10788
      %v10790 = vpop.f32.mrb[0].mxu0
      %v10791 = vadd.f32 %v10047, %v10790
      %10792 = vmatprep.mubr.bf16.mxu0 %v9492
      %10793 = vmatmul.mubr.bf16.gmra.mrb[0].mxu0 %v9428
      %v10794 = vpop.f32.mrb[0].mxu0
      %v10795 = vadd.f32 %v10043, %v10794
      %v10796 = vpop.f32.mrb[0].mxu0
      %v10797 = vadd.f32 %v10047, %v10796
      %v10798 = vpop.f32.mrb[0].mxu0
      %v10799 = vadd.f32 %v10043, %v10798
      %v10800 = vpop.f32.mrb[0].mxu0
      %v10801 = vadd.f32 %v10047, %v10800
      %10802 = vmatprep.mubr.bf16.mxu0 %v9496
      %10803 = vmatmul.mubr.bf16.gmra.mrb[0].mxu0 %v9432
      %v10804 = vpop.f32.mrb[0].mxu0
      %v10805 = vadd.f32 %v10043, %v10804
      %v10806 = vpop.f32.mrb[0].mxu0
      %v10807 = vadd.f32 %v10047, %v10806
      %v10808 = vpop.f32.mrb[0].mxu0
      %v10809 = vadd.f32 %v10043, %v10808
      %v10810 = vpop.f32.mrb[0].mxu0
      %v10811 = vadd.f32 %v10047, %v10810
      %10812 = vmatprep.mubr.bf16.mxu0 %v9500
      %10813 = vmatmul.mubr.bf16.gmra.mrb[0].mxu0 %v9436
      %v10814 = vpop.f32.mrb[0].mxu0
      %v10815 = vadd.f32 %v10043, %v10814
      %v10816 = vpop.f32.mrb[0].mxu0
      %v10817 = vadd.f32 %v10047, %v10816
      %v10818 = vpop.f32.mrb[0].mxu0
      %v10819 = vadd.f32 %v10043, %v10818
      %v10820 = vpop.f32.mrb[0].mxu0
      %v10821 = vadd.f32 %v10047, %v10820
      %10822 = vmatprep.mubr.bf16.mxu0 %v9504
      %10823 = vmatmul.mubr.bf16.gmra.mrb[0].mxu0 %v9440
      %v10824 = vpop.f32.mrb[0].mxu0
      %v10825 = vadd.f32 %v10043, %v10824
      %v10826 = vpop.f32.mrb[0].mxu0
      %v10827 = vadd.f32 %v10047, %v10826
      %v10828 = vpop.f32.mrb[0].mxu0
      %v10829 = vadd.f32 %v10043, %v10828
      %v10830 = vpop.f32.mrb[0].mxu0
      %v10831 = vadd.f32 %v10047, %v10830
      %10832 = vmatprep.mubr.bf16.mxu0 %v9508
      %10833 = vmatmul.mubr.bf16.gmra.mrb[0].mxu0 %v9444
      %v10834 = vpop.f32.mrb[0].mxu0
      %v10835 = vadd.f32 %v10043, %v10834
      %v10836 = vpop.f32.mrb[0].mxu0
      %v10837 = vadd.f32 %v10047, %v10836
      %v10838 = vpop.f32.mrb[0].mxu0
      %v10839 = vadd.f32 %v10043, %v10838
      %v10840 = vpop.f32.mrb[0].mxu0
      %v10841 = vadd.f32 %v10047, %v10840
      %10842 = vmatprep.mubr.bf16.mxu0 %v9512
      %10843 = vmatmul.mubr.bf16.gmra.mrb[0].mxu0 %v9448
      %v10844 = vpop.f32.mrb[0].mxu0
      %v10845 = vadd.f32 %v10043, %v10844
      %v10846 = vpop.f32.mrb[0].mxu0
      %v10847 = vadd.f32 %v10047, %v10846
      %v10848 = vpop.f32.mrb[0].mxu0
      %v10849 = vadd.f32 %v10043, %v10848
      %v10850 = vpop.f32.mrb[0].mxu0
      %v10851 = vadd.f32 %v10047, %v10850
      %10852 = vmatprep.mubr.bf16.mxu0 %v9516
      %10853 = vmatmul.mubr.bf16.gmra.mrb[0].mxu0 %v9452
      %v10854 = vpop.f32.mrb[0].mxu0
      %v10855 = vadd.f32 %v10043, %v10854
      %v10856 = vpop.f32.mrb[0].mxu0
      %v10857 = vadd.f32 %v10047, %v10856
      %v10858 = vpop.f32.mrb[0].mxu0
      %v10859 = vadd.f32 %v10043, %v10858
      %v10860 = vpop.f32.mrb[0].mxu0
      %v10861 = vadd.f32 %v10047, %v10860
      %10862 = vmatprep.mubr.bf16.mxu0 %v9520
      %10863 = vmatmul.mubr.bf16.gmra.mrb[0].mxu0 %v9456
      %v10864 = vpop.f32.mrb[0].mxu0
      %v10865 = vadd.f32 %v10043, %v10864
      %v10866 = vpop.f32.mrb[0].mxu0
      %v10867 = vadd.f32 %v10047, %v10866
      %v10868 = vpop.f32.mrb[0].mxu0
      %v10869 = vadd.f32 %v10043, %v10868
      %v10870 = vpop.f32.mrb[0].mxu0
      %v10871 = vadd.f32 %v10047, %v10870
      %10872 = vmatprep.mubr.bf16.mxu0 %v9524
      %10873 = vmatmul.mubr.bf16.gmra.mrb[0].mxu0 %v9460
      %v10874 = vpop.f32.mrb[0].mxu0
      %v10875 = vadd.f32 %v10043, %v10874
      %v10876 = vpop.f32.mrb[0].mxu0
      %v10877 = vadd.f32 %v10047, %v10876
      %v10878 = vpop.f32.mrb[0].mxu0
      %v10879 = vadd.f32 %v10043, %v10878
      %v10880 = vpop.f32.mrb[0].mxu0
      %v10881 = vadd.f32 %v10047, %v10880
      %10882 = vdwg.mxu0
      %10883 = vmatprep.subr.bf16.mxu0 %v10467
      %10884 = vmatpush1.bf16.msra.mxu0 %v10466
      %10885 = vmatprep.subr.bf16.mxu0 %v10469
      %10886 = vmatpush1.bf16.msra.mxu0 %v10468
      %10887 = vmatprep.subr.bf16.mxu0 %v10471
      %10888 = vmatpush1.bf16.msra.mxu0 %v10470
      %10889 = vmatprep.subr.bf16.mxu0 %v10473
      %10890 = vmatpush1.bf16.msra.mxu0 %v10472
      %10891 = vmatprep.subr.bf16.mxu0 %v10475
      %10892 = vmatpush1.bf16.msra.mxu0 %v10474
      %10893 = vmatprep.subr.bf16.mxu0 %v10477
      %10894 = vmatpush1.bf16.msra.mxu0 %v10476
      %10895 = vmatprep.subr.bf16.mxu0 %v10479
      %10896 = vmatpush1.bf16.msra.mxu0 %v10478
      %10897 = vmatprep.subr.bf16.mxu0 %v10481
      %10898 = vmatpush1.bf16.msra.mxu0 %v10480
      %10899 = vmatprep.subr.bf16.mxu0 %v10483
      %10900 = vmatpush1.bf16.msra.mxu0 %v10482
      %10901 = vmatprep.subr.bf16.mxu0 %v10485
      %10902 = vmatpush1.bf16.msra.mxu0 %v10484
      %10903 = vmatprep.subr.bf16.mxu0 %v10487
      %10904 = vmatpush1.bf16.msra.mxu0 %v10486
      %10905 = vmatprep.subr.bf16.mxu0 %v10489
      %10906 = vmatpush1.bf16.msra.mxu0 %v10488
      %10907 = vmatprep.subr.bf16.mxu0 %v10491
      %10908 = vmatpush1.bf16.msra.mxu0 %v10490
      %10909 = vmatprep.subr.bf16.mxu0 %v10493
      %10910 = vmatpush1.bf16.msra.mxu0 %v10492
      %10911 = vmatprep.subr.bf16.mxu0 %v10495
      %10912 = vmatpush1.bf16.msra.mxu0 %v10494
      %10913 = vmatprep.subr.bf16.mxu0 %v10497
      %10914 = vmatpush1.bf16.msra.mxu0 %v10496
      %10915 = vmatprep.mubr.bf16.mxu0 %v9592
      %10916 = vmatmul.mubr.bf16.gmra.mrb[0].mxu0 %v9528
      %v10917 = vpop.f32.mrb[0].mxu0
      %v10918 = vadd.f32 %v10725, %v10917
      %v10919 = vpop.f32.mrb[0].mxu0
      %v10920 = vadd.f32 %v10727, %v10919
      %v10921 = vpop.f32.mrb[0].mxu0
      %v10922 = vadd.f32 %v10729, %v10921
      %v10923 = vpop.f32.mrb[0].mxu0
      %v10924 = vadd.f32 %v10731, %v10923
      %10925 = vmatprep.mubr.bf16.mxu0 %v9596
      %10926 = vmatmul.mubr.bf16.gmra.mrb[0].mxu0 %v9532
      %v10927 = vpop.f32.mrb[0].mxu0
      %v10928 = vadd.f32 %v10735, %v10927
      %v10929 = vpop.f32.mrb[0].mxu0
      %v10930 = vadd.f32 %v10737, %v10929
      %v10931 = vpop.f32.mrb[0].mxu0
      %v10932 = vadd.f32 %v10739, %v10931
      %v10933 = vpop.f32.mrb[0].mxu0
      %v10934 = vadd.f32 %v10741, %v10933
      %10935 = vmatprep.mubr.bf16.mxu0 %v9600
      %10936 = vmatmul.mubr.bf16.gmra.mrb[0].mxu0 %v9536
      %v10937 = vpop.f32.mrb[0].mxu0
      %v10938 = vadd.f32 %v10745, %v10937
      %v10939 = vpop.f32.mrb[0].mxu0
      %v10940 = vadd.f32 %v10747, %v10939
      %v10941 = vpop.f32.mrb[0].mxu0
      %v10942 = vadd.f32 %v10749, %v10941
      %v10943 = vpop.f32.mrb[0].mxu0
      %v10944 = vadd.f32 %v10751, %v10943
      %10945 = vmatprep.mubr.bf16.mxu0 %v9604
      %10946 = vmatmul.mubr.bf16.gmra.mrb[0].mxu0 %v9540
      %v10947 = vpop.f32.mrb[0].mxu0
      %v10948 = vadd.f32 %v10755, %v10947
      %v10949 = vpop.f32.mrb[0].mxu0
      %v10950 = vadd.f32 %v10757, %v10949
      %v10951 = vpop.f32.mrb[0].mxu0
      %v10952 = vadd.f32 %v10759, %v10951
      %v10953 = vpop.f32.mrb[0].mxu0
      %v10954 = vadd.f32 %v10761, %v10953
      %10955 = vmatprep.mubr.bf16.mxu0 %v9608
      %10956 = vmatmul.mubr.bf16.gmra.mrb[0].mxu0 %v9544
      %v10957 = vpop.f32.mrb[0].mxu0
      %v10958 = vadd.f32 %v10765, %v10957
      %v10959 = vpop.f32.mrb[0].mxu0
      %v10960 = vadd.f32 %v10767, %v10959
      %v10961 = vpop.f32.mrb[0].mxu0
      %v10962 = vadd.f32 %v10769, %v10961
      %v10963 = vpop.f32.mrb[0].mxu0
      %v10964 = vadd.f32 %v10771, %v10963
      %10965 = vmatprep.mubr.bf16.mxu0 %v9612
      %10966 = vmatmul.mubr.bf16.gmra.mrb[0].mxu0 %v9548
      %v10967 = vpop.f32.mrb[0].mxu0
      %v10968 = vadd.f32 %v10775, %v10967
      %v10969 = vpop.f32.mrb[0].mxu0
      %v10970 = vadd.f32 %v10777, %v10969
      %v10971 = vpop.f32.mrb[0].mxu0
      %v10972 = vadd.f32 %v10779, %v10971
      %v10973 = vpop.f32.mrb[0].mxu0
      %v10974 = vadd.f32 %v10781, %v10973
      %10975 = vmatprep.mubr.bf16.mxu0 %v9616
      %10976 = vmatmul.mubr.bf16.gmra.mrb[0].mxu0 %v9552
      %v10977 = vpop.f32.mrb[0].mxu0
      %v10978 = vadd.f32 %v10785, %v10977
      %v10979 = vpop.f32.mrb[0].mxu0
      %v10980 = vadd.f32 %v10787, %v10979
      %v10981 = vpop.f32.mrb[0].mxu0
      %v10982 = vadd.f32 %v10789, %v10981
      %v10983 = vpop.f32.mrb[0].mxu0
      %v10984 = vadd.f32 %v10791, %v10983
      %10985 = vmatprep.mubr.bf16.mxu0 %v9620
      %10986 = vmatmul.mubr.bf16.gmra.mrb[0].mxu0 %v9556
      %v10987 = vpop.f32.mrb[0].mxu0
      %v10988 = vadd.f32 %v10795, %v10987
      %v10989 = vpop.f32.mrb[0].mxu0
      %v10990 = vadd.f32 %v10797, %v10989
      %v10991 = vpop.f32.mrb[0].mxu0
      %v10992 = vadd.f32 %v10799, %v10991
      %v10993 = vpop.f32.mrb[0].mxu0
      %v10994 = vadd.f32 %v10801, %v10993
      %10995 = vmatprep.mubr.bf16.mxu0 %v9624
      %10996 = vmatmul.mubr.bf16.gmra.mrb[0].mxu0 %v9560
      %v10997 = vpop.f32.mrb[0].mxu0
      %v10998 = vadd.f32 %v10805, %v10997
      %v10999 = vpop.f32.mrb[0].mxu0
      %v11000 = vadd.f32 %v10807, %v10999
      %v11001 = vpop.f32.mrb[0].mxu0
      %v11002 = vadd.f32 %v10809, %v11001
      %v11003 = vpop.f32.mrb[0].mxu0
      %v11004 = vadd.f32 %v10811, %v11003
      %11005 = vmatprep.mubr.bf16.mxu0 %v9628
      %11006 = vmatmul.mubr.bf16.gmra.mrb[0].mxu0 %v9564
      %v11007 = vpop.f32.mrb[0].mxu0
      %v11008 = vadd.f32 %v10815, %v11007
      %v11009 = vpop.f32.mrb[0].mxu0
      %v11010 = vadd.f32 %v10817, %v11009
      %v11011 = vpop.f32.mrb[0].mxu0
      %v11012 = vadd.f32 %v10819, %v11011
      %v11013 = vpop.f32.mrb[0].mxu0
      %v11014 = vadd.f32 %v10821, %v11013
      %11015 = vmatprep.mubr.bf16.mxu0 %v9632
      %11016 = vmatmul.mubr.bf16.gmra.mrb[0].mxu0 %v9568
      %v11017 = vpop.f32.mrb[0].mxu0
      %v11018 = vadd.f32 %v10825, %v11017
      %v11019 = vpop.f32.mrb[0].mxu0
      %v11020 = vadd.f32 %v10827, %v11019
      %v11021 = vpop.f32.mrb[0].mxu0
      %v11022 = vadd.f32 %v10829, %v11021
      %v11023 = vpop.f32.mrb[0].mxu0
      %v11024 = vadd.f32 %v10831, %v11023
      %11025 = vmatprep.mubr.bf16.mxu0 %v9636
      %11026 = vmatmul.mubr.bf16.gmra.mrb[0].mxu0 %v9572
      %v11027 = vpop.f32.mrb[0].mxu0
      %v11028 = vadd.f32 %v10835, %v11027
      %v11029 = vpop.f32.mrb[0].mxu0
      %v11030 = vadd.f32 %v10837, %v11029
      %v11031 = vpop.f32.mrb[0].mxu0
      %v11032 = vadd.f32 %v10839, %v11031
      %v11033 = vpop.f32.mrb[0].mxu0
      %v11034 = vadd.f32 %v10841, %v11033
      %11035 = vmatprep.mubr.bf16.mxu0 %v9640
      %11036 = vmatmul.mubr.bf16.gmra.mrb[0].mxu0 %v9576
      %v11037 = vpop.f32.mrb[0].mxu0
      %v11038 = vadd.f32 %v10845, %v11037
      %v11039 = vpop.f32.mrb[0].mxu0
      %v11040 = vadd.f32 %v10847, %v11039
      %v11041 = vpop.f32.mrb[0].mxu0
      %v11042 = vadd.f32 %v10849, %v11041
      %v11043 = vpop.f32.mrb[0].mxu0
      %v11044 = vadd.f32 %v10851, %v11043
      %11045 = vmatprep.mubr.bf16.mxu0 %v9644
      %11046 = vmatmul.mubr.bf16.gmra.mrb[0].mxu0 %v9580
      %v11047 = vpop.f32.mrb[0].mxu0
      %v11048 = vadd.f32 %v10855, %v11047
      %v11049 = vpop.f32.mrb[0].mxu0
      %v11050 = vadd.f32 %v10857, %v11049
      %v11051 = vpop.f32.mrb[0].mxu0
      %v11052 = vadd.f32 %v10859, %v11051
      %v11053 = vpop.f32.mrb[0].mxu0
      %v11054 = vadd.f32 %v10861, %v11053
      %11055 = vmatprep.mubr.bf16.mxu0 %v9648
      %11056 = vmatmul.mubr.bf16.gmra.mrb[0].mxu0 %v9584
      %v11057 = vpop.f32.mrb[0].mxu0
      %v11058 = vadd.f32 %v10865, %v11057
      %v11059 = vpop.f32.mrb[0].mxu0
      %v11060 = vadd.f32 %v10867, %v11059
      %v11061 = vpop.f32.mrb[0].mxu0
      %v11062 = vadd.f32 %v10869, %v11061
      %v11063 = vpop.f32.mrb[0].mxu0
      %v11064 = vadd.f32 %v10871, %v11063
      %11065 = vmatprep.mubr.bf16.mxu0 %v9652
      %11066 = vmatmul.mubr.bf16.gmra.mrb[0].mxu0 %v9588
      %v11067 = vpop.f32.mrb[0].mxu0
      %v11068 = vadd.f32 %v10875, %v11067
      %v11069 = vpop.f32.mrb[0].mxu0
      %v11070 = vadd.f32 %v10877, %v11069
      %v11071 = vpop.f32.mrb[0].mxu0
      %v11072 = vadd.f32 %v10879, %v11071
      %v11073 = vpop.f32.mrb[0].mxu0
      %v11074 = vadd.f32 %v10881, %v11073
      %11075 = vdwg.mxu0
      %11076 = vmatprep.subr.bf16.mxu0 %v10499
      %11077 = vmatpush1.bf16.msra.mxu0 %v10498
      %11078 = vmatprep.subr.bf16.mxu0 %v10501
      %11079 = vmatpush1.bf16.msra.mxu0 %v10500
      %11080 = vmatprep.subr.bf16.mxu0 %v10503
      %11081 = vmatpush1.bf16.msra.mxu0 %v10502
      %11082 = vmatprep.subr.bf16.mxu0 %v10505
      %11083 = vmatpush1.bf16.msra.mxu0 %v10504
      %11084 = vmatprep.subr.bf16.mxu0 %v10507
      %11085 = vmatpush1.bf16.msra.mxu0 %v10506
      %11086 = vmatprep.subr.bf16.mxu0 %v10509
      %11087 = vmatpush1.bf16.msra.mxu0 %v10508
      %11088 = vmatprep.subr.bf16.mxu0 %v10511
      %11089 = vmatpush1.bf16.msra.mxu0 %v10510
      %11090 = vmatprep.subr.bf16.mxu0 %v10513
      %11091 = vmatpush1.bf16.msra.mxu0 %v10512
      %11092 = vmatprep.subr.bf16.mxu0 %v10515
      %11093 = vmatpush1.bf16.msra.mxu0 %v10514
      %11094 = vmatprep.subr.bf16.mxu0 %v10517
      %11095 = vmatpush1.bf16.msra.mxu0 %v10516
      %11096 = vmatprep.subr.bf16.mxu0 %v10519
      %11097 = vmatpush1.bf16.msra.mxu0 %v10518
      %11098 = vmatprep.subr.bf16.mxu0 %v10521
      %11099 = vmatpush1.bf16.msra.mxu0 %v10520
      %11100 = vmatprep.subr.bf16.mxu0 %v10523
      %11101 = vmatpush1.bf16.msra.mxu0 %v10522
      %11102 = vmatprep.subr.bf16.mxu0 %v10525
      %11103 = vmatpush1.bf16.msra.mxu0 %v10524
      %11104 = vmatprep.subr.bf16.mxu0 %v10527
      %11105 = vmatpush1.bf16.msra.mxu0 %v10526
      %11106 = vmatprep.subr.bf16.mxu0 %v10529
      %11107 = vmatpush1.bf16.msra.mxu0 %v10528
      %11108 = vmatprep.mubr.bf16.mxu0 %v9720
      %11109 = vmatmul.mubr.bf16.gmra.mrb[0].mxu0 %v9656
      %v11110 = vpop.f32.mrb[0].mxu0
      %v11111 = vadd.f32 %v10918, %v11110
      %v11112 = vpop.f32.mrb[0].mxu0
      %v11113 = vadd.f32 %v10920, %v11112
      %v11114 = vpop.f32.mrb[0].mxu0
      %v11115 = vadd.f32 %v10922, %v11114
      %v11116 = vpop.f32.mrb[0].mxu0
      %v11117 = vadd.f32 %v10924, %v11116
      %11118 = vmatprep.mubr.bf16.mxu0 %v9724
      %11119 = vmatmul.mubr.bf16.gmra.mrb[0].mxu0 %v9660
      %v11120 = vpop.f32.mrb[0].mxu0
      %v11121 = vadd.f32 %v10928, %v11120
      %v11122 = vpop.f32.mrb[0].mxu0
      %v11123 = vadd.f32 %v10930, %v11122
      %v11124 = vpop.f32.mrb[0].mxu0
      %v11125 = vadd.f32 %v10932, %v11124
      %v11126 = vpop.f32.mrb[0].mxu0
      %v11127 = vadd.f32 %v10934, %v11126
      %11128 = vmatprep.mubr.bf16.mxu0 %v9728
      %11129 = vmatmul.mubr.bf16.gmra.mrb[0].mxu0 %v9664
      %v11130 = vpop.f32.mrb[0].mxu0
      %v11131 = vadd.f32 %v10938, %v11130
      %v11132 = vpop.f32.mrb[0].mxu0
      %v11133 = vadd.f32 %v10940, %v11132
      %v11134 = vpop.f32.mrb[0].mxu0
      %v11135 = vadd.f32 %v10942, %v11134
      %v11136 = vpop.f32.mrb[0].mxu0
      %v11137 = vadd.f32 %v10944, %v11136
      %11138 = vmatprep.mubr.bf16.mxu0 %v9732
      %11139 = vmatmul.mubr.bf16.gmra.mrb[0].mxu0 %v9668
      %v11140 = vpop.f32.mrb[0].mxu0
      %v11141 = vadd.f32 %v10948, %v11140
      %v11142 = vpop.f32.mrb[0].mxu0
      %v11143 = vadd.f32 %v10950, %v11142
      %v11144 = vpop.f32.mrb[0].mxu0
      %v11145 = vadd.f32 %v10952, %v11144
      %v11146 = vpop.f32.mrb[0].mxu0
      %v11147 = vadd.f32 %v10954, %v11146
      %11148 = vmatprep.mubr.bf16.mxu0 %v9736
      %11149 = vmatmul.mubr.bf16.gmra.mrb[0].mxu0 %v9672
      %v11150 = vpop.f32.mrb[0].mxu0
      %v11151 = vadd.f32 %v10958, %v11150
      %v11152 = vpop.f32.mrb[0].mxu0
      %v11153 = vadd.f32 %v10960, %v11152
      %v11154 = vpop.f32.mrb[0].mxu0
      %v11155 = vadd.f32 %v10962, %v11154
      %v11156 = vpop.f32.mrb[0].mxu0
      %v11157 = vadd.f32 %v10964, %v11156
      %11158 = vmatprep.mubr.bf16.mxu0 %v9740
      %11159 = vmatmul.mubr.bf16.gmra.mrb[0].mxu0 %v9676
      %v11160 = vpop.f32.mrb[0].mxu0
      %v11161 = vadd.f32 %v10968, %v11160
      %v11162 = vpop.f32.mrb[0].mxu0
      %v11163 = vadd.f32 %v10970, %v11162
      %v11164 = vpop.f32.mrb[0].mxu0
      %v11165 = vadd.f32 %v10972, %v11164
      %v11166 = vpop.f32.mrb[0].mxu0
      %v11167 = vadd.f32 %v10974, %v11166
      %11168 = vmatprep.mubr.bf16.mxu0 %v9744
      %11169 = vmatmul.mubr.bf16.gmra.mrb[0].mxu0 %v9680
      %v11170 = vpop.f32.mrb[0].mxu0
      %v11171 = vadd.f32 %v10978, %v11170
      %v11172 = vpop.f32.mrb[0].mxu0
      %v11173 = vadd.f32 %v10980, %v11172
      %v11174 = vpop.f32.mrb[0].mxu0
      %v11175 = vadd.f32 %v10982, %v11174
      %v11176 = vpop.f32.mrb[0].mxu0
      %v11177 = vadd.f32 %v10984, %v11176
      %11178 = vmatprep.mubr.bf16.mxu0 %v9748
      %11179 = vmatmul.mubr.bf16.gmra.mrb[0].mxu0 %v9684
      %v11180 = vpop.f32.mrb[0].mxu0
      %v11181 = vadd.f32 %v10988, %v11180
      %v11182 = vpop.f32.mrb[0].mxu0
      %v11183 = vadd.f32 %v10990, %v11182
      %v11184 = vpop.f32.mrb[0].mxu0
      %v11185 = vadd.f32 %v10992, %v11184
      %v11186 = vpop.f32.mrb[0].mxu0
      %v11187 = vadd.f32 %v10994, %v11186
      %11188 = vmatprep.mubr.bf16.mxu0 %v9752
      %11189 = vmatmul.mubr.bf16.gmra.mrb[0].mxu0 %v9688
      %v11190 = vpop.f32.mrb[0].mxu0
      %v11191 = vadd.f32 %v10998, %v11190
      %v11192 = vpop.f32.mrb[0].mxu0
      %v11193 = vadd.f32 %v11000, %v11192
      %v11194 = vpop.f32.mrb[0].mxu0
      %v11195 = vadd.f32 %v11002, %v11194
      %v11196 = vpop.f32.mrb[0].mxu0
      %v11197 = vadd.f32 %v11004, %v11196
      %11198 = vmatprep.mubr.bf16.mxu0 %v9756
      %11199 = vmatmul.mubr.bf16.gmra.mrb[0].mxu0 %v9692
      %v11200 = vpop.f32.mrb[0].mxu0
      %v11201 = vadd.f32 %v11008, %v11200
      %v11202 = vpop.f32.mrb[0].mxu0
      %v11203 = vadd.f32 %v11010, %v11202
      %v11204 = vpop.f32.mrb[0].mxu0
      %v11205 = vadd.f32 %v11012, %v11204
      %v11206 = vpop.f32.mrb[0].mxu0
      %v11207 = vadd.f32 %v11014, %v11206
      %11208 = vmatprep.mubr.bf16.mxu0 %v9760
      %11209 = vmatmul.mubr.bf16.gmra.mrb[0].mxu0 %v9696
      %v11210 = vpop.f32.mrb[0].mxu0
      %v11211 = vadd.f32 %v11018, %v11210
      %v11212 = vpop.f32.mrb[0].mxu0
      %v11213 = vadd.f32 %v11020, %v11212
      %v11214 = vpop.f32.mrb[0].mxu0
      %v11215 = vadd.f32 %v11022, %v11214
      %v11216 = vpop.f32.mrb[0].mxu0
      %v11217 = vadd.f32 %v11024, %v11216
      %11218 = vmatprep.mubr.bf16.mxu0 %v9764
      %11219 = vmatmul.mubr.bf16.gmra.mrb[0].mxu0 %v9700
      %v11220 = vpop.f32.mrb[0].mxu0
      %v11221 = vadd.f32 %v11028, %v11220
      %v11222 = vpop.f32.mrb[0].mxu0
      %v11223 = vadd.f32 %v11030, %v11222
      %v11224 = vpop.f32.mrb[0].mxu0
      %v11225 = vadd.f32 %v11032, %v11224
      %v11226 = vpop.f32.mrb[0].mxu0
      %v11227 = vadd.f32 %v11034, %v11226
      %11228 = vmatprep.mubr.bf16.mxu0 %v9768
      %11229 = vmatmul.mubr.bf16.gmra.mrb[0].mxu0 %v9704
      %v11230 = vpop.f32.mrb[0].mxu0
      %v11231 = vadd.f32 %v11038, %v11230
      %v11232 = vpop.f32.mrb[0].mxu0
      %v11233 = vadd.f32 %v11040, %v11232
      %v11234 = vpop.f32.mrb[0].mxu0
      %v11235 = vadd.f32 %v11042, %v11234
      %v11236 = vpop.f32.mrb[0].mxu0
      %v11237 = vadd.f32 %v11044, %v11236
      %11238 = vmatprep.mubr.bf16.mxu0 %v9772
      %11239 = vmatmul.mubr.bf16.gmra.mrb[0].mxu0 %v9708
      %v11240 = vpop.f32.mrb[0].mxu0
      %v11241 = vadd.f32 %v11048, %v11240
      %v11242 = vpop.f32.mrb[0].mxu0
      %v11243 = vadd.f32 %v11050, %v11242
      %v11244 = vpop.f32.mrb[0].mxu0
      %v11245 = vadd.f32 %v11052, %v11244
      %v11246 = vpop.f32.mrb[0].mxu0
      %v11247 = vadd.f32 %v11054, %v11246
      %11248 = vmatprep.mubr.bf16.mxu0 %v9776
      %11249 = vmatmul.mubr.bf16.gmra.mrb[0].mxu0 %v9712
      %v11250 = vpop.f32.mrb[0].mxu0
      %v11251 = vadd.f32 %v11058, %v11250
      %v11252 = vpop.f32.mrb[0].mxu0
      %v11253 = vadd.f32 %v11060, %v11252
      %v11254 = vpop.f32.mrb[0].mxu0
      %v11255 = vadd.f32 %v11062, %v11254
      %v11256 = vpop.f32.mrb[0].mxu0
      %v11257 = vadd.f32 %v11064, %v11256
      %11258 = vmatprep.mubr.bf16.mxu0 %v9780
      %11259 = vmatmul.mubr.bf16.gmra.mrb[0].mxu0 %v9716
      %v11260 = vpop.f32.mrb[0].mxu0
      %v11261 = vadd.f32 %v11068, %v11260
      %v11262 = vpop.f32.mrb[0].mxu0
      %v11263 = vadd.f32 %v11070, %v11262
      %v11264 = vpop.f32.mrb[0].mxu0
      %v11265 = vadd.f32 %v11072, %v11264
      %v11266 = vpop.f32.mrb[0].mxu0
      %v11267 = vadd.f32 %v11074, %v11266
      %11268 = vdwg.mxu0
      %11269 = vmatprep.subr.bf16.mxu0 %v10531
      %11270 = vmatpush1.bf16.msra.mxu0 %v10530
      %11271 = vmatprep.subr.bf16.mxu0 %v10533
      %11272 = vmatpush1.bf16.msra.mxu0 %v10532
      %11273 = vmatprep.subr.bf16.mxu0 %v10535
      %11274 = vmatpush1.bf16.msra.mxu0 %v10534
      %11275 = vmatprep.subr.bf16.mxu0 %v10537
      %11276 = vmatpush1.bf16.msra.mxu0 %v10536
      %11277 = vmatprep.subr.bf16.mxu0 %v10539
      %11278 = vmatpush1.bf16.msra.mxu0 %v10538
      %11279 = vmatprep.subr.bf16.mxu0 %v10541
      %11280 = vmatpush1.bf16.msra.mxu0 %v10540
      %11281 = vmatprep.subr.bf16.mxu0 %v10543
      %11282 = vmatpush1.bf16.msra.mxu0 %v10542
      %11283 = vmatprep.subr.bf16.mxu0 %v10545
      %11284 = vmatpush1.bf16.msra.mxu0 %v10544
      %11285 = vmatprep.subr.bf16.mxu0 %v10547
      %11286 = vmatpush1.bf16.msra.mxu0 %v10546
      %11287 = vmatprep.subr.bf16.mxu0 %v10549
      %11288 = vmatpush1.bf16.msra.mxu0 %v10548
      %11289 = vmatprep.subr.bf16.mxu0 %v10551
      %11290 = vmatpush1.bf16.msra.mxu0 %v10550
      %11291 = vmatprep.subr.bf16.mxu0 %v10553
      %11292 = vmatpush1.bf16.msra.mxu0 %v10552
      %11293 = vmatprep.subr.bf16.mxu0 %v10555
      %11294 = vmatpush1.bf16.msra.mxu0 %v10554
      %11295 = vmatprep.subr.bf16.mxu0 %v10557
      %11296 = vmatpush1.bf16.msra.mxu0 %v10556
      %11297 = vmatprep.subr.bf16.mxu0 %v10559
      %11298 = vmatpush1.bf16.msra.mxu0 %v10558
      %11299 = vmatprep.subr.bf16.mxu0 %v10561
      %11300 = vmatpush1.bf16.msra.mxu0 %v10560
      %11301 = vmatprep.mubr.bf16.mxu0 %v9848
      %11302 = vmatmul.mubr.bf16.gmra.mrb[0].mxu0 %v9784
      %v11303 = vpop.f32.mrb[0].mxu0
      %v11304 = vadd.f32 %v11111, %v11303
      %v11305 = vpop.f32.mrb[0].mxu0
      %v11306 = vadd.f32 %v11113, %v11305
      %v11307 = vpop.f32.mrb[0].mxu0
      %v11308 = vadd.f32 %v11115, %v11307
      %v11309 = vpop.f32.mrb[0].mxu0
      %v11310 = vadd.f32 %v11117, %v11309
      %11311 = vmatprep.mubr.bf16.mxu0 %v9852
      %11312 = vmatmul.mubr.bf16.gmra.mrb[0].mxu0 %v9788
      %v11313 = vpop.f32.mrb[0].mxu0
      %v11314 = vadd.f32 %v11121, %v11313
      %v11315 = vpop.f32.mrb[0].mxu0
      %v11316 = vadd.f32 %v11123, %v11315
      %v11317 = vpop.f32.mrb[0].mxu0
      %v11318 = vadd.f32 %v11125, %v11317
      %v11319 = vpop.f32.mrb[0].mxu0
      %v11320 = vadd.f32 %v11127, %v11319
      %11321 = vmatprep.mubr.bf16.mxu0 %v9856
      %11322 = vmatmul.mubr.bf16.gmra.mrb[0].mxu0 %v9792
      %v11323 = vpop.f32.mrb[0].mxu0
      %v11324 = vadd.f32 %v11131, %v11323
      %v11325 = vpop.f32.mrb[0].mxu0
      %v11326 = vadd.f32 %v11133, %v11325
      %v11327 = vpop.f32.mrb[0].mxu0
      %v11328 = vadd.f32 %v11135, %v11327
      %v11329 = vpop.f32.mrb[0].mxu0
      %v11330 = vadd.f32 %v11137, %v11329
      %11331 = vmatprep.mubr.bf16.mxu0 %v9860
      %11332 = vmatmul.mubr.bf16.gmra.mrb[0].mxu0 %v9796
      %v11333 = vpop.f32.mrb[0].mxu0
      %v11334 = vadd.f32 %v11141, %v11333
      %v11335 = vpop.f32.mrb[0].mxu0
      %v11336 = vadd.f32 %v11143, %v11335
      %v11337 = vpop.f32.mrb[0].mxu0
      %v11338 = vadd.f32 %v11145, %v11337
      %v11339 = vpop.f32.mrb[0].mxu0
      %v11340 = vadd.f32 %v11147, %v11339
      %11341 = vmatprep.mubr.bf16.mxu0 %v9864
      %11342 = vmatmul.mubr.bf16.gmra.mrb[0].mxu0 %v9800
      %v11343 = vpop.f32.mrb[0].mxu0
      %v11344 = vadd.f32 %v11151, %v11343
      %v11345 = vpop.f32.mrb[0].mxu0
      %v11346 = vadd.f32 %v11153, %v11345
      %v11347 = vpop.f32.mrb[0].mxu0
      %v11348 = vadd.f32 %v11155, %v11347
      %v11349 = vpop.f32.mrb[0].mxu0
      %v11350 = vadd.f32 %v11157, %v11349
      %11351 = vmatprep.mubr.bf16.mxu0 %v9868
      %11352 = vmatmul.mubr.bf16.gmra.mrb[0].mxu0 %v9804
      %v11353 = vpop.f32.mrb[0].mxu0
      %v11354 = vadd.f32 %v11161, %v11353
      %v11355 = vpop.f32.mrb[0].mxu0
      %v11356 = vadd.f32 %v11163, %v11355
      %v11357 = vpop.f32.mrb[0].mxu0
      %v11358 = vadd.f32 %v11165, %v11357
      %v11359 = vpop.f32.mrb[0].mxu0
      %v11360 = vadd.f32 %v11167, %v11359
      %11361 = vmatprep.mubr.bf16.mxu0 %v9872
      %11362 = vmatmul.mubr.bf16.gmra.mrb[0].mxu0 %v9808
      %v11363 = vpop.f32.mrb[0].mxu0
      %v11364 = vadd.f32 %v11171, %v11363
      %v11365 = vpop.f32.mrb[0].mxu0
      %v11366 = vadd.f32 %v11173, %v11365
      %v11367 = vpop.f32.mrb[0].mxu0
      %v11368 = vadd.f32 %v11175, %v11367
      %v11369 = vpop.f32.mrb[0].mxu0
      %v11370 = vadd.f32 %v11177, %v11369
      %11371 = vmatprep.mubr.bf16.mxu0 %v9876
      %11372 = vmatmul.mubr.bf16.gmra.mrb[0].mxu0 %v9812
      %v11373 = vpop.f32.mrb[0].mxu0
      %v11374 = vadd.f32 %v11181, %v11373
      %v11375 = vpop.f32.mrb[0].mxu0
      %v11376 = vadd.f32 %v11183, %v11375
      %v11377 = vpop.f32.mrb[0].mxu0
      %v11378 = vadd.f32 %v11185, %v11377
      %v11379 = vpop.f32.mrb[0].mxu0
      %v11380 = vadd.f32 %v11187, %v11379
      %11381 = vmatprep.mubr.bf16.mxu0 %v9880
      %11382 = vmatmul.mubr.bf16.gmra.mrb[0].mxu0 %v9816
      %v11383 = vpop.f32.mrb[0].mxu0
      %v11384 = vadd.f32 %v11191, %v11383
      %v11385 = vpop.f32.mrb[0].mxu0
      %v11386 = vadd.f32 %v11193, %v11385
      %v11387 = vpop.f32.mrb[0].mxu0
      %v11388 = vadd.f32 %v11195, %v11387
      %v11389 = vpop.f32.mrb[0].mxu0
      %v11390 = vadd.f32 %v11197, %v11389
      %11391 = vmatprep.mubr.bf16.mxu0 %v9884
      %11392 = vmatmul.mubr.bf16.gmra.mrb[0].mxu0 %v9820
      %v11393 = vpop.f32.mrb[0].mxu0
      %v11394 = vadd.f32 %v11201, %v11393
      %v11395 = vpop.f32.mrb[0].mxu0
      %v11396 = vadd.f32 %v11203, %v11395
      %v11397 = vpop.f32.mrb[0].mxu0
      %v11398 = vadd.f32 %v11205, %v11397
      %v11399 = vpop.f32.mrb[0].mxu0
      %v11400 = vadd.f32 %v11207, %v11399
      %11401 = vmatprep.mubr.bf16.mxu0 %v9888
      %11402 = vmatmul.mubr.bf16.gmra.mrb[0].mxu0 %v9824
      %v11403 = vpop.f32.mrb[0].mxu0
      %v11404 = vadd.f32 %v11211, %v11403
      %v11405 = vpop.f32.mrb[0].mxu0
      %v11406 = vadd.f32 %v11213, %v11405
      %v11407 = vpop.f32.mrb[0].mxu0
      %v11408 = vadd.f32 %v11215, %v11407
      %v11409 = vpop.f32.mrb[0].mxu0
      %v11410 = vadd.f32 %v11217, %v11409
      %11411 = vmatprep.mubr.bf16.mxu0 %v9892
      %11412 = vmatmul.mubr.bf16.gmra.mrb[0].mxu0 %v9828
      %v11413 = vpop.f32.mrb[0].mxu0
      %v11414 = vadd.f32 %v11221, %v11413
      %v11415 = vpop.f32.mrb[0].mxu0
      %v11416 = vadd.f32 %v11223, %v11415
      %v11417 = vpop.f32.mrb[0].mxu0
      %v11418 = vadd.f32 %v11225, %v11417
      %v11419 = vpop.f32.mrb[0].mxu0
      %v11420 = vadd.f32 %v11227, %v11419
      %11421 = vmatprep.mubr.bf16.mxu0 %v9896
      %11422 = vmatmul.mubr.bf16.gmra.mrb[0].mxu0 %v9832
      %v11423 = vpop.f32.mrb[0].mxu0
      %v11424 = vadd.f32 %v11231, %v11423
      %v11425 = vpop.f32.mrb[0].mxu0
      %v11426 = vadd.f32 %v11233, %v11425
      %v11427 = vpop.f32.mrb[0].mxu0
      %v11428 = vadd.f32 %v11235, %v11427
      %v11429 = vpop.f32.mrb[0].mxu0
      %v11430 = vadd.f32 %v11237, %v11429
      %11431 = vmatprep.mubr.bf16.mxu0 %v9900
      %11432 = vmatmul.mubr.bf16.gmra.mrb[0].mxu0 %v9836
      %v11433 = vpop.f32.mrb[0].mxu0
      %v11434 = vadd.f32 %v11241, %v11433
      %v11435 = vpop.f32.mrb[0].mxu0
      %v11436 = vadd.f32 %v11243, %v11435
      %v11437 = vpop.f32.mrb[0].mxu0
      %v11438 = vadd.f32 %v11245, %v11437
      %v11439 = vpop.f32.mrb[0].mxu0
      %v11440 = vadd.f32 %v11247, %v11439
      %11441 = vmatprep.mubr.bf16.mxu0 %v9904
      %11442 = vmatmul.mubr.bf16.gmra.mrb[0].mxu0 %v9840
      %v11443 = vpop.f32.mrb[0].mxu0
      %v11444 = vadd.f32 %v11251, %v11443
      %v11445 = vpop.f32.mrb[0].mxu0
      %v11446 = vadd.f32 %v11253, %v11445
      %v11447 = vpop.f32.mrb[0].mxu0
      %v11448 = vadd.f32 %v11255, %v11447
      %v11449 = vpop.f32.mrb[0].mxu0
      %v11450 = vadd.f32 %v11257, %v11449
      %11451 = vmatprep.mubr.bf16.mxu0 %v9908
      %11452 = vmatmul.mubr.bf16.gmra.mrb[0].mxu0 %v9844
      %v11453 = vpop.f32.mrb[0].mxu0
      %v11454 = vadd.f32 %v11261, %v11453
      %v11455 = vpop.f32.mrb[0].mxu0
      %v11456 = vadd.f32 %v11263, %v11455
      %v11457 = vpop.f32.mrb[0].mxu0
      %v11458 = vadd.f32 %v11265, %v11457
      %v11459 = vpop.f32.mrb[0].mxu0
      %v11460 = vadd.f32 %v11267, %v11459
      %11461 = vdwg.mxu0
      %v11462 = vld [vmem:[%s7] sm:$0x3]
      %v11463 = vld [vmem:[%s8] sm:$0x3]
      %v11464 = vadd.f32 %v11304, %v11308
      %v11465 = vadd.f32 %v11464, %v11314
      %v11466 = vadd.f32 %v11465, %v11318
      %v11467 = vadd.f32 %v11466, %v11324
      %v11468 = vadd.f32 %v11467, %v11328
      %v11469 = vadd.f32 %v11468, %v11334
      %v11470 = vadd.f32 %v11469, %v11338
      %v11471 = vadd.f32 %v11470, %v11344
      %v11472 = vadd.f32 %v11471, %v11348
      %v11473 = vadd.f32 %v11472, %v11354
      %v11474 = vadd.f32 %v11473, %v11358
      %v11475 = vadd.f32 %v11474, %v11364
      %v11476 = vadd.f32 %v11475, %v11368
      %v11477 = vadd.f32 %v11476, %v11374
      %v11478 = vadd.f32 %v11477, %v11378
      %v11479 = vadd.f32 %v11478, %v11384
      %v11480 = vadd.f32 %v11479, %v11388
      %v11481 = vadd.f32 %v11480, %v11394
      %v11482 = vadd.f32 %v11481, %v11398
      %v11483 = vadd.f32 %v11482, %v11404
      %v11484 = vadd.f32 %v11483, %v11408
      %v11485 = vadd.f32 %v11484, %v11414
      %v11486 = vadd.f32 %v11485, %v11418
      %v11487 = vadd.f32 %v11486, %v11424
      %v11488 = vadd.f32 %v11487, %v11428
      %v11489 = vadd.f32 %v11488, %v11434
      %v11490 = vadd.f32 %v11489, %v11438
      %v11491 = vadd.f32 %v11490, %v11444
      %v11492 = vadd.f32 %v11491, %v11448
      %v11493 = vadd.f32 %v11492, %v11454
      %v11494 = vadd.f32 %v11493, %v11458
      %v11495 = vrot.slane %v11494, 4
      %v11496 = vadd.f32 %v11494, %v11495
      %v11497 = vrot.slane %v11496, 2
      %v11498 = vadd.f32 %v11496, %v11497
      %v11499 = vrot.slane %v11498, 1
      %v11500 = vadd.f32 %v11498, %v11499
      %v11501 = vadd.f32 %v11306, %v11310
      %v11502 = vadd.f32 %v11501, %v11316
      %v11503 = vadd.f32 %v11502, %v11320
      %v11504 = vadd.f32 %v11503, %v11326
      %v11505 = vadd.f32 %v11504, %v11330
      %v11506 = vadd.f32 %v11505, %v11336
      %v11507 = vadd.f32 %v11506, %v11340
      %v11508 = vadd.f32 %v11507, %v11346
      %v11509 = vadd.f32 %v11508, %v11350
      %v11510 = vadd.f32 %v11509, %v11356
      %v11511 = vadd.f32 %v11510, %v11360
      %v11512 = vadd.f32 %v11511, %v11366
      %v11513 = vadd.f32 %v11512, %v11370
      %v11514 = vadd.f32 %v11513, %v11376
      %v11515 = vadd.f32 %v11514, %v11380
      %v11516 = vadd.f32 %v11515, %v11386
      %v11517 = vadd.f32 %v11516, %v11390
      %v11518 = vadd.f32 %v11517, %v11396
      %v11519 = vadd.f32 %v11518, %v11400
      %v11520 = vadd.f32 %v11519, %v11406
      %v11521 = vadd.f32 %v11520, %v11410
      %v11522 = vadd.f32 %v11521, %v11416
      %v11523 = vadd.f32 %v11522, %v11420
      %v11524 = vadd.f32 %v11523, %v11426
      %v11525 = vadd.f32 %v11524, %v11430
      %v11526 = vadd.f32 %v11525, %v11436
      %v11527 = vadd.f32 %v11526, %v11440
      %v11528 = vadd.f32 %v11527, %v11446
      %v11529 = vadd.f32 %v11528, %v11450
      %v11530 = vadd.f32 %v11529, %v11456
      %v11531 = vadd.f32 %v11530, %v11460
      %v11532 = vrot.slane %v11531, 4
      %v11533 = vadd.f32 %v11531, %v11532
      %v11534 = vrot.slane %v11533, 2
      %v11535 = vadd.f32 %v11533, %v11534
      %v11536 = vrot.slane %v11535, 1
      %v11537 = vadd.f32 %v11535, %v11536
      %11539 = vrot.lane.b32.xlu0 %v11500, 64
      %v11540 = vpop.permute.xlu0 %11539
      %v11542 = vadd.f32 %v11500, %v11540
      %v11543 = vadd.f32 %v11542, %v11537
      %11545 = vrot.lane.b32.xlu0 %v11537, 64
      %v11546 = vpop.permute.xlu0 %11545
      %v11548 = vadd.f32 %v11543, %v11546
      %v11549 = vmul.f32 %v11548, 0.0009765625
      %11551 = vrot.lane.b32.xlu0 %v11549, 64
      %v11552 = vpop.permute.xlu0 %11551
      %v11554 = vsel %vm3543, %v11549, %v11552
      %v11555 = vlaneseq
      %v11556 = vshrl.u32 %v11555, 7
      %v11557 = vsub.s32 0, %v11556
      %v11558 = vrot.slane %v11554, %v11557
      %v11559 = vsub.f32 %v11304, %v11558
      %v11560 = vsub.f32 %v11306, %v11558
      %v11561 = vsub.f32 %v11308, %v11558
      %v11562 = vsub.f32 %v11310, %v11558
      %v11563 = vsub.f32 %v11314, %v11558
      %v11564 = vsub.f32 %v11316, %v11558
      %v11565 = vsub.f32 %v11318, %v11558
      %v11566 = vsub.f32 %v11320, %v11558
      %v11567 = vsub.f32 %v11324, %v11558
      %v11568 = vsub.f32 %v11326, %v11558
      %v11569 = vsub.f32 %v11328, %v11558
      %v11570 = vsub.f32 %v11330, %v11558
      %v11571 = vsub.f32 %v11334, %v11558
      %v11572 = vsub.f32 %v11336, %v11558
      %v11573 = vsub.f32 %v11338, %v11558
      %v11574 = vsub.f32 %v11340, %v11558
      %v11575 = vsub.f32 %v11344, %v11558
      %v11576 = vsub.f32 %v11346, %v11558
      %v11577 = vsub.f32 %v11348, %v11558
      %v11578 = vsub.f32 %v11350, %v11558
      %v11579 = vsub.f32 %v11354, %v11558
      %v11580 = vsub.f32 %v11356, %v11558
      %v11581 = vsub.f32 %v11358, %v11558
      %v11582 = vsub.f32 %v11360, %v11558
      %v11583 = vsub.f32 %v11364, %v11558
      %v11584 = vsub.f32 %v11366, %v11558
      %v11585 = vsub.f32 %v11368, %v11558
      %v11586 = vsub.f32 %v11370, %v11558
      %v11587 = vsub.f32 %v11374, %v11558
      %v11588 = vsub.f32 %v11376, %v11558
      %v11589 = vsub.f32 %v11378, %v11558
      %v11590 = vsub.f32 %v11380, %v11558
      %v11591 = vsub.f32 %v11384, %v11558
      %v11592 = vsub.f32 %v11386, %v11558
      %v11593 = vsub.f32 %v11388, %v11558
      %v11594 = vsub.f32 %v11390, %v11558
      %v11595 = vsub.f32 %v11394, %v11558
      %v11596 = vsub.f32 %v11396, %v11558
      %v11597 = vsub.f32 %v11398, %v11558
      %v11598 = vsub.f32 %v11400, %v11558
      %v11599 = vsub.f32 %v11404, %v11558
      %v11600 = vsub.f32 %v11406, %v11558
      %v11601 = vsub.f32 %v11408, %v11558
      %v11602 = vsub.f32 %v11410, %v11558
      %v11603 = vsub.f32 %v11414, %v11558
      %v11604 = vsub.f32 %v11416, %v11558
      %v11605 = vsub.f32 %v11418, %v11558
      %v11606 = vsub.f32 %v11420, %v11558
      %v11607 = vsub.f32 %v11424, %v11558
      %v11608 = vsub.f32 %v11426, %v11558
      %v11609 = vsub.f32 %v11428, %v11558
      %v11610 = vsub.f32 %v11430, %v11558
      %v11611 = vsub.f32 %v11434, %v11558
      %v11612 = vsub.f32 %v11436, %v11558
      %v11613 = vsub.f32 %v11438, %v11558
      %v11614 = vsub.f32 %v11440, %v11558
      %v11615 = vsub.f32 %v11444, %v11558
      %v11616 = vsub.f32 %v11446, %v11558
      %v11617 = vsub.f32 %v11448, %v11558
      %v11618 = vsub.f32 %v11450, %v11558
      %v11619 = vsub.f32 %v11454, %v11558
      %v11620 = vsub.f32 %v11456, %v11558
      %v11621 = vsub.f32 %v11458, %v11558
      %v11622 = vsub.f32 %v11460, %v11558
      %v11623 = vmul.f32 %v11559, %v11559
      %v11624 = vmul.f32 %v11560, %v11560
      %v11625 = vmul.f32 %v11561, %v11561
      %v11626 = vmul.f32 %v11562, %v11562
      %v11627 = vmul.f32 %v11563, %v11563
      %v11628 = vmul.f32 %v11564, %v11564
      %v11629 = vmul.f32 %v11565, %v11565
      %v11630 = vmul.f32 %v11566, %v11566
      %v11631 = vmul.f32 %v11567, %v11567
      %v11632 = vmul.f32 %v11568, %v11568
      %v11633 = vmul.f32 %v11569, %v11569
      %v11634 = vmul.f32 %v11570, %v11570
      %v11635 = vmul.f32 %v11571, %v11571
      %v11636 = vmul.f32 %v11572, %v11572
      %v11637 = vmul.f32 %v11573, %v11573
      %v11638 = vmul.f32 %v11574, %v11574
      %v11639 = vmul.f32 %v11575, %v11575
      %v11640 = vmul.f32 %v11576, %v11576
      %v11641 = vmul.f32 %v11577, %v11577
      %v11642 = vmul.f32 %v11578, %v11578
      %v11643 = vmul.f32 %v11579, %v11579
      %v11644 = vmul.f32 %v11580, %v11580
      %v11645 = vmul.f32 %v11581, %v11581
      %v11646 = vmul.f32 %v11582, %v11582
      %v11647 = vmul.f32 %v11583, %v11583
      %v11648 = vmul.f32 %v11584, %v11584
      %v11649 = vmul.f32 %v11585, %v11585
      %v11650 = vmul.f32 %v11586, %v11586
      %v11651 = vmul.f32 %v11587, %v11587
      %v11652 = vmul.f32 %v11588, %v11588
      %v11653 = vmul.f32 %v11589, %v11589
      %v11654 = vmul.f32 %v11590, %v11590
      %v11655 = vmul.f32 %v11591, %v11591
      %v11656 = vmul.f32 %v11592, %v11592
      %v11657 = vmul.f32 %v11593, %v11593
      %v11658 = vmul.f32 %v11594, %v11594
      %v11659 = vmul.f32 %v11595, %v11595
      %v11660 = vmul.f32 %v11596, %v11596
      %v11661 = vmul.f32 %v11597, %v11597
      %v11662 = vmul.f32 %v11598, %v11598
      %v11663 = vmul.f32 %v11599, %v11599
      %v11664 = vmul.f32 %v11600, %v11600
      %v11665 = vmul.f32 %v11601, %v11601
      %v11666 = vmul.f32 %v11602, %v11602
      %v11667 = vmul.f32 %v11603, %v11603
      %v11668 = vmul.f32 %v11604, %v11604
      %v11669 = vmul.f32 %v11605, %v11605
      %v11670 = vmul.f32 %v11606, %v11606
      %v11671 = vmul.f32 %v11607, %v11607
      %v11672 = vmul.f32 %v11608, %v11608
      %v11673 = vmul.f32 %v11609, %v11609
      %v11674 = vmul.f32 %v11610, %v11610
      %v11675 = vmul.f32 %v11611, %v11611
      %v11676 = vmul.f32 %v11612, %v11612
      %v11677 = vmul.f32 %v11613, %v11613
      %v11678 = vmul.f32 %v11614, %v11614
      %v11679 = vmul.f32 %v11615, %v11615
      %v11680 = vmul.f32 %v11616, %v11616
      %v11681 = vmul.f32 %v11617, %v11617
      %v11682 = vmul.f32 %v11618, %v11618
      %v11683 = vmul.f32 %v11619, %v11619
      %v11684 = vmul.f32 %v11620, %v11620
      %v11685 = vmul.f32 %v11621, %v11621
      %v11686 = vmul.f32 %v11622, %v11622
      %v11687 = vadd.f32 %v11623, %v11625
      %v11688 = vadd.f32 %v11687, %v11627
      %v11689 = vadd.f32 %v11688, %v11629
      %v11690 = vadd.f32 %v11689, %v11631
      %v11691 = vadd.f32 %v11690, %v11633
      %v11692 = vadd.f32 %v11691, %v11635
      %v11693 = vadd.f32 %v11692, %v11637
      %v11694 = vadd.f32 %v11693, %v11639
      %v11695 = vadd.f32 %v11694, %v11641
      %v11696 = vadd.f32 %v11695, %v11643
      %v11697 = vadd.f32 %v11696, %v11645
      %v11698 = vadd.f32 %v11697, %v11647
      %v11699 = vadd.f32 %v11698, %v11649
      %v11700 = vadd.f32 %v11699, %v11651
      %v11701 = vadd.f32 %v11700, %v11653
      %v11702 = vadd.f32 %v11701, %v11655
      %v11703 = vadd.f32 %v11702, %v11657
      %v11704 = vadd.f32 %v11703, %v11659
      %v11705 = vadd.f32 %v11704, %v11661
      %v11706 = vadd.f32 %v11705, %v11663
      %v11707 = vadd.f32 %v11706, %v11665
      %v11708 = vadd.f32 %v11707, %v11667
      %v11709 = vadd.f32 %v11708, %v11669
      %v11710 = vadd.f32 %v11709, %v11671
      %v11711 = vadd.f32 %v11710, %v11673
      %v11712 = vadd.f32 %v11711, %v11675
      %v11713 = vadd.f32 %v11712, %v11677
      %v11714 = vadd.f32 %v11713, %v11679
      %v11715 = vadd.f32 %v11714, %v11681
      %v11716 = vadd.f32 %v11715, %v11683
      %v11717 = vadd.f32 %v11716, %v11685
      %v11718 = vrot.slane %v11717, 4
      %v11719 = vadd.f32 %v11717, %v11718
      %v11720 = vrot.slane %v11719, 2
      %v11721 = vadd.f32 %v11719, %v11720
      %v11722 = vrot.slane %v11721, 1
      %v11723 = vadd.f32 %v11721, %v11722
      %v11724 = vadd.f32 %v11624, %v11626
      %v11725 = vadd.f32 %v11724, %v11628
      %v11726 = vadd.f32 %v11725, %v11630
      %v11727 = vadd.f32 %v11726, %v11632
      %v11728 = vadd.f32 %v11727, %v11634
      %v11729 = vadd.f32 %v11728, %v11636
      %v11730 = vadd.f32 %v11729, %v11638
      %v11731 = vadd.f32 %v11730, %v11640
      %v11732 = vadd.f32 %v11731, %v11642
      %v11733 = vadd.f32 %v11732, %v11644
      %v11734 = vadd.f32 %v11733, %v11646
      %v11735 = vadd.f32 %v11734, %v11648
      %v11736 = vadd.f32 %v11735, %v11650
      %v11737 = vadd.f32 %v11736, %v11652
      %v11738 = vadd.f32 %v11737, %v11654
      %v11739 = vadd.f32 %v11738, %v11656
      %v11740 = vadd.f32 %v11739, %v11658
      %v11741 = vadd.f32 %v11740, %v11660
      %v11742 = vadd.f32 %v11741, %v11662
      %v11743 = vadd.f32 %v11742, %v11664
      %v11744 = vadd.f32 %v11743, %v11666
      %v11745 = vadd.f32 %v11744, %v11668
      %v11746 = vadd.f32 %v11745, %v11670
      %v11747 = vadd.f32 %v11746, %v11672
      %v11748 = vadd.f32 %v11747, %v11674
      %v11749 = vadd.f32 %v11748, %v11676
      %v11750 = vadd.f32 %v11749, %v11678
      %v11751 = vadd.f32 %v11750, %v11680
      %v11752 = vadd.f32 %v11751, %v11682
      %v11753 = vadd.f32 %v11752, %v11684
      %v11754 = vadd.f32 %v11753, %v11686
      %v11755 = vrot.slane %v11754, 4
      %v11756 = vadd.f32 %v11754, %v11755
      %v11757 = vrot.slane %v11756, 2
      %v11758 = vadd.f32 %v11756, %v11757
      %v11759 = vrot.slane %v11758, 1
      %v11760 = vadd.f32 %v11758, %v11759
      %11762 = vrot.lane.b32.xlu0 %v11723, 64
      %v11763 = vpop.permute.xlu0 %11762
      %v11765 = vadd.f32 %v11723, %v11763
      %v11766 = vadd.f32 %v11765, %v11760
      %11768 = vrot.lane.b32.xlu0 %v11760, 64
      %v11769 = vpop.permute.xlu0 %11768
      %v11771 = vadd.f32 %v11766, %v11769
      %v11772 = vmul.f32 %v11771, 0.0009765625
      %v11773 = vadd.f32 %v11772, 1e-05
      %v11774 = vrsqrt.pop %v11773
      %11776 = vrot.lane.b32.xlu0 %v11774, 64
      %v11777 = vpop.permute.xlu0 %11776
      %v11779 = vsel %vm3543, %v11774, %v11777
      %v11780 = vlaneseq
      %v11781 = vshrl.u32 %v11780, 7
      %v11782 = vsub.s32 0, %v11781
      %v11783 = vrot.slane %v11779, %v11782
      %v11784 = vmul.f32 %v11559, %v11783
      %v11785 = vmul.f32 %v11560, %v11783
      %v11786 = vmul.f32 %v11561, %v11783
      %v11787 = vmul.f32 %v11562, %v11783
      %v11788 = vmul.f32 %v11563, %v11783
      %v11789 = vmul.f32 %v11564, %v11783
      %v11790 = vmul.f32 %v11565, %v11783
      %v11791 = vmul.f32 %v11566, %v11783
      %v11792 = vmul.f32 %v11567, %v11783
      %v11793 = vmul.f32 %v11568, %v11783
      %v11794 = vmul.f32 %v11569, %v11783
      %v11795 = vmul.f32 %v11570, %v11783
      %v11796 = vmul.f32 %v11571, %v11783
      %v11797 = vmul.f32 %v11572, %v11783
      %v11798 = vmul.f32 %v11573, %v11783
      %v11799 = vmul.f32 %v11574, %v11783
      %v11800 = vmul.f32 %v11575, %v11783
      %v11801 = vmul.f32 %v11576, %v11783
      %v11802 = vmul.f32 %v11577, %v11783
      %v11803 = vmul.f32 %v11578, %v11783
      %v11804 = vmul.f32 %v11579, %v11783
      %v11805 = vmul.f32 %v11580, %v11783
      %v11806 = vmul.f32 %v11581, %v11783
      %v11807 = vmul.f32 %v11582, %v11783
      %v11808 = vmul.f32 %v11583, %v11783
      %v11809 = vmul.f32 %v11584, %v11783
      %v11810 = vmul.f32 %v11585, %v11783
      %v11811 = vmul.f32 %v11586, %v11783
      %v11812 = vmul.f32 %v11587, %v11783
      %v11813 = vmul.f32 %v11588, %v11783
      %v11814 = vmul.f32 %v11589, %v11783
      %v11815 = vmul.f32 %v11590, %v11783
      %v11816 = vmul.f32 %v11591, %v11783
      %v11817 = vmul.f32 %v11592, %v11783
      %v11818 = vmul.f32 %v11593, %v11783
      %v11819 = vmul.f32 %v11594, %v11783
      %v11820 = vmul.f32 %v11595, %v11783
      %v11821 = vmul.f32 %v11596, %v11783
      %v11822 = vmul.f32 %v11597, %v11783
      %v11823 = vmul.f32 %v11598, %v11783
      %v11824 = vmul.f32 %v11599, %v11783
      %v11825 = vmul.f32 %v11600, %v11783
      %v11826 = vmul.f32 %v11601, %v11783
      %v11827 = vmul.f32 %v11602, %v11783
      %v11828 = vmul.f32 %v11603, %v11783
      %v11829 = vmul.f32 %v11604, %v11783
      %v11830 = vmul.f32 %v11605, %v11783
      %v11831 = vmul.f32 %v11606, %v11783
      %v11832 = vmul.f32 %v11607, %v11783
      %v11833 = vmul.f32 %v11608, %v11783
      %v11834 = vmul.f32 %v11609, %v11783
      %v11835 = vmul.f32 %v11610, %v11783
      %v11836 = vmul.f32 %v11611, %v11783
      %v11837 = vmul.f32 %v11612, %v11783
      %v11838 = vmul.f32 %v11613, %v11783
      %v11839 = vmul.f32 %v11614, %v11783
      %v11840 = vmul.f32 %v11615, %v11783
      %v11841 = vmul.f32 %v11616, %v11783
      %v11842 = vmul.f32 %v11617, %v11783
      %v11843 = vmul.f32 %v11618, %v11783
      %v11844 = vmul.f32 %v11619, %v11783
      %v11845 = vmul.f32 %v11620, %v11783
      %v11846 = vmul.f32 %v11621, %v11783
      %v11847 = vmul.f32 %v11622, %v11783
      %v11849 = vlaneseq
      %v11850 = vshrl.u32 %v11849, 7
      %v11851 = vsub.s32 0, %v11850
      %v11852 = vrot.slane %v11462, %v11851
      %v11853 = vlaneseq
      %v11854 = vshrl.u32 %v11853, 7
      %v11855 = vsub.s32 1, %v11854
      %v11856 = vrot.slane %v11462, %v11855
      %v11859 = vmul.f32 %v11784, %v11852
      %v11860 = vmul.f32 %v11785, %v11856
      %v11861 = vmul.f32 %v11786, %v11852
      %v11862 = vmul.f32 %v11787, %v11856
      %v11863 = vmul.f32 %v11788, %v11852
      %v11864 = vmul.f32 %v11789, %v11856
      %v11865 = vmul.f32 %v11790, %v11852
      %v11866 = vmul.f32 %v11791, %v11856
      %v11867 = vmul.f32 %v11792, %v11852
      %v11868 = vmul.f32 %v11793, %v11856
      %v11869 = vmul.f32 %v11794, %v11852
      %v11870 = vmul.f32 %v11795, %v11856
      %v11871 = vmul.f32 %v11796, %v11852
      %v11872 = vmul.f32 %v11797, %v11856
      %v11873 = vmul.f32 %v11798, %v11852
      %v11874 = vmul.f32 %v11799, %v11856
      %v11875 = vmul.f32 %v11800, %v11852
      %v11876 = vmul.f32 %v11801, %v11856
      %v11877 = vmul.f32 %v11802, %v11852
      %v11878 = vmul.f32 %v11803, %v11856
      %v11879 = vmul.f32 %v11804, %v11852
      %v11880 = vmul.f32 %v11805, %v11856
      %v11881 = vmul.f32 %v11806, %v11852
      %v11882 = vmul.f32 %v11807, %v11856
      %v11883 = vmul.f32 %v11808, %v11852
      %v11884 = vmul.f32 %v11809, %v11856
      %v11885 = vmul.f32 %v11810, %v11852
      %v11886 = vmul.f32 %v11811, %v11856
      %v11887 = vmul.f32 %v11812, %v11852
      %v11888 = vmul.f32 %v11813, %v11856
      %v11889 = vmul.f32 %v11814, %v11852
      %v11890 = vmul.f32 %v11815, %v11856
      %v11891 = vmul.f32 %v11816, %v11852
      %v11892 = vmul.f32 %v11817, %v11856
      %v11893 = vmul.f32 %v11818, %v11852
      %v11894 = vmul.f32 %v11819, %v11856
      %v11895 = vmul.f32 %v11820, %v11852
      %v11896 = vmul.f32 %v11821, %v11856
      %v11897 = vmul.f32 %v11822, %v11852
      %v11898 = vmul.f32 %v11823, %v11856
      %v11899 = vmul.f32 %v11824, %v11852
      %v11900 = vmul.f32 %v11825, %v11856
      %v11901 = vmul.f32 %v11826, %v11852
      %v11902 = vmul.f32 %v11827, %v11856
      %v11903 = vmul.f32 %v11828, %v11852
      %v11904 = vmul.f32 %v11829, %v11856
      %v11905 = vmul.f32 %v11830, %v11852
      %v11906 = vmul.f32 %v11831, %v11856
      %v11907 = vmul.f32 %v11832, %v11852
      %v11908 = vmul.f32 %v11833, %v11856
      %v11909 = vmul.f32 %v11834, %v11852
      %v11910 = vmul.f32 %v11835, %v11856
      %v11911 = vmul.f32 %v11836, %v11852
      %v11912 = vmul.f32 %v11837, %v11856
      %v11913 = vmul.f32 %v11838, %v11852
      %v11914 = vmul.f32 %v11839, %v11856
      %v11915 = vmul.f32 %v11840, %v11852
      %v11916 = vmul.f32 %v11841, %v11856
      %v11917 = vmul.f32 %v11842, %v11852
      %v11918 = vmul.f32 %v11843, %v11856
      %v11919 = vmul.f32 %v11844, %v11852
      %v11920 = vmul.f32 %v11845, %v11856
      %v11921 = vmul.f32 %v11846, %v11852
      %v11922 = vmul.f32 %v11847, %v11856
      %v11924 = vlaneseq
      %v11925 = vshrl.u32 %v11924, 7
      %v11926 = vsub.s32 0, %v11925
      %v11927 = vrot.slane %v11463, %v11926
      %v11928 = vlaneseq
      %v11929 = vshrl.u32 %v11928, 7
      %v11930 = vsub.s32 1, %v11929
      %v11931 = vrot.slane %v11463, %v11930
      %v11934 = vadd.f32 %v11859, %v11927
      %v11935 = vadd.f32 %v11860, %v11931
      %v11936 = vadd.f32 %v11861, %v11927
      %v11937 = vadd.f32 %v11862, %v11931
      %v11938 = vadd.f32 %v11863, %v11927
      %v11939 = vadd.f32 %v11864, %v11931
      %v11940 = vadd.f32 %v11865, %v11927
      %v11941 = vadd.f32 %v11866, %v11931
      %v11942 = vadd.f32 %v11867, %v11927
      %v11943 = vadd.f32 %v11868, %v11931
      %v11944 = vadd.f32 %v11869, %v11927
      %v11945 = vadd.f32 %v11870, %v11931
      %v11946 = vadd.f32 %v11871, %v11927
      %v11947 = vadd.f32 %v11872, %v11931
      %v11948 = vadd.f32 %v11873, %v11927
      %v11949 = vadd.f32 %v11874, %v11931
      %v11950 = vadd.f32 %v11875, %v11927
      %v11951 = vadd.f32 %v11876, %v11931
      %v11952 = vadd.f32 %v11877, %v11927
      %v11953 = vadd.f32 %v11878, %v11931
      %v11954 = vadd.f32 %v11879, %v11927
      %v11955 = vadd.f32 %v11880, %v11931
      %v11956 = vadd.f32 %v11881, %v11927
      %v11957 = vadd.f32 %v11882, %v11931
      %v11958 = vadd.f32 %v11883, %v11927
      %v11959 = vadd.f32 %v11884, %v11931
      %v11960 = vadd.f32 %v11885, %v11927
      %v11961 = vadd.f32 %v11886, %v11931
      %v11962 = vadd.f32 %v11887, %v11927
      %v11963 = vadd.f32 %v11888, %v11931
      %v11964 = vadd.f32 %v11889, %v11927
      %v11965 = vadd.f32 %v11890, %v11931
      %v11966 = vadd.f32 %v11891, %v11927
      %v11967 = vadd.f32 %v11892, %v11931
      %v11968 = vadd.f32 %v11893, %v11927
      %v11969 = vadd.f32 %v11894, %v11931
      %v11970 = vadd.f32 %v11895, %v11927
      %v11971 = vadd.f32 %v11896, %v11931
      %v11972 = vadd.f32 %v11897, %v11927
      %v11973 = vadd.f32 %v11898, %v11931
      %v11974 = vadd.f32 %v11899, %v11927
      %v11975 = vadd.f32 %v11900, %v11931
      %v11976 = vadd.f32 %v11901, %v11927
      %v11977 = vadd.f32 %v11902, %v11931
      %v11978 = vadd.f32 %v11903, %v11927
      %v11979 = vadd.f32 %v11904, %v11931
      %v11980 = vadd.f32 %v11905, %v11927
      %v11981 = vadd.f32 %v11906, %v11931
      %v11982 = vadd.f32 %v11907, %v11927
      %v11983 = vadd.f32 %v11908, %v11931
      %v11984 = vadd.f32 %v11909, %v11927
      %v11985 = vadd.f32 %v11910, %v11931
      %v11986 = vadd.f32 %v11911, %v11927
      %v11987 = vadd.f32 %v11912, %v11931
      %v11988 = vadd.f32 %v11913, %v11927
      %v11989 = vadd.f32 %v11914, %v11931
      %v11990 = vadd.f32 %v11915, %v11927
      %v11991 = vadd.f32 %v11916, %v11931
      %v11992 = vadd.f32 %v11917, %v11927
      %v11993 = vadd.f32 %v11918, %v11931
      %v11994 = vadd.f32 %v11919, %v11927
      %v11995 = vadd.f32 %v11920, %v11931
      %v11996 = vadd.f32 %v11921, %v11927
      %v11997 = vadd.f32 %v11922, %v11931
      %v11998 = vmax.f32 %v11934, 0.0
      %v11999 = vmax.f32 %v11935, 0.0
      %v12000 = vmax.f32 %v11936, 0.0
      %v12001 = vmax.f32 %v11937, 0.0
      %v12002 = vmax.f32 %v11938, 0.0
      %v12003 = vmax.f32 %v11939, 0.0
      %v12004 = vmax.f32 %v11940, 0.0
      %v12005 = vmax.f32 %v11941, 0.0
      %v12006 = vmax.f32 %v11942, 0.0
      %v12007 = vmax.f32 %v11943, 0.0
      %v12008 = vmax.f32 %v11944, 0.0
      %v12009 = vmax.f32 %v11945, 0.0
      %v12010 = vmax.f32 %v11946, 0.0
      %v12011 = vmax.f32 %v11947, 0.0
      %v12012 = vmax.f32 %v11948, 0.0
      %v12013 = vmax.f32 %v11949, 0.0
      %v12014 = vmax.f32 %v11950, 0.0
      %v12015 = vmax.f32 %v11951, 0.0
      %v12016 = vmax.f32 %v11952, 0.0
      %v12017 = vmax.f32 %v11953, 0.0
      %v12018 = vmax.f32 %v11954, 0.0
      %v12019 = vmax.f32 %v11955, 0.0
      %v12020 = vmax.f32 %v11956, 0.0
      %v12021 = vmax.f32 %v11957, 0.0
      %v12022 = vmax.f32 %v11958, 0.0
      %v12023 = vmax.f32 %v11959, 0.0
      %v12024 = vmax.f32 %v11960, 0.0
      %v12025 = vmax.f32 %v11961, 0.0
      %v12026 = vmax.f32 %v11962, 0.0
      %v12027 = vmax.f32 %v11963, 0.0
      %v12028 = vmax.f32 %v11964, 0.0
      %v12029 = vmax.f32 %v11965, 0.0
      %v12030 = vmax.f32 %v11966, 0.0
      %v12031 = vmax.f32 %v11967, 0.0
      %v12032 = vmax.f32 %v11968, 0.0
      %v12033 = vmax.f32 %v11969, 0.0
      %v12034 = vmax.f32 %v11970, 0.0
      %v12035 = vmax.f32 %v11971, 0.0
      %v12036 = vmax.f32 %v11972, 0.0
      %v12037 = vmax.f32 %v11973, 0.0
      %v12038 = vmax.f32 %v11974, 0.0
      %v12039 = vmax.f32 %v11975, 0.0
      %v12040 = vmax.f32 %v11976, 0.0
      %v12041 = vmax.f32 %v11977, 0.0
      %v12042 = vmax.f32 %v11978, 0.0
      %v12043 = vmax.f32 %v11979, 0.0
      %v12044 = vmax.f32 %v11980, 0.0
      %v12045 = vmax.f32 %v11981, 0.0
      %v12046 = vmax.f32 %v11982, 0.0
      %v12047 = vmax.f32 %v11983, 0.0
      %v12048 = vmax.f32 %v11984, 0.0
      %v12049 = vmax.f32 %v11985, 0.0
      %v12050 = vmax.f32 %v11986, 0.0
      %v12051 = vmax.f32 %v11987, 0.0
      %v12052 = vmax.f32 %v11988, 0.0
      %v12053 = vmax.f32 %v11989, 0.0
      %v12054 = vmax.f32 %v11990, 0.0
      %v12055 = vmax.f32 %v11991, 0.0
      %v12056 = vmax.f32 %v11992, 0.0
      %v12057 = vmax.f32 %v11993, 0.0
      %v12058 = vmax.f32 %v11994, 0.0
      %v12059 = vmax.f32 %v11995, 0.0
      %v12060 = vmax.f32 %v11996, 0.0
      %v12061 = vmax.f32 %v11997, 0.0
      %v12062 = vld [vmem:[%s9] sm:$0xff]
      %v12063 = vld [vmem:[%s10] sm:$0xff]
      %12065 = vset.pattern.permute.xlu0 0
      %12066 = vperm.xlu0 %12065, %v12063
      %v12067 = vpop.permute.xlu0 %12066
      %v12070 = vsel %vm3543, %v12062, 0
      %v12073 = vsel %vm3543, %v11998, 0
      %v12076 = vsel %vm3543, %v12000, 0
      %v12079 = vsel %vm3543, %v12002, 0
      %v12082 = vsel %vm3543, %v12004, 0
      %v12085 = vsel %vm3543, %v12006, 0
      %v12088 = vsel %vm3543, %v12008, 0
      %v12091 = vsel %vm3543, %v12010, 0
      %v12094 = vsel %vm3543, %v12012, 0
      %v12097 = vsel %vm3543, %v12014, 0
      %v12100 = vsel %vm3543, %v12016, 0
      %v12103 = vsel %vm3543, %v12018, 0
      %v12106 = vsel %vm3543, %v12020, 0
      %v12109 = vsel %vm3543, %v12022, 0
      %v12112 = vsel %vm3543, %v12024, 0
      %v12115 = vsel %vm3543, %v12026, 0
      %v12118 = vsel %vm3543, %v12028, 0
      %v12121 = vsel %vm3543, %v12030, 0
      %v12124 = vsel %vm3543, %v12032, 0
      %v12127 = vsel %vm3543, %v12034, 0
      %v12130 = vsel %vm3543, %v12036, 0
      %v12133 = vsel %vm3543, %v12038, 0
      %v12136 = vsel %vm3543, %v12040, 0
      %v12139 = vsel %vm3543, %v12042, 0
      %v12142 = vsel %vm3543, %v12044, 0
      %v12145 = vsel %vm3543, %v12046, 0
      %v12148 = vsel %vm3543, %v12048, 0
      %v12151 = vsel %vm3543, %v12050, 0
      %v12154 = vsel %vm3543, %v12052, 0
      %v12157 = vsel %vm3543, %v12054, 0
      %v12160 = vsel %vm3543, %v12056, 0
      %v12163 = vsel %vm3543, %v12058, 0
      %v12166 = vsel %vm3543, %v12060, 0
      %12168 = vmatprep.subr.mxu0 0.0
      %12169 = vmatpush1.xpose.msra.mxu0 %v12073
      %12170 = vmatprep.subr.mxu0 0.0
      %12171 = vmatpush1.xpose.msra.mxu0 %v12076
      %12172 = vmatprep.subr.mxu0 0.0
      %12173 = vmatpush1.xpose.msra.mxu0 %v12079
      %12174 = vmatprep.subr.mxu0 0.0
      %12175 = vmatpush1.xpose.msra.mxu0 %v12082
      %12176 = vmatprep.subr.mxu0 0.0
      %12177 = vmatpush1.xpose.msra.mxu0 %v12085
      %12178 = vmatprep.subr.mxu0 0.0
      %12179 = vmatpush1.xpose.msra.mxu0 %v12088
      %12180 = vmatprep.subr.mxu0 0.0
      %12181 = vmatpush1.xpose.msra.mxu0 %v12091
      %12182 = vmatprep.subr.mxu0 0.0
      %12183 = vmatpush1.xpose.msra.mxu0 %v12094
      %12184 = vmatprep.subr.mxu0 0.0
      %12185 = vmatpush1.xpose.msra.mxu0 %v12097
      %12186 = vmatprep.subr.mxu0 0.0
      %12187 = vmatpush1.xpose.msra.mxu0 %v12100
      %12188 = vmatprep.subr.mxu0 0.0
      %12189 = vmatpush1.xpose.msra.mxu0 %v12103
      %12190 = vmatprep.subr.mxu0 0.0
      %12191 = vmatpush1.xpose.msra.mxu0 %v12106
      %12192 = vmatprep.subr.mxu0 0.0
      %12193 = vmatpush1.xpose.msra.mxu0 %v12109
      %12194 = vmatprep.subr.mxu0 0.0
      %12195 = vmatpush1.xpose.msra.mxu0 %v12112
      %12196 = vmatprep.subr.mxu0 0.0
      %12197 = vmatpush1.xpose.msra.mxu0 %v12115
      %12198 = vmatprep.subr.mxu0 0.0
      %12199 = vmatpush1.xpose.msra.mxu0 %v12118
      %12200 = vmatprep.subr.mxu0 0.0
      %12201 = vmatpush1.xpose.msra.mxu0 %v12121
      %12202 = vmatprep.subr.mxu0 0.0
      %12203 = vmatpush1.xpose.msra.mxu0 %v12124
      %12204 = vmatprep.subr.mxu0 0.0
      %12205 = vmatpush1.xpose.msra.mxu0 %v12127
      %12206 = vmatprep.subr.mxu0 0.0
      %12207 = vmatpush1.xpose.msra.mxu0 %v12130
      %12208 = vmatprep.subr.mxu0 0.0
      %12209 = vmatpush1.xpose.msra.mxu0 %v12133
      %12210 = vmatprep.subr.mxu0 0.0
      %12211 = vmatpush1.xpose.msra.mxu0 %v12136
      %12212 = vmatprep.subr.mxu0 0.0
      %12213 = vmatpush1.xpose.msra.mxu0 %v12139
      %12214 = vmatprep.subr.mxu0 0.0
      %12215 = vmatpush1.xpose.msra.mxu0 %v12142
      %12216 = vmatprep.subr.mxu0 0.0
      %12217 = vmatpush1.xpose.msra.mxu0 %v12145
      %12218 = vmatprep.subr.mxu0 0.0
      %12219 = vmatpush1.xpose.msra.mxu0 %v12148
      %12220 = vmatprep.subr.mxu0 0.0
      %12221 = vmatpush1.xpose.msra.mxu0 %v12151
      %12222 = vmatprep.subr.mxu0 0.0
      %12223 = vmatpush1.xpose.msra.mxu0 %v12154
      %12224 = vmatprep.subr.mxu0 0.0
      %12225 = vmatpush1.xpose.msra.mxu0 %v12157
      %12226 = vmatprep.subr.mxu0 0.0
      %12227 = vmatpush1.xpose.msra.mxu0 %v12160
      %12228 = vmatprep.subr.mxu0 0.0
      %12229 = vmatpush1.xpose.msra.mxu0 %v12163
      %12230 = vmatprep.subr.mxu0 0.0
      %12231 = vmatpush1.xpose.msra.mxu0 %v12166
      %12232 = vmatprep.mubr.f32.mxu0 0.0
      %12233 = vmatmul.mubr.f32.gmra.mrb[0].mxu0 %v12070
      %v12234 = vpop.f32.mrb[0].mxu0
      %v12235 = vadd.f32 %v12067, %v12234
      %v12236 = vpop.f32.mrb[0].mxu0
      %v12237 = vadd.f32 %v12067, %v12236
      %12238 = vdwg.mxu0
      %v12241 = vcombine.low %v12235, %v12237
      %12243 = vst [vmem:[%s386] sm:$0x77] %v12241
      %v12244 = vld [vmem:[%s9] sm:$0xff]
      %v12245 = vld [vmem:[%s10] sm:$0xff]
      %12247 = vset.pattern.permute.xlu0 0
      %12248 = vperm.xlu0 %12247, %v12245
      %v12249 = vpop.permute.xlu0 %12248
      %12251 = vrot.lane.b32.xlu0 %v11998, 64
      %v12252 = vpop.permute.xlu0 %12251
      %12253 = vrot.lane.b32.xlu0 %v12000, 64
      %v12254 = vpop.permute.xlu0 %12253
      %12255 = vrot.lane.b32.xlu0 %v12002, 64
      %v12256 = vpop.permute.xlu0 %12255
      %12257 = vrot.lane.b32.xlu0 %v12004, 64
      %v12258 = vpop.permute.xlu0 %12257
      %12259 = vrot.lane.b32.xlu0 %v12006, 64
      %v12260 = vpop.permute.xlu0 %12259
      %12261 = vrot.lane.b32.xlu0 %v12008, 64
      %v12262 = vpop.permute.xlu0 %12261
      %12263 = vrot.lane.b32.xlu0 %v12010, 64
      %v12264 = vpop.permute.xlu0 %12263
      %12265 = vrot.lane.b32.xlu0 %v12012, 64
      %v12266 = vpop.permute.xlu0 %12265
      %12267 = vrot.lane.b32.xlu0 %v12014, 64
      %v12268 = vpop.permute.xlu0 %12267
      %12269 = vrot.lane.b32.xlu0 %v12016, 64
      %v12270 = vpop.permute.xlu0 %12269
      %12271 = vrot.lane.b32.xlu0 %v12018, 64
      %v12272 = vpop.permute.xlu0 %12271
      %12273 = vrot.lane.b32.xlu0 %v12020, 64
      %v12274 = vpop.permute.xlu0 %12273
      %12275 = vrot.lane.b32.xlu0 %v12022, 64
      %v12276 = vpop.permute.xlu0 %12275
      %12277 = vrot.lane.b32.xlu0 %v12024, 64
      %v12278 = vpop.permute.xlu0 %12277
      %12279 = vrot.lane.b32.xlu0 %v12026, 64
      %v12280 = vpop.permute.xlu0 %12279
      %12281 = vrot.lane.b32.xlu0 %v12028, 64
      %v12282 = vpop.permute.xlu0 %12281
      %12283 = vrot.lane.b32.xlu0 %v12030, 64
      %v12284 = vpop.permute.xlu0 %12283
      %12285 = vrot.lane.b32.xlu0 %v12032, 64
      %v12286 = vpop.permute.xlu0 %12285
      %12287 = vrot.lane.b32.xlu0 %v12034, 64
      %v12288 = vpop.permute.xlu0 %12287
      %12289 = vrot.lane.b32.xlu0 %v12036, 64
      %v12290 = vpop.permute.xlu0 %12289
      %12291 = vrot.lane.b32.xlu0 %v12038, 64
      %v12292 = vpop.permute.xlu0 %12291
      %12293 = vrot.lane.b32.xlu0 %v12040, 64
      %v12294 = vpop.permute.xlu0 %12293
      %12295 = vrot.lane.b32.xlu0 %v12042, 64
      %v12296 = vpop.permute.xlu0 %12295
      %12297 = vrot.lane.b32.xlu0 %v12044, 64
      %v12298 = vpop.permute.xlu0 %12297
      %12299 = vrot.lane.b32.xlu0 %v12046, 64
      %v12300 = vpop.permute.xlu0 %12299
      %12301 = vrot.lane.b32.xlu0 %v12048, 64
      %v12302 = vpop.permute.xlu0 %12301
      %12303 = vrot.lane.b32.xlu0 %v12050, 64
      %v12304 = vpop.permute.xlu0 %12303
      %12305 = vrot.lane.b32.xlu0 %v12052, 64
      %v12306 = vpop.permute.xlu0 %12305
      %12307 = vrot.lane.b32.xlu0 %v12054, 64
      %v12308 = vpop.permute.xlu0 %12307
      %12309 = vrot.lane.b32.xlu0 %v12056, 64
      %v12310 = vpop.permute.xlu0 %12309
      %12311 = vrot.lane.b32.xlu0 %v12058, 64
      %v12312 = vpop.permute.xlu0 %12311
      %12313 = vrot.lane.b32.xlu0 %v12060, 64
      %v12314 = vpop.permute.xlu0 %12313
      %v12316 = vsel %vm3543, %v12244, 0
      %v12318 = vsel %vm3543, %v12252, 0
      %v12320 = vsel %vm3543, %v12254, 0
      %v12322 = vsel %vm3543, %v12256, 0
      %v12324 = vsel %vm3543, %v12258, 0
      %v12326 = vsel %vm3543, %v12260, 0
      %v12328 = vsel %vm3543, %v12262, 0
      %v12330 = vsel %vm3543, %v12264, 0
      %v12332 = vsel %vm3543, %v12266, 0
      %v12334 = vsel %vm3543, %v12268, 0
      %v12336 = vsel %vm3543, %v12270, 0
      %v12338 = vsel %vm3543, %v12272, 0
      %v12340 = vsel %vm3543, %v12274, 0
      %v12342 = vsel %vm3543, %v12276, 0
      %v12344 = vsel %vm3543, %v12278, 0
      %v12346 = vsel %vm3543, %v12280, 0
      %v12348 = vsel %vm3543, %v12282, 0
      %v12350 = vsel %vm3543, %v12284, 0
      %v12352 = vsel %vm3543, %v12286, 0
      %v12354 = vsel %vm3543, %v12288, 0
      %v12356 = vsel %vm3543, %v12290, 0
      %v12358 = vsel %vm3543, %v12292, 0
      %v12360 = vsel %vm3543, %v12294, 0
      %v12362 = vsel %vm3543, %v12296, 0
      %v12364 = vsel %vm3543, %v12298, 0
      %v12366 = vsel %vm3543, %v12300, 0
      %v12368 = vsel %vm3543, %v12302, 0
      %v12370 = vsel %vm3543, %v12304, 0
      %v12372 = vsel %vm3543, %v12306, 0
      %v12374 = vsel %vm3543, %v12308, 0
      %v12376 = vsel %vm3543, %v12310, 0
      %v12378 = vsel %vm3543, %v12312, 0
      %v12380 = vsel %vm3543, %v12314, 0
      %12382 = vmatprep.subr.mxu0 0.0
      %12383 = vmatpush1.xpose.msra.mxu0 %v12318
      %12384 = vmatprep.subr.mxu0 0.0
      %12385 = vmatpush1.xpose.msra.mxu0 %v12320
      %12386 = vmatprep.subr.mxu0 0.0
      %12387 = vmatpush1.xpose.msra.mxu0 %v12322
      %12388 = vmatprep.subr.mxu0 0.0
      %12389 = vmatpush1.xpose.msra.mxu0 %v12324
      %12390 = vmatprep.subr.mxu0 0.0
      %12391 = vmatpush1.xpose.msra.mxu0 %v12326
      %12392 = vmatprep.subr.mxu0 0.0
      %12393 = vmatpush1.xpose.msra.mxu0 %v12328
      %12394 = vmatprep.subr.mxu0 0.0
      %12395 = vmatpush1.xpose.msra.mxu0 %v12330
      %12396 = vmatprep.subr.mxu0 0.0
      %12397 = vmatpush1.xpose.msra.mxu0 %v12332
      %12398 = vmatprep.subr.mxu0 0.0
      %12399 = vmatpush1.xpose.msra.mxu0 %v12334
      %12400 = vmatprep.subr.mxu0 0.0
      %12401 = vmatpush1.xpose.msra.mxu0 %v12336
      %12402 = vmatprep.subr.mxu0 0.0
      %12403 = vmatpush1.xpose.msra.mxu0 %v12338
      %12404 = vmatprep.subr.mxu0 0.0
      %12405 = vmatpush1.xpose.msra.mxu0 %v12340
      %12406 = vmatprep.subr.mxu0 0.0
      %12407 = vmatpush1.xpose.msra.mxu0 %v12342
      %12408 = vmatprep.subr.mxu0 0.0
      %12409 = vmatpush1.xpose.msra.mxu0 %v12344
      %12410 = vmatprep.subr.mxu0 0.0
      %12411 = vmatpush1.xpose.msra.mxu0 %v12346
      %12412 = vmatprep.subr.mxu0 0.0
      %12413 = vmatpush1.xpose.msra.mxu0 %v12348
      %12414 = vmatprep.subr.mxu0 0.0
      %12415 = vmatpush1.xpose.msra.mxu0 %v12350
      %12416 = vmatprep.subr.mxu0 0.0
      %12417 = vmatpush1.xpose.msra.mxu0 %v12352
      %12418 = vmatprep.subr.mxu0 0.0
      %12419 = vmatpush1.xpose.msra.mxu0 %v12354
      %12420 = vmatprep.subr.mxu0 0.0
      %12421 = vmatpush1.xpose.msra.mxu0 %v12356
      %12422 = vmatprep.subr.mxu0 0.0
      %12423 = vmatpush1.xpose.msra.mxu0 %v12358
      %12424 = vmatprep.subr.mxu0 0.0
      %12425 = vmatpush1.xpose.msra.mxu0 %v12360
      %12426 = vmatprep.subr.mxu0 0.0
      %12427 = vmatpush1.xpose.msra.mxu0 %v12362
      %12428 = vmatprep.subr.mxu0 0.0
      %12429 = vmatpush1.xpose.msra.mxu0 %v12364
      %12430 = vmatprep.subr.mxu0 0.0
      %12431 = vmatpush1.xpose.msra.mxu0 %v12366
      %12432 = vmatprep.subr.mxu0 0.0
      %12433 = vmatpush1.xpose.msra.mxu0 %v12368
      %12434 = vmatprep.subr.mxu0 0.0
      %12435 = vmatpush1.xpose.msra.mxu0 %v12370
      %12436 = vmatprep.subr.mxu0 0.0
      %12437 = vmatpush1.xpose.msra.mxu0 %v12372
      %12438 = vmatprep.subr.mxu0 0.0
      %12439 = vmatpush1.xpose.msra.mxu0 %v12374
      %12440 = vmatprep.subr.mxu0 0.0
      %12441 = vmatpush1.xpose.msra.mxu0 %v12376
      %12442 = vmatprep.subr.mxu0 0.0
      %12443 = vmatpush1.xpose.msra.mxu0 %v12378
      %12444 = vmatprep.subr.mxu0 0.0
      %12445 = vmatpush1.xpose.msra.mxu0 %v12380
      %12446 = vmatprep.mubr.f32.mxu0 0.0
      %12447 = vmatmul.mubr.f32.gmra.mrb[0].mxu0 %v12316
      %v12448 = vpop.f32.mrb[0].mxu0
      %v12449 = vadd.f32 %v12249, %v12448
      %v12450 = vpop.f32.mrb[0].mxu0
      %v12451 = vadd.f32 %v12249, %v12450
      %12452 = vdwg.mxu0
      %v12455 = vcombine.low %v12449, %v12451
      %s12457 = scalar_lea.vmem %s386, 8
      %12458 = vst [vmem:[%s12457] sm:$0x77] %v12455
      %v12459 = vld [vmem:[%s9] sm:$0xff]
      %v12460 = vld [vmem:[%s10] sm:$0xff]
      %12462 = vset.pattern.permute.xlu0 0
      %12463 = vperm.xlu0 %12462, %v12460
      %v12464 = vpop.permute.xlu0 %12463
      %v12467 = vsel %vm3543, %v12459, 0
      %v12470 = vsel %vm3543, %v11999, 0
      %v12473 = vsel %vm3543, %v12001, 0
      %v12476 = vsel %vm3543, %v12003, 0
      %v12479 = vsel %vm3543, %v12005, 0
      %v12482 = vsel %vm3543, %v12007, 0
      %v12485 = vsel %vm3543, %v12009, 0
      %v12488 = vsel %vm3543, %v12011, 0
      %v12491 = vsel %vm3543, %v12013, 0
      %v12494 = vsel %vm3543, %v12015, 0
      %v12497 = vsel %vm3543, %v12017, 0
      %v12500 = vsel %vm3543, %v12019, 0
      %v12503 = vsel %vm3543, %v12021, 0
      %v12506 = vsel %vm3543, %v12023, 0
      %v12509 = vsel %vm3543, %v12025, 0
      %v12512 = vsel %vm3543, %v12027, 0
      %v12515 = vsel %vm3543, %v12029, 0
      %v12518 = vsel %vm3543, %v12031, 0
      %v12521 = vsel %vm3543, %v12033, 0
      %v12524 = vsel %vm3543, %v12035, 0
      %v12527 = vsel %vm3543, %v12037, 0
      %v12530 = vsel %vm3543, %v12039, 0
      %v12533 = vsel %vm3543, %v12041, 0
      %v12536 = vsel %vm3543, %v12043, 0
      %v12539 = vsel %vm3543, %v12045, 0
      %v12542 = vsel %vm3543, %v12047, 0
      %v12545 = vsel %vm3543, %v12049, 0
      %v12548 = vsel %vm3543, %v12051, 0
      %v12551 = vsel %vm3543, %v12053, 0
      %v12554 = vsel %vm3543, %v12055, 0
      %v12557 = vsel %vm3543, %v12057, 0
      %v12560 = vsel %vm3543, %v12059, 0
      %v12563 = vsel %vm3543, %v12061, 0
      %12565 = vmatprep.subr.mxu0 0.0
      %12566 = vmatpush1.xpose.msra.mxu0 %v12470
      %12567 = vmatprep.subr.mxu0 0.0
      %12568 = vmatpush1.xpose.msra.mxu0 %v12473
      %12569 = vmatprep.subr.mxu0 0.0
      %12570 = vmatpush1.xpose.msra.mxu0 %v12476
      %12571 = vmatprep.subr.mxu0 0.0
      %12572 = vmatpush1.xpose.msra.mxu0 %v12479
      %12573 = vmatprep.subr.mxu0 0.0
      %12574 = vmatpush1.xpose.msra.mxu0 %v12482
      %12575 = vmatprep.subr.mxu0 0.0
      %12576 = vmatpush1.xpose.msra.mxu0 %v12485
      %12577 = vmatprep.subr.mxu0 0.0
      %12578 = vmatpush1.xpose.msra.mxu0 %v12488
      %12579 = vmatprep.subr.mxu0 0.0
      %12580 = vmatpush1.xpose.msra.mxu0 %v12491
      %12581 = vmatprep.subr.mxu0 0.0
      %12582 = vmatpush1.xpose.msra.mxu0 %v12494
      %12583 = vmatprep.subr.mxu0 0.0
      %12584 = vmatpush1.xpose.msra.mxu0 %v12497
      %12585 = vmatprep.subr.mxu0 0.0
      %12586 = vmatpush1.xpose.msra.mxu0 %v12500
      %12587 = vmatprep.subr.mxu0 0.0
      %12588 = vmatpush1.xpose.msra.mxu0 %v12503
      %12589 = vmatprep.subr.mxu0 0.0
      %12590 = vmatpush1.xpose.msra.mxu0 %v12506
      %12591 = vmatprep.subr.mxu0 0.0
      %12592 = vmatpush1.xpose.msra.mxu0 %v12509
      %12593 = vmatprep.subr.mxu0 0.0
      %12594 = vmatpush1.xpose.msra.mxu0 %v12512
      %12595 = vmatprep.subr.mxu0 0.0
      %12596 = vmatpush1.xpose.msra.mxu0 %v12515
      %12597 = vmatprep.subr.mxu0 0.0
      %12598 = vmatpush1.xpose.msra.mxu0 %v12518
      %12599 = vmatprep.subr.mxu0 0.0
      %12600 = vmatpush1.xpose.msra.mxu0 %v12521
      %12601 = vmatprep.subr.mxu0 0.0
      %12602 = vmatpush1.xpose.msra.mxu0 %v12524
      %12603 = vmatprep.subr.mxu0 0.0
      %12604 = vmatpush1.xpose.msra.mxu0 %v12527
      %12605 = vmatprep.subr.mxu0 0.0
      %12606 = vmatpush1.xpose.msra.mxu0 %v12530
      %12607 = vmatprep.subr.mxu0 0.0
      %12608 = vmatpush1.xpose.msra.mxu0 %v12533
      %12609 = vmatprep.subr.mxu0 0.0
      %12610 = vmatpush1.xpose.msra.mxu0 %v12536
      %12611 = vmatprep.subr.mxu0 0.0
      %12612 = vmatpush1.xpose.msra.mxu0 %v12539
      %12613 = vmatprep.subr.mxu0 0.0
      %12614 = vmatpush1.xpose.msra.mxu0 %v12542
      %12615 = vmatprep.subr.mxu0 0.0
      %12616 = vmatpush1.xpose.msra.mxu0 %v12545
      %12617 = vmatprep.subr.mxu0 0.0
      %12618 = vmatpush1.xpose.msra.mxu0 %v12548
      %12619 = vmatprep.subr.mxu0 0.0
      %12620 = vmatpush1.xpose.msra.mxu0 %v12551
      %12621 = vmatprep.subr.mxu0 0.0
      %12622 = vmatpush1.xpose.msra.mxu0 %v12554
      %12623 = vmatprep.subr.mxu0 0.0
      %12624 = vmatpush1.xpose.msra.mxu0 %v12557
      %12625 = vmatprep.subr.mxu0 0.0
      %12626 = vmatpush1.xpose.msra.mxu0 %v12560
      %12627 = vmatprep.subr.mxu0 0.0
      %12628 = vmatpush1.xpose.msra.mxu0 %v12563
      %12629 = vmatprep.mubr.f32.mxu0 0.0
      %12630 = vmatmul.mubr.f32.gmra.mrb[0].mxu0 %v12467
      %v12631 = vpop.f32.mrb[0].mxu0
      %v12632 = vadd.f32 %v12464, %v12631
      %v12633 = vpop.f32.mrb[0].mxu0
      %v12634 = vadd.f32 %v12464, %v12633
      %12635 = vdwg.mxu0
      %v12638 = vcombine.low %v12632, %v12634
      %s12640 = scalar_lea.vmem %s386, 16
      %12641 = vst [vmem:[%s12640] sm:$0x77] %v12638
      %v12642 = vld [vmem:[%s9] sm:$0xff]
      %v12643 = vld [vmem:[%s10] sm:$0xff]
      %12645 = vset.pattern.permute.xlu0 0
      %12646 = vperm.xlu0 %12645, %v12643
      %v12647 = vpop.permute.xlu0 %12646
      %12649 = vrot.lane.b32.xlu0 %v11999, 64
      %v12650 = vpop.permute.xlu0 %12649
      %12651 = vrot.lane.b32.xlu0 %v12001, 64
      %v12652 = vpop.permute.xlu0 %12651
      %12653 = vrot.lane.b32.xlu0 %v12003, 64
      %v12654 = vpop.permute.xlu0 %12653
      %12655 = vrot.lane.b32.xlu0 %v12005, 64
      %v12656 = vpop.permute.xlu0 %12655
      %12657 = vrot.lane.b32.xlu0 %v12007, 64
      %v12658 = vpop.permute.xlu0 %12657
      %12659 = vrot.lane.b32.xlu0 %v12009, 64
      %v12660 = vpop.permute.xlu0 %12659
      %12661 = vrot.lane.b32.xlu0 %v12011, 64
      %v12662 = vpop.permute.xlu0 %12661
      %12663 = vrot.lane.b32.xlu0 %v12013, 64
      %v12664 = vpop.permute.xlu0 %12663
      %12665 = vrot.lane.b32.xlu0 %v12015, 64
      %v12666 = vpop.permute.xlu0 %12665
      %12667 = vrot.lane.b32.xlu0 %v12017, 64
      %v12668 = vpop.permute.xlu0 %12667
      %12669 = vrot.lane.b32.xlu0 %v12019, 64
      %v12670 = vpop.permute.xlu0 %12669
      %12671 = vrot.lane.b32.xlu0 %v12021, 64
      %v12672 = vpop.permute.xlu0 %12671
      %12673 = vrot.lane.b32.xlu0 %v12023, 64
      %v12674 = vpop.permute.xlu0 %12673
      %12675 = vrot.lane.b32.xlu0 %v12025, 64
      %v12676 = vpop.permute.xlu0 %12675
      %12677 = vrot.lane.b32.xlu0 %v12027, 64
      %v12678 = vpop.permute.xlu0 %12677
      %12679 = vrot.lane.b32.xlu0 %v12029, 64
      %v12680 = vpop.permute.xlu0 %12679
      %12681 = vrot.lane.b32.xlu0 %v12031, 64
      %v12682 = vpop.permute.xlu0 %12681
      %12683 = vrot.lane.b32.xlu0 %v12033, 64
      %v12684 = vpop.permute.xlu0 %12683
      %12685 = vrot.lane.b32.xlu0 %v12035, 64
      %v12686 = vpop.permute.xlu0 %12685
      %12687 = vrot.lane.b32.xlu0 %v12037, 64
      %v12688 = vpop.permute.xlu0 %12687
      %12689 = vrot.lane.b32.xlu0 %v12039, 64
      %v12690 = vpop.permute.xlu0 %12689
      %12691 = vrot.lane.b32.xlu0 %v12041, 64
      %v12692 = vpop.permute.xlu0 %12691
      %12693 = vrot.lane.b32.xlu0 %v12043, 64
      %v12694 = vpop.permute.xlu0 %12693
      %12695 = vrot.lane.b32.xlu0 %v12045, 64
      %v12696 = vpop.permute.xlu0 %12695
      %12697 = vrot.lane.b32.xlu0 %v12047, 64
      %v12698 = vpop.permute.xlu0 %12697
      %12699 = vrot.lane.b32.xlu0 %v12049, 64
      %v12700 = vpop.permute.xlu0 %12699
      %12701 = vrot.lane.b32.xlu0 %v12051, 64
      %v12702 = vpop.permute.xlu0 %12701
      %12703 = vrot.lane.b32.xlu0 %v12053, 64
      %v12704 = vpop.permute.xlu0 %12703
      %12705 = vrot.lane.b32.xlu0 %v12055, 64
      %v12706 = vpop.permute.xlu0 %12705
      %12707 = vrot.lane.b32.xlu0 %v12057, 64
      %v12708 = vpop.permute.xlu0 %12707
      %12709 = vrot.lane.b32.xlu0 %v12059, 64
      %v12710 = vpop.permute.xlu0 %12709
      %12711 = vrot.lane.b32.xlu0 %v12061, 64
      %v12712 = vpop.permute.xlu0 %12711
      %v12714 = vsel %vm3543, %v12642, 0
      %v12716 = vsel %vm3543, %v12650, 0
      %v12718 = vsel %vm3543, %v12652, 0
      %v12720 = vsel %vm3543, %v12654, 0
      %v12722 = vsel %vm3543, %v12656, 0
      %v12724 = vsel %vm3543, %v12658, 0
      %v12726 = vsel %vm3543, %v12660, 0
      %v12728 = vsel %vm3543, %v12662, 0
      %v12730 = vsel %vm3543, %v12664, 0
      %v12732 = vsel %vm3543, %v12666, 0
      %v12734 = vsel %vm3543, %v12668, 0
      %v12736 = vsel %vm3543, %v12670, 0
      %v12738 = vsel %vm3543, %v12672, 0
      %v12740 = vsel %vm3543, %v12674, 0
      %v12742 = vsel %vm3543, %v12676, 0
      %v12744 = vsel %vm3543, %v12678, 0
      %v12746 = vsel %vm3543, %v12680, 0
      %v12748 = vsel %vm3543, %v12682, 0
      %v12750 = vsel %vm3543, %v12684, 0
      %v12752 = vsel %vm3543, %v12686, 0
      %v12754 = vsel %vm3543, %v12688, 0
      %v12756 = vsel %vm3543, %v12690, 0
      %v12758 = vsel %vm3543, %v12692, 0
      %v12760 = vsel %vm3543, %v12694, 0
      %v12762 = vsel %vm3543, %v12696, 0
      %v12764 = vsel %vm3543, %v12698, 0
      %v12766 = vsel %vm3543, %v12700, 0
      %v12768 = vsel %vm3543, %v12702, 0
      %v12770 = vsel %vm3543, %v12704, 0
      %v12772 = vsel %vm3543, %v12706, 0
      %v12774 = vsel %vm3543, %v12708, 0
      %v12776 = vsel %vm3543, %v12710, 0
      %v12778 = vsel %vm3543, %v12712, 0
      %12780 = vmatprep.subr.mxu0 0.0
      %12781 = vmatpush1.xpose.msra.mxu0 %v12716
      %12782 = vmatprep.subr.mxu0 0.0
      %12783 = vmatpush1.xpose.msra.mxu0 %v12718
      %12784 = vmatprep.subr.mxu0 0.0
      %12785 = vmatpush1.xpose.msra.mxu0 %v12720
      %12786 = vmatprep.subr.mxu0 0.0
      %12787 = vmatpush1.xpose.msra.mxu0 %v12722
      %12788 = vmatprep.subr.mxu0 0.0
      %12789 = vmatpush1.xpose.msra.mxu0 %v12724
      %12790 = vmatprep.subr.mxu0 0.0
      %12791 = vmatpush1.xpose.msra.mxu0 %v12726
      %12792 = vmatprep.subr.mxu0 0.0
      %12793 = vmatpush1.xpose.msra.mxu0 %v12728
      %12794 = vmatprep.subr.mxu0 0.0
      %12795 = vmatpush1.xpose.msra.mxu0 %v12730
      %12796 = vmatprep.subr.mxu0 0.0
      %12797 = vmatpush1.xpose.msra.mxu0 %v12732
      %12798 = vmatprep.subr.mxu0 0.0
      %12799 = vmatpush1.xpose.msra.mxu0 %v12734
      %12800 = vmatprep.subr.mxu0 0.0
      %12801 = vmatpush1.xpose.msra.mxu0 %v12736
      %12802 = vmatprep.subr.mxu0 0.0
      %12803 = vmatpush1.xpose.msra.mxu0 %v12738
      %12804 = vmatprep.subr.mxu0 0.0
      %12805 = vmatpush1.xpose.msra.mxu0 %v12740
      %12806 = vmatprep.subr.mxu0 0.0
      %12807 = vmatpush1.xpose.msra.mxu0 %v12742
      %12808 = vmatprep.subr.mxu0 0.0
      %12809 = vmatpush1.xpose.msra.mxu0 %v12744
      %12810 = vmatprep.subr.mxu0 0.0
      %12811 = vmatpush1.xpose.msra.mxu0 %v12746
      %12812 = vmatprep.subr.mxu0 0.0
      %12813 = vmatpush1.xpose.msra.mxu0 %v12748
      %12814 = vmatprep.subr.mxu0 0.0
      %12815 = vmatpush1.xpose.msra.mxu0 %v12750
      %12816 = vmatprep.subr.mxu0 0.0
      %12817 = vmatpush1.xpose.msra.mxu0 %v12752
      %12818 = vmatprep.subr.mxu0 0.0
      %12819 = vmatpush1.xpose.msra.mxu0 %v12754
      %12820 = vmatprep.subr.mxu0 0.0
      %12821 = vmatpush1.xpose.msra.mxu0 %v12756
      %12822 = vmatprep.subr.mxu0 0.0
      %12823 = vmatpush1.xpose.msra.mxu0 %v12758
      %12824 = vmatprep.subr.mxu0 0.0
      %12825 = vmatpush1.xpose.msra.mxu0 %v12760
      %12826 = vmatprep.subr.mxu0 0.0
      %12827 = vmatpush1.xpose.msra.mxu0 %v12762
      %12828 = vmatprep.subr.mxu0 0.0
      %12829 = vmatpush1.xpose.msra.mxu0 %v12764
      %12830 = vmatprep.subr.mxu0 0.0
      %12831 = vmatpush1.xpose.msra.mxu0 %v12766
      %12832 = vmatprep.subr.mxu0 0.0
      %12833 = vmatpush1.xpose.msra.mxu0 %v12768
      %12834 = vmatprep.subr.mxu0 0.0
      %12835 = vmatpush1.xpose.msra.mxu0 %v12770
      %12836 = vmatprep.subr.mxu0 0.0
      %12837 = vmatpush1.xpose.msra.mxu0 %v12772
      %12838 = vmatprep.subr.mxu0 0.0
      %12839 = vmatpush1.xpose.msra.mxu0 %v12774
      %12840 = vmatprep.subr.mxu0 0.0
      %12841 = vmatpush1.xpose.msra.mxu0 %v12776
      %12842 = vmatprep.subr.mxu0 0.0
      %12843 = vmatpush1.xpose.msra.mxu0 %v12778
      %12844 = vmatprep.mubr.f32.mxu0 0.0
      %12845 = vmatmul.mubr.f32.gmra.mrb[0].mxu0 %v12714
      %v12846 = vpop.f32.mrb[0].mxu0
      %v12847 = vadd.f32 %v12647, %v12846
      %v12848 = vpop.f32.mrb[0].mxu0
      %v12849 = vadd.f32 %v12647, %v12848
      %12850 = vdwg.mxu0
      %v12853 = vcombine.low %v12847, %v12849
      %s12855 = scalar_lea.vmem %s386, 24
      %12856 = vst [vmem:[%s12855] sm:$0x77] %v12853
      %p12857 = scmp.lt.s32.totalorder %s22, 1
      %s12858 = scalar_select %p12857, %s22, 1
      %s12859 = smul.addr %s12858, 8
      %s12860 = smul.addr %s12859, 4
      %s12861 = scalar_lea.vmem %s11, %s12860
      // Predicated region
      $region65: #{decoder_forward.1} parent=63 // pred_check
        %p12862 = pneg %p276
      $region66: #{decoder_forward.1} parent=63 // pred_check_branch
        %12864 = sbr.rel (%p12862) target = $region68
      $region67: #{decoder_forward.1} parent=63 // pred_region
        _
      $region68: #{decoder_forward.1} parent=63 // pred_fallthru
        _
    $region64: #{decoder_forward.1} parent=5 // pred_fallthru
      _
    %p12865 = scmp.le.s32.totalorder 2, %s17
    // Predicated region
    $region69: #{decoder_forward.1} parent=5 // pred_check
      %p12866 = pneg %p12865
    $region70: #{decoder_forward.1} parent=5 // pred_check_branch
      %12868 = sbr.rel (%p12866) target = $region72
    $region71: #{decoder_forward.1} parent=5 // pred_region
      %s12869 = ssub.s32 %s17, 2
      // Predicated region
      $region73: #{decoder_forward.1} parent=71 // pred_check
        %p12870 = pneg %p282
      $region74: #{decoder_forward.1} parent=71 // pred_check_branch
        %12872 = sbr.rel (%p12870) target = $region76
      $region75: #{decoder_forward.1} parent=71 // pred_region
        %p12873 = scmp.lt.s32.totalorder %s23, 1
        %s12874 = scalar_select %p12873, %s23, 1
        %s12875 = smul.addr %s12874, 8
        %s12876 = smul.addr %s12875, 4
        %s12877 = scalar_lea.vmem %s11, %s12876
      $region76: #{decoder_forward.1} parent=71 // pred_fallthru
        _
    $region72: #{decoder_forward.1} parent=5 // pred_fallthru
      _
  $region6: #{decoder_forward.1} parent=0 // loop_footer
    %s21 = sadd.s32 1, %s17
  $region7: #{decoder_forward.1} parent=0 // loop_footer_branch
    %16 = sbr.rel target = $region3
  $region8: #{decoder_forward.1} parent=0 // loop_exit
    _

</llo_original>
